<compile_context>
chip_gen: v6e
topology: v6e:2x2x1
jax: 0.10.0
libtpu: 0.0.40
codegen_flags: <defaults>
</compile_context>

<pallas_src>
import functools
import math

import jax
import jax.numpy as jnp
from jax.experimental import pallas as pl
from jax.experimental.pallas import tpu as pltpu


def _mha_kernel(x_ref, w_qkv_ref, b_qkv_ref, wo_ref, bo_ref, o_ref, attn_scratch,
                *, batch_tile: int, seq_len: int, num_heads_p: int, head_dim: int):
    bt, S, Hp, D = batch_tile, seq_len, num_heads_p, head_dim
    Ep = Hp * D

    x = x_ref[...]                                           # (bt*S, Ep) bf16

    # --- fused Q/K/V projection: one MXU matmul, f32 accumulation ---
    qkv = jnp.dot(x, w_qkv_ref[...],
                  preferred_element_type=jnp.float32) + b_qkv_ref[...]
    q = qkv[:, :Ep]              # 1/sqrt(head_dim) already folded into Wq / bq
    k = qkv[:, Ep:2 * Ep]
    v = qkv[:, 2 * Ep:]

    # --- per-batch-element scaled-dot-product attention (full, non-causal) ---
    # bt is small and static -> trace-time loop; padded (all-zero) heads give
    # scores == 0 -> uniform softmax over zero V -> exact zero contribution.
    for b in range(bt):
        r0 = b * S
        qb = q[r0:r0 + S, :].reshape(S, Hp, D)
        kb = k[r0:r0 + S, :].reshape(S, Hp, D)
        vb = v[r0:r0 + S, :].reshape(S, Hp, D)

        scores = jnp.einsum('shd,thd->hst', qb, kb,
                            preferred_element_type=jnp.float32)   # (Hp, S, S) f32
        m = jnp.max(scores, axis=-1, keepdims=True)
        e = jnp.exp(scores - m)
        p = e * pl.reciprocal(jnp.sum(e, axis=-1, keepdims=True), approx=True)

        # dropout p=0.0 => identity in this config (nonzero training dropout
        # would use pltpu.prng_seed + pltpu.stateful_bernoulli here).
        a = jnp.einsum('hst,thd->shd', p, vb,
                       preferred_element_type=jnp.float32)        # (S, Hp, D)
        attn_scratch[r0:r0 + S, :] = a.reshape(S, Ep)

    # --- output projection on the full (bt*S, Ep) block ---
    attn = attn_scratch[...].astype(x.dtype)                 # bf16 for the MXU
    out = jnp.dot(attn, wo_ref[...],
                  preferred_element_type=jnp.float32) + bo_ref[...]
    o_ref[...] = out.astype(o_ref.dtype)


def _pad2d(a, rows, cols):
    return jnp.pad(a, ((0, rows - a.shape[0]), (0, cols - a.shape[1])))


def _pick_batch_tile(batch: int, seq: int, max_rows: int = 256) -> int:
    """Largest divisor of `batch` whose row block stays <= max_rows.

    Folds batch into the matmul M dimension (fewer, fatter grid steps).  For
    real batch sizes this still leaves several grid steps, which the "parallel"
    grid axis spreads across v7x's two TensorCores.
    """
    bt = 1
    for cand in range(1, batch + 1):
        if batch % cand == 0 and cand * seq <= max_rows:
            bt = cand
    return bt


def multi_head_attention(x, params, *, num_heads: int):
    """x: (B, S, E) float32; params: (E, E) weights (stored as (in, out)) and (1, E) biases."""
    B, S, E = x.shape
    D = E // num_heads
    assert D * num_heads == E

    # Pad the embedding so the lane dim is a multiple of 128 AND of head_dim.
    lane_mult = math.lcm(128, D)
    Ep = ((E + lane_mult - 1) // lane_mult) * lane_mult
    Hp = Ep // D
    scale = 1.0 / math.sqrt(D)

    # --- one-time parameter prep (in real use, pre-pack outside the hot path) ---
    w_qkv = jnp.concatenate(
        [_pad2d(params["wq"] * scale, Ep, Ep),
         _pad2d(params["wk"], Ep, Ep),
         _pad2d(params["wv"], Ep, Ep)], axis=1).astype(jnp.bfloat16)      # (Ep, 3Ep)
    b_qkv = jnp.concatenate(
        [_pad2d(params["bq"] * scale, 1, Ep),
         _pad2d(params["bk"], 1, Ep),
         _pad2d(params["bv"], 1, Ep)], axis=1).astype(jnp.float32)        # (1, 3Ep)
    wo = _pad2d(params["wo"], Ep, Ep).astype(jnp.bfloat16)                # (Ep, Ep)
    bo = _pad2d(params["bo"], 1, Ep).astype(jnp.float32)                  # (1, Ep)

    xp = jnp.pad(x, ((0, 0), (0, 0), (0, Ep - E)))
    xp = xp.reshape(B * S, Ep).astype(jnp.bfloat16)                       # (B*S, Ep)

    bt = _pick_batch_tile(B, S)
    rows = bt * S
    grid = (B // bt,)

    kernel = functools.partial(_mha_kernel, batch_tile=bt, seq_len=S,
                               num_heads_p=Hp, head_dim=D)

    out = pl.pallas_call(
        kernel,
        out_shape=jax.ShapeDtypeStruct((B * S, Ep), jnp.float32),
        grid_spec=pltpu.PrefetchScalarGridSpec(
            num_scalar_prefetch=0,
            grid=grid,
            in_specs=[
                pl.BlockSpec((rows, Ep), lambda i: (i, 0)),      # x row-tile
                pl.BlockSpec((Ep, 3 * Ep), lambda i: (0, 0)),    # fused W_qkv
                pl.BlockSpec((1, 3 * Ep), lambda i: (0, 0)),     # fused b_qkv
                pl.BlockSpec((Ep, Ep), lambda i: (0, 0)),        # W_out
                pl.BlockSpec((1, Ep), lambda i: (0, 0)),         # b_out
            ],
            out_specs=pl.BlockSpec((rows, Ep), lambda i: (i, 0)),
            scratch_shapes=[pltpu.VMEM((rows, Ep), jnp.float32)],
        ),
        compiler_params=pltpu.CompilerParams(
            dimension_semantics=("parallel",),
            vmem_limit_bytes=32 * 1024 * 1024),
    )(xp, w_qkv, b_qkv, wo, bo)

    return out.reshape(B, S, Ep)[:, :, :E]


def _reference_mha(x, params, *, num_heads: int):
    """Plain-JAX f32 reference mirroring the PyTorch forward."""
    B, S, E = x.shape
    D = E // num_heads
    q = x @ params["wq"] + params["bq"]
    k = x @ params["wk"] + params["bk"]
    v = x @ params["wv"] + params["bv"]
    q = q.reshape(B, S, num_heads, D).transpose(0, 2, 1, 3)
    k = k.reshape(B, S, num_heads, D).transpose(0, 2, 1, 3)
    v = v.reshape(B, S, num_heads, D).transpose(0, 2, 1, 3)
    w = (q @ jnp.swapaxes(k, -1, -2)) / (D ** 0.5)
    w = jax.nn.softmax(w, axis=-1)
    a = w @ v
    a = a.transpose(0, 2, 1, 3).reshape(B, S, E)
    return a @ params["wo"] + params["bo"]


if __name__ == "__main__":
    # Small shapes consistent with the module: embed_dim divisible by 12 heads.
    B, S, E, H = 2, 8, 96, 12

    key = jax.random.PRNGKey(0)
    keys = jax.random.split(key, 9)
    wscale = 1.0 / (E ** 0.5)

    params = {
        "wq": jax.random.normal(keys[0], (E, E), jnp.float32) * wscale,
        "bq": jax.random.normal(keys[1], (1, E), jnp.float32) * 0.01,
        "wk": jax.random.normal(keys[2], (E, E), jnp.float32) * wscale,
        "bk": jax.random.normal(keys[3], (1, E), jnp.float32) * 0.01,
        "wv": jax.random.normal(keys[4], (E, E), jnp.float32) * wscale,
        "bv": jax.random.normal(keys[5], (1, E), jnp.float32) * 0.01,
        "wo": jax.random.normal(keys[6], (E, E), jnp.float32) * wscale,
        "bo": jax.random.normal(keys[7], (1, E), jnp.float32) * 0.01,
    }
    x = jax.random.normal(keys[8], (B, S, E), jnp.float32)

    out = multi_head_attention(x, params, num_heads=H)
    out = jax.block_until_ready(out)
    assert out.shape == (B, S, E)

    # Primary check: compare against a reference fed the same bf16-rounded
    # x / weights (the kernel quantizes those for the MXU, f32 accumulation).
    rt = lambda a: a.astype(jnp.bfloat16).astype(jnp.float32)
    q_params = dict(params)
    for name in ("wq", "wk", "wv", "wo"):
        q_params[name] = rt(params[name])
    ref_q = _reference_mha(rt(x), q_params, num_heads=H)
    assert jnp.allclose(out, ref_q, atol=2e-2, rtol=2e-2), "mismatch vs bf16-quantized reference"

    # Coarse sanity check against the full-f32 reference (catches algorithmic bugs).
    ref_f = _reference_mha(x, params, num_heads=H)
    assert jnp.allclose(out, ref_f, atol=1e-1, rtol=1e-1), "mismatch vs f32 reference"

    print("KERNEL_OK")
</pallas_src>

<mosaic_0001>
module attributes {stable_mosaic.version = 11 : i64} {
  func.func @_mha_kernel(%arg0: i32, %arg1: memref<16x128xbf16, #tpu.memory_space<vmem>>, %arg2: memref<128x384xbf16, #tpu.memory_space<vmem>>, %arg3: memref<1x384xf32, #tpu.memory_space<vmem>>, %arg4: memref<128x128xbf16, #tpu.memory_space<vmem>>, %arg5: memref<1x128xf32, #tpu.memory_space<vmem>>, %arg6: memref<16x128xf32, #tpu.memory_space<vmem>>, %arg7: memref<16x128xf32, #tpu.memory_space<vmem>>) attributes {dimension_semantics = [#tpu.dimension_semantics<parallel>], iteration_bounds = array<i64: 1>, scalar_prefetch = 0 : i64, scratch_operands = 1 : i64, tpu.core_type = #tpu.core_type<tc>, window_params = [{transform_indices = @transform_0, window_bounds = array<i64: 16, 128>}, {pipeline_mode = #tpu.pipeline_mode<synchronous>, transform_indices = @transform_1, window_bounds = array<i64: 128, 384>}, {pipeline_mode = #tpu.pipeline_mode<synchronous>, transform_indices = @transform_2, window_bounds = array<i64: 1, 384>}, {pipeline_mode = #tpu.pipeline_mode<synchronous>, transform_indices = @transform_3, window_bounds = array<i64: 128, 128>}, {pipeline_mode = #tpu.pipeline_mode<synchronous>, transform_indices = @transform_4, window_bounds = array<i64: 1, 128>}, {transform_indices = @transform_5, window_bounds = array<i64: 16, 128>}]} {
    %c0 = arith.constant 0 : index
    %c0_0 = arith.constant 0 : index
    %0 = vector.load %arg1[%c0, %c0_0] : memref<16x128xbf16, #tpu.memory_space<vmem>>, vector<16x128xbf16>
    %c0_1 = arith.constant 0 : index
    %c0_2 = arith.constant 0 : index
    %1 = vector.load %arg2[%c0_1, %c0_2] : memref<128x384xbf16, #tpu.memory_space<vmem>>, vector<128x384xbf16>
    %cst = arith.constant dense<0.000000e+00> : vector<16x384xf32>
    %2 = tpu.matmul %0, %1, %cst {dimension_numbers = #tpu.dot_dimension_numbers<[1], [0], [0], [1], [0, 0, 1, 1], [], []>} : vector<16x128xbf16>, vector<128x384xbf16>, vector<16x384xf32> -> vector<16x384xf32>
    %c0_3 = arith.constant 0 : index
    %c0_4 = arith.constant 0 : index
    %3 = vector.load %arg3[%c0_3, %c0_4] : memref<1x384xf32, #tpu.memory_space<vmem>>, vector<1x384xf32>
    %4 = vector.broadcast %3 : vector<1x384xf32> to vector<16x384xf32>
    %5 = arith.addf %2, %4 : vector<16x384xf32>
    %6 = vector.extract_strided_slice %5 {offsets = [0, 0], sizes = [16, 128], strides = [1, 1]} : vector<16x384xf32> to vector<16x128xf32>
    %7 = vector.extract_strided_slice %5 {offsets = [0, 128], sizes = [16, 128], strides = [1, 1]} : vector<16x384xf32> to vector<16x128xf32>
    %8 = vector.extract_strided_slice %5 {offsets = [0, 256], sizes = [16, 128], strides = [1, 1]} : vector<16x384xf32> to vector<16x128xf32>
    %9 = vector.extract_strided_slice %6 {offsets = [0, 0], sizes = [8, 128], strides = [1, 1]} : vector<16x128xf32> to vector<8x128xf32>
    %10 = vector.shape_cast %9 : vector<8x128xf32> to vector<8x16x8xf32>
    %11 = vector.extract_strided_slice %7 {offsets = [0, 0], sizes = [8, 128], strides = [1, 1]} : vector<16x128xf32> to vector<8x128xf32>
    %12 = vector.shape_cast %11 : vector<8x128xf32> to vector<8x16x8xf32>
    %13 = vector.extract_strided_slice %8 {offsets = [0, 0], sizes = [8, 128], strides = [1, 1]} : vector<16x128xf32> to vector<8x128xf32>
    %14 = vector.shape_cast %13 : vector<8x128xf32> to vector<8x16x8xf32>
    "tpu.trace_start"() <{level = 10 : i32, message = "shd,thd->hst"}> : () -> ()
    %cst_5 = arith.constant dense<0.000000e+00> : vector<16x8x8xf32>
    %15 = tpu.matmul %10, %12, %cst_5 {dimension_numbers = #tpu.dot_dimension_numbers<[2], [2], [0], [0], [0, 1, 0, 0, 1, 0], [1], [1]>} : vector<8x16x8xf32>, vector<8x16x8xf32>, vector<16x8x8xf32> -> vector<16x8x8xf32>
    "tpu.trace_stop"() : () -> ()
    %cst_6 = arith.constant dense<0xFF800000> : vector<16x8xf32>
    %16 = vector.multi_reduction <maximumf>, %15, %cst_6 [2] : vector<16x8x8xf32> to vector<16x8xf32>
    %17 = vector.shape_cast %16 : vector<16x8xf32> to vector<16x8x1xf32>
    %18 = vector.broadcast %17 : vector<16x8x1xf32> to vector<16x8x8xf32>
    %19 = arith.subf %15, %18 : vector<16x8x8xf32>
    %20 = math.exp %19 : vector<16x8x8xf32>
    %cst_7 = arith.constant dense<0.000000e+00> : vector<16x8xf32>
    %21 = vector.multi_reduction <add>, %20, %cst_7 [2] : vector<16x8x8xf32> to vector<16x8xf32>
    %22 = vector.shape_cast %21 : vector<16x8xf32> to vector<16x8x1xf32>
    %23 = tpu.reciprocal %22 {approx = true} : vector<16x8x1xf32> -> vector<16x8x1xf32>
    %24 = vector.broadcast %23 : vector<16x8x1xf32> to vector<16x8x8xf32>
    %25 = arith.mulf %20, %24 : vector<16x8x8xf32>
    "tpu.trace_start"() <{level = 10 : i32, message = "hst,thd->shd"}> : () -> ()
    %cst_8 = arith.constant dense<0.000000e+00> : vector<16x8x8xf32>
    %26 = tpu.matmul %14, %25, %cst_8 {dimension_numbers = #tpu.dot_dimension_numbers<[0], [2], [2], [1], [0, 1, 0, 2, 1, 1], [1], [0]>} : vector<8x16x8xf32>, vector<16x8x8xf32>, vector<16x8x8xf32> -> vector<16x8x8xf32>
    %27 = tpu.transpose %26, [2, 0, 1] : vector<16x8x8xf32> -> vector<8x16x8xf32>
    "tpu.trace_stop"() : () -> ()
    %28 = vector.shape_cast %27 : vector<8x16x8xf32> to vector<8x128xf32>
    %c0_9 = arith.constant 0 : index
    %c0_10 = arith.constant 0 : index
    %29 = vector.load %arg7[%c0_9, %c0_10] : memref<16x128xf32, #tpu.memory_space<vmem>>, vector<8x128xf32>
    tpu.vector_store %arg7[%c0_9, %c0_10], %28 {strides = array<i32>} : memref<16x128xf32, #tpu.memory_space<vmem>>, vector<8x128xf32>,
    %30 = vector.extract_strided_slice %6 {offsets = [8, 0], sizes = [8, 128], strides = [1, 1]} : vector<16x128xf32> to vector<8x128xf32>
    %31 = vector.shape_cast %30 : vector<8x128xf32> to vector<8x16x8xf32>
    %32 = vector.extract_strided_slice %7 {offsets = [8, 0], sizes = [8, 128], strides = [1, 1]} : vector<16x128xf32> to vector<8x128xf32>
    %33 = vector.shape_cast %32 : vector<8x128xf32> to vector<8x16x8xf32>
    %34 = vector.extract_strided_slice %8 {offsets = [8, 0], sizes = [8, 128], strides = [1, 1]} : vector<16x128xf32> to vector<8x128xf32>
    %35 = vector.shape_cast %34 : vector<8x128xf32> to vector<8x16x8xf32>
    "tpu.trace_start"() <{level = 10 : i32, message = "shd,thd->hst"}> : () -> ()
    %cst_11 = arith.constant dense<0.000000e+00> : vector<16x8x8xf32>
    %36 = tpu.matmul %31, %33, %cst_11 {dimension_numbers = #tpu.dot_dimension_numbers<[2], [2], [0], [0], [0, 1, 0, 0, 1, 0], [1], [1]>} : vector<8x16x8xf32>, vector<8x16x8xf32>, vector<16x8x8xf32> -> vector<16x8x8xf32>
    "tpu.trace_stop"() : () -> ()
    %cst_12 = arith.constant dense<0xFF800000> : vector<16x8xf32>
    %37 = vector.multi_reduction <maximumf>, %36, %cst_12 [2] : vector<16x8x8xf32> to vector<16x8xf32>
    %38 = vector.shape_cast %37 : vector<16x8xf32> to vector<16x8x1xf32>
    %39 = vector.broadcast %38 : vector<16x8x1xf32> to vector<16x8x8xf32>
    %40 = arith.subf %36, %39 : vector<16x8x8xf32>
    %41 = math.exp %40 : vector<16x8x8xf32>
    %cst_13 = arith.constant dense<0.000000e+00> : vector<16x8xf32>
    %42 = vector.multi_reduction <add>, %41, %cst_13 [2] : vector<16x8x8xf32> to vector<16x8xf32>
    %43 = vector.shape_cast %42 : vector<16x8xf32> to vector<16x8x1xf32>
    %44 = tpu.reciprocal %43 {approx = true} : vector<16x8x1xf32> -> vector<16x8x1xf32>
    %45 = vector.broadcast %44 : vector<16x8x1xf32> to vector<16x8x8xf32>
    %46 = arith.mulf %41, %45 : vector<16x8x8xf32>
    "tpu.trace_start"() <{level = 10 : i32, message = "hst,thd->shd"}> : () -> ()
    %cst_14 = arith.constant dense<0.000000e+00> : vector<16x8x8xf32>
    %47 = tpu.matmul %35, %46, %cst_14 {dimension_numbers = #tpu.dot_dimension_numbers<[0], [2], [2], [1], [0, 1, 0, 2, 1, 1], [1], [0]>} : vector<8x16x8xf32>, vector<16x8x8xf32>, vector<16x8x8xf32> -> vector<16x8x8xf32>
    %48 = tpu.transpose %47, [2, 0, 1] : vector<16x8x8xf32> -> vector<8x16x8xf32>
    "tpu.trace_stop"() : () -> ()
    %49 = vector.shape_cast %48 : vector<8x16x8xf32> to vector<8x128xf32>
    %c8 = arith.constant 8 : index
    %c0_15 = arith.constant 0 : index
    %50 = vector.load %arg7[%c8, %c0_15] : memref<16x128xf32, #tpu.memory_space<vmem>>, vector<8x128xf32>
    tpu.vector_store %arg7[%c8, %c0_15], %49 {strides = array<i32>} : memref<16x128xf32, #tpu.memory_space<vmem>>, vector<8x128xf32>,
    %c0_16 = arith.constant 0 : index
    %c0_17 = arith.constant 0 : index
    %51 = vector.load %arg7[%c0_16, %c0_17] : memref<16x128xf32, #tpu.memory_space<vmem>>, vector<16x128xf32>
    %52 = arith.truncf %51 : vector<16x128xf32> to vector<16x128xbf16>
    %c0_18 = arith.constant 0 : index
    %c0_19 = arith.constant 0 : index
    %53 = vector.load %arg4[%c0_18, %c0_19] : memref<128x128xbf16, #tpu.memory_space<vmem>>, vector<128x128xbf16>
    %cst_20 = arith.constant dense<0.000000e+00> : vector<16x128xf32>
    %54 = tpu.matmul %52, %53, %cst_20 {dimension_numbers = #tpu.dot_dimension_numbers<[1], [0], [0], [1], [0, 0, 1, 1], [], []>} : vector<16x128xbf16>, vector<128x128xbf16>, vector<16x128xf32> -> vector<16x128xf32>
    %c0_21 = arith.constant 0 : index
    %c0_22 = arith.constant 0 : index
    %55 = vector.load %arg5[%c0_21, %c0_22] : memref<1x128xf32, #tpu.memory_space<vmem>>, vector<1x128xf32>
    %56 = vector.broadcast %55 : vector<1x128xf32> to vector<16x128xf32>
    %57 = arith.addf %54, %56 : vector<16x128xf32>
    %c0_23 = arith.constant 0 : index
    %c0_24 = arith.constant 0 : index
    %58 = vector.load %arg6[%c0_23, %c0_24] : memref<16x128xf32, #tpu.memory_space<vmem>>, vector<16x128xf32>
    tpu.vector_store %arg6[%c0_23, %c0_24], %57 {strides = array<i32>} : memref<16x128xf32, #tpu.memory_space<vmem>>, vector<16x128xf32>,
    return
  }
  func.func @transform_0(%arg0: i32) -> (i32, i32) {
    %c0_i32 = arith.constant 0 : i32
    %c0_i32_0 = arith.constant 0 : i32
    return %arg0, %c0_i32 : i32, i32
  }
  func.func @transform_1(%arg0: i32) -> (i32, i32) {
    %c0_i32 = arith.constant 0 : i32
    %c0_i32_0 = arith.constant 0 : i32
    %c0_i32_1 = arith.constant 0 : i32
    return %c0_i32, %c0_i32_0 : i32, i32
  }
  func.func @transform_2(%arg0: i32) -> (i32, i32) {
    %c0_i32 = arith.constant 0 : i32
    %c0_i32_0 = arith.constant 0 : i32
    %c0_i32_1 = arith.constant 0 : i32
    return %c0_i32, %c0_i32_0 : i32, i32
  }
  func.func @transform_3(%arg0: i32) -> (i32, i32) {
    %c0_i32 = arith.constant 0 : i32
    %c0_i32_0 = arith.constant 0 : i32
    %c0_i32_1 = arith.constant 0 : i32
    return %c0_i32, %c0_i32_0 : i32, i32
  }
  func.func @transform_4(%arg0: i32) -> (i32, i32) {
    %c0_i32 = arith.constant 0 : i32
    %c0_i32_0 = arith.constant 0 : i32
    %c0_i32_1 = arith.constant 0 : i32
    return %c0_i32, %c0_i32_0 : i32, i32
  }
  func.func @transform_5(%arg0: i32) -> (i32, i32) {
    %c0_i32 = arith.constant 0 : i32
    %c0_i32_0 = arith.constant 0 : i32
    return %arg0, %c0_i32 : i32, i32
  }
}

</mosaic_0001>

<llo_original>
// kernel: tpu_custom_call.1
$region0: #{tpu_custom_call.1}
  #allocation0 [shape = 'u32[]', space=smem, size = 0x4, offset = 0x4, fixed_abs, tag = 'smem constant byte address 0x4 - core index']
  #allocation1 [shape = 'u32[144,128]{1,0:T(1,128)}', space=vmem, size = 0x12000, scoped, tag = 'internal scratch']
  #allocation2 [shape = 'f32[16,128]{1,0:T(8,128)}', space=vmem, size = 0x2000, scoped, tag = 'scratch operand']
  %s0 = inlined_call_operand.hbm [shape: bf16[16,128], index: 0, kind: input, shape index: {}]
  %s1 = inlined_call_operand.hbm [shape: bf16[128,384], index: 1, kind: input, shape index: {}]
  %s2 = inlined_call_operand.vmem [shape: f32[1,384], index: 2, kind: input, shape index: {}]
  %s3 = inlined_call_operand.hbm [shape: bf16[128,128], index: 3, kind: input, shape index: {}]
  %s4 = inlined_call_operand.vmem [shape: f32[1,128], index: 4, kind: input, shape index: {}]
  %s5 = inlined_call_operand.hbm [shape: f32[16,128], index: 5, kind: output, shape index: {}]
  %s6 = sld [smem:[#allocation0]]
  $region42: #{tpu_custom_call.1} parent=0
    _
  %s8 = ssub.s32 1, %s6
  %s9 = scalar_select 0, %s8, %s6
  $region1: #{tpu_custom_call.1} parent=0
    #allocation3 [shape = 'u8[4096]{0}', space=vmem, size = 0x1000, scoped, tag = 'input window, operand 0, single buffered']
    #allocation4 [shape = 's32[1]{0}', space=sflag, size = 0x4, scoped, tag = 'scoped memory for tpu_custom_call.1']
    #allocation5 [shape = 's32[1]{0}', space=sflag, size = 0x4, scoped, tag = 'scoped memory for tpu_custom_call.1']
    #allocation6 [shape = 'u8[98304]{0}', space=vmem, size = 0x18000, scoped, tag = 'input window, operand 1, single buffered']
    #allocation7 [shape = 's32[1]{0}', space=sflag, size = 0x4, scoped, tag = 'scoped memory for tpu_custom_call.1']
    #allocation8 [shape = 'u8[32768]{0}', space=vmem, size = 0x8000, scoped, tag = 'input window, operand 3, single buffered']
    #allocation9 [shape = 'u8[8192]{0}', space=vmem, size = 0x2000, scoped, tag = 'output window, operand 0, single buffered']
    %10 = vsyncpa [#allocation4], 0
    %11 = vsyncpa [#allocation7], 0
    %12 = vsyncpa [#allocation5], 0
    // Predicated region
    $region2: #{tpu_custom_call.1} parent=1 // pred_check
      _
    $region3: #{tpu_custom_call.1} parent=1 // pred_check_branch
      %14 = sbr.rel (0) target = $region5
    $region4: #{tpu_custom_call.1} parent=1 // pred_region
      %s16 = ssub.s32 128, 128
      %17 = vsyncadd [#allocation4], %s16
      %s18 = sshll.u32 [#allocation3], 4
      %s19 = int_to_ptr.vmem [resolvable:$true] %s18
      %24 = dma.hbm_to_vmem [thread:$0]  %s0, 128, %s19, [#allocation4], 64, 64, 4
    $region5: #{tpu_custom_call.1} parent=1 // pred_fallthru
      _
    // Predicated region
    $region6: #{tpu_custom_call.1} parent=1 // pred_check
      _
    $region7: #{tpu_custom_call.1} parent=1 // pred_check_branch
      %26 = sbr.rel (0) target = $region9
    $region8: #{tpu_custom_call.1} parent=1 // pred_region
      %s28 = ssub.s32 3072, 3072
      %29 = vsyncadd [#allocation7], %s28
      %s30 = sshll.u32 [#allocation6], 4
      %s31 = int_to_ptr.vmem [resolvable:$true] %s30
      %36 = dma.hbm_to_vmem [thread:$0]  %s1, 3072, %s31, [#allocation7], 192, 192, 12
    $region9: #{tpu_custom_call.1} parent=1 // pred_fallthru
      _
    // Predicated region
    $region10: #{tpu_custom_call.1} parent=1 // pred_check
      _
    $region11: #{tpu_custom_call.1} parent=1 // pred_check_branch
      %38 = sbr.rel (0) target = $region13
    $region12: #{tpu_custom_call.1} parent=1 // pred_region
      _
    $region13: #{tpu_custom_call.1} parent=1 // pred_fallthru
      _
    // Predicated region
    $region14: #{tpu_custom_call.1} parent=1 // pred_check
      _
    $region15: #{tpu_custom_call.1} parent=1 // pred_check_branch
      %40 = sbr.rel (0) target = $region17
    $region16: #{tpu_custom_call.1} parent=1 // pred_region
      %s42 = ssub.s32 1024, 1024
      %43 = vsyncadd [#allocation7], %s42
      %s44 = sshll.u32 [#allocation8], 4
      %s45 = int_to_ptr.vmem [resolvable:$true] %s44
      %50 = dma.hbm_to_vmem [thread:$0]  %s3, 1024, %s45, [#allocation7], 64, 64, 4
    $region17: #{tpu_custom_call.1} parent=1 // pred_fallthru
      _
    // Predicated region
    $region18: #{tpu_custom_call.1} parent=1 // pred_check
      _
    $region19: #{tpu_custom_call.1} parent=1 // pred_check_branch
      %52 = sbr.rel (0) target = $region21
    $region20: #{tpu_custom_call.1} parent=1 // pred_region
      _
    $region21: #{tpu_custom_call.1} parent=1 // pred_fallthru
      _
    // Predicated region
    $region22: #{tpu_custom_call.1} parent=1 // pred_check
      _
    $region23: #{tpu_custom_call.1} parent=1 // pred_check_branch
      %54 = sbr.rel (0) target = $region25
    $region24: #{tpu_custom_call.1} parent=1 // pred_region
      %55 = dma.done [#allocation4], 128
    $region25: #{tpu_custom_call.1} parent=1 // pred_fallthru
      _
    // Predicated region
    $region26: #{tpu_custom_call.1} parent=1 // pred_check
      _
    $region27: #{tpu_custom_call.1} parent=1 // pred_check_branch
      %57 = sbr.rel (0) target = $region29
    $region28: #{tpu_custom_call.1} parent=1 // pred_region
      %58 = dma.done [#allocation7], 3072
    $region29: #{tpu_custom_call.1} parent=1 // pred_fallthru
      _
    // Predicated region
    $region30: #{tpu_custom_call.1} parent=1 // pred_check
      _
    $region31: #{tpu_custom_call.1} parent=1 // pred_check_branch
      %60 = sbr.rel (0) target = $region33
    $region32: #{tpu_custom_call.1} parent=1 // pred_region
      %61 = dma.done [#allocation7], 1024
    $region33: #{tpu_custom_call.1} parent=1 // pred_fallthru
      _
    %v63 = vld [vmem:[#allocation3] sm:$0xf]
    %v64 = vld [vmem:[#allocation3 + $0x4] sm:$0xf]
    %v65 = vld [vmem:[#allocation6] sm:$0xff]
    %v66 = vld [vmem:[#allocation6 + $0x8] sm:$0xf]
    %v67 = vld [vmem:[#allocation6 + $0xc] sm:$0xff]
    %v68 = vld [vmem:[#allocation6 + $0x14] sm:$0xf]
    %v69 = vld [vmem:[#allocation6 + $0x18] sm:$0xff]
    %v70 = vld [vmem:[#allocation6 + $0x20] sm:$0xf]
    %v71 = vld [vmem:[#allocation6 + $0x24] sm:$0xff]
    %v72 = vld [vmem:[#allocation6 + $0x2c] sm:$0xf]
    %v73 = vld [vmem:[#allocation6 + $0x30] sm:$0xff]
    %v74 = vld [vmem:[#allocation6 + $0x38] sm:$0xf]
    %v75 = vld [vmem:[#allocation6 + $0x3c] sm:$0xff]
    %v76 = vld [vmem:[#allocation6 + $0x44] sm:$0xf]
    %v77 = vld [vmem:[#allocation6 + $0x48] sm:$0xff]
    %v78 = vld [vmem:[#allocation6 + $0x50] sm:$0xf]
    %v79 = vld [vmem:[#allocation6 + $0x54] sm:$0xff]
    %v80 = vld [vmem:[#allocation6 + $0x5c] sm:$0xf]
    %v81 = vld [vmem:[#allocation6 + $0x60] sm:$0xff]
    %v82 = vld [vmem:[#allocation6 + $0x68] sm:$0xf]
    %v83 = vld [vmem:[#allocation6 + $0x6c] sm:$0xff]
    %v84 = vld [vmem:[#allocation6 + $0x74] sm:$0xf]
    %v85 = vld [vmem:[#allocation6 + $0x78] sm:$0xff]
    %v86 = vld [vmem:[#allocation6 + $0x80] sm:$0xf]
    %v87 = vld [vmem:[#allocation6 + $0x84] sm:$0xff]
    %v88 = vld [vmem:[#allocation6 + $0x8c] sm:$0xf]
    %v89 = vld [vmem:[#allocation6 + $0x90] sm:$0xff]
    %v90 = vld [vmem:[#allocation6 + $0x98] sm:$0xf]
    %v91 = vld [vmem:[#allocation6 + $0x9c] sm:$0xff]
    %v92 = vld [vmem:[#allocation6 + $0xa4] sm:$0xf]
    %v93 = vld [vmem:[#allocation6 + $0xa8] sm:$0xff]
    %v94 = vld [vmem:[#allocation6 + $0xb0] sm:$0xf]
    %v95 = vld [vmem:[#allocation6 + $0xb4] sm:$0xff]
    %v96 = vld [vmem:[#allocation6 + $0xbc] sm:$0xf]
    %v97 = vld [vmem:[%s2] sm:$0x7]
    %v99 = vlaneseq
    %v100 = vshrl.u32 %v99, 7
    %v101 = vsub.s32 0, %v100
    %v102 = vrot.slane %v97, %v101
    %v103 = vlaneseq
    %v104 = vshrl.u32 %v103, 7
    %v105 = vsub.s32 1, %v104
    %v106 = vrot.slane %v97, %v105
    %v107 = vlaneseq
    %v108 = vshrl.u32 %v107, 7
    %v109 = vsub.s32 2, %v108
    %v110 = vrot.slane %v97, %v109
    %v116 = vunpack.c.l.b16 %v63
    %v117 = vunpack.c.l.b16 %v64
    %v118 = vpack.c.b16 %v117, %v116
    %v152 = vunpack.c.l.b16 %v65
    %v153 = vunpack.c.h.b16 %v65
    %v154 = vunpack.c.l.b16 %v66
    %v155 = vunpack.c.l.b16 %v67
    %v156 = vunpack.c.h.b16 %v67
    %v157 = vunpack.c.l.b16 %v68
    %v158 = vunpack.c.l.b16 %v69
    %v159 = vunpack.c.h.b16 %v69
    %v160 = vunpack.c.l.b16 %v70
    %v161 = vunpack.c.l.b16 %v71
    %v162 = vunpack.c.h.b16 %v71
    %v163 = vunpack.c.l.b16 %v72
    %v164 = vunpack.c.l.b16 %v73
    %v165 = vunpack.c.h.b16 %v73
    %v166 = vunpack.c.l.b16 %v74
    %v167 = vunpack.c.l.b16 %v75
    %v168 = vunpack.c.h.b16 %v75
    %v169 = vunpack.c.l.b16 %v76
    %v170 = vunpack.c.l.b16 %v77
    %v171 = vunpack.c.h.b16 %v77
    %v172 = vunpack.c.l.b16 %v78
    %v173 = vunpack.c.l.b16 %v79
    %v174 = vunpack.c.h.b16 %v79
    %v175 = vunpack.c.l.b16 %v80
    %v176 = vunpack.c.l.b16 %v81
    %v177 = vunpack.c.h.b16 %v81
    %v178 = vunpack.c.l.b16 %v82
    %v179 = vunpack.c.l.b16 %v83
    %v180 = vunpack.c.h.b16 %v83
    %v181 = vunpack.c.l.b16 %v84
    %v182 = vunpack.c.l.b16 %v85
    %v183 = vunpack.c.h.b16 %v85
    %v184 = vunpack.c.l.b16 %v86
    %v185 = vunpack.c.l.b16 %v87
    %v186 = vunpack.c.h.b16 %v87
    %v187 = vunpack.c.l.b16 %v88
    %v188 = vunpack.c.l.b16 %v89
    %v189 = vunpack.c.h.b16 %v89
    %v190 = vunpack.c.l.b16 %v90
    %v191 = vunpack.c.l.b16 %v91
    %v192 = vunpack.c.h.b16 %v91
    %v193 = vunpack.c.l.b16 %v92
    %v194 = vunpack.c.l.b16 %v93
    %v195 = vunpack.c.h.b16 %v93
    %v196 = vunpack.c.l.b16 %v94
    %v197 = vunpack.c.l.b16 %v95
    %v198 = vunpack.c.h.b16 %v95
    %v199 = vunpack.c.l.b16 %v96
    %v200 = vpack.c.b16 %v155, %v152
    %v201 = vpack.c.b16 %v156, %v153
    %v202 = vpack.c.b16 %v157, %v154
    %v203 = vpack.c.b16 %v161, %v158
    %v204 = vpack.c.b16 %v162, %v159
    %v205 = vpack.c.b16 %v163, %v160
    %v206 = vpack.c.b16 %v167, %v164
    %v207 = vpack.c.b16 %v168, %v165
    %v208 = vpack.c.b16 %v169, %v166
    %v209 = vpack.c.b16 %v173, %v170
    %v210 = vpack.c.b16 %v174, %v171
    %v211 = vpack.c.b16 %v175, %v172
    %v212 = vpack.c.b16 %v179, %v176
    %v213 = vpack.c.b16 %v180, %v177
    %v214 = vpack.c.b16 %v181, %v178
    %v215 = vpack.c.b16 %v185, %v182
    %v216 = vpack.c.b16 %v186, %v183
    %v217 = vpack.c.b16 %v187, %v184
    %v218 = vpack.c.b16 %v191, %v188
    %v219 = vpack.c.b16 %v192, %v189
    %v220 = vpack.c.b16 %v193, %v190
    %v221 = vpack.c.b16 %v197, %v194
    %v222 = vpack.c.b16 %v198, %v195
    %v223 = vpack.c.b16 %v199, %v196
    %248 = vmatprep.subr.bf16.mxu0 %v222
    %249 = vmatpush1.bf16.msra.mxu0 %v221
    %250 = vmatprep.subr.bf16.mxu0 %v219
    %251 = vmatpush1.bf16.msra.mxu0 %v218
    %252 = vmatprep.subr.bf16.mxu0 %v216
    %253 = vmatpush1.bf16.msra.mxu0 %v215
    %254 = vmatprep.subr.bf16.mxu0 %v213
    %255 = vmatpush1.bf16.msra.mxu0 %v212
    %256 = vmatprep.subr.bf16.mxu0 %v210
    %257 = vmatpush1.bf16.msra.mxu0 %v209
    %258 = vmatprep.subr.bf16.mxu0 %v207
    %259 = vmatpush1.bf16.msra.mxu0 %v206
    %260 = vmatprep.subr.bf16.mxu0 %v204
    %261 = vmatpush1.bf16.msra.mxu0 %v203
    %262 = vmatprep.subr.bf16.mxu0 %v201
    %263 = vmatpush1.bf16.msra.mxu0 %v200
    %264 = vmatprep.subr.bf16.mxu0 0
    %265 = vmatpush2.bf16.msra.mxu0 0
    %266 = vmatprep.subr.bf16.mxu0 0
    %267 = vmatpush2.bf16.msra.mxu0 0
    %268 = vmatprep.subr.bf16.mxu0 0
    %269 = vmatpush2.bf16.msra.mxu0 0
    %270 = vmatprep.subr.bf16.mxu0 0
    %271 = vmatpush2.bf16.msra.mxu0 0
    %272 = vmatprep.subr.bf16.mxu0 0
    %273 = vmatpush2.bf16.msra.mxu0 0
    %274 = vmatprep.subr.bf16.mxu0 0
    %275 = vmatpush2.bf16.msra.mxu0 0
    %276 = vmatprep.subr.bf16.mxu0 0
    %277 = vmatpush2.bf16.msra.mxu0 0
    %278 = vmatprep.subr.bf16.mxu0 0
    %279 = vmatpush2.bf16.msra.mxu0 0
    %280 = vmatprep.mubr.bf16.mxu0 0
    %281 = vmatmul.mubr.bf16.gmra.mxu0 %v118
    %v282 = vpop.f32.mrf.mxu0
    %v283 = vadd.f32 %v102, %v282
    %v284 = vpop.f32.mrf.mxu0
    %v285 = vadd.f32 %v106, %v284
    %v286 = vpop.f32.mrf.mxu0
    %v287 = vadd.f32 %v102, %v286
    %v288 = vpop.f32.mrf.mxu0
    %v289 = vadd.f32 %v106, %v288
    %290 = vdwg.mxu0
    %291 = vmatprep.subr.bf16.mxu0 0
    %292 = vmatpush1.bf16.msra.mxu0 %v223
    %293 = vmatprep.subr.bf16.mxu0 0
    %294 = vmatpush1.bf16.msra.mxu0 %v220
    %295 = vmatprep.subr.bf16.mxu0 0
    %296 = vmatpush1.bf16.msra.mxu0 %v217
    %297 = vmatprep.subr.bf16.mxu0 0
    %298 = vmatpush1.bf16.msra.mxu0 %v214
    %299 = vmatprep.subr.bf16.mxu0 0
    %300 = vmatpush1.bf16.msra.mxu0 %v211
    %301 = vmatprep.subr.bf16.mxu0 0
    %302 = vmatpush1.bf16.msra.mxu0 %v208
    %303 = vmatprep.subr.bf16.mxu0 0
    %304 = vmatpush1.bf16.msra.mxu0 %v205
    %305 = vmatprep.subr.bf16.mxu0 0
    %306 = vmatpush1.bf16.msra.mxu0 %v202
    %307 = vmatprep.subr.bf16.mxu0 0
    %308 = vmatpush2.bf16.msra.mxu0 0
    %309 = vmatprep.subr.bf16.mxu0 0
    %310 = vmatpush2.bf16.msra.mxu0 0
    %311 = vmatprep.subr.bf16.mxu0 0
    %312 = vmatpush2.bf16.msra.mxu0 0
    %313 = vmatprep.subr.bf16.mxu0 0
    %314 = vmatpush2.bf16.msra.mxu0 0
    %315 = vmatprep.subr.bf16.mxu0 0
    %316 = vmatpush2.bf16.msra.mxu0 0
    %317 = vmatprep.subr.bf16.mxu0 0
    %318 = vmatpush2.bf16.msra.mxu0 0
    %319 = vmatprep.subr.bf16.mxu0 0
    %320 = vmatpush2.bf16.msra.mxu0 0
    %321 = vmatprep.subr.bf16.mxu0 0
    %322 = vmatpush2.bf16.msra.mxu0 0
    %323 = vmatprep.mubr.bf16.mxu0 0
    %324 = vmatmul.mubr.bf16.gmra.mxu0 %v118
    %v325 = vpop.f32.mrf.mxu0
    %v326 = vadd.f32 %v110, %v325
    %v327 = vpop.f32.mrf.mxu0
    %v328 = vpop.f32.mrf.mxu0
    %v329 = vadd.f32 %v110, %v328
    %v330 = vpop.f32.mrf.mxu0
    %331 = vdwg.mxu0
    %333 = vrot.lane.b32.xlu0 %v283, 120
    %v334 = vpop.permute.xlu0 %333
    %335 = vrot.lane.b32.xlu0 %v283, 112
    %v336 = vpop.permute.xlu0 %335
    %337 = vrot.lane.b32.xlu0 %v283, 104
    %v338 = vpop.permute.xlu0 %337
    %339 = vrot.lane.b32.xlu0 %v283, 96
    %v340 = vpop.permute.xlu0 %339
    %341 = vrot.lane.b32.xlu0 %v283, 88
    %v342 = vpop.permute.xlu0 %341
    %343 = vrot.lane.b32.xlu0 %v283, 80
    %v344 = vpop.permute.xlu0 %343
    %345 = vrot.lane.b32.xlu0 %v283, 72
    %v346 = vpop.permute.xlu0 %345
    %347 = vrot.lane.b32.xlu0 %v283, 64
    %v348 = vpop.permute.xlu0 %347
    %349 = vrot.lane.b32.xlu0 %v283, 56
    %v350 = vpop.permute.xlu0 %349
    %351 = vrot.lane.b32.xlu0 %v283, 48
    %v352 = vpop.permute.xlu0 %351
    %353 = vrot.lane.b32.xlu0 %v283, 40
    %v354 = vpop.permute.xlu0 %353
    %355 = vrot.lane.b32.xlu0 %v283, 32
    %v356 = vpop.permute.xlu0 %355
    %357 = vrot.lane.b32.xlu0 %v283, 24
    %v358 = vpop.permute.xlu0 %357
    %359 = vrot.lane.b32.xlu0 %v283, 16
    %v360 = vpop.permute.xlu0 %359
    %361 = vrot.lane.b32.xlu0 %v283, 8
    %v362 = vpop.permute.xlu0 %361
    %364 = vrot.lane.b32.xlu0 %v285, 120
    %v365 = vpop.permute.xlu0 %364
    %367 = vrot.lane.b32.xlu0 %v285, 112
    %v368 = vpop.permute.xlu0 %367
    %370 = vrot.lane.b32.xlu0 %v285, 104
    %v371 = vpop.permute.xlu0 %370
    %373 = vrot.lane.b32.xlu0 %v285, 96
    %v374 = vpop.permute.xlu0 %373
    %376 = vrot.lane.b32.xlu0 %v285, 88
    %v377 = vpop.permute.xlu0 %376
    %379 = vrot.lane.b32.xlu0 %v285, 80
    %v380 = vpop.permute.xlu0 %379
    %382 = vrot.lane.b32.xlu0 %v285, 72
    %v383 = vpop.permute.xlu0 %382
    %385 = vrot.lane.b32.xlu0 %v285, 64
    %v386 = vpop.permute.xlu0 %385
    %388 = vrot.lane.b32.xlu0 %v285, 56
    %v389 = vpop.permute.xlu0 %388
    %391 = vrot.lane.b32.xlu0 %v285, 48
    %v392 = vpop.permute.xlu0 %391
    %394 = vrot.lane.b32.xlu0 %v285, 40
    %v395 = vpop.permute.xlu0 %394
    %397 = vrot.lane.b32.xlu0 %v285, 32
    %v398 = vpop.permute.xlu0 %397
    %400 = vrot.lane.b32.xlu0 %v285, 24
    %v401 = vpop.permute.xlu0 %400
    %403 = vrot.lane.b32.xlu0 %v285, 16
    %v404 = vpop.permute.xlu0 %403
    %406 = vrot.lane.b32.xlu0 %v285, 8
    %v407 = vpop.permute.xlu0 %406
    %410 = vrot.lane.b32.xlu0 %v326, 120
    %v411 = vpop.permute.xlu0 %410
    %413 = vrot.lane.b32.xlu0 %v326, 112
    %v414 = vpop.permute.xlu0 %413
    %416 = vrot.lane.b32.xlu0 %v326, 104
    %v417 = vpop.permute.xlu0 %416
    %419 = vrot.lane.b32.xlu0 %v326, 96
    %v420 = vpop.permute.xlu0 %419
    %422 = vrot.lane.b32.xlu0 %v326, 88
    %v423 = vpop.permute.xlu0 %422
    %425 = vrot.lane.b32.xlu0 %v326, 80
    %v426 = vpop.permute.xlu0 %425
    %428 = vrot.lane.b32.xlu0 %v326, 72
    %v429 = vpop.permute.xlu0 %428
    %431 = vrot.lane.b32.xlu0 %v326, 64
    %v432 = vpop.permute.xlu0 %431
    %434 = vrot.lane.b32.xlu0 %v326, 56
    %v435 = vpop.permute.xlu0 %434
    %437 = vrot.lane.b32.xlu0 %v326, 48
    %v438 = vpop.permute.xlu0 %437
    %440 = vrot.lane.b32.xlu0 %v326, 40
    %v441 = vpop.permute.xlu0 %440
    %443 = vrot.lane.b32.xlu0 %v326, 32
    %v444 = vpop.permute.xlu0 %443
    %446 = vrot.lane.b32.xlu0 %v326, 24
    %v447 = vpop.permute.xlu0 %446
    %449 = vrot.lane.b32.xlu0 %v326, 16
    %v450 = vpop.permute.xlu0 %449
    %452 = vrot.lane.b32.xlu0 %v326, 8
    %v453 = vpop.permute.xlu0 %452
    %455 = vxpose.xlu0.b32.start [1/16] %v285, 128
    %456 = vxpose.xlu0.b32.cont [2/16] 0.0, 128
    %457 = vxpose.xlu0.b32.cont [3/16] 0.0, 128
    %458 = vxpose.xlu0.b32.cont [4/16] 0.0, 128
    %459 = vxpose.xlu0.b32.cont [5/16] 0.0, 128
    %460 = vxpose.xlu0.b32.cont [6/16] 0.0, 128
    %461 = vxpose.xlu0.b32.cont [7/16] 0.0, 128
    %462 = vxpose.xlu0.b32.cont [8/16] 0.0, 128
    %463 = vxpose.xlu0.b32.cont [9/16] 0.0, 128
    %464 = vxpose.xlu0.b32.cont [10/16] 0.0, 128
    %465 = vxpose.xlu0.b32.cont [11/16] 0.0, 128
    %466 = vxpose.xlu0.b32.cont [12/16] 0.0, 128
    %467 = vxpose.xlu0.b32.cont [13/16] 0.0, 128
    %468 = vxpose.xlu0.b32.cont [14/16] 0.0, 128
    %469 = vxpose.xlu0.b32.cont [15/16] 0.0, 128
    %470 = vxpose.xlu0.b32.end [16/16] 0.0, 128
    %v471 = vpop.trf.xlu0
    %v472 = vpop.trf.xlu0
    %v473 = vpop.trf.xlu0
    %v474 = vpop.trf.xlu0
    %v475 = vpop.trf.xlu0
    %v476 = vpop.trf.xlu0
    %v477 = vpop.trf.xlu0
    %v478 = vpop.trf.xlu0
    %v479 = vpop.trf.xlu0
    %v480 = vpop.trf.xlu0
    %v481 = vpop.trf.xlu0
    %v482 = vpop.trf.xlu0
    %v483 = vpop.trf.xlu0
    %v484 = vpop.trf.xlu0
    %v485 = vpop.trf.xlu0
    %v486 = vpop.trf.xlu0
    %487 = vxpose.xlu0.b32.start [1/16] %v365, 128
    %488 = vxpose.xlu0.b32.cont [2/16] 0.0, 128
    %489 = vxpose.xlu0.b32.cont [3/16] 0.0, 128
    %490 = vxpose.xlu0.b32.cont [4/16] 0.0, 128
    %491 = vxpose.xlu0.b32.cont [5/16] 0.0, 128
    %492 = vxpose.xlu0.b32.cont [6/16] 0.0, 128
    %493 = vxpose.xlu0.b32.cont [7/16] 0.0, 128
    %494 = vxpose.xlu0.b32.cont [8/16] 0.0, 128
    %495 = vxpose.xlu0.b32.cont [9/16] 0.0, 128
    %496 = vxpose.xlu0.b32.cont [10/16] 0.0, 128
    %497 = vxpose.xlu0.b32.cont [11/16] 0.0, 128
    %498 = vxpose.xlu0.b32.cont [12/16] 0.0, 128
    %499 = vxpose.xlu0.b32.cont [13/16] 0.0, 128
    %500 = vxpose.xlu0.b32.cont [14/16] 0.0, 128
    %501 = vxpose.xlu0.b32.cont [15/16] 0.0, 128
    %502 = vxpose.xlu0.b32.end [16/16] 0.0, 128
    %v503 = vpop.trf.xlu0
    %v504 = vpop.trf.xlu0
    %v505 = vpop.trf.xlu0
    %v506 = vpop.trf.xlu0
    %v507 = vpop.trf.xlu0
    %v508 = vpop.trf.xlu0
    %v509 = vpop.trf.xlu0
    %v510 = vpop.trf.xlu0
    %v511 = vpop.trf.xlu0
    %v512 = vpop.trf.xlu0
    %v513 = vpop.trf.xlu0
    %v514 = vpop.trf.xlu0
    %v515 = vpop.trf.xlu0
    %v516 = vpop.trf.xlu0
    %v517 = vpop.trf.xlu0
    %v518 = vpop.trf.xlu0
    %519 = vxpose.xlu0.b32.start [1/16] %v368, 128
    %520 = vxpose.xlu0.b32.cont [2/16] 0.0, 128
    %521 = vxpose.xlu0.b32.cont [3/16] 0.0, 128
    %522 = vxpose.xlu0.b32.cont [4/16] 0.0, 128
    %523 = vxpose.xlu0.b32.cont [5/16] 0.0, 128
    %524 = vxpose.xlu0.b32.cont [6/16] 0.0, 128
    %525 = vxpose.xlu0.b32.cont [7/16] 0.0, 128
    %526 = vxpose.xlu0.b32.cont [8/16] 0.0, 128
    %527 = vxpose.xlu0.b32.cont [9/16] 0.0, 128
    %528 = vxpose.xlu0.b32.cont [10/16] 0.0, 128
    %529 = vxpose.xlu0.b32.cont [11/16] 0.0, 128
    %530 = vxpose.xlu0.b32.cont [12/16] 0.0, 128
    %531 = vxpose.xlu0.b32.cont [13/16] 0.0, 128
    %532 = vxpose.xlu0.b32.cont [14/16] 0.0, 128
    %533 = vxpose.xlu0.b32.cont [15/16] 0.0, 128
    %534 = vxpose.xlu0.b32.end [16/16] 0.0, 128
    %v535 = vpop.trf.xlu0
    %v536 = vpop.trf.xlu0
    %v537 = vpop.trf.xlu0
    %v538 = vpop.trf.xlu0
    %v539 = vpop.trf.xlu0
    %v540 = vpop.trf.xlu0
    %v541 = vpop.trf.xlu0
    %v542 = vpop.trf.xlu0
    %v543 = vpop.trf.xlu0
    %v544 = vpop.trf.xlu0
    %v545 = vpop.trf.xlu0
    %v546 = vpop.trf.xlu0
    %v547 = vpop.trf.xlu0
    %v548 = vpop.trf.xlu0
    %v549 = vpop.trf.xlu0
    %v550 = vpop.trf.xlu0
    %551 = vxpose.xlu0.b32.start [1/16] %v371, 128
    %552 = vxpose.xlu0.b32.cont [2/16] 0.0, 128
    %553 = vxpose.xlu0.b32.cont [3/16] 0.0, 128
    %554 = vxpose.xlu0.b32.cont [4/16] 0.0, 128
    %555 = vxpose.xlu0.b32.cont [5/16] 0.0, 128
    %556 = vxpose.xlu0.b32.cont [6/16] 0.0, 128
    %557 = vxpose.xlu0.b32.cont [7/16] 0.0, 128
    %558 = vxpose.xlu0.b32.cont [8/16] 0.0, 128
    %559 = vxpose.xlu0.b32.cont [9/16] 0.0, 128
    %560 = vxpose.xlu0.b32.cont [10/16] 0.0, 128
    %561 = vxpose.xlu0.b32.cont [11/16] 0.0, 128
    %562 = vxpose.xlu0.b32.cont [12/16] 0.0, 128
    %563 = vxpose.xlu0.b32.cont [13/16] 0.0, 128
    %564 = vxpose.xlu0.b32.cont [14/16] 0.0, 128
    %565 = vxpose.xlu0.b32.cont [15/16] 0.0, 128
    %566 = vxpose.xlu0.b32.end [16/16] 0.0, 128
    %v567 = vpop.trf.xlu0
    %v568 = vpop.trf.xlu0
    %v569 = vpop.trf.xlu0
    %v570 = vpop.trf.xlu0
    %v571 = vpop.trf.xlu0
    %v572 = vpop.trf.xlu0
    %v573 = vpop.trf.xlu0
    %v574 = vpop.trf.xlu0
    %v575 = vpop.trf.xlu0
    %v576 = vpop.trf.xlu0
    %v577 = vpop.trf.xlu0
    %v578 = vpop.trf.xlu0
    %v579 = vpop.trf.xlu0
    %v580 = vpop.trf.xlu0
    %v581 = vpop.trf.xlu0
    %v582 = vpop.trf.xlu0
    %583 = vxpose.xlu0.b32.start [1/16] %v374, 128
    %584 = vxpose.xlu0.b32.cont [2/16] 0.0, 128
    %585 = vxpose.xlu0.b32.cont [3/16] 0.0, 128
    %586 = vxpose.xlu0.b32.cont [4/16] 0.0, 128
    %587 = vxpose.xlu0.b32.cont [5/16] 0.0, 128
    %588 = vxpose.xlu0.b32.cont [6/16] 0.0, 128
    %589 = vxpose.xlu0.b32.cont [7/16] 0.0, 128
    %590 = vxpose.xlu0.b32.cont [8/16] 0.0, 128
    %591 = vxpose.xlu0.b32.cont [9/16] 0.0, 128
    %592 = vxpose.xlu0.b32.cont [10/16] 0.0, 128
    %593 = vxpose.xlu0.b32.cont [11/16] 0.0, 128
    %594 = vxpose.xlu0.b32.cont [12/16] 0.0, 128
    %595 = vxpose.xlu0.b32.cont [13/16] 0.0, 128
    %596 = vxpose.xlu0.b32.cont [14/16] 0.0, 128
    %597 = vxpose.xlu0.b32.cont [15/16] 0.0, 128
    %598 = vxpose.xlu0.b32.end [16/16] 0.0, 128
    %v599 = vpop.trf.xlu0
    %v600 = vpop.trf.xlu0
    %v601 = vpop.trf.xlu0
    %v602 = vpop.trf.xlu0
    %v603 = vpop.trf.xlu0
    %v604 = vpop.trf.xlu0
    %v605 = vpop.trf.xlu0
    %v606 = vpop.trf.xlu0
    %v607 = vpop.trf.xlu0
    %v608 = vpop.trf.xlu0
    %v609 = vpop.trf.xlu0
    %v610 = vpop.trf.xlu0
    %v611 = vpop.trf.xlu0
    %v612 = vpop.trf.xlu0
    %v613 = vpop.trf.xlu0
    %v614 = vpop.trf.xlu0
    %615 = vxpose.xlu0.b32.start [1/16] %v377, 128
    %616 = vxpose.xlu0.b32.cont [2/16] 0.0, 128
    %617 = vxpose.xlu0.b32.cont [3/16] 0.0, 128
    %618 = vxpose.xlu0.b32.cont [4/16] 0.0, 128
    %619 = vxpose.xlu0.b32.cont [5/16] 0.0, 128
    %620 = vxpose.xlu0.b32.cont [6/16] 0.0, 128
    %621 = vxpose.xlu0.b32.cont [7/16] 0.0, 128
    %622 = vxpose.xlu0.b32.cont [8/16] 0.0, 128
    %623 = vxpose.xlu0.b32.cont [9/16] 0.0, 128
    %624 = vxpose.xlu0.b32.cont [10/16] 0.0, 128
    %625 = vxpose.xlu0.b32.cont [11/16] 0.0, 128
    %626 = vxpose.xlu0.b32.cont [12/16] 0.0, 128
    %627 = vxpose.xlu0.b32.cont [13/16] 0.0, 128
    %628 = vxpose.xlu0.b32.cont [14/16] 0.0, 128
    %629 = vxpose.xlu0.b32.cont [15/16] 0.0, 128
    %630 = vxpose.xlu0.b32.end [16/16] 0.0, 128
    %v631 = vpop.trf.xlu0
    %v632 = vpop.trf.xlu0
    %v633 = vpop.trf.xlu0
    %v634 = vpop.trf.xlu0
    %v635 = vpop.trf.xlu0
    %v636 = vpop.trf.xlu0
    %v637 = vpop.trf.xlu0
    %v638 = vpop.trf.xlu0
    %v639 = vpop.trf.xlu0
    %v640 = vpop.trf.xlu0
    %v641 = vpop.trf.xlu0
    %v642 = vpop.trf.xlu0
    %v643 = vpop.trf.xlu0
    %v644 = vpop.trf.xlu0
    %v645 = vpop.trf.xlu0
    %v646 = vpop.trf.xlu0
    %647 = vxpose.xlu0.b32.start [1/16] %v380, 128
    %648 = vxpose.xlu0.b32.cont [2/16] 0.0, 128
    %649 = vxpose.xlu0.b32.cont [3/16] 0.0, 128
    %650 = vxpose.xlu0.b32.cont [4/16] 0.0, 128
    %651 = vxpose.xlu0.b32.cont [5/16] 0.0, 128
    %652 = vxpose.xlu0.b32.cont [6/16] 0.0, 128
    %653 = vxpose.xlu0.b32.cont [7/16] 0.0, 128
    %654 = vxpose.xlu0.b32.cont [8/16] 0.0, 128
    %655 = vxpose.xlu0.b32.cont [9/16] 0.0, 128
    %656 = vxpose.xlu0.b32.cont [10/16] 0.0, 128
    %657 = vxpose.xlu0.b32.cont [11/16] 0.0, 128
    %658 = vxpose.xlu0.b32.cont [12/16] 0.0, 128
    %659 = vxpose.xlu0.b32.cont [13/16] 0.0, 128
    %660 = vxpose.xlu0.b32.cont [14/16] 0.0, 128
    %661 = vxpose.xlu0.b32.cont [15/16] 0.0, 128
    %662 = vxpose.xlu0.b32.end [16/16] 0.0, 128
    %v663 = vpop.trf.xlu0
    %v664 = vpop.trf.xlu0
    %v665 = vpop.trf.xlu0
    %v666 = vpop.trf.xlu0
    %v667 = vpop.trf.xlu0
    %v668 = vpop.trf.xlu0
    %v669 = vpop.trf.xlu0
    %v670 = vpop.trf.xlu0
    %v671 = vpop.trf.xlu0
    %v672 = vpop.trf.xlu0
    %v673 = vpop.trf.xlu0
    %v674 = vpop.trf.xlu0
    %v675 = vpop.trf.xlu0
    %v676 = vpop.trf.xlu0
    %v677 = vpop.trf.xlu0
    %v678 = vpop.trf.xlu0
    %679 = vxpose.xlu0.b32.start [1/16] %v383, 128
    %680 = vxpose.xlu0.b32.cont [2/16] 0.0, 128
    %681 = vxpose.xlu0.b32.cont [3/16] 0.0, 128
    %682 = vxpose.xlu0.b32.cont [4/16] 0.0, 128
    %683 = vxpose.xlu0.b32.cont [5/16] 0.0, 128
    %684 = vxpose.xlu0.b32.cont [6/16] 0.0, 128
    %685 = vxpose.xlu0.b32.cont [7/16] 0.0, 128
    %686 = vxpose.xlu0.b32.cont [8/16] 0.0, 128
    %687 = vxpose.xlu0.b32.cont [9/16] 0.0, 128
    %688 = vxpose.xlu0.b32.cont [10/16] 0.0, 128
    %689 = vxpose.xlu0.b32.cont [11/16] 0.0, 128
    %690 = vxpose.xlu0.b32.cont [12/16] 0.0, 128
    %691 = vxpose.xlu0.b32.cont [13/16] 0.0, 128
    %692 = vxpose.xlu0.b32.cont [14/16] 0.0, 128
    %693 = vxpose.xlu0.b32.cont [15/16] 0.0, 128
    %694 = vxpose.xlu0.b32.end [16/16] 0.0, 128
    %v695 = vpop.trf.xlu0
    %v696 = vpop.trf.xlu0
    %v697 = vpop.trf.xlu0
    %v698 = vpop.trf.xlu0
    %v699 = vpop.trf.xlu0
    %v700 = vpop.trf.xlu0
    %v701 = vpop.trf.xlu0
    %v702 = vpop.trf.xlu0
    %v703 = vpop.trf.xlu0
    %v704 = vpop.trf.xlu0
    %v705 = vpop.trf.xlu0
    %v706 = vpop.trf.xlu0
    %v707 = vpop.trf.xlu0
    %v708 = vpop.trf.xlu0
    %v709 = vpop.trf.xlu0
    %v710 = vpop.trf.xlu0
    %711 = vxpose.xlu0.b32.start [1/16] %v386, 128
    %712 = vxpose.xlu0.b32.cont [2/16] 0.0, 128
    %713 = vxpose.xlu0.b32.cont [3/16] 0.0, 128
    %714 = vxpose.xlu0.b32.cont [4/16] 0.0, 128
    %715 = vxpose.xlu0.b32.cont [5/16] 0.0, 128
    %716 = vxpose.xlu0.b32.cont [6/16] 0.0, 128
    %717 = vxpose.xlu0.b32.cont [7/16] 0.0, 128
    %718 = vxpose.xlu0.b32.cont [8/16] 0.0, 128
    %719 = vxpose.xlu0.b32.cont [9/16] 0.0, 128
    %720 = vxpose.xlu0.b32.cont [10/16] 0.0, 128
    %721 = vxpose.xlu0.b32.cont [11/16] 0.0, 128
    %722 = vxpose.xlu0.b32.cont [12/16] 0.0, 128
    %723 = vxpose.xlu0.b32.cont [13/16] 0.0, 128
    %724 = vxpose.xlu0.b32.cont [14/16] 0.0, 128
    %725 = vxpose.xlu0.b32.cont [15/16] 0.0, 128
    %726 = vxpose.xlu0.b32.end [16/16] 0.0, 128
    %v727 = vpop.trf.xlu0
    %v728 = vpop.trf.xlu0
    %v729 = vpop.trf.xlu0
    %v730 = vpop.trf.xlu0
    %v731 = vpop.trf.xlu0
    %v732 = vpop.trf.xlu0
    %v733 = vpop.trf.xlu0
    %v734 = vpop.trf.xlu0
    %v735 = vpop.trf.xlu0
    %v736 = vpop.trf.xlu0
    %v737 = vpop.trf.xlu0
    %v738 = vpop.trf.xlu0
    %v739 = vpop.trf.xlu0
    %v740 = vpop.trf.xlu0
    %v741 = vpop.trf.xlu0
    %v742 = vpop.trf.xlu0
    %743 = vxpose.xlu0.b32.start [1/16] %v389, 128
    %744 = vxpose.xlu0.b32.cont [2/16] 0.0, 128
    %745 = vxpose.xlu0.b32.cont [3/16] 0.0, 128
    %746 = vxpose.xlu0.b32.cont [4/16] 0.0, 128
    %747 = vxpose.xlu0.b32.cont [5/16] 0.0, 128
    %748 = vxpose.xlu0.b32.cont [6/16] 0.0, 128
    %749 = vxpose.xlu0.b32.cont [7/16] 0.0, 128
    %750 = vxpose.xlu0.b32.cont [8/16] 0.0, 128
    %751 = vxpose.xlu0.b32.cont [9/16] 0.0, 128
    %752 = vxpose.xlu0.b32.cont [10/16] 0.0, 128
    %753 = vxpose.xlu0.b32.cont [11/16] 0.0, 128
    %754 = vxpose.xlu0.b32.cont [12/16] 0.0, 128
    %755 = vxpose.xlu0.b32.cont [13/16] 0.0, 128
    %756 = vxpose.xlu0.b32.cont [14/16] 0.0, 128
    %757 = vxpose.xlu0.b32.cont [15/16] 0.0, 128
    %758 = vxpose.xlu0.b32.end [16/16] 0.0, 128
    %v759 = vpop.trf.xlu0
    %v760 = vpop.trf.xlu0
    %v761 = vpop.trf.xlu0
    %v762 = vpop.trf.xlu0
    %v763 = vpop.trf.xlu0
    %v764 = vpop.trf.xlu0
    %v765 = vpop.trf.xlu0
    %v766 = vpop.trf.xlu0
    %v767 = vpop.trf.xlu0
    %v768 = vpop.trf.xlu0
    %v769 = vpop.trf.xlu0
    %v770 = vpop.trf.xlu0
    %v771 = vpop.trf.xlu0
    %v772 = vpop.trf.xlu0
    %v773 = vpop.trf.xlu0
    %v774 = vpop.trf.xlu0
    %775 = vxpose.xlu0.b32.start [1/16] %v392, 128
    %776 = vxpose.xlu0.b32.cont [2/16] 0.0, 128
    %777 = vxpose.xlu0.b32.cont [3/16] 0.0, 128
    %778 = vxpose.xlu0.b32.cont [4/16] 0.0, 128
    %779 = vxpose.xlu0.b32.cont [5/16] 0.0, 128
    %780 = vxpose.xlu0.b32.cont [6/16] 0.0, 128
    %781 = vxpose.xlu0.b32.cont [7/16] 0.0, 128
    %782 = vxpose.xlu0.b32.cont [8/16] 0.0, 128
    %783 = vxpose.xlu0.b32.cont [9/16] 0.0, 128
    %784 = vxpose.xlu0.b32.cont [10/16] 0.0, 128
    %785 = vxpose.xlu0.b32.cont [11/16] 0.0, 128
    %786 = vxpose.xlu0.b32.cont [12/16] 0.0, 128
    %787 = vxpose.xlu0.b32.cont [13/16] 0.0, 128
    %788 = vxpose.xlu0.b32.cont [14/16] 0.0, 128
    %789 = vxpose.xlu0.b32.cont [15/16] 0.0, 128
    %790 = vxpose.xlu0.b32.end [16/16] 0.0, 128
    %v791 = vpop.trf.xlu0
    %v792 = vpop.trf.xlu0
    %v793 = vpop.trf.xlu0
    %v794 = vpop.trf.xlu0
    %v795 = vpop.trf.xlu0
    %v796 = vpop.trf.xlu0
    %v797 = vpop.trf.xlu0
    %v798 = vpop.trf.xlu0
    %v799 = vpop.trf.xlu0
    %v800 = vpop.trf.xlu0
    %v801 = vpop.trf.xlu0
    %v802 = vpop.trf.xlu0
    %v803 = vpop.trf.xlu0
    %v804 = vpop.trf.xlu0
    %v805 = vpop.trf.xlu0
    %v806 = vpop.trf.xlu0
    %807 = vxpose.xlu0.b32.start [1/16] %v395, 128
    %808 = vxpose.xlu0.b32.cont [2/16] 0.0, 128
    %809 = vxpose.xlu0.b32.cont [3/16] 0.0, 128
    %810 = vxpose.xlu0.b32.cont [4/16] 0.0, 128
    %811 = vxpose.xlu0.b32.cont [5/16] 0.0, 128
    %812 = vxpose.xlu0.b32.cont [6/16] 0.0, 128
    %813 = vxpose.xlu0.b32.cont [7/16] 0.0, 128
    %814 = vxpose.xlu0.b32.cont [8/16] 0.0, 128
    %815 = vxpose.xlu0.b32.cont [9/16] 0.0, 128
    %816 = vxpose.xlu0.b32.cont [10/16] 0.0, 128
    %817 = vxpose.xlu0.b32.cont [11/16] 0.0, 128
    %818 = vxpose.xlu0.b32.cont [12/16] 0.0, 128
    %819 = vxpose.xlu0.b32.cont [13/16] 0.0, 128
    %820 = vxpose.xlu0.b32.cont [14/16] 0.0, 128
    %821 = vxpose.xlu0.b32.cont [15/16] 0.0, 128
    %822 = vxpose.xlu0.b32.end [16/16] 0.0, 128
    %v823 = vpop.trf.xlu0
    %v824 = vpop.trf.xlu0
    %v825 = vpop.trf.xlu0
    %v826 = vpop.trf.xlu0
    %v827 = vpop.trf.xlu0
    %v828 = vpop.trf.xlu0
    %v829 = vpop.trf.xlu0
    %v830 = vpop.trf.xlu0
    %v831 = vpop.trf.xlu0
    %v832 = vpop.trf.xlu0
    %v833 = vpop.trf.xlu0
    %v834 = vpop.trf.xlu0
    %v835 = vpop.trf.xlu0
    %v836 = vpop.trf.xlu0
    %v837 = vpop.trf.xlu0
    %v838 = vpop.trf.xlu0
    %839 = vxpose.xlu0.b32.start [1/16] %v398, 128
    %840 = vxpose.xlu0.b32.cont [2/16] 0.0, 128
    %841 = vxpose.xlu0.b32.cont [3/16] 0.0, 128
    %842 = vxpose.xlu0.b32.cont [4/16] 0.0, 128
    %843 = vxpose.xlu0.b32.cont [5/16] 0.0, 128
    %844 = vxpose.xlu0.b32.cont [6/16] 0.0, 128
    %845 = vxpose.xlu0.b32.cont [7/16] 0.0, 128
    %846 = vxpose.xlu0.b32.cont [8/16] 0.0, 128
    %847 = vxpose.xlu0.b32.cont [9/16] 0.0, 128
    %848 = vxpose.xlu0.b32.cont [10/16] 0.0, 128
    %849 = vxpose.xlu0.b32.cont [11/16] 0.0, 128
    %850 = vxpose.xlu0.b32.cont [12/16] 0.0, 128
    %851 = vxpose.xlu0.b32.cont [13/16] 0.0, 128
    %852 = vxpose.xlu0.b32.cont [14/16] 0.0, 128
    %853 = vxpose.xlu0.b32.cont [15/16] 0.0, 128
    %854 = vxpose.xlu0.b32.end [16/16] 0.0, 128
    %v855 = vpop.trf.xlu0
    %v856 = vpop.trf.xlu0
    %v857 = vpop.trf.xlu0
    %v858 = vpop.trf.xlu0
    %v859 = vpop.trf.xlu0
    %v860 = vpop.trf.xlu0
    %v861 = vpop.trf.xlu0
    %v862 = vpop.trf.xlu0
    %v863 = vpop.trf.xlu0
    %v864 = vpop.trf.xlu0
    %v865 = vpop.trf.xlu0
    %v866 = vpop.trf.xlu0
    %v867 = vpop.trf.xlu0
    %v868 = vpop.trf.xlu0
    %v869 = vpop.trf.xlu0
    %v870 = vpop.trf.xlu0
    %871 = vxpose.xlu0.b32.start [1/16] %v401, 128
    %872 = vxpose.xlu0.b32.cont [2/16] 0.0, 128
    %873 = vxpose.xlu0.b32.cont [3/16] 0.0, 128
    %874 = vxpose.xlu0.b32.cont [4/16] 0.0, 128
    %875 = vxpose.xlu0.b32.cont [5/16] 0.0, 128
    %876 = vxpose.xlu0.b32.cont [6/16] 0.0, 128
    %877 = vxpose.xlu0.b32.cont [7/16] 0.0, 128
    %878 = vxpose.xlu0.b32.cont [8/16] 0.0, 128
    %879 = vxpose.xlu0.b32.cont [9/16] 0.0, 128
    %880 = vxpose.xlu0.b32.cont [10/16] 0.0, 128
    %881 = vxpose.xlu0.b32.cont [11/16] 0.0, 128
    %882 = vxpose.xlu0.b32.cont [12/16] 0.0, 128
    %883 = vxpose.xlu0.b32.cont [13/16] 0.0, 128
    %884 = vxpose.xlu0.b32.cont [14/16] 0.0, 128
    %885 = vxpose.xlu0.b32.cont [15/16] 0.0, 128
    %886 = vxpose.xlu0.b32.end [16/16] 0.0, 128
    %v887 = vpop.trf.xlu0
    %v888 = vpop.trf.xlu0
    %v889 = vpop.trf.xlu0
    %v890 = vpop.trf.xlu0
    %v891 = vpop.trf.xlu0
    %v892 = vpop.trf.xlu0
    %v893 = vpop.trf.xlu0
    %v894 = vpop.trf.xlu0
    %v895 = vpop.trf.xlu0
    %v896 = vpop.trf.xlu0
    %v897 = vpop.trf.xlu0
    %v898 = vpop.trf.xlu0
    %v899 = vpop.trf.xlu0
    %v900 = vpop.trf.xlu0
    %v901 = vpop.trf.xlu0
    %v902 = vpop.trf.xlu0
    %903 = vxpose.xlu0.b32.start [1/16] %v404, 128
    %904 = vxpose.xlu0.b32.cont [2/16] 0.0, 128
    %905 = vxpose.xlu0.b32.cont [3/16] 0.0, 128
    %906 = vxpose.xlu0.b32.cont [4/16] 0.0, 128
    %907 = vxpose.xlu0.b32.cont [5/16] 0.0, 128
    %908 = vxpose.xlu0.b32.cont [6/16] 0.0, 128
    %909 = vxpose.xlu0.b32.cont [7/16] 0.0, 128
    %910 = vxpose.xlu0.b32.cont [8/16] 0.0, 128
    %911 = vxpose.xlu0.b32.cont [9/16] 0.0, 128
    %912 = vxpose.xlu0.b32.cont [10/16] 0.0, 128
    %913 = vxpose.xlu0.b32.cont [11/16] 0.0, 128
    %914 = vxpose.xlu0.b32.cont [12/16] 0.0, 128
    %915 = vxpose.xlu0.b32.cont [13/16] 0.0, 128
    %916 = vxpose.xlu0.b32.cont [14/16] 0.0, 128
    %917 = vxpose.xlu0.b32.cont [15/16] 0.0, 128
    %918 = vxpose.xlu0.b32.end [16/16] 0.0, 128
    %v919 = vpop.trf.xlu0
    %v920 = vpop.trf.xlu0
    %v921 = vpop.trf.xlu0
    %v922 = vpop.trf.xlu0
    %v923 = vpop.trf.xlu0
    %v924 = vpop.trf.xlu0
    %v925 = vpop.trf.xlu0
    %v926 = vpop.trf.xlu0
    %v927 = vpop.trf.xlu0
    %v928 = vpop.trf.xlu0
    %v929 = vpop.trf.xlu0
    %v930 = vpop.trf.xlu0
    %v931 = vpop.trf.xlu0
    %v932 = vpop.trf.xlu0
    %v933 = vpop.trf.xlu0
    %v934 = vpop.trf.xlu0
    %935 = vxpose.xlu0.b32.start [1/16] %v407, 128
    %936 = vxpose.xlu0.b32.cont [2/16] 0.0, 128
    %937 = vxpose.xlu0.b32.cont [3/16] 0.0, 128
    %938 = vxpose.xlu0.b32.cont [4/16] 0.0, 128
    %939 = vxpose.xlu0.b32.cont [5/16] 0.0, 128
    %940 = vxpose.xlu0.b32.cont [6/16] 0.0, 128
    %941 = vxpose.xlu0.b32.cont [7/16] 0.0, 128
    %942 = vxpose.xlu0.b32.cont [8/16] 0.0, 128
    %943 = vxpose.xlu0.b32.cont [9/16] 0.0, 128
    %944 = vxpose.xlu0.b32.cont [10/16] 0.0, 128
    %945 = vxpose.xlu0.b32.cont [11/16] 0.0, 128
    %946 = vxpose.xlu0.b32.cont [12/16] 0.0, 128
    %947 = vxpose.xlu0.b32.cont [13/16] 0.0, 128
    %948 = vxpose.xlu0.b32.cont [14/16] 0.0, 128
    %949 = vxpose.xlu0.b32.cont [15/16] 0.0, 128
    %950 = vxpose.xlu0.b32.end [16/16] 0.0, 128
    %v951 = vpop.trf.xlu0
    %v952 = vpop.trf.xlu0
    %v953 = vpop.trf.xlu0
    %v954 = vpop.trf.xlu0
    %v955 = vpop.trf.xlu0
    %v956 = vpop.trf.xlu0
    %v957 = vpop.trf.xlu0
    %v958 = vpop.trf.xlu0
    %v959 = vpop.trf.xlu0
    %v960 = vpop.trf.xlu0
    %v961 = vpop.trf.xlu0
    %v962 = vpop.trf.xlu0
    %v963 = vpop.trf.xlu0
    %v964 = vpop.trf.xlu0
    %v965 = vpop.trf.xlu0
    %v966 = vpop.trf.xlu0
    %vm967 = vcmask 64512
    %v968 = vsel %vm967, %v283, 0
    %970 = vmatprep.subr.mxu0 0.0
    %971 = vmatpush1.msra.mxu0 0.0
    %972 = vmatprep.subr.mxu0 0.0
    %973 = vmatpush1.msra.mxu0 0.0
    %974 = vmatprep.subr.mxu0 0.0
    %975 = vmatpush1.msra.mxu0 0.0
    %976 = vmatprep.subr.mxu0 0.0
    %977 = vmatpush1.msra.mxu0 0.0
    %978 = vmatprep.subr.mxu0 0.0
    %979 = vmatpush1.msra.mxu0 0.0
    %980 = vmatprep.subr.mxu0 0.0
    %981 = vmatpush1.msra.mxu0 0.0
    %982 = vmatprep.subr.mxu0 0.0
    %983 = vmatpush1.msra.mxu0 0.0
    %984 = vmatprep.subr.mxu0 0.0
    %985 = vmatpush1.msra.mxu0 0.0
    %986 = vmatprep.subr.mxu0 0.0
    %987 = vmatpush1.msra.mxu0 0.0
    %988 = vmatprep.subr.mxu0 0.0
    %989 = vmatpush1.msra.mxu0 0.0
    %990 = vmatprep.subr.mxu0 0.0
    %991 = vmatpush1.msra.mxu0 0.0
    %992 = vmatprep.subr.mxu0 0.0
    %993 = vmatpush1.msra.mxu0 0.0
    %994 = vmatprep.subr.mxu0 0.0
    %995 = vmatpush1.msra.mxu0 0.0
    %996 = vmatprep.subr.mxu0 0.0
    %997 = vmatpush1.msra.mxu0 0.0
    %998 = vmatprep.subr.mxu0 0.0
    %999 = vmatpush1.msra.mxu0 0.0
    %1000 = vmatprep.subr.mxu0 0.0
    %1001 = vmatpush1.msra.mxu0 %v471
    %1002 = vmatprep.subr.mxu0 0.0
    %1003 = vmatpush2.msra.mxu0 0.0
    %1004 = vmatprep.subr.mxu0 0.0
    %1005 = vmatpush2.msra.mxu0 0.0
    %1006 = vmatprep.subr.mxu0 0.0
    %1007 = vmatpush2.msra.mxu0 0.0
    %1008 = vmatprep.subr.mxu0 0.0
    %1009 = vmatpush2.msra.mxu0 0.0
    %1010 = vmatprep.subr.mxu0 0.0
    %1011 = vmatpush2.msra.mxu0 0.0
    %1012 = vmatprep.subr.mxu0 0.0
    %1013 = vmatpush2.msra.mxu0 0.0
    %1014 = vmatprep.subr.mxu0 0.0
    %1015 = vmatpush2.msra.mxu0 0.0
    %1016 = vmatprep.subr.mxu0 0.0
    %1017 = vmatpush2.msra.mxu0 0.0
    %1018 = vmatprep.subr.mxu0 0.0
    %1019 = vmatpush2.msra.mxu0 0.0
    %1020 = vmatprep.subr.mxu0 0.0
    %1021 = vmatpush2.msra.mxu0 0.0
    %1022 = vmatprep.subr.mxu0 0.0
    %1023 = vmatpush2.msra.mxu0 0.0
    %1024 = vmatprep.subr.mxu0 0.0
    %1025 = vmatpush2.msra.mxu0 0.0
    %1026 = vmatprep.subr.mxu0 0.0
    %1027 = vmatpush2.msra.mxu0 0.0
    %1028 = vmatprep.subr.mxu0 0.0
    %1029 = vmatpush2.msra.mxu0 0.0
    %1030 = vmatprep.subr.mxu0 0.0
    %1031 = vmatpush2.msra.mxu0 0.0
    %1032 = vmatprep.subr.mxu0 0.0
    %1033 = vmatpush2.msra.mxu0 0.0
    %1034 = vmatprep.mubr.f32.mxu0 0.0
    %1035 = vmatmul.mubr.f32.gmra.mxu0 %v968
    %v1036 = vpop.f32.mrf.mxu0
    %v1037 = vadd.f32 0.0, %v1036
    %v1038 = vpop.f32.mrf.mxu0
    %1039 = vdwg.mxu0
    %v1040 = vsel %vm967, %v334, 0
    %1042 = vmatprep.subr.mxu0 0.0
    %1043 = vmatpush1.msra.mxu0 0.0
    %1044 = vmatprep.subr.mxu0 0.0
    %1045 = vmatpush1.msra.mxu0 0.0
    %1046 = vmatprep.subr.mxu0 0.0
    %1047 = vmatpush1.msra.mxu0 0.0
    %1048 = vmatprep.subr.mxu0 0.0
    %1049 = vmatpush1.msra.mxu0 0.0
    %1050 = vmatprep.subr.mxu0 0.0
    %1051 = vmatpush1.msra.mxu0 0.0
    %1052 = vmatprep.subr.mxu0 0.0
    %1053 = vmatpush1.msra.mxu0 0.0
    %1054 = vmatprep.subr.mxu0 0.0
    %1055 = vmatpush1.msra.mxu0 0.0
    %1056 = vmatprep.subr.mxu0 0.0
    %1057 = vmatpush1.msra.mxu0 0.0
    %1058 = vmatprep.subr.mxu0 0.0
    %1059 = vmatpush1.msra.mxu0 0.0
    %1060 = vmatprep.subr.mxu0 0.0
    %1061 = vmatpush1.msra.mxu0 0.0
    %1062 = vmatprep.subr.mxu0 0.0
    %1063 = vmatpush1.msra.mxu0 0.0
    %1064 = vmatprep.subr.mxu0 0.0
    %1065 = vmatpush1.msra.mxu0 0.0
    %1066 = vmatprep.subr.mxu0 0.0
    %1067 = vmatpush1.msra.mxu0 0.0
    %1068 = vmatprep.subr.mxu0 0.0
    %1069 = vmatpush1.msra.mxu0 0.0
    %1070 = vmatprep.subr.mxu0 0.0
    %1071 = vmatpush1.msra.mxu0 0.0
    %1072 = vmatprep.subr.mxu0 0.0
    %1073 = vmatpush1.msra.mxu0 %v503
    %1074 = vmatprep.subr.mxu0 0.0
    %1075 = vmatpush2.msra.mxu0 0.0
    %1076 = vmatprep.subr.mxu0 0.0
    %1077 = vmatpush2.msra.mxu0 0.0
    %1078 = vmatprep.subr.mxu0 0.0
    %1079 = vmatpush2.msra.mxu0 0.0
    %1080 = vmatprep.subr.mxu0 0.0
    %1081 = vmatpush2.msra.mxu0 0.0
    %1082 = vmatprep.subr.mxu0 0.0
    %1083 = vmatpush2.msra.mxu0 0.0
    %1084 = vmatprep.subr.mxu0 0.0
    %1085 = vmatpush2.msra.mxu0 0.0
    %1086 = vmatprep.subr.mxu0 0.0
    %1087 = vmatpush2.msra.mxu0 0.0
    %1088 = vmatprep.subr.mxu0 0.0
    %1089 = vmatpush2.msra.mxu0 0.0
    %1090 = vmatprep.subr.mxu0 0.0
    %1091 = vmatpush2.msra.mxu0 0.0
    %1092 = vmatprep.subr.mxu0 0.0
    %1093 = vmatpush2.msra.mxu0 0.0
    %1094 = vmatprep.subr.mxu0 0.0
    %1095 = vmatpush2.msra.mxu0 0.0
    %1096 = vmatprep.subr.mxu0 0.0
    %1097 = vmatpush2.msra.mxu0 0.0
    %1098 = vmatprep.subr.mxu0 0.0
    %1099 = vmatpush2.msra.mxu0 0.0
    %1100 = vmatprep.subr.mxu0 0.0
    %1101 = vmatpush2.msra.mxu0 0.0
    %1102 = vmatprep.subr.mxu0 0.0
    %1103 = vmatpush2.msra.mxu0 0.0
    %1104 = vmatprep.subr.mxu0 0.0
    %1105 = vmatpush2.msra.mxu0 0.0
    %1106 = vmatprep.mubr.f32.mxu0 0.0
    %1107 = vmatmul.mubr.f32.gmra.mxu0 %v1040
    %v1108 = vpop.f32.mrf.mxu0
    %v1109 = vadd.f32 0.0, %v1108
    %v1110 = vpop.f32.mrf.mxu0
    %1111 = vdwg.mxu0
    %v1112 = vsel %vm967, %v336, 0
    %1114 = vmatprep.subr.mxu0 0.0
    %1115 = vmatpush1.msra.mxu0 0.0
    %1116 = vmatprep.subr.mxu0 0.0
    %1117 = vmatpush1.msra.mxu0 0.0
    %1118 = vmatprep.subr.mxu0 0.0
    %1119 = vmatpush1.msra.mxu0 0.0
    %1120 = vmatprep.subr.mxu0 0.0
    %1121 = vmatpush1.msra.mxu0 0.0
    %1122 = vmatprep.subr.mxu0 0.0
    %1123 = vmatpush1.msra.mxu0 0.0
    %1124 = vmatprep.subr.mxu0 0.0
    %1125 = vmatpush1.msra.mxu0 0.0
    %1126 = vmatprep.subr.mxu0 0.0
    %1127 = vmatpush1.msra.mxu0 0.0
    %1128 = vmatprep.subr.mxu0 0.0
    %1129 = vmatpush1.msra.mxu0 0.0
    %1130 = vmatprep.subr.mxu0 0.0
    %1131 = vmatpush1.msra.mxu0 0.0
    %1132 = vmatprep.subr.mxu0 0.0
    %1133 = vmatpush1.msra.mxu0 0.0
    %1134 = vmatprep.subr.mxu0 0.0
    %1135 = vmatpush1.msra.mxu0 0.0
    %1136 = vmatprep.subr.mxu0 0.0
    %1137 = vmatpush1.msra.mxu0 0.0
    %1138 = vmatprep.subr.mxu0 0.0
    %1139 = vmatpush1.msra.mxu0 0.0
    %1140 = vmatprep.subr.mxu0 0.0
    %1141 = vmatpush1.msra.mxu0 0.0
    %1142 = vmatprep.subr.mxu0 0.0
    %1143 = vmatpush1.msra.mxu0 0.0
    %1144 = vmatprep.subr.mxu0 0.0
    %1145 = vmatpush1.msra.mxu0 %v535
    %1146 = vmatprep.subr.mxu0 0.0
    %1147 = vmatpush2.msra.mxu0 0.0
    %1148 = vmatprep.subr.mxu0 0.0
    %1149 = vmatpush2.msra.mxu0 0.0
    %1150 = vmatprep.subr.mxu0 0.0
    %1151 = vmatpush2.msra.mxu0 0.0
    %1152 = vmatprep.subr.mxu0 0.0
    %1153 = vmatpush2.msra.mxu0 0.0
    %1154 = vmatprep.subr.mxu0 0.0
    %1155 = vmatpush2.msra.mxu0 0.0
    %1156 = vmatprep.subr.mxu0 0.0
    %1157 = vmatpush2.msra.mxu0 0.0
    %1158 = vmatprep.subr.mxu0 0.0
    %1159 = vmatpush2.msra.mxu0 0.0
    %1160 = vmatprep.subr.mxu0 0.0
    %1161 = vmatpush2.msra.mxu0 0.0
    %1162 = vmatprep.subr.mxu0 0.0
    %1163 = vmatpush2.msra.mxu0 0.0
    %1164 = vmatprep.subr.mxu0 0.0
    %1165 = vmatpush2.msra.mxu0 0.0
    %1166 = vmatprep.subr.mxu0 0.0
    %1167 = vmatpush2.msra.mxu0 0.0
    %1168 = vmatprep.subr.mxu0 0.0
    %1169 = vmatpush2.msra.mxu0 0.0
    %1170 = vmatprep.subr.mxu0 0.0
    %1171 = vmatpush2.msra.mxu0 0.0
    %1172 = vmatprep.subr.mxu0 0.0
    %1173 = vmatpush2.msra.mxu0 0.0
    %1174 = vmatprep.subr.mxu0 0.0
    %1175 = vmatpush2.msra.mxu0 0.0
    %1176 = vmatprep.subr.mxu0 0.0
    %1177 = vmatpush2.msra.mxu0 0.0
    %1178 = vmatprep.mubr.f32.mxu0 0.0
    %1179 = vmatmul.mubr.f32.gmra.mxu0 %v1112
    %v1180 = vpop.f32.mrf.mxu0
    %v1181 = vadd.f32 0.0, %v1180
    %v1182 = vpop.f32.mrf.mxu0
    %1183 = vdwg.mxu0
    %v1184 = vsel %vm967, %v338, 0
    %1186 = vmatprep.subr.mxu0 0.0
    %1187 = vmatpush1.msra.mxu0 0.0
    %1188 = vmatprep.subr.mxu0 0.0
    %1189 = vmatpush1.msra.mxu0 0.0
    %1190 = vmatprep.subr.mxu0 0.0
    %1191 = vmatpush1.msra.mxu0 0.0
    %1192 = vmatprep.subr.mxu0 0.0
    %1193 = vmatpush1.msra.mxu0 0.0
    %1194 = vmatprep.subr.mxu0 0.0
    %1195 = vmatpush1.msra.mxu0 0.0
    %1196 = vmatprep.subr.mxu0 0.0
    %1197 = vmatpush1.msra.mxu0 0.0
    %1198 = vmatprep.subr.mxu0 0.0
    %1199 = vmatpush1.msra.mxu0 0.0
    %1200 = vmatprep.subr.mxu0 0.0
    %1201 = vmatpush1.msra.mxu0 0.0
    %1202 = vmatprep.subr.mxu0 0.0
    %1203 = vmatpush1.msra.mxu0 0.0
    %1204 = vmatprep.subr.mxu0 0.0
    %1205 = vmatpush1.msra.mxu0 0.0
    %1206 = vmatprep.subr.mxu0 0.0
    %1207 = vmatpush1.msra.mxu0 0.0
    %1208 = vmatprep.subr.mxu0 0.0
    %1209 = vmatpush1.msra.mxu0 0.0
    %1210 = vmatprep.subr.mxu0 0.0
    %1211 = vmatpush1.msra.mxu0 0.0
    %1212 = vmatprep.subr.mxu0 0.0
    %1213 = vmatpush1.msra.mxu0 0.0
    %1214 = vmatprep.subr.mxu0 0.0
    %1215 = vmatpush1.msra.mxu0 0.0
    %1216 = vmatprep.subr.mxu0 0.0
    %1217 = vmatpush1.msra.mxu0 %v567
    %1218 = vmatprep.subr.mxu0 0.0
    %1219 = vmatpush2.msra.mxu0 0.0
    %1220 = vmatprep.subr.mxu0 0.0
    %1221 = vmatpush2.msra.mxu0 0.0
    %1222 = vmatprep.subr.mxu0 0.0
    %1223 = vmatpush2.msra.mxu0 0.0
    %1224 = vmatprep.subr.mxu0 0.0
    %1225 = vmatpush2.msra.mxu0 0.0
    %1226 = vmatprep.subr.mxu0 0.0
    %1227 = vmatpush2.msra.mxu0 0.0
    %1228 = vmatprep.subr.mxu0 0.0
    %1229 = vmatpush2.msra.mxu0 0.0
    %1230 = vmatprep.subr.mxu0 0.0
    %1231 = vmatpush2.msra.mxu0 0.0
    %1232 = vmatprep.subr.mxu0 0.0
    %1233 = vmatpush2.msra.mxu0 0.0
    %1234 = vmatprep.subr.mxu0 0.0
    %1235 = vmatpush2.msra.mxu0 0.0
    %1236 = vmatprep.subr.mxu0 0.0
    %1237 = vmatpush2.msra.mxu0 0.0
    %1238 = vmatprep.subr.mxu0 0.0
    %1239 = vmatpush2.msra.mxu0 0.0
    %1240 = vmatprep.subr.mxu0 0.0
    %1241 = vmatpush2.msra.mxu0 0.0
    %1242 = vmatprep.subr.mxu0 0.0
    %1243 = vmatpush2.msra.mxu0 0.0
    %1244 = vmatprep.subr.mxu0 0.0
    %1245 = vmatpush2.msra.mxu0 0.0
    %1246 = vmatprep.subr.mxu0 0.0
    %1247 = vmatpush2.msra.mxu0 0.0
    %1248 = vmatprep.subr.mxu0 0.0
    %1249 = vmatpush2.msra.mxu0 0.0
    %1250 = vmatprep.mubr.f32.mxu0 0.0
    %1251 = vmatmul.mubr.f32.gmra.mxu0 %v1184
    %v1252 = vpop.f32.mrf.mxu0
    %v1253 = vadd.f32 0.0, %v1252
    %v1254 = vpop.f32.mrf.mxu0
    %1255 = vdwg.mxu0
    %v1256 = vsel %vm967, %v340, 0
    %1258 = vmatprep.subr.mxu0 0.0
    %1259 = vmatpush1.msra.mxu0 0.0
    %1260 = vmatprep.subr.mxu0 0.0
    %1261 = vmatpush1.msra.mxu0 0.0
    %1262 = vmatprep.subr.mxu0 0.0
    %1263 = vmatpush1.msra.mxu0 0.0
    %1264 = vmatprep.subr.mxu0 0.0
    %1265 = vmatpush1.msra.mxu0 0.0
    %1266 = vmatprep.subr.mxu0 0.0
    %1267 = vmatpush1.msra.mxu0 0.0
    %1268 = vmatprep.subr.mxu0 0.0
    %1269 = vmatpush1.msra.mxu0 0.0
    %1270 = vmatprep.subr.mxu0 0.0
    %1271 = vmatpush1.msra.mxu0 0.0
    %1272 = vmatprep.subr.mxu0 0.0
    %1273 = vmatpush1.msra.mxu0 0.0
    %1274 = vmatprep.subr.mxu0 0.0
    %1275 = vmatpush1.msra.mxu0 0.0
    %1276 = vmatprep.subr.mxu0 0.0
    %1277 = vmatpush1.msra.mxu0 0.0
    %1278 = vmatprep.subr.mxu0 0.0
    %1279 = vmatpush1.msra.mxu0 0.0
    %1280 = vmatprep.subr.mxu0 0.0
    %1281 = vmatpush1.msra.mxu0 0.0
    %1282 = vmatprep.subr.mxu0 0.0
    %1283 = vmatpush1.msra.mxu0 0.0
    %1284 = vmatprep.subr.mxu0 0.0
    %1285 = vmatpush1.msra.mxu0 0.0
    %1286 = vmatprep.subr.mxu0 0.0
    %1287 = vmatpush1.msra.mxu0 0.0
    %1288 = vmatprep.subr.mxu0 0.0
    %1289 = vmatpush1.msra.mxu0 %v599
    %1290 = vmatprep.subr.mxu0 0.0
    %1291 = vmatpush2.msra.mxu0 0.0
    %1292 = vmatprep.subr.mxu0 0.0
    %1293 = vmatpush2.msra.mxu0 0.0
    %1294 = vmatprep.subr.mxu0 0.0
    %1295 = vmatpush2.msra.mxu0 0.0
    %1296 = vmatprep.subr.mxu0 0.0
    %1297 = vmatpush2.msra.mxu0 0.0
    %1298 = vmatprep.subr.mxu0 0.0
    %1299 = vmatpush2.msra.mxu0 0.0
    %1300 = vmatprep.subr.mxu0 0.0
    %1301 = vmatpush2.msra.mxu0 0.0
    %1302 = vmatprep.subr.mxu0 0.0
    %1303 = vmatpush2.msra.mxu0 0.0
    %1304 = vmatprep.subr.mxu0 0.0
    %1305 = vmatpush2.msra.mxu0 0.0
    %1306 = vmatprep.subr.mxu0 0.0
    %1307 = vmatpush2.msra.mxu0 0.0
    %1308 = vmatprep.subr.mxu0 0.0
    %1309 = vmatpush2.msra.mxu0 0.0
    %1310 = vmatprep.subr.mxu0 0.0
    %1311 = vmatpush2.msra.mxu0 0.0
    %1312 = vmatprep.subr.mxu0 0.0
    %1313 = vmatpush2.msra.mxu0 0.0
    %1314 = vmatprep.subr.mxu0 0.0
    %1315 = vmatpush2.msra.mxu0 0.0
    %1316 = vmatprep.subr.mxu0 0.0
    %1317 = vmatpush2.msra.mxu0 0.0
    %1318 = vmatprep.subr.mxu0 0.0
    %1319 = vmatpush2.msra.mxu0 0.0
    %1320 = vmatprep.subr.mxu0 0.0
    %1321 = vmatpush2.msra.mxu0 0.0
    %1322 = vmatprep.mubr.f32.mxu0 0.0
    %1323 = vmatmul.mubr.f32.gmra.mxu0 %v1256
    %v1324 = vpop.f32.mrf.mxu0
    %v1325 = vadd.f32 0.0, %v1324
    %v1326 = vpop.f32.mrf.mxu0
    %1327 = vdwg.mxu0
    %v1328 = vsel %vm967, %v342, 0
    %1330 = vmatprep.subr.mxu0 0.0
    %1331 = vmatpush1.msra.mxu0 0.0
    %1332 = vmatprep.subr.mxu0 0.0
    %1333 = vmatpush1.msra.mxu0 0.0
    %1334 = vmatprep.subr.mxu0 0.0
    %1335 = vmatpush1.msra.mxu0 0.0
    %1336 = vmatprep.subr.mxu0 0.0
    %1337 = vmatpush1.msra.mxu0 0.0
    %1338 = vmatprep.subr.mxu0 0.0
    %1339 = vmatpush1.msra.mxu0 0.0
    %1340 = vmatprep.subr.mxu0 0.0
    %1341 = vmatpush1.msra.mxu0 0.0
    %1342 = vmatprep.subr.mxu0 0.0
    %1343 = vmatpush1.msra.mxu0 0.0
    %1344 = vmatprep.subr.mxu0 0.0
    %1345 = vmatpush1.msra.mxu0 0.0
    %1346 = vmatprep.subr.mxu0 0.0
    %1347 = vmatpush1.msra.mxu0 0.0
    %1348 = vmatprep.subr.mxu0 0.0
    %1349 = vmatpush1.msra.mxu0 0.0
    %1350 = vmatprep.subr.mxu0 0.0
    %1351 = vmatpush1.msra.mxu0 0.0
    %1352 = vmatprep.subr.mxu0 0.0
    %1353 = vmatpush1.msra.mxu0 0.0
    %1354 = vmatprep.subr.mxu0 0.0
    %1355 = vmatpush1.msra.mxu0 0.0
    %1356 = vmatprep.subr.mxu0 0.0
    %1357 = vmatpush1.msra.mxu0 0.0
    %1358 = vmatprep.subr.mxu0 0.0
    %1359 = vmatpush1.msra.mxu0 0.0
    %1360 = vmatprep.subr.mxu0 0.0
    %1361 = vmatpush1.msra.mxu0 %v631
    %1362 = vmatprep.subr.mxu0 0.0
    %1363 = vmatpush2.msra.mxu0 0.0
    %1364 = vmatprep.subr.mxu0 0.0
    %1365 = vmatpush2.msra.mxu0 0.0
    %1366 = vmatprep.subr.mxu0 0.0
    %1367 = vmatpush2.msra.mxu0 0.0
    %1368 = vmatprep.subr.mxu0 0.0
    %1369 = vmatpush2.msra.mxu0 0.0
    %1370 = vmatprep.subr.mxu0 0.0
    %1371 = vmatpush2.msra.mxu0 0.0
    %1372 = vmatprep.subr.mxu0 0.0
    %1373 = vmatpush2.msra.mxu0 0.0
    %1374 = vmatprep.subr.mxu0 0.0
    %1375 = vmatpush2.msra.mxu0 0.0
    %1376 = vmatprep.subr.mxu0 0.0
    %1377 = vmatpush2.msra.mxu0 0.0
    %1378 = vmatprep.subr.mxu0 0.0
    %1379 = vmatpush2.msra.mxu0 0.0
    %1380 = vmatprep.subr.mxu0 0.0
    %1381 = vmatpush2.msra.mxu0 0.0
    %1382 = vmatprep.subr.mxu0 0.0
    %1383 = vmatpush2.msra.mxu0 0.0
    %1384 = vmatprep.subr.mxu0 0.0
    %1385 = vmatpush2.msra.mxu0 0.0
    %1386 = vmatprep.subr.mxu0 0.0
    %1387 = vmatpush2.msra.mxu0 0.0
    %1388 = vmatprep.subr.mxu0 0.0
    %1389 = vmatpush2.msra.mxu0 0.0
    %1390 = vmatprep.subr.mxu0 0.0
    %1391 = vmatpush2.msra.mxu0 0.0
    %1392 = vmatprep.subr.mxu0 0.0
    %1393 = vmatpush2.msra.mxu0 0.0
    %1394 = vmatprep.mubr.f32.mxu0 0.0
    %1395 = vmatmul.mubr.f32.gmra.mxu0 %v1328
    %v1396 = vpop.f32.mrf.mxu0
    %v1397 = vadd.f32 0.0, %v1396
    %v1398 = vpop.f32.mrf.mxu0
    %1399 = vdwg.mxu0
    %v1400 = vsel %vm967, %v344, 0
    %1402 = vmatprep.subr.mxu0 0.0
    %1403 = vmatpush1.msra.mxu0 0.0
    %1404 = vmatprep.subr.mxu0 0.0
    %1405 = vmatpush1.msra.mxu0 0.0
    %1406 = vmatprep.subr.mxu0 0.0
    %1407 = vmatpush1.msra.mxu0 0.0
    %1408 = vmatprep.subr.mxu0 0.0
    %1409 = vmatpush1.msra.mxu0 0.0
    %1410 = vmatprep.subr.mxu0 0.0
    %1411 = vmatpush1.msra.mxu0 0.0
    %1412 = vmatprep.subr.mxu0 0.0
    %1413 = vmatpush1.msra.mxu0 0.0
    %1414 = vmatprep.subr.mxu0 0.0
    %1415 = vmatpush1.msra.mxu0 0.0
    %1416 = vmatprep.subr.mxu0 0.0
    %1417 = vmatpush1.msra.mxu0 0.0
    %1418 = vmatprep.subr.mxu0 0.0
    %1419 = vmatpush1.msra.mxu0 0.0
    %1420 = vmatprep.subr.mxu0 0.0
    %1421 = vmatpush1.msra.mxu0 0.0
    %1422 = vmatprep.subr.mxu0 0.0
    %1423 = vmatpush1.msra.mxu0 0.0
    %1424 = vmatprep.subr.mxu0 0.0
    %1425 = vmatpush1.msra.mxu0 0.0
    %1426 = vmatprep.subr.mxu0 0.0
    %1427 = vmatpush1.msra.mxu0 0.0
    %1428 = vmatprep.subr.mxu0 0.0
    %1429 = vmatpush1.msra.mxu0 0.0
    %1430 = vmatprep.subr.mxu0 0.0
    %1431 = vmatpush1.msra.mxu0 0.0
    %1432 = vmatprep.subr.mxu0 0.0
    %1433 = vmatpush1.msra.mxu0 %v663
    %1434 = vmatprep.subr.mxu0 0.0
    %1435 = vmatpush2.msra.mxu0 0.0
    %1436 = vmatprep.subr.mxu0 0.0
    %1437 = vmatpush2.msra.mxu0 0.0
    %1438 = vmatprep.subr.mxu0 0.0
    %1439 = vmatpush2.msra.mxu0 0.0
    %1440 = vmatprep.subr.mxu0 0.0
    %1441 = vmatpush2.msra.mxu0 0.0
    %1442 = vmatprep.subr.mxu0 0.0
    %1443 = vmatpush2.msra.mxu0 0.0
    %1444 = vmatprep.subr.mxu0 0.0
    %1445 = vmatpush2.msra.mxu0 0.0
    %1446 = vmatprep.subr.mxu0 0.0
    %1447 = vmatpush2.msra.mxu0 0.0
    %1448 = vmatprep.subr.mxu0 0.0
    %1449 = vmatpush2.msra.mxu0 0.0
    %1450 = vmatprep.subr.mxu0 0.0
    %1451 = vmatpush2.msra.mxu0 0.0
    %1452 = vmatprep.subr.mxu0 0.0
    %1453 = vmatpush2.msra.mxu0 0.0
    %1454 = vmatprep.subr.mxu0 0.0
    %1455 = vmatpush2.msra.mxu0 0.0
    %1456 = vmatprep.subr.mxu0 0.0
    %1457 = vmatpush2.msra.mxu0 0.0
    %1458 = vmatprep.subr.mxu0 0.0
    %1459 = vmatpush2.msra.mxu0 0.0
    %1460 = vmatprep.subr.mxu0 0.0
    %1461 = vmatpush2.msra.mxu0 0.0
    %1462 = vmatprep.subr.mxu0 0.0
    %1463 = vmatpush2.msra.mxu0 0.0
    %1464 = vmatprep.subr.mxu0 0.0
    %1465 = vmatpush2.msra.mxu0 0.0
    %1466 = vmatprep.mubr.f32.mxu0 0.0
    %1467 = vmatmul.mubr.f32.gmra.mxu0 %v1400
    %v1468 = vpop.f32.mrf.mxu0
    %v1469 = vadd.f32 0.0, %v1468
    %v1470 = vpop.f32.mrf.mxu0
    %1471 = vdwg.mxu0
    %v1472 = vsel %vm967, %v346, 0
    %1474 = vmatprep.subr.mxu0 0.0
    %1475 = vmatpush1.msra.mxu0 0.0
    %1476 = vmatprep.subr.mxu0 0.0
    %1477 = vmatpush1.msra.mxu0 0.0
    %1478 = vmatprep.subr.mxu0 0.0
    %1479 = vmatpush1.msra.mxu0 0.0
    %1480 = vmatprep.subr.mxu0 0.0
    %1481 = vmatpush1.msra.mxu0 0.0
    %1482 = vmatprep.subr.mxu0 0.0
    %1483 = vmatpush1.msra.mxu0 0.0
    %1484 = vmatprep.subr.mxu0 0.0
    %1485 = vmatpush1.msra.mxu0 0.0
    %1486 = vmatprep.subr.mxu0 0.0
    %1487 = vmatpush1.msra.mxu0 0.0
    %1488 = vmatprep.subr.mxu0 0.0
    %1489 = vmatpush1.msra.mxu0 0.0
    %1490 = vmatprep.subr.mxu0 0.0
    %1491 = vmatpush1.msra.mxu0 0.0
    %1492 = vmatprep.subr.mxu0 0.0
    %1493 = vmatpush1.msra.mxu0 0.0
    %1494 = vmatprep.subr.mxu0 0.0
    %1495 = vmatpush1.msra.mxu0 0.0
    %1496 = vmatprep.subr.mxu0 0.0
    %1497 = vmatpush1.msra.mxu0 0.0
    %1498 = vmatprep.subr.mxu0 0.0
    %1499 = vmatpush1.msra.mxu0 0.0
    %1500 = vmatprep.subr.mxu0 0.0
    %1501 = vmatpush1.msra.mxu0 0.0
    %1502 = vmatprep.subr.mxu0 0.0
    %1503 = vmatpush1.msra.mxu0 0.0
    %1504 = vmatprep.subr.mxu0 0.0
    %1505 = vmatpush1.msra.mxu0 %v695
    %1506 = vmatprep.subr.mxu0 0.0
    %1507 = vmatpush2.msra.mxu0 0.0
    %1508 = vmatprep.subr.mxu0 0.0
    %1509 = vmatpush2.msra.mxu0 0.0
    %1510 = vmatprep.subr.mxu0 0.0
    %1511 = vmatpush2.msra.mxu0 0.0
    %1512 = vmatprep.subr.mxu0 0.0
    %1513 = vmatpush2.msra.mxu0 0.0
    %1514 = vmatprep.subr.mxu0 0.0
    %1515 = vmatpush2.msra.mxu0 0.0
    %1516 = vmatprep.subr.mxu0 0.0
    %1517 = vmatpush2.msra.mxu0 0.0
    %1518 = vmatprep.subr.mxu0 0.0
    %1519 = vmatpush2.msra.mxu0 0.0
    %1520 = vmatprep.subr.mxu0 0.0
    %1521 = vmatpush2.msra.mxu0 0.0
    %1522 = vmatprep.subr.mxu0 0.0
    %1523 = vmatpush2.msra.mxu0 0.0
    %1524 = vmatprep.subr.mxu0 0.0
    %1525 = vmatpush2.msra.mxu0 0.0
    %1526 = vmatprep.subr.mxu0 0.0
    %1527 = vmatpush2.msra.mxu0 0.0
    %1528 = vmatprep.subr.mxu0 0.0
    %1529 = vmatpush2.msra.mxu0 0.0
    %1530 = vmatprep.subr.mxu0 0.0
    %1531 = vmatpush2.msra.mxu0 0.0
    %1532 = vmatprep.subr.mxu0 0.0
    %1533 = vmatpush2.msra.mxu0 0.0
    %1534 = vmatprep.subr.mxu0 0.0
    %1535 = vmatpush2.msra.mxu0 0.0
    %1536 = vmatprep.subr.mxu0 0.0
    %1537 = vmatpush2.msra.mxu0 0.0
    %1538 = vmatprep.mubr.f32.mxu0 0.0
    %1539 = vmatmul.mubr.f32.gmra.mxu0 %v1472
    %v1540 = vpop.f32.mrf.mxu0
    %v1541 = vadd.f32 0.0, %v1540
    %v1542 = vpop.f32.mrf.mxu0
    %1543 = vdwg.mxu0
    %v1544 = vsel %vm967, %v348, 0
    %1546 = vmatprep.subr.mxu0 0.0
    %1547 = vmatpush1.msra.mxu0 0.0
    %1548 = vmatprep.subr.mxu0 0.0
    %1549 = vmatpush1.msra.mxu0 0.0
    %1550 = vmatprep.subr.mxu0 0.0
    %1551 = vmatpush1.msra.mxu0 0.0
    %1552 = vmatprep.subr.mxu0 0.0
    %1553 = vmatpush1.msra.mxu0 0.0
    %1554 = vmatprep.subr.mxu0 0.0
    %1555 = vmatpush1.msra.mxu0 0.0
    %1556 = vmatprep.subr.mxu0 0.0
    %1557 = vmatpush1.msra.mxu0 0.0
    %1558 = vmatprep.subr.mxu0 0.0
    %1559 = vmatpush1.msra.mxu0 0.0
    %1560 = vmatprep.subr.mxu0 0.0
    %1561 = vmatpush1.msra.mxu0 0.0
    %1562 = vmatprep.subr.mxu0 0.0
    %1563 = vmatpush1.msra.mxu0 0.0
    %1564 = vmatprep.subr.mxu0 0.0
    %1565 = vmatpush1.msra.mxu0 0.0
    %1566 = vmatprep.subr.mxu0 0.0
    %1567 = vmatpush1.msra.mxu0 0.0
    %1568 = vmatprep.subr.mxu0 0.0
    %1569 = vmatpush1.msra.mxu0 0.0
    %1570 = vmatprep.subr.mxu0 0.0
    %1571 = vmatpush1.msra.mxu0 0.0
    %1572 = vmatprep.subr.mxu0 0.0
    %1573 = vmatpush1.msra.mxu0 0.0
    %1574 = vmatprep.subr.mxu0 0.0
    %1575 = vmatpush1.msra.mxu0 0.0
    %1576 = vmatprep.subr.mxu0 0.0
    %1577 = vmatpush1.msra.mxu0 %v727
    %1578 = vmatprep.subr.mxu0 0.0
    %1579 = vmatpush2.msra.mxu0 0.0
    %1580 = vmatprep.subr.mxu0 0.0
    %1581 = vmatpush2.msra.mxu0 0.0
    %1582 = vmatprep.subr.mxu0 0.0
    %1583 = vmatpush2.msra.mxu0 0.0
    %1584 = vmatprep.subr.mxu0 0.0
    %1585 = vmatpush2.msra.mxu0 0.0
    %1586 = vmatprep.subr.mxu0 0.0
    %1587 = vmatpush2.msra.mxu0 0.0
    %1588 = vmatprep.subr.mxu0 0.0
    %1589 = vmatpush2.msra.mxu0 0.0
    %1590 = vmatprep.subr.mxu0 0.0
    %1591 = vmatpush2.msra.mxu0 0.0
    %1592 = vmatprep.subr.mxu0 0.0
    %1593 = vmatpush2.msra.mxu0 0.0
    %1594 = vmatprep.subr.mxu0 0.0
    %1595 = vmatpush2.msra.mxu0 0.0
    %1596 = vmatprep.subr.mxu0 0.0
    %1597 = vmatpush2.msra.mxu0 0.0
    %1598 = vmatprep.subr.mxu0 0.0
    %1599 = vmatpush2.msra.mxu0 0.0
    %1600 = vmatprep.subr.mxu0 0.0
    %1601 = vmatpush2.msra.mxu0 0.0
    %1602 = vmatprep.subr.mxu0 0.0
    %1603 = vmatpush2.msra.mxu0 0.0
    %1604 = vmatprep.subr.mxu0 0.0
    %1605 = vmatpush2.msra.mxu0 0.0
    %1606 = vmatprep.subr.mxu0 0.0
    %1607 = vmatpush2.msra.mxu0 0.0
    %1608 = vmatprep.subr.mxu0 0.0
    %1609 = vmatpush2.msra.mxu0 0.0
    %1610 = vmatprep.mubr.f32.mxu0 0.0
    %1611 = vmatmul.mubr.f32.gmra.mxu0 %v1544
    %v1612 = vpop.f32.mrf.mxu0
    %v1613 = vadd.f32 0.0, %v1612
    %v1614 = vpop.f32.mrf.mxu0
    %1615 = vdwg.mxu0
    %v1616 = vsel %vm967, %v350, 0
    %1618 = vmatprep.subr.mxu0 0.0
    %1619 = vmatpush1.msra.mxu0 0.0
    %1620 = vmatprep.subr.mxu0 0.0
    %1621 = vmatpush1.msra.mxu0 0.0
    %1622 = vmatprep.subr.mxu0 0.0
    %1623 = vmatpush1.msra.mxu0 0.0
    %1624 = vmatprep.subr.mxu0 0.0
    %1625 = vmatpush1.msra.mxu0 0.0
    %1626 = vmatprep.subr.mxu0 0.0
    %1627 = vmatpush1.msra.mxu0 0.0
    %1628 = vmatprep.subr.mxu0 0.0
    %1629 = vmatpush1.msra.mxu0 0.0
    %1630 = vmatprep.subr.mxu0 0.0
    %1631 = vmatpush1.msra.mxu0 0.0
    %1632 = vmatprep.subr.mxu0 0.0
    %1633 = vmatpush1.msra.mxu0 0.0
    %1634 = vmatprep.subr.mxu0 0.0
    %1635 = vmatpush1.msra.mxu0 0.0
    %1636 = vmatprep.subr.mxu0 0.0
    %1637 = vmatpush1.msra.mxu0 0.0
    %1638 = vmatprep.subr.mxu0 0.0
    %1639 = vmatpush1.msra.mxu0 0.0
    %1640 = vmatprep.subr.mxu0 0.0
    %1641 = vmatpush1.msra.mxu0 0.0
    %1642 = vmatprep.subr.mxu0 0.0
    %1643 = vmatpush1.msra.mxu0 0.0
    %1644 = vmatprep.subr.mxu0 0.0
    %1645 = vmatpush1.msra.mxu0 0.0
    %1646 = vmatprep.subr.mxu0 0.0
    %1647 = vmatpush1.msra.mxu0 0.0
    %1648 = vmatprep.subr.mxu0 0.0
    %1649 = vmatpush1.msra.mxu0 %v759
    %1650 = vmatprep.subr.mxu0 0.0
    %1651 = vmatpush2.msra.mxu0 0.0
    %1652 = vmatprep.subr.mxu0 0.0
    %1653 = vmatpush2.msra.mxu0 0.0
    %1654 = vmatprep.subr.mxu0 0.0
    %1655 = vmatpush2.msra.mxu0 0.0
    %1656 = vmatprep.subr.mxu0 0.0
    %1657 = vmatpush2.msra.mxu0 0.0
    %1658 = vmatprep.subr.mxu0 0.0
    %1659 = vmatpush2.msra.mxu0 0.0
    %1660 = vmatprep.subr.mxu0 0.0
    %1661 = vmatpush2.msra.mxu0 0.0
    %1662 = vmatprep.subr.mxu0 0.0
    %1663 = vmatpush2.msra.mxu0 0.0
    %1664 = vmatprep.subr.mxu0 0.0
    %1665 = vmatpush2.msra.mxu0 0.0
    %1666 = vmatprep.subr.mxu0 0.0
    %1667 = vmatpush2.msra.mxu0 0.0
    %1668 = vmatprep.subr.mxu0 0.0
    %1669 = vmatpush2.msra.mxu0 0.0
    %1670 = vmatprep.subr.mxu0 0.0
    %1671 = vmatpush2.msra.mxu0 0.0
    %1672 = vmatprep.subr.mxu0 0.0
    %1673 = vmatpush2.msra.mxu0 0.0
    %1674 = vmatprep.subr.mxu0 0.0
    %1675 = vmatpush2.msra.mxu0 0.0
    %1676 = vmatprep.subr.mxu0 0.0
    %1677 = vmatpush2.msra.mxu0 0.0
    %1678 = vmatprep.subr.mxu0 0.0
    %1679 = vmatpush2.msra.mxu0 0.0
    %1680 = vmatprep.subr.mxu0 0.0
    %1681 = vmatpush2.msra.mxu0 0.0
    %1682 = vmatprep.mubr.f32.mxu0 0.0
    %1683 = vmatmul.mubr.f32.gmra.mxu0 %v1616
    %v1684 = vpop.f32.mrf.mxu0
    %v1685 = vadd.f32 0.0, %v1684
    %v1686 = vpop.f32.mrf.mxu0
    %1687 = vdwg.mxu0
    %v1688 = vsel %vm967, %v352, 0
    %1690 = vmatprep.subr.mxu0 0.0
    %1691 = vmatpush1.msra.mxu0 0.0
    %1692 = vmatprep.subr.mxu0 0.0
    %1693 = vmatpush1.msra.mxu0 0.0
    %1694 = vmatprep.subr.mxu0 0.0
    %1695 = vmatpush1.msra.mxu0 0.0
    %1696 = vmatprep.subr.mxu0 0.0
    %1697 = vmatpush1.msra.mxu0 0.0
    %1698 = vmatprep.subr.mxu0 0.0
    %1699 = vmatpush1.msra.mxu0 0.0
    %1700 = vmatprep.subr.mxu0 0.0
    %1701 = vmatpush1.msra.mxu0 0.0
    %1702 = vmatprep.subr.mxu0 0.0
    %1703 = vmatpush1.msra.mxu0 0.0
    %1704 = vmatprep.subr.mxu0 0.0
    %1705 = vmatpush1.msra.mxu0 0.0
    %1706 = vmatprep.subr.mxu0 0.0
    %1707 = vmatpush1.msra.mxu0 0.0
    %1708 = vmatprep.subr.mxu0 0.0
    %1709 = vmatpush1.msra.mxu0 0.0
    %1710 = vmatprep.subr.mxu0 0.0
    %1711 = vmatpush1.msra.mxu0 0.0
    %1712 = vmatprep.subr.mxu0 0.0
    %1713 = vmatpush1.msra.mxu0 0.0
    %1714 = vmatprep.subr.mxu0 0.0
    %1715 = vmatpush1.msra.mxu0 0.0
    %1716 = vmatprep.subr.mxu0 0.0
    %1717 = vmatpush1.msra.mxu0 0.0
    %1718 = vmatprep.subr.mxu0 0.0
    %1719 = vmatpush1.msra.mxu0 0.0
    %1720 = vmatprep.subr.mxu0 0.0
    %1721 = vmatpush1.msra.mxu0 %v791
    %1722 = vmatprep.subr.mxu0 0.0
    %1723 = vmatpush2.msra.mxu0 0.0
    %1724 = vmatprep.subr.mxu0 0.0
    %1725 = vmatpush2.msra.mxu0 0.0
    %1726 = vmatprep.subr.mxu0 0.0
    %1727 = vmatpush2.msra.mxu0 0.0
    %1728 = vmatprep.subr.mxu0 0.0
    %1729 = vmatpush2.msra.mxu0 0.0
    %1730 = vmatprep.subr.mxu0 0.0
    %1731 = vmatpush2.msra.mxu0 0.0
    %1732 = vmatprep.subr.mxu0 0.0
    %1733 = vmatpush2.msra.mxu0 0.0
    %1734 = vmatprep.subr.mxu0 0.0
    %1735 = vmatpush2.msra.mxu0 0.0
    %1736 = vmatprep.subr.mxu0 0.0
    %1737 = vmatpush2.msra.mxu0 0.0
    %1738 = vmatprep.subr.mxu0 0.0
    %1739 = vmatpush2.msra.mxu0 0.0
    %1740 = vmatprep.subr.mxu0 0.0
    %1741 = vmatpush2.msra.mxu0 0.0
    %1742 = vmatprep.subr.mxu0 0.0
    %1743 = vmatpush2.msra.mxu0 0.0
    %1744 = vmatprep.subr.mxu0 0.0
    %1745 = vmatpush2.msra.mxu0 0.0
    %1746 = vmatprep.subr.mxu0 0.0
    %1747 = vmatpush2.msra.mxu0 0.0
    %1748 = vmatprep.subr.mxu0 0.0
    %1749 = vmatpush2.msra.mxu0 0.0
    %1750 = vmatprep.subr.mxu0 0.0
    %1751 = vmatpush2.msra.mxu0 0.0
    %1752 = vmatprep.subr.mxu0 0.0
    %1753 = vmatpush2.msra.mxu0 0.0
    %1754 = vmatprep.mubr.f32.mxu0 0.0
    %1755 = vmatmul.mubr.f32.gmra.mxu0 %v1688
    %v1756 = vpop.f32.mrf.mxu0
    %v1757 = vadd.f32 0.0, %v1756
    %v1758 = vpop.f32.mrf.mxu0
    %1759 = vdwg.mxu0
    %v1760 = vsel %vm967, %v354, 0
    %1762 = vmatprep.subr.mxu0 0.0
    %1763 = vmatpush1.msra.mxu0 0.0
    %1764 = vmatprep.subr.mxu0 0.0
    %1765 = vmatpush1.msra.mxu0 0.0
    %1766 = vmatprep.subr.mxu0 0.0
    %1767 = vmatpush1.msra.mxu0 0.0
    %1768 = vmatprep.subr.mxu0 0.0
    %1769 = vmatpush1.msra.mxu0 0.0
    %1770 = vmatprep.subr.mxu0 0.0
    %1771 = vmatpush1.msra.mxu0 0.0
    %1772 = vmatprep.subr.mxu0 0.0
    %1773 = vmatpush1.msra.mxu0 0.0
    %1774 = vmatprep.subr.mxu0 0.0
    %1775 = vmatpush1.msra.mxu0 0.0
    %1776 = vmatprep.subr.mxu0 0.0
    %1777 = vmatpush1.msra.mxu0 0.0
    %1778 = vmatprep.subr.mxu0 0.0
    %1779 = vmatpush1.msra.mxu0 0.0
    %1780 = vmatprep.subr.mxu0 0.0
    %1781 = vmatpush1.msra.mxu0 0.0
    %1782 = vmatprep.subr.mxu0 0.0
    %1783 = vmatpush1.msra.mxu0 0.0
    %1784 = vmatprep.subr.mxu0 0.0
    %1785 = vmatpush1.msra.mxu0 0.0
    %1786 = vmatprep.subr.mxu0 0.0
    %1787 = vmatpush1.msra.mxu0 0.0
    %1788 = vmatprep.subr.mxu0 0.0
    %1789 = vmatpush1.msra.mxu0 0.0
    %1790 = vmatprep.subr.mxu0 0.0
    %1791 = vmatpush1.msra.mxu0 0.0
    %1792 = vmatprep.subr.mxu0 0.0
    %1793 = vmatpush1.msra.mxu0 %v823
    %1794 = vmatprep.subr.mxu0 0.0
    %1795 = vmatpush2.msra.mxu0 0.0
    %1796 = vmatprep.subr.mxu0 0.0
    %1797 = vmatpush2.msra.mxu0 0.0
    %1798 = vmatprep.subr.mxu0 0.0
    %1799 = vmatpush2.msra.mxu0 0.0
    %1800 = vmatprep.subr.mxu0 0.0
    %1801 = vmatpush2.msra.mxu0 0.0
    %1802 = vmatprep.subr.mxu0 0.0
    %1803 = vmatpush2.msra.mxu0 0.0
    %1804 = vmatprep.subr.mxu0 0.0
    %1805 = vmatpush2.msra.mxu0 0.0
    %1806 = vmatprep.subr.mxu0 0.0
    %1807 = vmatpush2.msra.mxu0 0.0
    %1808 = vmatprep.subr.mxu0 0.0
    %1809 = vmatpush2.msra.mxu0 0.0
    %1810 = vmatprep.subr.mxu0 0.0
    %1811 = vmatpush2.msra.mxu0 0.0
    %1812 = vmatprep.subr.mxu0 0.0
    %1813 = vmatpush2.msra.mxu0 0.0
    %1814 = vmatprep.subr.mxu0 0.0
    %1815 = vmatpush2.msra.mxu0 0.0
    %1816 = vmatprep.subr.mxu0 0.0
    %1817 = vmatpush2.msra.mxu0 0.0
    %1818 = vmatprep.subr.mxu0 0.0
    %1819 = vmatpush2.msra.mxu0 0.0
    %1820 = vmatprep.subr.mxu0 0.0
    %1821 = vmatpush2.msra.mxu0 0.0
    %1822 = vmatprep.subr.mxu0 0.0
    %1823 = vmatpush2.msra.mxu0 0.0
    %1824 = vmatprep.subr.mxu0 0.0
    %1825 = vmatpush2.msra.mxu0 0.0
    %1826 = vmatprep.mubr.f32.mxu0 0.0
    %1827 = vmatmul.mubr.f32.gmra.mxu0 %v1760
    %v1828 = vpop.f32.mrf.mxu0
    %v1829 = vadd.f32 0.0, %v1828
    %v1830 = vpop.f32.mrf.mxu0
    %1831 = vdwg.mxu0
    %v1832 = vsel %vm967, %v356, 0
    %1834 = vmatprep.subr.mxu0 0.0
    %1835 = vmatpush1.msra.mxu0 0.0
    %1836 = vmatprep.subr.mxu0 0.0
    %1837 = vmatpush1.msra.mxu0 0.0
    %1838 = vmatprep.subr.mxu0 0.0
    %1839 = vmatpush1.msra.mxu0 0.0
    %1840 = vmatprep.subr.mxu0 0.0
    %1841 = vmatpush1.msra.mxu0 0.0
    %1842 = vmatprep.subr.mxu0 0.0
    %1843 = vmatpush1.msra.mxu0 0.0
    %1844 = vmatprep.subr.mxu0 0.0
    %1845 = vmatpush1.msra.mxu0 0.0
    %1846 = vmatprep.subr.mxu0 0.0
    %1847 = vmatpush1.msra.mxu0 0.0
    %1848 = vmatprep.subr.mxu0 0.0
    %1849 = vmatpush1.msra.mxu0 0.0
    %1850 = vmatprep.subr.mxu0 0.0
    %1851 = vmatpush1.msra.mxu0 0.0
    %1852 = vmatprep.subr.mxu0 0.0
    %1853 = vmatpush1.msra.mxu0 0.0
    %1854 = vmatprep.subr.mxu0 0.0
    %1855 = vmatpush1.msra.mxu0 0.0
    %1856 = vmatprep.subr.mxu0 0.0
    %1857 = vmatpush1.msra.mxu0 0.0
    %1858 = vmatprep.subr.mxu0 0.0
    %1859 = vmatpush1.msra.mxu0 0.0
    %1860 = vmatprep.subr.mxu0 0.0
    %1861 = vmatpush1.msra.mxu0 0.0
    %1862 = vmatprep.subr.mxu0 0.0
    %1863 = vmatpush1.msra.mxu0 0.0
    %1864 = vmatprep.subr.mxu0 0.0
    %1865 = vmatpush1.msra.mxu0 %v855
    %1866 = vmatprep.subr.mxu0 0.0
    %1867 = vmatpush2.msra.mxu0 0.0
    %1868 = vmatprep.subr.mxu0 0.0
    %1869 = vmatpush2.msra.mxu0 0.0
    %1870 = vmatprep.subr.mxu0 0.0
    %1871 = vmatpush2.msra.mxu0 0.0
    %1872 = vmatprep.subr.mxu0 0.0
    %1873 = vmatpush2.msra.mxu0 0.0
    %1874 = vmatprep.subr.mxu0 0.0
    %1875 = vmatpush2.msra.mxu0 0.0
    %1876 = vmatprep.subr.mxu0 0.0
    %1877 = vmatpush2.msra.mxu0 0.0
    %1878 = vmatprep.subr.mxu0 0.0
    %1879 = vmatpush2.msra.mxu0 0.0
    %1880 = vmatprep.subr.mxu0 0.0
    %1881 = vmatpush2.msra.mxu0 0.0
    %1882 = vmatprep.subr.mxu0 0.0
    %1883 = vmatpush2.msra.mxu0 0.0
    %1884 = vmatprep.subr.mxu0 0.0
    %1885 = vmatpush2.msra.mxu0 0.0
    %1886 = vmatprep.subr.mxu0 0.0
    %1887 = vmatpush2.msra.mxu0 0.0
    %1888 = vmatprep.subr.mxu0 0.0
    %1889 = vmatpush2.msra.mxu0 0.0
    %1890 = vmatprep.subr.mxu0 0.0
    %1891 = vmatpush2.msra.mxu0 0.0
    %1892 = vmatprep.subr.mxu0 0.0
    %1893 = vmatpush2.msra.mxu0 0.0
    %1894 = vmatprep.subr.mxu0 0.0
    %1895 = vmatpush2.msra.mxu0 0.0
    %1896 = vmatprep.subr.mxu0 0.0
    %1897 = vmatpush2.msra.mxu0 0.0
    %1898 = vmatprep.mubr.f32.mxu0 0.0
    %1899 = vmatmul.mubr.f32.gmra.mxu0 %v1832
    %v1900 = vpop.f32.mrf.mxu0
    %v1901 = vadd.f32 0.0, %v1900
    %v1902 = vpop.f32.mrf.mxu0
    %1903 = vdwg.mxu0
    %v1904 = vsel %vm967, %v358, 0
    %1906 = vmatprep.subr.mxu0 0.0
    %1907 = vmatpush1.msra.mxu0 0.0
    %1908 = vmatprep.subr.mxu0 0.0
    %1909 = vmatpush1.msra.mxu0 0.0
    %1910 = vmatprep.subr.mxu0 0.0
    %1911 = vmatpush1.msra.mxu0 0.0
    %1912 = vmatprep.subr.mxu0 0.0
    %1913 = vmatpush1.msra.mxu0 0.0
    %1914 = vmatprep.subr.mxu0 0.0
    %1915 = vmatpush1.msra.mxu0 0.0
    %1916 = vmatprep.subr.mxu0 0.0
    %1917 = vmatpush1.msra.mxu0 0.0
    %1918 = vmatprep.subr.mxu0 0.0
    %1919 = vmatpush1.msra.mxu0 0.0
    %1920 = vmatprep.subr.mxu0 0.0
    %1921 = vmatpush1.msra.mxu0 0.0
    %1922 = vmatprep.subr.mxu0 0.0
    %1923 = vmatpush1.msra.mxu0 0.0
    %1924 = vmatprep.subr.mxu0 0.0
    %1925 = vmatpush1.msra.mxu0 0.0
    %1926 = vmatprep.subr.mxu0 0.0
    %1927 = vmatpush1.msra.mxu0 0.0
    %1928 = vmatprep.subr.mxu0 0.0
    %1929 = vmatpush1.msra.mxu0 0.0
    %1930 = vmatprep.subr.mxu0 0.0
    %1931 = vmatpush1.msra.mxu0 0.0
    %1932 = vmatprep.subr.mxu0 0.0
    %1933 = vmatpush1.msra.mxu0 0.0
    %1934 = vmatprep.subr.mxu0 0.0
    %1935 = vmatpush1.msra.mxu0 0.0
    %1936 = vmatprep.subr.mxu0 0.0
    %1937 = vmatpush1.msra.mxu0 %v887
    %1938 = vmatprep.subr.mxu0 0.0
    %1939 = vmatpush2.msra.mxu0 0.0
    %1940 = vmatprep.subr.mxu0 0.0
    %1941 = vmatpush2.msra.mxu0 0.0
    %1942 = vmatprep.subr.mxu0 0.0
    %1943 = vmatpush2.msra.mxu0 0.0
    %1944 = vmatprep.subr.mxu0 0.0
    %1945 = vmatpush2.msra.mxu0 0.0
    %1946 = vmatprep.subr.mxu0 0.0
    %1947 = vmatpush2.msra.mxu0 0.0
    %1948 = vmatprep.subr.mxu0 0.0
    %1949 = vmatpush2.msra.mxu0 0.0
    %1950 = vmatprep.subr.mxu0 0.0
    %1951 = vmatpush2.msra.mxu0 0.0
    %1952 = vmatprep.subr.mxu0 0.0
    %1953 = vmatpush2.msra.mxu0 0.0
    %1954 = vmatprep.subr.mxu0 0.0
    %1955 = vmatpush2.msra.mxu0 0.0
    %1956 = vmatprep.subr.mxu0 0.0
    %1957 = vmatpush2.msra.mxu0 0.0
    %1958 = vmatprep.subr.mxu0 0.0
    %1959 = vmatpush2.msra.mxu0 0.0
    %1960 = vmatprep.subr.mxu0 0.0
    %1961 = vmatpush2.msra.mxu0 0.0
    %1962 = vmatprep.subr.mxu0 0.0
    %1963 = vmatpush2.msra.mxu0 0.0
    %1964 = vmatprep.subr.mxu0 0.0
    %1965 = vmatpush2.msra.mxu0 0.0
    %1966 = vmatprep.subr.mxu0 0.0
    %1967 = vmatpush2.msra.mxu0 0.0
    %1968 = vmatprep.subr.mxu0 0.0
    %1969 = vmatpush2.msra.mxu0 0.0
    %1970 = vmatprep.mubr.f32.mxu0 0.0
    %1971 = vmatmul.mubr.f32.gmra.mxu0 %v1904
    %v1972 = vpop.f32.mrf.mxu0
    %v1973 = vadd.f32 0.0, %v1972
    %v1974 = vpop.f32.mrf.mxu0
    %1975 = vdwg.mxu0
    %v1976 = vsel %vm967, %v360, 0
    %1978 = vmatprep.subr.mxu0 0.0
    %1979 = vmatpush1.msra.mxu0 0.0
    %1980 = vmatprep.subr.mxu0 0.0
    %1981 = vmatpush1.msra.mxu0 0.0
    %1982 = vmatprep.subr.mxu0 0.0
    %1983 = vmatpush1.msra.mxu0 0.0
    %1984 = vmatprep.subr.mxu0 0.0
    %1985 = vmatpush1.msra.mxu0 0.0
    %1986 = vmatprep.subr.mxu0 0.0
    %1987 = vmatpush1.msra.mxu0 0.0
    %1988 = vmatprep.subr.mxu0 0.0
    %1989 = vmatpush1.msra.mxu0 0.0
    %1990 = vmatprep.subr.mxu0 0.0
    %1991 = vmatpush1.msra.mxu0 0.0
    %1992 = vmatprep.subr.mxu0 0.0
    %1993 = vmatpush1.msra.mxu0 0.0
    %1994 = vmatprep.subr.mxu0 0.0
    %1995 = vmatpush1.msra.mxu0 0.0
    %1996 = vmatprep.subr.mxu0 0.0
    %1997 = vmatpush1.msra.mxu0 0.0
    %1998 = vmatprep.subr.mxu0 0.0
    %1999 = vmatpush1.msra.mxu0 0.0
    %2000 = vmatprep.subr.mxu0 0.0
    %2001 = vmatpush1.msra.mxu0 0.0
    %2002 = vmatprep.subr.mxu0 0.0
    %2003 = vmatpush1.msra.mxu0 0.0
    %2004 = vmatprep.subr.mxu0 0.0
    %2005 = vmatpush1.msra.mxu0 0.0
    %2006 = vmatprep.subr.mxu0 0.0
    %2007 = vmatpush1.msra.mxu0 0.0
    %2008 = vmatprep.subr.mxu0 0.0
    %2009 = vmatpush1.msra.mxu0 %v919
    %2010 = vmatprep.subr.mxu0 0.0
    %2011 = vmatpush2.msra.mxu0 0.0
    %2012 = vmatprep.subr.mxu0 0.0
    %2013 = vmatpush2.msra.mxu0 0.0
    %2014 = vmatprep.subr.mxu0 0.0
    %2015 = vmatpush2.msra.mxu0 0.0
    %2016 = vmatprep.subr.mxu0 0.0
    %2017 = vmatpush2.msra.mxu0 0.0
    %2018 = vmatprep.subr.mxu0 0.0
    %2019 = vmatpush2.msra.mxu0 0.0
    %2020 = vmatprep.subr.mxu0 0.0
    %2021 = vmatpush2.msra.mxu0 0.0
    %2022 = vmatprep.subr.mxu0 0.0
    %2023 = vmatpush2.msra.mxu0 0.0
    %2024 = vmatprep.subr.mxu0 0.0
    %2025 = vmatpush2.msra.mxu0 0.0
    %2026 = vmatprep.subr.mxu0 0.0
    %2027 = vmatpush2.msra.mxu0 0.0
    %2028 = vmatprep.subr.mxu0 0.0
    %2029 = vmatpush2.msra.mxu0 0.0
    %2030 = vmatprep.subr.mxu0 0.0
    %2031 = vmatpush2.msra.mxu0 0.0
    %2032 = vmatprep.subr.mxu0 0.0
    %2033 = vmatpush2.msra.mxu0 0.0
    %2034 = vmatprep.subr.mxu0 0.0
    %2035 = vmatpush2.msra.mxu0 0.0
    %2036 = vmatprep.subr.mxu0 0.0
    %2037 = vmatpush2.msra.mxu0 0.0
    %2038 = vmatprep.subr.mxu0 0.0
    %2039 = vmatpush2.msra.mxu0 0.0
    %2040 = vmatprep.subr.mxu0 0.0
    %2041 = vmatpush2.msra.mxu0 0.0
    %2042 = vmatprep.mubr.f32.mxu0 0.0
    %2043 = vmatmul.mubr.f32.gmra.mxu0 %v1976
    %v2044 = vpop.f32.mrf.mxu0
    %v2045 = vadd.f32 0.0, %v2044
    %v2046 = vpop.f32.mrf.mxu0
    %2047 = vdwg.mxu0
    %v2048 = vsel %vm967, %v362, 0
    %2050 = vmatprep.subr.mxu0 0.0
    %2051 = vmatpush1.msra.mxu0 0.0
    %2052 = vmatprep.subr.mxu0 0.0
    %2053 = vmatpush1.msra.mxu0 0.0
    %2054 = vmatprep.subr.mxu0 0.0
    %2055 = vmatpush1.msra.mxu0 0.0
    %2056 = vmatprep.subr.mxu0 0.0
    %2057 = vmatpush1.msra.mxu0 0.0
    %2058 = vmatprep.subr.mxu0 0.0
    %2059 = vmatpush1.msra.mxu0 0.0
    %2060 = vmatprep.subr.mxu0 0.0
    %2061 = vmatpush1.msra.mxu0 0.0
    %2062 = vmatprep.subr.mxu0 0.0
    %2063 = vmatpush1.msra.mxu0 0.0
    %2064 = vmatprep.subr.mxu0 0.0
    %2065 = vmatpush1.msra.mxu0 0.0
    %2066 = vmatprep.subr.mxu0 0.0
    %2067 = vmatpush1.msra.mxu0 0.0
    %2068 = vmatprep.subr.mxu0 0.0
    %2069 = vmatpush1.msra.mxu0 0.0
    %2070 = vmatprep.subr.mxu0 0.0
    %2071 = vmatpush1.msra.mxu0 0.0
    %2072 = vmatprep.subr.mxu0 0.0
    %2073 = vmatpush1.msra.mxu0 0.0
    %2074 = vmatprep.subr.mxu0 0.0
    %2075 = vmatpush1.msra.mxu0 0.0
    %2076 = vmatprep.subr.mxu0 0.0
    %2077 = vmatpush1.msra.mxu0 0.0
    %2078 = vmatprep.subr.mxu0 0.0
    %2079 = vmatpush1.msra.mxu0 0.0
    %2080 = vmatprep.subr.mxu0 0.0
    %2081 = vmatpush1.msra.mxu0 %v951
    %2082 = vmatprep.subr.mxu0 0.0
    %2083 = vmatpush2.msra.mxu0 0.0
    %2084 = vmatprep.subr.mxu0 0.0
    %2085 = vmatpush2.msra.mxu0 0.0
    %2086 = vmatprep.subr.mxu0 0.0
    %2087 = vmatpush2.msra.mxu0 0.0
    %2088 = vmatprep.subr.mxu0 0.0
    %2089 = vmatpush2.msra.mxu0 0.0
    %2090 = vmatprep.subr.mxu0 0.0
    %2091 = vmatpush2.msra.mxu0 0.0
    %2092 = vmatprep.subr.mxu0 0.0
    %2093 = vmatpush2.msra.mxu0 0.0
    %2094 = vmatprep.subr.mxu0 0.0
    %2095 = vmatpush2.msra.mxu0 0.0
    %2096 = vmatprep.subr.mxu0 0.0
    %2097 = vmatpush2.msra.mxu0 0.0
    %2098 = vmatprep.subr.mxu0 0.0
    %2099 = vmatpush2.msra.mxu0 0.0
    %2100 = vmatprep.subr.mxu0 0.0
    %2101 = vmatpush2.msra.mxu0 0.0
    %2102 = vmatprep.subr.mxu0 0.0
    %2103 = vmatpush2.msra.mxu0 0.0
    %2104 = vmatprep.subr.mxu0 0.0
    %2105 = vmatpush2.msra.mxu0 0.0
    %2106 = vmatprep.subr.mxu0 0.0
    %2107 = vmatpush2.msra.mxu0 0.0
    %2108 = vmatprep.subr.mxu0 0.0
    %2109 = vmatpush2.msra.mxu0 0.0
    %2110 = vmatprep.subr.mxu0 0.0
    %2111 = vmatpush2.msra.mxu0 0.0
    %2112 = vmatprep.subr.mxu0 0.0
    %2113 = vmatpush2.msra.mxu0 0.0
    %2114 = vmatprep.mubr.f32.mxu0 0.0
    %2115 = vmatmul.mubr.f32.gmra.mxu0 %v2048
    %v2116 = vpop.f32.mrf.mxu0
    %v2117 = vadd.f32 0.0, %v2116
    %v2118 = vpop.f32.mrf.mxu0
    %2119 = vdwg.mxu0
    %v2120 = vsel %vm967, %v1037, -inf
    %2121 = vmax.xlane.f32.xlu0 %v2120
    %v2122 = vpop.xlane.xlu0 %2121
    %v2123 = vsel %vm967, %v1109, -inf
    %2124 = vmax.xlane.f32.xlu0 %v2123
    %v2125 = vpop.xlane.xlu0 %2124
    %v2126 = vsel %vm967, %v1181, -inf
    %2127 = vmax.xlane.f32.xlu0 %v2126
    %v2128 = vpop.xlane.xlu0 %2127
    %v2129 = vsel %vm967, %v1253, -inf
    %2130 = vmax.xlane.f32.xlu0 %v2129
    %v2131 = vpop.xlane.xlu0 %2130
    %v2132 = vsel %vm967, %v1325, -inf
    %2133 = vmax.xlane.f32.xlu0 %v2132
    %v2134 = vpop.xlane.xlu0 %2133
    %v2135 = vsel %vm967, %v1397, -inf
    %2136 = vmax.xlane.f32.xlu0 %v2135
    %v2137 = vpop.xlane.xlu0 %2136
    %v2138 = vsel %vm967, %v1469, -inf
    %2139 = vmax.xlane.f32.xlu0 %v2138
    %v2140 = vpop.xlane.xlu0 %2139
    %v2141 = vsel %vm967, %v1541, -inf
    %2142 = vmax.xlane.f32.xlu0 %v2141
    %v2143 = vpop.xlane.xlu0 %2142
    %v2144 = vsel %vm967, %v1613, -inf
    %2145 = vmax.xlane.f32.xlu0 %v2144
    %v2146 = vpop.xlane.xlu0 %2145
    %v2147 = vsel %vm967, %v1685, -inf
    %2148 = vmax.xlane.f32.xlu0 %v2147
    %v2149 = vpop.xlane.xlu0 %2148
    %v2150 = vsel %vm967, %v1757, -inf
    %2151 = vmax.xlane.f32.xlu0 %v2150
    %v2152 = vpop.xlane.xlu0 %2151
    %v2153 = vsel %vm967, %v1829, -inf
    %2154 = vmax.xlane.f32.xlu0 %v2153
    %v2155 = vpop.xlane.xlu0 %2154
    %v2156 = vsel %vm967, %v1901, -inf
    %2157 = vmax.xlane.f32.xlu0 %v2156
    %v2158 = vpop.xlane.xlu0 %2157
    %v2159 = vsel %vm967, %v1973, -inf
    %2160 = vmax.xlane.f32.xlu0 %v2159
    %v2161 = vpop.xlane.xlu0 %2160
    %v2162 = vsel %vm967, %v2045, -inf
    %2163 = vmax.xlane.f32.xlu0 %v2162
    %v2164 = vpop.xlane.xlu0 %2163
    %v2165 = vsel %vm967, %v2117, -inf
    %2166 = vmax.xlane.f32.xlu0 %v2165
    %v2167 = vpop.xlane.xlu0 %2166
    %v2168 = vsub.f32 %v1037, %v2122
    %v2169 = vsub.f32 %v1109, %v2125
    %v2170 = vsub.f32 %v1181, %v2128
    %v2171 = vsub.f32 %v1253, %v2131
    %v2172 = vsub.f32 %v1325, %v2134
    %v2173 = vsub.f32 %v1397, %v2137
    %v2174 = vsub.f32 %v1469, %v2140
    %v2175 = vsub.f32 %v1541, %v2143
    %v2176 = vsub.f32 %v1613, %v2146
    %v2177 = vsub.f32 %v1685, %v2149
    %v2178 = vsub.f32 %v1757, %v2152
    %v2179 = vsub.f32 %v1829, %v2155
    %v2180 = vsub.f32 %v1901, %v2158
    %v2181 = vsub.f32 %v1973, %v2161
    %v2182 = vsub.f32 %v2045, %v2164
    %v2183 = vsub.f32 %v2117, %v2167
    %v2184 = vmul.f32 %v2168, 1.442695
    %v2185 = vpow.pop %v2184
    %v2186 = vmul.f32 %v2169, 1.442695
    %v2187 = vpow.pop %v2186
    %v2188 = vmul.f32 %v2170, 1.442695
    %v2189 = vpow.pop %v2188
    %v2190 = vmul.f32 %v2171, 1.442695
    %v2191 = vpow.pop %v2190
    %v2192 = vmul.f32 %v2172, 1.442695
    %v2193 = vpow.pop %v2192
    %v2194 = vmul.f32 %v2173, 1.442695
    %v2195 = vpow.pop %v2194
    %v2196 = vmul.f32 %v2174, 1.442695
    %v2197 = vpow.pop %v2196
    %v2198 = vmul.f32 %v2175, 1.442695
    %v2199 = vpow.pop %v2198
    %v2200 = vmul.f32 %v2176, 1.442695
    %v2201 = vpow.pop %v2200
    %v2202 = vmul.f32 %v2177, 1.442695
    %v2203 = vpow.pop %v2202
    %v2204 = vmul.f32 %v2178, 1.442695
    %v2205 = vpow.pop %v2204
    %v2206 = vmul.f32 %v2179, 1.442695
    %v2207 = vpow.pop %v2206
    %v2208 = vmul.f32 %v2180, 1.442695
    %v2209 = vpow.pop %v2208
    %v2210 = vmul.f32 %v2181, 1.442695
    %v2211 = vpow.pop %v2210
    %v2212 = vmul.f32 %v2182, 1.442695
    %v2213 = vpow.pop %v2212
    %v2214 = vmul.f32 %v2183, 1.442695
    %v2215 = vpow.pop %v2214
    %v2216 = vsel %vm967, %v2185, 0.0
    %2217 = vadd.xlane.f32.xlu0 %v2216
    %v2218 = vpop.xlane.xlu0 %2217
    %v2219 = vsel %vm967, %v2187, 0.0
    %2220 = vadd.xlane.f32.xlu0 %v2219
    %v2221 = vpop.xlane.xlu0 %2220
    %v2222 = vsel %vm967, %v2189, 0.0
    %2223 = vadd.xlane.f32.xlu0 %v2222
    %v2224 = vpop.xlane.xlu0 %2223
    %v2225 = vsel %vm967, %v2191, 0.0
    %2226 = vadd.xlane.f32.xlu0 %v2225
    %v2227 = vpop.xlane.xlu0 %2226
    %v2228 = vsel %vm967, %v2193, 0.0
    %2229 = vadd.xlane.f32.xlu0 %v2228
    %v2230 = vpop.xlane.xlu0 %2229
    %v2231 = vsel %vm967, %v2195, 0.0
    %2232 = vadd.xlane.f32.xlu0 %v2231
    %v2233 = vpop.xlane.xlu0 %2232
    %v2234 = vsel %vm967, %v2197, 0.0
    %2235 = vadd.xlane.f32.xlu0 %v2234
    %v2236 = vpop.xlane.xlu0 %2235
    %v2237 = vsel %vm967, %v2199, 0.0
    %2238 = vadd.xlane.f32.xlu0 %v2237
    %v2239 = vpop.xlane.xlu0 %2238
    %v2240 = vsel %vm967, %v2201, 0.0
    %2241 = vadd.xlane.f32.xlu0 %v2240
    %v2242 = vpop.xlane.xlu0 %2241
    %v2243 = vsel %vm967, %v2203, 0.0
    %2244 = vadd.xlane.f32.xlu0 %v2243
    %v2245 = vpop.xlane.xlu0 %2244
    %v2246 = vsel %vm967, %v2205, 0.0
    %2247 = vadd.xlane.f32.xlu0 %v2246
    %v2248 = vpop.xlane.xlu0 %2247
    %v2249 = vsel %vm967, %v2207, 0.0
    %2250 = vadd.xlane.f32.xlu0 %v2249
    %v2251 = vpop.xlane.xlu0 %2250
    %v2252 = vsel %vm967, %v2209, 0.0
    %2253 = vadd.xlane.f32.xlu0 %v2252
    %v2254 = vpop.xlane.xlu0 %2253
    %v2255 = vsel %vm967, %v2211, 0.0
    %2256 = vadd.xlane.f32.xlu0 %v2255
    %v2257 = vpop.xlane.xlu0 %2256
    %v2258 = vsel %vm967, %v2213, 0.0
    %2259 = vadd.xlane.f32.xlu0 %v2258
    %v2260 = vpop.xlane.xlu0 %2259
    %v2261 = vsel %vm967, %v2215, 0.0
    %2262 = vadd.xlane.f32.xlu0 %v2261
    %v2263 = vpop.xlane.xlu0 %2262
    %v2264 = vrcp.pop %v2218
    %v2265 = vrcp.pop %v2221
    %v2266 = vrcp.pop %v2224
    %v2267 = vrcp.pop %v2227
    %v2268 = vrcp.pop %v2230
    %v2269 = vrcp.pop %v2233
    %v2270 = vrcp.pop %v2236
    %v2271 = vrcp.pop %v2239
    %v2272 = vrcp.pop %v2242
    %v2273 = vrcp.pop %v2245
    %v2274 = vrcp.pop %v2248
    %v2275 = vrcp.pop %v2251
    %v2276 = vrcp.pop %v2254
    %v2277 = vrcp.pop %v2257
    %v2278 = vrcp.pop %v2260
    %v2279 = vrcp.pop %v2263
    %v2280 = vmul.f32 %v2185, %v2264
    %v2281 = vmul.f32 %v2187, %v2265
    %v2282 = vmul.f32 %v2189, %v2266
    %v2283 = vmul.f32 %v2191, %v2267
    %v2284 = vmul.f32 %v2193, %v2268
    %v2285 = vmul.f32 %v2195, %v2269
    %v2286 = vmul.f32 %v2197, %v2270
    %v2287 = vmul.f32 %v2199, %v2271
    %v2288 = vmul.f32 %v2201, %v2272
    %v2289 = vmul.f32 %v2203, %v2273
    %v2290 = vmul.f32 %v2205, %v2274
    %v2291 = vmul.f32 %v2207, %v2275
    %v2292 = vmul.f32 %v2209, %v2276
    %v2293 = vmul.f32 %v2211, %v2277
    %v2294 = vmul.f32 %v2213, %v2278
    %v2295 = vmul.f32 %v2215, %v2279
    %2296 = vxpose.xlu0.b32.start [1/16] %v326, 128
    %2297 = vxpose.xlu0.b32.cont [2/16] 0.0, 128
    %2298 = vxpose.xlu0.b32.cont [3/16] 0.0, 128
    %2299 = vxpose.xlu0.b32.cont [4/16] 0.0, 128
    %2300 = vxpose.xlu0.b32.cont [5/16] 0.0, 128
    %2301 = vxpose.xlu0.b32.cont [6/16] 0.0, 128
    %2302 = vxpose.xlu0.b32.cont [7/16] 0.0, 128
    %2303 = vxpose.xlu0.b32.cont [8/16] 0.0, 128
    %2304 = vxpose.xlu0.b32.cont [9/16] 0.0, 128
    %2305 = vxpose.xlu0.b32.cont [10/16] 0.0, 128
    %2306 = vxpose.xlu0.b32.cont [11/16] 0.0, 128
    %2307 = vxpose.xlu0.b32.cont [12/16] 0.0, 128
    %2308 = vxpose.xlu0.b32.cont [13/16] 0.0, 128
    %2309 = vxpose.xlu0.b32.cont [14/16] 0.0, 128
    %2310 = vxpose.xlu0.b32.cont [15/16] 0.0, 128
    %2311 = vxpose.xlu0.b32.end [16/16] 0.0, 128
    %v2312 = vpop.trf.xlu0
    %v2313 = vpop.trf.xlu0
    %v2314 = vpop.trf.xlu0
    %v2315 = vpop.trf.xlu0
    %v2316 = vpop.trf.xlu0
    %v2317 = vpop.trf.xlu0
    %v2318 = vpop.trf.xlu0
    %v2319 = vpop.trf.xlu0
    %v2320 = vpop.trf.xlu0
    %v2321 = vpop.trf.xlu0
    %v2322 = vpop.trf.xlu0
    %v2323 = vpop.trf.xlu0
    %v2324 = vpop.trf.xlu0
    %v2325 = vpop.trf.xlu0
    %v2326 = vpop.trf.xlu0
    %v2327 = vpop.trf.xlu0
    %2328 = vxpose.xlu0.b32.start [1/16] %v411, 128
    %2329 = vxpose.xlu0.b32.cont [2/16] 0.0, 128
    %2330 = vxpose.xlu0.b32.cont [3/16] 0.0, 128
    %2331 = vxpose.xlu0.b32.cont [4/16] 0.0, 128
    %2332 = vxpose.xlu0.b32.cont [5/16] 0.0, 128
    %2333 = vxpose.xlu0.b32.cont [6/16] 0.0, 128
    %2334 = vxpose.xlu0.b32.cont [7/16] 0.0, 128
    %2335 = vxpose.xlu0.b32.cont [8/16] 0.0, 128
    %2336 = vxpose.xlu0.b32.cont [9/16] 0.0, 128
    %2337 = vxpose.xlu0.b32.cont [10/16] 0.0, 128
    %2338 = vxpose.xlu0.b32.cont [11/16] 0.0, 128
    %2339 = vxpose.xlu0.b32.cont [12/16] 0.0, 128
    %2340 = vxpose.xlu0.b32.cont [13/16] 0.0, 128
    %2341 = vxpose.xlu0.b32.cont [14/16] 0.0, 128
    %2342 = vxpose.xlu0.b32.cont [15/16] 0.0, 128
    %2343 = vxpose.xlu0.b32.end [16/16] 0.0, 128
    %v2344 = vpop.trf.xlu0
    %v2345 = vpop.trf.xlu0
    %v2346 = vpop.trf.xlu0
    %v2347 = vpop.trf.xlu0
    %v2348 = vpop.trf.xlu0
    %v2349 = vpop.trf.xlu0
    %v2350 = vpop.trf.xlu0
    %v2351 = vpop.trf.xlu0
    %v2352 = vpop.trf.xlu0
    %v2353 = vpop.trf.xlu0
    %v2354 = vpop.trf.xlu0
    %v2355 = vpop.trf.xlu0
    %v2356 = vpop.trf.xlu0
    %v2357 = vpop.trf.xlu0
    %v2358 = vpop.trf.xlu0
    %v2359 = vpop.trf.xlu0
    %2360 = vxpose.xlu0.b32.start [1/16] %v414, 128
    %2361 = vxpose.xlu0.b32.cont [2/16] 0.0, 128
    %2362 = vxpose.xlu0.b32.cont [3/16] 0.0, 128
    %2363 = vxpose.xlu0.b32.cont [4/16] 0.0, 128
    %2364 = vxpose.xlu0.b32.cont [5/16] 0.0, 128
    %2365 = vxpose.xlu0.b32.cont [6/16] 0.0, 128
    %2366 = vxpose.xlu0.b32.cont [7/16] 0.0, 128
    %2367 = vxpose.xlu0.b32.cont [8/16] 0.0, 128
    %2368 = vxpose.xlu0.b32.cont [9/16] 0.0, 128
    %2369 = vxpose.xlu0.b32.cont [10/16] 0.0, 128
    %2370 = vxpose.xlu0.b32.cont [11/16] 0.0, 128
    %2371 = vxpose.xlu0.b32.cont [12/16] 0.0, 128
    %2372 = vxpose.xlu0.b32.cont [13/16] 0.0, 128
    %2373 = vxpose.xlu0.b32.cont [14/16] 0.0, 128
    %2374 = vxpose.xlu0.b32.cont [15/16] 0.0, 128
    %2375 = vxpose.xlu0.b32.end [16/16] 0.0, 128
    %v2376 = vpop.trf.xlu0
    %v2377 = vpop.trf.xlu0
    %v2378 = vpop.trf.xlu0
    %v2379 = vpop.trf.xlu0
    %v2380 = vpop.trf.xlu0
    %v2381 = vpop.trf.xlu0
    %v2382 = vpop.trf.xlu0
    %v2383 = vpop.trf.xlu0
    %v2384 = vpop.trf.xlu0
    %v2385 = vpop.trf.xlu0
    %v2386 = vpop.trf.xlu0
    %v2387 = vpop.trf.xlu0
    %v2388 = vpop.trf.xlu0
    %v2389 = vpop.trf.xlu0
    %v2390 = vpop.trf.xlu0
    %v2391 = vpop.trf.xlu0
    %2392 = vxpose.xlu0.b32.start [1/16] %v417, 128
    %2393 = vxpose.xlu0.b32.cont [2/16] 0.0, 128
    %2394 = vxpose.xlu0.b32.cont [3/16] 0.0, 128
    %2395 = vxpose.xlu0.b32.cont [4/16] 0.0, 128
    %2396 = vxpose.xlu0.b32.cont [5/16] 0.0, 128
    %2397 = vxpose.xlu0.b32.cont [6/16] 0.0, 128
    %2398 = vxpose.xlu0.b32.cont [7/16] 0.0, 128
    %2399 = vxpose.xlu0.b32.cont [8/16] 0.0, 128
    %2400 = vxpose.xlu0.b32.cont [9/16] 0.0, 128
    %2401 = vxpose.xlu0.b32.cont [10/16] 0.0, 128
    %2402 = vxpose.xlu0.b32.cont [11/16] 0.0, 128
    %2403 = vxpose.xlu0.b32.cont [12/16] 0.0, 128
    %2404 = vxpose.xlu0.b32.cont [13/16] 0.0, 128
    %2405 = vxpose.xlu0.b32.cont [14/16] 0.0, 128
    %2406 = vxpose.xlu0.b32.cont [15/16] 0.0, 128
    %2407 = vxpose.xlu0.b32.end [16/16] 0.0, 128
    %v2408 = vpop.trf.xlu0
    %v2409 = vpop.trf.xlu0
    %v2410 = vpop.trf.xlu0
    %v2411 = vpop.trf.xlu0
    %v2412 = vpop.trf.xlu0
    %v2413 = vpop.trf.xlu0
    %v2414 = vpop.trf.xlu0
    %v2415 = vpop.trf.xlu0
    %v2416 = vpop.trf.xlu0
    %v2417 = vpop.trf.xlu0
    %v2418 = vpop.trf.xlu0
    %v2419 = vpop.trf.xlu0
    %v2420 = vpop.trf.xlu0
    %v2421 = vpop.trf.xlu0
    %v2422 = vpop.trf.xlu0
    %v2423 = vpop.trf.xlu0
    %2424 = vxpose.xlu0.b32.start [1/16] %v420, 128
    %2425 = vxpose.xlu0.b32.cont [2/16] 0.0, 128
    %2426 = vxpose.xlu0.b32.cont [3/16] 0.0, 128
    %2427 = vxpose.xlu0.b32.cont [4/16] 0.0, 128
    %2428 = vxpose.xlu0.b32.cont [5/16] 0.0, 128
    %2429 = vxpose.xlu0.b32.cont [6/16] 0.0, 128
    %2430 = vxpose.xlu0.b32.cont [7/16] 0.0, 128
    %2431 = vxpose.xlu0.b32.cont [8/16] 0.0, 128
    %2432 = vxpose.xlu0.b32.cont [9/16] 0.0, 128
    %2433 = vxpose.xlu0.b32.cont [10/16] 0.0, 128
    %2434 = vxpose.xlu0.b32.cont [11/16] 0.0, 128
    %2435 = vxpose.xlu0.b32.cont [12/16] 0.0, 128
    %2436 = vxpose.xlu0.b32.cont [13/16] 0.0, 128
    %2437 = vxpose.xlu0.b32.cont [14/16] 0.0, 128
    %2438 = vxpose.xlu0.b32.cont [15/16] 0.0, 128
    %2439 = vxpose.xlu0.b32.end [16/16] 0.0, 128
    %v2440 = vpop.trf.xlu0
    %v2441 = vpop.trf.xlu0
    %v2442 = vpop.trf.xlu0
    %v2443 = vpop.trf.xlu0
    %v2444 = vpop.trf.xlu0
    %v2445 = vpop.trf.xlu0
    %v2446 = vpop.trf.xlu0
    %v2447 = vpop.trf.xlu0
    %v2448 = vpop.trf.xlu0
    %v2449 = vpop.trf.xlu0
    %v2450 = vpop.trf.xlu0
    %v2451 = vpop.trf.xlu0
    %v2452 = vpop.trf.xlu0
    %v2453 = vpop.trf.xlu0
    %v2454 = vpop.trf.xlu0
    %v2455 = vpop.trf.xlu0
    %2456 = vxpose.xlu0.b32.start [1/16] %v423, 128
    %2457 = vxpose.xlu0.b32.cont [2/16] 0.0, 128
    %2458 = vxpose.xlu0.b32.cont [3/16] 0.0, 128
    %2459 = vxpose.xlu0.b32.cont [4/16] 0.0, 128
    %2460 = vxpose.xlu0.b32.cont [5/16] 0.0, 128
    %2461 = vxpose.xlu0.b32.cont [6/16] 0.0, 128
    %2462 = vxpose.xlu0.b32.cont [7/16] 0.0, 128
    %2463 = vxpose.xlu0.b32.cont [8/16] 0.0, 128
    %2464 = vxpose.xlu0.b32.cont [9/16] 0.0, 128
    %2465 = vxpose.xlu0.b32.cont [10/16] 0.0, 128
    %2466 = vxpose.xlu0.b32.cont [11/16] 0.0, 128
    %2467 = vxpose.xlu0.b32.cont [12/16] 0.0, 128
    %2468 = vxpose.xlu0.b32.cont [13/16] 0.0, 128
    %2469 = vxpose.xlu0.b32.cont [14/16] 0.0, 128
    %2470 = vxpose.xlu0.b32.cont [15/16] 0.0, 128
    %2471 = vxpose.xlu0.b32.end [16/16] 0.0, 128
    %v2472 = vpop.trf.xlu0
    %v2473 = vpop.trf.xlu0
    %v2474 = vpop.trf.xlu0
    %v2475 = vpop.trf.xlu0
    %v2476 = vpop.trf.xlu0
    %v2477 = vpop.trf.xlu0
    %v2478 = vpop.trf.xlu0
    %v2479 = vpop.trf.xlu0
    %v2480 = vpop.trf.xlu0
    %v2481 = vpop.trf.xlu0
    %v2482 = vpop.trf.xlu0
    %v2483 = vpop.trf.xlu0
    %v2484 = vpop.trf.xlu0
    %v2485 = vpop.trf.xlu0
    %v2486 = vpop.trf.xlu0
    %v2487 = vpop.trf.xlu0
    %2488 = vxpose.xlu0.b32.start [1/16] %v426, 128
    %2489 = vxpose.xlu0.b32.cont [2/16] 0.0, 128
    %2490 = vxpose.xlu0.b32.cont [3/16] 0.0, 128
    %2491 = vxpose.xlu0.b32.cont [4/16] 0.0, 128
    %2492 = vxpose.xlu0.b32.cont [5/16] 0.0, 128
    %2493 = vxpose.xlu0.b32.cont [6/16] 0.0, 128
    %2494 = vxpose.xlu0.b32.cont [7/16] 0.0, 128
    %2495 = vxpose.xlu0.b32.cont [8/16] 0.0, 128
    %2496 = vxpose.xlu0.b32.cont [9/16] 0.0, 128
    %2497 = vxpose.xlu0.b32.cont [10/16] 0.0, 128
    %2498 = vxpose.xlu0.b32.cont [11/16] 0.0, 128
    %2499 = vxpose.xlu0.b32.cont [12/16] 0.0, 128
    %2500 = vxpose.xlu0.b32.cont [13/16] 0.0, 128
    %2501 = vxpose.xlu0.b32.cont [14/16] 0.0, 128
    %2502 = vxpose.xlu0.b32.cont [15/16] 0.0, 128
    %2503 = vxpose.xlu0.b32.end [16/16] 0.0, 128
    %v2504 = vpop.trf.xlu0
    %v2505 = vpop.trf.xlu0
    %v2506 = vpop.trf.xlu0
    %v2507 = vpop.trf.xlu0
    %v2508 = vpop.trf.xlu0
    %v2509 = vpop.trf.xlu0
    %v2510 = vpop.trf.xlu0
    %v2511 = vpop.trf.xlu0
    %v2512 = vpop.trf.xlu0
    %v2513 = vpop.trf.xlu0
    %v2514 = vpop.trf.xlu0
    %v2515 = vpop.trf.xlu0
    %v2516 = vpop.trf.xlu0
    %v2517 = vpop.trf.xlu0
    %v2518 = vpop.trf.xlu0
    %v2519 = vpop.trf.xlu0
    %2520 = vxpose.xlu0.b32.start [1/16] %v429, 128
    %2521 = vxpose.xlu0.b32.cont [2/16] 0.0, 128
    %2522 = vxpose.xlu0.b32.cont [3/16] 0.0, 128
    %2523 = vxpose.xlu0.b32.cont [4/16] 0.0, 128
    %2524 = vxpose.xlu0.b32.cont [5/16] 0.0, 128
    %2525 = vxpose.xlu0.b32.cont [6/16] 0.0, 128
    %2526 = vxpose.xlu0.b32.cont [7/16] 0.0, 128
    %2527 = vxpose.xlu0.b32.cont [8/16] 0.0, 128
    %2528 = vxpose.xlu0.b32.cont [9/16] 0.0, 128
    %2529 = vxpose.xlu0.b32.cont [10/16] 0.0, 128
    %2530 = vxpose.xlu0.b32.cont [11/16] 0.0, 128
    %2531 = vxpose.xlu0.b32.cont [12/16] 0.0, 128
    %2532 = vxpose.xlu0.b32.cont [13/16] 0.0, 128
    %2533 = vxpose.xlu0.b32.cont [14/16] 0.0, 128
    %2534 = vxpose.xlu0.b32.cont [15/16] 0.0, 128
    %2535 = vxpose.xlu0.b32.end [16/16] 0.0, 128
    %v2536 = vpop.trf.xlu0
    %v2537 = vpop.trf.xlu0
    %v2538 = vpop.trf.xlu0
    %v2539 = vpop.trf.xlu0
    %v2540 = vpop.trf.xlu0
    %v2541 = vpop.trf.xlu0
    %v2542 = vpop.trf.xlu0
    %v2543 = vpop.trf.xlu0
    %v2544 = vpop.trf.xlu0
    %v2545 = vpop.trf.xlu0
    %v2546 = vpop.trf.xlu0
    %v2547 = vpop.trf.xlu0
    %v2548 = vpop.trf.xlu0
    %v2549 = vpop.trf.xlu0
    %v2550 = vpop.trf.xlu0
    %v2551 = vpop.trf.xlu0
    %2552 = vxpose.xlu0.b32.start [1/16] %v432, 128
    %2553 = vxpose.xlu0.b32.cont [2/16] 0.0, 128
    %2554 = vxpose.xlu0.b32.cont [3/16] 0.0, 128
    %2555 = vxpose.xlu0.b32.cont [4/16] 0.0, 128
    %2556 = vxpose.xlu0.b32.cont [5/16] 0.0, 128
    %2557 = vxpose.xlu0.b32.cont [6/16] 0.0, 128
    %2558 = vxpose.xlu0.b32.cont [7/16] 0.0, 128
    %2559 = vxpose.xlu0.b32.cont [8/16] 0.0, 128
    %2560 = vxpose.xlu0.b32.cont [9/16] 0.0, 128
    %2561 = vxpose.xlu0.b32.cont [10/16] 0.0, 128
    %2562 = vxpose.xlu0.b32.cont [11/16] 0.0, 128
    %2563 = vxpose.xlu0.b32.cont [12/16] 0.0, 128
    %2564 = vxpose.xlu0.b32.cont [13/16] 0.0, 128
    %2565 = vxpose.xlu0.b32.cont [14/16] 0.0, 128
    %2566 = vxpose.xlu0.b32.cont [15/16] 0.0, 128
    %2567 = vxpose.xlu0.b32.end [16/16] 0.0, 128
    %v2568 = vpop.trf.xlu0
    %v2569 = vpop.trf.xlu0
    %v2570 = vpop.trf.xlu0
    %v2571 = vpop.trf.xlu0
    %v2572 = vpop.trf.xlu0
    %v2573 = vpop.trf.xlu0
    %v2574 = vpop.trf.xlu0
    %v2575 = vpop.trf.xlu0
    %v2576 = vpop.trf.xlu0
    %v2577 = vpop.trf.xlu0
    %v2578 = vpop.trf.xlu0
    %v2579 = vpop.trf.xlu0
    %v2580 = vpop.trf.xlu0
    %v2581 = vpop.trf.xlu0
    %v2582 = vpop.trf.xlu0
    %v2583 = vpop.trf.xlu0
    %2584 = vxpose.xlu0.b32.start [1/16] %v435, 128
    %2585 = vxpose.xlu0.b32.cont [2/16] 0.0, 128
    %2586 = vxpose.xlu0.b32.cont [3/16] 0.0, 128
    %2587 = vxpose.xlu0.b32.cont [4/16] 0.0, 128
    %2588 = vxpose.xlu0.b32.cont [5/16] 0.0, 128
    %2589 = vxpose.xlu0.b32.cont [6/16] 0.0, 128
    %2590 = vxpose.xlu0.b32.cont [7/16] 0.0, 128
    %2591 = vxpose.xlu0.b32.cont [8/16] 0.0, 128
    %2592 = vxpose.xlu0.b32.cont [9/16] 0.0, 128
    %2593 = vxpose.xlu0.b32.cont [10/16] 0.0, 128
    %2594 = vxpose.xlu0.b32.cont [11/16] 0.0, 128
    %2595 = vxpose.xlu0.b32.cont [12/16] 0.0, 128
    %2596 = vxpose.xlu0.b32.cont [13/16] 0.0, 128
    %2597 = vxpose.xlu0.b32.cont [14/16] 0.0, 128
    %2598 = vxpose.xlu0.b32.cont [15/16] 0.0, 128
    %2599 = vxpose.xlu0.b32.end [16/16] 0.0, 128
    %v2600 = vpop.trf.xlu0
    %v2601 = vpop.trf.xlu0
    %v2602 = vpop.trf.xlu0
    %v2603 = vpop.trf.xlu0
    %v2604 = vpop.trf.xlu0
    %v2605 = vpop.trf.xlu0
    %v2606 = vpop.trf.xlu0
    %v2607 = vpop.trf.xlu0
    %v2608 = vpop.trf.xlu0
    %v2609 = vpop.trf.xlu0
    %v2610 = vpop.trf.xlu0
    %v2611 = vpop.trf.xlu0
    %v2612 = vpop.trf.xlu0
    %v2613 = vpop.trf.xlu0
    %v2614 = vpop.trf.xlu0
    %v2615 = vpop.trf.xlu0
    %2616 = vxpose.xlu0.b32.start [1/16] %v438, 128
    %2617 = vxpose.xlu0.b32.cont [2/16] 0.0, 128
    %2618 = vxpose.xlu0.b32.cont [3/16] 0.0, 128
    %2619 = vxpose.xlu0.b32.cont [4/16] 0.0, 128
    %2620 = vxpose.xlu0.b32.cont [5/16] 0.0, 128
    %2621 = vxpose.xlu0.b32.cont [6/16] 0.0, 128
    %2622 = vxpose.xlu0.b32.cont [7/16] 0.0, 128
    %2623 = vxpose.xlu0.b32.cont [8/16] 0.0, 128
    %2624 = vxpose.xlu0.b32.cont [9/16] 0.0, 128
    %2625 = vxpose.xlu0.b32.cont [10/16] 0.0, 128
    %2626 = vxpose.xlu0.b32.cont [11/16] 0.0, 128
    %2627 = vxpose.xlu0.b32.cont [12/16] 0.0, 128
    %2628 = vxpose.xlu0.b32.cont [13/16] 0.0, 128
    %2629 = vxpose.xlu0.b32.cont [14/16] 0.0, 128
    %2630 = vxpose.xlu0.b32.cont [15/16] 0.0, 128
    %2631 = vxpose.xlu0.b32.end [16/16] 0.0, 128
    %v2632 = vpop.trf.xlu0
    %v2633 = vpop.trf.xlu0
    %v2634 = vpop.trf.xlu0
    %v2635 = vpop.trf.xlu0
    %v2636 = vpop.trf.xlu0
    %v2637 = vpop.trf.xlu0
    %v2638 = vpop.trf.xlu0
    %v2639 = vpop.trf.xlu0
    %v2640 = vpop.trf.xlu0
    %v2641 = vpop.trf.xlu0
    %v2642 = vpop.trf.xlu0
    %v2643 = vpop.trf.xlu0
    %v2644 = vpop.trf.xlu0
    %v2645 = vpop.trf.xlu0
    %v2646 = vpop.trf.xlu0
    %v2647 = vpop.trf.xlu0
    %2648 = vxpose.xlu0.b32.start [1/16] %v441, 128
    %2649 = vxpose.xlu0.b32.cont [2/16] 0.0, 128
    %2650 = vxpose.xlu0.b32.cont [3/16] 0.0, 128
    %2651 = vxpose.xlu0.b32.cont [4/16] 0.0, 128
    %2652 = vxpose.xlu0.b32.cont [5/16] 0.0, 128
    %2653 = vxpose.xlu0.b32.cont [6/16] 0.0, 128
    %2654 = vxpose.xlu0.b32.cont [7/16] 0.0, 128
    %2655 = vxpose.xlu0.b32.cont [8/16] 0.0, 128
    %2656 = vxpose.xlu0.b32.cont [9/16] 0.0, 128
    %2657 = vxpose.xlu0.b32.cont [10/16] 0.0, 128
    %2658 = vxpose.xlu0.b32.cont [11/16] 0.0, 128
    %2659 = vxpose.xlu0.b32.cont [12/16] 0.0, 128
    %2660 = vxpose.xlu0.b32.cont [13/16] 0.0, 128
    %2661 = vxpose.xlu0.b32.cont [14/16] 0.0, 128
    %2662 = vxpose.xlu0.b32.cont [15/16] 0.0, 128
    %2663 = vxpose.xlu0.b32.end [16/16] 0.0, 128
    %v2664 = vpop.trf.xlu0
    %v2665 = vpop.trf.xlu0
    %v2666 = vpop.trf.xlu0
    %v2667 = vpop.trf.xlu0
    %v2668 = vpop.trf.xlu0
    %v2669 = vpop.trf.xlu0
    %v2670 = vpop.trf.xlu0
    %v2671 = vpop.trf.xlu0
    %v2672 = vpop.trf.xlu0
    %v2673 = vpop.trf.xlu0
    %v2674 = vpop.trf.xlu0
    %v2675 = vpop.trf.xlu0
    %v2676 = vpop.trf.xlu0
    %v2677 = vpop.trf.xlu0
    %v2678 = vpop.trf.xlu0
    %v2679 = vpop.trf.xlu0
    %2680 = vxpose.xlu0.b32.start [1/16] %v444, 128
    %2681 = vxpose.xlu0.b32.cont [2/16] 0.0, 128
    %2682 = vxpose.xlu0.b32.cont [3/16] 0.0, 128
    %2683 = vxpose.xlu0.b32.cont [4/16] 0.0, 128
    %2684 = vxpose.xlu0.b32.cont [5/16] 0.0, 128
    %2685 = vxpose.xlu0.b32.cont [6/16] 0.0, 128
    %2686 = vxpose.xlu0.b32.cont [7/16] 0.0, 128
    %2687 = vxpose.xlu0.b32.cont [8/16] 0.0, 128
    %2688 = vxpose.xlu0.b32.cont [9/16] 0.0, 128
    %2689 = vxpose.xlu0.b32.cont [10/16] 0.0, 128
    %2690 = vxpose.xlu0.b32.cont [11/16] 0.0, 128
    %2691 = vxpose.xlu0.b32.cont [12/16] 0.0, 128
    %2692 = vxpose.xlu0.b32.cont [13/16] 0.0, 128
    %2693 = vxpose.xlu0.b32.cont [14/16] 0.0, 128
    %2694 = vxpose.xlu0.b32.cont [15/16] 0.0, 128
    %2695 = vxpose.xlu0.b32.end [16/16] 0.0, 128
    %v2696 = vpop.trf.xlu0
    %v2697 = vpop.trf.xlu0
    %v2698 = vpop.trf.xlu0
    %v2699 = vpop.trf.xlu0
    %v2700 = vpop.trf.xlu0
    %v2701 = vpop.trf.xlu0
    %v2702 = vpop.trf.xlu0
    %v2703 = vpop.trf.xlu0
    %v2704 = vpop.trf.xlu0
    %v2705 = vpop.trf.xlu0
    %v2706 = vpop.trf.xlu0
    %v2707 = vpop.trf.xlu0
    %v2708 = vpop.trf.xlu0
    %v2709 = vpop.trf.xlu0
    %v2710 = vpop.trf.xlu0
    %v2711 = vpop.trf.xlu0
    %2712 = vxpose.xlu0.b32.start [1/16] %v447, 128
    %2713 = vxpose.xlu0.b32.cont [2/16] 0.0, 128
    %2714 = vxpose.xlu0.b32.cont [3/16] 0.0, 128
    %2715 = vxpose.xlu0.b32.cont [4/16] 0.0, 128
    %2716 = vxpose.xlu0.b32.cont [5/16] 0.0, 128
    %2717 = vxpose.xlu0.b32.cont [6/16] 0.0, 128
    %2718 = vxpose.xlu0.b32.cont [7/16] 0.0, 128
    %2719 = vxpose.xlu0.b32.cont [8/16] 0.0, 128
    %2720 = vxpose.xlu0.b32.cont [9/16] 0.0, 128
    %2721 = vxpose.xlu0.b32.cont [10/16] 0.0, 128
    %2722 = vxpose.xlu0.b32.cont [11/16] 0.0, 128
    %2723 = vxpose.xlu0.b32.cont [12/16] 0.0, 128
    %2724 = vxpose.xlu0.b32.cont [13/16] 0.0, 128
    %2725 = vxpose.xlu0.b32.cont [14/16] 0.0, 128
    %2726 = vxpose.xlu0.b32.cont [15/16] 0.0, 128
    %2727 = vxpose.xlu0.b32.end [16/16] 0.0, 128
    %v2728 = vpop.trf.xlu0
    %v2729 = vpop.trf.xlu0
    %v2730 = vpop.trf.xlu0
    %v2731 = vpop.trf.xlu0
    %v2732 = vpop.trf.xlu0
    %v2733 = vpop.trf.xlu0
    %v2734 = vpop.trf.xlu0
    %v2735 = vpop.trf.xlu0
    %v2736 = vpop.trf.xlu0
    %v2737 = vpop.trf.xlu0
    %v2738 = vpop.trf.xlu0
    %v2739 = vpop.trf.xlu0
    %v2740 = vpop.trf.xlu0
    %v2741 = vpop.trf.xlu0
    %v2742 = vpop.trf.xlu0
    %v2743 = vpop.trf.xlu0
    %2744 = vxpose.xlu0.b32.start [1/16] %v450, 128
    %2745 = vxpose.xlu0.b32.cont [2/16] 0.0, 128
    %2746 = vxpose.xlu0.b32.cont [3/16] 0.0, 128
    %2747 = vxpose.xlu0.b32.cont [4/16] 0.0, 128
    %2748 = vxpose.xlu0.b32.cont [5/16] 0.0, 128
    %2749 = vxpose.xlu0.b32.cont [6/16] 0.0, 128
    %2750 = vxpose.xlu0.b32.cont [7/16] 0.0, 128
    %2751 = vxpose.xlu0.b32.cont [8/16] 0.0, 128
    %2752 = vxpose.xlu0.b32.cont [9/16] 0.0, 128
    %2753 = vxpose.xlu0.b32.cont [10/16] 0.0, 128
    %2754 = vxpose.xlu0.b32.cont [11/16] 0.0, 128
    %2755 = vxpose.xlu0.b32.cont [12/16] 0.0, 128
    %2756 = vxpose.xlu0.b32.cont [13/16] 0.0, 128
    %2757 = vxpose.xlu0.b32.cont [14/16] 0.0, 128
    %2758 = vxpose.xlu0.b32.cont [15/16] 0.0, 128
    %2759 = vxpose.xlu0.b32.end [16/16] 0.0, 128
    %v2760 = vpop.trf.xlu0
    %v2761 = vpop.trf.xlu0
    %v2762 = vpop.trf.xlu0
    %v2763 = vpop.trf.xlu0
    %v2764 = vpop.trf.xlu0
    %v2765 = vpop.trf.xlu0
    %v2766 = vpop.trf.xlu0
    %v2767 = vpop.trf.xlu0
    %v2768 = vpop.trf.xlu0
    %v2769 = vpop.trf.xlu0
    %v2770 = vpop.trf.xlu0
    %v2771 = vpop.trf.xlu0
    %v2772 = vpop.trf.xlu0
    %v2773 = vpop.trf.xlu0
    %v2774 = vpop.trf.xlu0
    %v2775 = vpop.trf.xlu0
    %2776 = vxpose.xlu0.b32.start [1/16] %v453, 128
    %2777 = vxpose.xlu0.b32.cont [2/16] 0.0, 128
    %2778 = vxpose.xlu0.b32.cont [3/16] 0.0, 128
    %2779 = vxpose.xlu0.b32.cont [4/16] 0.0, 128
    %2780 = vxpose.xlu0.b32.cont [5/16] 0.0, 128
    %2781 = vxpose.xlu0.b32.cont [6/16] 0.0, 128
    %2782 = vxpose.xlu0.b32.cont [7/16] 0.0, 128
    %2783 = vxpose.xlu0.b32.cont [8/16] 0.0, 128
    %2784 = vxpose.xlu0.b32.cont [9/16] 0.0, 128
    %2785 = vxpose.xlu0.b32.cont [10/16] 0.0, 128
    %2786 = vxpose.xlu0.b32.cont [11/16] 0.0, 128
    %2787 = vxpose.xlu0.b32.cont [12/16] 0.0, 128
    %2788 = vxpose.xlu0.b32.cont [13/16] 0.0, 128
    %2789 = vxpose.xlu0.b32.cont [14/16] 0.0, 128
    %2790 = vxpose.xlu0.b32.cont [15/16] 0.0, 128
    %2791 = vxpose.xlu0.b32.end [16/16] 0.0, 128
    %v2792 = vpop.trf.xlu0
    %v2793 = vpop.trf.xlu0
    %v2794 = vpop.trf.xlu0
    %v2795 = vpop.trf.xlu0
    %v2796 = vpop.trf.xlu0
    %v2797 = vpop.trf.xlu0
    %v2798 = vpop.trf.xlu0
    %v2799 = vpop.trf.xlu0
    %v2800 = vpop.trf.xlu0
    %v2801 = vpop.trf.xlu0
    %v2802 = vpop.trf.xlu0
    %v2803 = vpop.trf.xlu0
    %v2804 = vpop.trf.xlu0
    %v2805 = vpop.trf.xlu0
    %v2806 = vpop.trf.xlu0
    %v2807 = vpop.trf.xlu0
    %v2809 = vsel %vm967, %v2312, 0
    %v2812 = vsel %vm967, %v2280, 0
    %2814 = vmatprep.subr.mxu0 0.0
    %2815 = vmatpush1.xpose.msra.mxu0 0.0
    %2816 = vmatprep.subr.mxu0 0.0
    %2817 = vmatpush1.xpose.msra.mxu0 0.0
    %2818 = vmatprep.subr.mxu0 0.0
    %2819 = vmatpush1.xpose.msra.mxu0 0.0
    %2820 = vmatprep.subr.mxu0 0.0
    %2821 = vmatpush1.xpose.msra.mxu0 0.0
    %2822 = vmatprep.subr.mxu0 0.0
    %2823 = vmatpush1.xpose.msra.mxu0 0.0
    %2824 = vmatprep.subr.mxu0 0.0
    %2825 = vmatpush1.xpose.msra.mxu0 0.0
    %2826 = vmatprep.subr.mxu0 0.0
    %2827 = vmatpush1.xpose.msra.mxu0 0.0
    %2828 = vmatprep.subr.mxu0 0.0
    %2829 = vmatpush1.xpose.msra.mxu0 0.0
    %2830 = vmatprep.subr.mxu0 0.0
    %2831 = vmatpush1.xpose.msra.mxu0 0.0
    %2832 = vmatprep.subr.mxu0 0.0
    %2833 = vmatpush1.xpose.msra.mxu0 0.0
    %2834 = vmatprep.subr.mxu0 0.0
    %2835 = vmatpush1.xpose.msra.mxu0 0.0
    %2836 = vmatprep.subr.mxu0 0.0
    %2837 = vmatpush1.xpose.msra.mxu0 0.0
    %2838 = vmatprep.subr.mxu0 0.0
    %2839 = vmatpush1.xpose.msra.mxu0 0.0
    %2840 = vmatprep.subr.mxu0 0.0
    %2841 = vmatpush1.xpose.msra.mxu0 0.0
    %2842 = vmatprep.subr.mxu0 0.0
    %2843 = vmatpush1.xpose.msra.mxu0 0.0
    %2844 = vmatprep.subr.mxu0 0.0
    %2845 = vmatpush1.xpose.msra.mxu0 %v2812
    %2846 = vmatprep.subr.mxu0 0.0
    %2847 = vmatpush2.xpose.msra.mxu0 0.0
    %2848 = vmatprep.subr.mxu0 0.0
    %2849 = vmatpush2.xpose.msra.mxu0 0.0
    %2850 = vmatprep.subr.mxu0 0.0
    %2851 = vmatpush2.xpose.msra.mxu0 0.0
    %2852 = vmatprep.subr.mxu0 0.0
    %2853 = vmatpush2.xpose.msra.mxu0 0.0
    %2854 = vmatprep.subr.mxu0 0.0
    %2855 = vmatpush2.xpose.msra.mxu0 0.0
    %2856 = vmatprep.subr.mxu0 0.0
    %2857 = vmatpush2.xpose.msra.mxu0 0.0
    %2858 = vmatprep.subr.mxu0 0.0
    %2859 = vmatpush2.xpose.msra.mxu0 0.0
    %2860 = vmatprep.subr.mxu0 0.0
    %2861 = vmatpush2.xpose.msra.mxu0 0.0
    %2862 = vmatprep.subr.mxu0 0.0
    %2863 = vmatpush2.xpose.msra.mxu0 0.0
    %2864 = vmatprep.subr.mxu0 0.0
    %2865 = vmatpush2.xpose.msra.mxu0 0.0
    %2866 = vmatprep.subr.mxu0 0.0
    %2867 = vmatpush2.xpose.msra.mxu0 0.0
    %2868 = vmatprep.subr.mxu0 0.0
    %2869 = vmatpush2.xpose.msra.mxu0 0.0
    %2870 = vmatprep.subr.mxu0 0.0
    %2871 = vmatpush2.xpose.msra.mxu0 0.0
    %2872 = vmatprep.subr.mxu0 0.0
    %2873 = vmatpush2.xpose.msra.mxu0 0.0
    %2874 = vmatprep.subr.mxu0 0.0
    %2875 = vmatpush2.xpose.msra.mxu0 0.0
    %2876 = vmatprep.subr.mxu0 0.0
    %2877 = vmatpush2.xpose.msra.mxu0 0.0
    %2878 = vmatprep.mubr.f32.mxu0 0.0
    %2879 = vmatmul.mubr.f32.gmra.mxu0 %v2809
    %v2880 = vpop.f32.mrf.mxu0
    %v2881 = vadd.f32 0.0, %v2880
    %v2882 = vpop.f32.mrf.mxu0
    %2883 = vdwg.mxu0
    %v2885 = vsel %vm967, %v2344, 0
    %v2888 = vsel %vm967, %v2281, 0
    %2890 = vmatprep.subr.mxu0 0.0
    %2891 = vmatpush1.xpose.msra.mxu0 0.0
    %2892 = vmatprep.subr.mxu0 0.0
    %2893 = vmatpush1.xpose.msra.mxu0 0.0
    %2894 = vmatprep.subr.mxu0 0.0
    %2895 = vmatpush1.xpose.msra.mxu0 0.0
    %2896 = vmatprep.subr.mxu0 0.0
    %2897 = vmatpush1.xpose.msra.mxu0 0.0
    %2898 = vmatprep.subr.mxu0 0.0
    %2899 = vmatpush1.xpose.msra.mxu0 0.0
    %2900 = vmatprep.subr.mxu0 0.0
    %2901 = vmatpush1.xpose.msra.mxu0 0.0
    %2902 = vmatprep.subr.mxu0 0.0
    %2903 = vmatpush1.xpose.msra.mxu0 0.0
    %2904 = vmatprep.subr.mxu0 0.0
    %2905 = vmatpush1.xpose.msra.mxu0 0.0
    %2906 = vmatprep.subr.mxu0 0.0
    %2907 = vmatpush1.xpose.msra.mxu0 0.0
    %2908 = vmatprep.subr.mxu0 0.0
    %2909 = vmatpush1.xpose.msra.mxu0 0.0
    %2910 = vmatprep.subr.mxu0 0.0
    %2911 = vmatpush1.xpose.msra.mxu0 0.0
    %2912 = vmatprep.subr.mxu0 0.0
    %2913 = vmatpush1.xpose.msra.mxu0 0.0
    %2914 = vmatprep.subr.mxu0 0.0
    %2915 = vmatpush1.xpose.msra.mxu0 0.0
    %2916 = vmatprep.subr.mxu0 0.0
    %2917 = vmatpush1.xpose.msra.mxu0 0.0
    %2918 = vmatprep.subr.mxu0 0.0
    %2919 = vmatpush1.xpose.msra.mxu0 0.0
    %2920 = vmatprep.subr.mxu0 0.0
    %2921 = vmatpush1.xpose.msra.mxu0 %v2888
    %2922 = vmatprep.subr.mxu0 0.0
    %2923 = vmatpush2.xpose.msra.mxu0 0.0
    %2924 = vmatprep.subr.mxu0 0.0
    %2925 = vmatpush2.xpose.msra.mxu0 0.0
    %2926 = vmatprep.subr.mxu0 0.0
    %2927 = vmatpush2.xpose.msra.mxu0 0.0
    %2928 = vmatprep.subr.mxu0 0.0
    %2929 = vmatpush2.xpose.msra.mxu0 0.0
    %2930 = vmatprep.subr.mxu0 0.0
    %2931 = vmatpush2.xpose.msra.mxu0 0.0
    %2932 = vmatprep.subr.mxu0 0.0
    %2933 = vmatpush2.xpose.msra.mxu0 0.0
    %2934 = vmatprep.subr.mxu0 0.0
    %2935 = vmatpush2.xpose.msra.mxu0 0.0
    %2936 = vmatprep.subr.mxu0 0.0
    %2937 = vmatpush2.xpose.msra.mxu0 0.0
    %2938 = vmatprep.subr.mxu0 0.0
    %2939 = vmatpush2.xpose.msra.mxu0 0.0
    %2940 = vmatprep.subr.mxu0 0.0
    %2941 = vmatpush2.xpose.msra.mxu0 0.0
    %2942 = vmatprep.subr.mxu0 0.0
    %2943 = vmatpush2.xpose.msra.mxu0 0.0
    %2944 = vmatprep.subr.mxu0 0.0
    %2945 = vmatpush2.xpose.msra.mxu0 0.0
    %2946 = vmatprep.subr.mxu0 0.0
    %2947 = vmatpush2.xpose.msra.mxu0 0.0
    %2948 = vmatprep.subr.mxu0 0.0
    %2949 = vmatpush2.xpose.msra.mxu0 0.0
    %2950 = vmatprep.subr.mxu0 0.0
    %2951 = vmatpush2.xpose.msra.mxu0 0.0
    %2952 = vmatprep.subr.mxu0 0.0
    %2953 = vmatpush2.xpose.msra.mxu0 0.0
    %2954 = vmatprep.mubr.f32.mxu0 0.0
    %2955 = vmatmul.mubr.f32.gmra.mxu0 %v2885
    %v2956 = vpop.f32.mrf.mxu0
    %v2957 = vadd.f32 0.0, %v2956
    %v2958 = vpop.f32.mrf.mxu0
    %2959 = vdwg.mxu0
    %v2961 = vsel %vm967, %v2376, 0
    %v2964 = vsel %vm967, %v2282, 0
    %2966 = vmatprep.subr.mxu0 0.0
    %2967 = vmatpush1.xpose.msra.mxu0 0.0
    %2968 = vmatprep.subr.mxu0 0.0
    %2969 = vmatpush1.xpose.msra.mxu0 0.0
    %2970 = vmatprep.subr.mxu0 0.0
    %2971 = vmatpush1.xpose.msra.mxu0 0.0
    %2972 = vmatprep.subr.mxu0 0.0
    %2973 = vmatpush1.xpose.msra.mxu0 0.0
    %2974 = vmatprep.subr.mxu0 0.0
    %2975 = vmatpush1.xpose.msra.mxu0 0.0
    %2976 = vmatprep.subr.mxu0 0.0
    %2977 = vmatpush1.xpose.msra.mxu0 0.0
    %2978 = vmatprep.subr.mxu0 0.0
    %2979 = vmatpush1.xpose.msra.mxu0 0.0
    %2980 = vmatprep.subr.mxu0 0.0
    %2981 = vmatpush1.xpose.msra.mxu0 0.0
    %2982 = vmatprep.subr.mxu0 0.0
    %2983 = vmatpush1.xpose.msra.mxu0 0.0
    %2984 = vmatprep.subr.mxu0 0.0
    %2985 = vmatpush1.xpose.msra.mxu0 0.0
    %2986 = vmatprep.subr.mxu0 0.0
    %2987 = vmatpush1.xpose.msra.mxu0 0.0
    %2988 = vmatprep.subr.mxu0 0.0
    %2989 = vmatpush1.xpose.msra.mxu0 0.0
    %2990 = vmatprep.subr.mxu0 0.0
    %2991 = vmatpush1.xpose.msra.mxu0 0.0
    %2992 = vmatprep.subr.mxu0 0.0
    %2993 = vmatpush1.xpose.msra.mxu0 0.0
    %2994 = vmatprep.subr.mxu0 0.0
    %2995 = vmatpush1.xpose.msra.mxu0 0.0
    %2996 = vmatprep.subr.mxu0 0.0
    %2997 = vmatpush1.xpose.msra.mxu0 %v2964
    %2998 = vmatprep.subr.mxu0 0.0
    %2999 = vmatpush2.xpose.msra.mxu0 0.0
    %3000 = vmatprep.subr.mxu0 0.0
    %3001 = vmatpush2.xpose.msra.mxu0 0.0
    %3002 = vmatprep.subr.mxu0 0.0
    %3003 = vmatpush2.xpose.msra.mxu0 0.0
    %3004 = vmatprep.subr.mxu0 0.0
    %3005 = vmatpush2.xpose.msra.mxu0 0.0
    %3006 = vmatprep.subr.mxu0 0.0
    %3007 = vmatpush2.xpose.msra.mxu0 0.0
    %3008 = vmatprep.subr.mxu0 0.0
    %3009 = vmatpush2.xpose.msra.mxu0 0.0
    %3010 = vmatprep.subr.mxu0 0.0
    %3011 = vmatpush2.xpose.msra.mxu0 0.0
    %3012 = vmatprep.subr.mxu0 0.0
    %3013 = vmatpush2.xpose.msra.mxu0 0.0
    %3014 = vmatprep.subr.mxu0 0.0
    %3015 = vmatpush2.xpose.msra.mxu0 0.0
    %3016 = vmatprep.subr.mxu0 0.0
    %3017 = vmatpush2.xpose.msra.mxu0 0.0
    %3018 = vmatprep.subr.mxu0 0.0
    %3019 = vmatpush2.xpose.msra.mxu0 0.0
    %3020 = vmatprep.subr.mxu0 0.0
    %3021 = vmatpush2.xpose.msra.mxu0 0.0
    %3022 = vmatprep.subr.mxu0 0.0
    %3023 = vmatpush2.xpose.msra.mxu0 0.0
    %3024 = vmatprep.subr.mxu0 0.0
    %3025 = vmatpush2.xpose.msra.mxu0 0.0
    %3026 = vmatprep.subr.mxu0 0.0
    %3027 = vmatpush2.xpose.msra.mxu0 0.0
    %3028 = vmatprep.subr.mxu0 0.0
    %3029 = vmatpush2.xpose.msra.mxu0 0.0
    %3030 = vmatprep.mubr.f32.mxu0 0.0
    %3031 = vmatmul.mubr.f32.gmra.mxu0 %v2961
    %v3032 = vpop.f32.mrf.mxu0
    %v3033 = vadd.f32 0.0, %v3032
    %v3034 = vpop.f32.mrf.mxu0
    %3035 = vdwg.mxu0
    %v3037 = vsel %vm967, %v2408, 0
    %v3040 = vsel %vm967, %v2283, 0
    %3042 = vmatprep.subr.mxu0 0.0
    %3043 = vmatpush1.xpose.msra.mxu0 0.0
    %3044 = vmatprep.subr.mxu0 0.0
    %3045 = vmatpush1.xpose.msra.mxu0 0.0
    %3046 = vmatprep.subr.mxu0 0.0
    %3047 = vmatpush1.xpose.msra.mxu0 0.0
    %3048 = vmatprep.subr.mxu0 0.0
    %3049 = vmatpush1.xpose.msra.mxu0 0.0
    %3050 = vmatprep.subr.mxu0 0.0
    %3051 = vmatpush1.xpose.msra.mxu0 0.0
    %3052 = vmatprep.subr.mxu0 0.0
    %3053 = vmatpush1.xpose.msra.mxu0 0.0
    %3054 = vmatprep.subr.mxu0 0.0
    %3055 = vmatpush1.xpose.msra.mxu0 0.0
    %3056 = vmatprep.subr.mxu0 0.0
    %3057 = vmatpush1.xpose.msra.mxu0 0.0
    %3058 = vmatprep.subr.mxu0 0.0
    %3059 = vmatpush1.xpose.msra.mxu0 0.0
    %3060 = vmatprep.subr.mxu0 0.0
    %3061 = vmatpush1.xpose.msra.mxu0 0.0
    %3062 = vmatprep.subr.mxu0 0.0
    %3063 = vmatpush1.xpose.msra.mxu0 0.0
    %3064 = vmatprep.subr.mxu0 0.0
    %3065 = vmatpush1.xpose.msra.mxu0 0.0
    %3066 = vmatprep.subr.mxu0 0.0
    %3067 = vmatpush1.xpose.msra.mxu0 0.0
    %3068 = vmatprep.subr.mxu0 0.0
    %3069 = vmatpush1.xpose.msra.mxu0 0.0
    %3070 = vmatprep.subr.mxu0 0.0
    %3071 = vmatpush1.xpose.msra.mxu0 0.0
    %3072 = vmatprep.subr.mxu0 0.0
    %3073 = vmatpush1.xpose.msra.mxu0 %v3040
    %3074 = vmatprep.subr.mxu0 0.0
    %3075 = vmatpush2.xpose.msra.mxu0 0.0
    %3076 = vmatprep.subr.mxu0 0.0
    %3077 = vmatpush2.xpose.msra.mxu0 0.0
    %3078 = vmatprep.subr.mxu0 0.0
    %3079 = vmatpush2.xpose.msra.mxu0 0.0
    %3080 = vmatprep.subr.mxu0 0.0
    %3081 = vmatpush2.xpose.msra.mxu0 0.0
    %3082 = vmatprep.subr.mxu0 0.0
    %3083 = vmatpush2.xpose.msra.mxu0 0.0
    %3084 = vmatprep.subr.mxu0 0.0
    %3085 = vmatpush2.xpose.msra.mxu0 0.0
    %3086 = vmatprep.subr.mxu0 0.0
    %3087 = vmatpush2.xpose.msra.mxu0 0.0
    %3088 = vmatprep.subr.mxu0 0.0
    %3089 = vmatpush2.xpose.msra.mxu0 0.0
    %3090 = vmatprep.subr.mxu0 0.0
    %3091 = vmatpush2.xpose.msra.mxu0 0.0
    %3092 = vmatprep.subr.mxu0 0.0
    %3093 = vmatpush2.xpose.msra.mxu0 0.0
    %3094 = vmatprep.subr.mxu0 0.0
    %3095 = vmatpush2.xpose.msra.mxu0 0.0
    %3096 = vmatprep.subr.mxu0 0.0
    %3097 = vmatpush2.xpose.msra.mxu0 0.0
    %3098 = vmatprep.subr.mxu0 0.0
    %3099 = vmatpush2.xpose.msra.mxu0 0.0
    %3100 = vmatprep.subr.mxu0 0.0
    %3101 = vmatpush2.xpose.msra.mxu0 0.0
    %3102 = vmatprep.subr.mxu0 0.0
    %3103 = vmatpush2.xpose.msra.mxu0 0.0
    %3104 = vmatprep.subr.mxu0 0.0
    %3105 = vmatpush2.xpose.msra.mxu0 0.0
    %3106 = vmatprep.mubr.f32.mxu0 0.0
    %3107 = vmatmul.mubr.f32.gmra.mxu0 %v3037
    %v3108 = vpop.f32.mrf.mxu0
    %v3109 = vadd.f32 0.0, %v3108
    %v3110 = vpop.f32.mrf.mxu0
    %3111 = vdwg.mxu0
    %v3113 = vsel %vm967, %v2440, 0
    %v3116 = vsel %vm967, %v2284, 0
    %3118 = vmatprep.subr.mxu0 0.0
    %3119 = vmatpush1.xpose.msra.mxu0 0.0
    %3120 = vmatprep.subr.mxu0 0.0
    %3121 = vmatpush1.xpose.msra.mxu0 0.0
    %3122 = vmatprep.subr.mxu0 0.0
    %3123 = vmatpush1.xpose.msra.mxu0 0.0
    %3124 = vmatprep.subr.mxu0 0.0
    %3125 = vmatpush1.xpose.msra.mxu0 0.0
    %3126 = vmatprep.subr.mxu0 0.0
    %3127 = vmatpush1.xpose.msra.mxu0 0.0
    %3128 = vmatprep.subr.mxu0 0.0
    %3129 = vmatpush1.xpose.msra.mxu0 0.0
    %3130 = vmatprep.subr.mxu0 0.0
    %3131 = vmatpush1.xpose.msra.mxu0 0.0
    %3132 = vmatprep.subr.mxu0 0.0
    %3133 = vmatpush1.xpose.msra.mxu0 0.0
    %3134 = vmatprep.subr.mxu0 0.0
    %3135 = vmatpush1.xpose.msra.mxu0 0.0
    %3136 = vmatprep.subr.mxu0 0.0
    %3137 = vmatpush1.xpose.msra.mxu0 0.0
    %3138 = vmatprep.subr.mxu0 0.0
    %3139 = vmatpush1.xpose.msra.mxu0 0.0
    %3140 = vmatprep.subr.mxu0 0.0
    %3141 = vmatpush1.xpose.msra.mxu0 0.0
    %3142 = vmatprep.subr.mxu0 0.0
    %3143 = vmatpush1.xpose.msra.mxu0 0.0
    %3144 = vmatprep.subr.mxu0 0.0
    %3145 = vmatpush1.xpose.msra.mxu0 0.0
    %3146 = vmatprep.subr.mxu0 0.0
    %3147 = vmatpush1.xpose.msra.mxu0 0.0
    %3148 = vmatprep.subr.mxu0 0.0
    %3149 = vmatpush1.xpose.msra.mxu0 %v3116
    %3150 = vmatprep.subr.mxu0 0.0
    %3151 = vmatpush2.xpose.msra.mxu0 0.0
    %3152 = vmatprep.subr.mxu0 0.0
    %3153 = vmatpush2.xpose.msra.mxu0 0.0
    %3154 = vmatprep.subr.mxu0 0.0
    %3155 = vmatpush2.xpose.msra.mxu0 0.0
    %3156 = vmatprep.subr.mxu0 0.0
    %3157 = vmatpush2.xpose.msra.mxu0 0.0
    %3158 = vmatprep.subr.mxu0 0.0
    %3159 = vmatpush2.xpose.msra.mxu0 0.0
    %3160 = vmatprep.subr.mxu0 0.0
    %3161 = vmatpush2.xpose.msra.mxu0 0.0
    %3162 = vmatprep.subr.mxu0 0.0
    %3163 = vmatpush2.xpose.msra.mxu0 0.0
    %3164 = vmatprep.subr.mxu0 0.0
    %3165 = vmatpush2.xpose.msra.mxu0 0.0
    %3166 = vmatprep.subr.mxu0 0.0
    %3167 = vmatpush2.xpose.msra.mxu0 0.0
    %3168 = vmatprep.subr.mxu0 0.0
    %3169 = vmatpush2.xpose.msra.mxu0 0.0
    %3170 = vmatprep.subr.mxu0 0.0
    %3171 = vmatpush2.xpose.msra.mxu0 0.0
    %3172 = vmatprep.subr.mxu0 0.0
    %3173 = vmatpush2.xpose.msra.mxu0 0.0
    %3174 = vmatprep.subr.mxu0 0.0
    %3175 = vmatpush2.xpose.msra.mxu0 0.0
    %3176 = vmatprep.subr.mxu0 0.0
    %3177 = vmatpush2.xpose.msra.mxu0 0.0
    %3178 = vmatprep.subr.mxu0 0.0
    %3179 = vmatpush2.xpose.msra.mxu0 0.0
    %3180 = vmatprep.subr.mxu0 0.0
    %3181 = vmatpush2.xpose.msra.mxu0 0.0
    %3182 = vmatprep.mubr.f32.mxu0 0.0
    %3183 = vmatmul.mubr.f32.gmra.mxu0 %v3113
    %v3184 = vpop.f32.mrf.mxu0
    %v3185 = vadd.f32 0.0, %v3184
    %v3186 = vpop.f32.mrf.mxu0
    %3187 = vdwg.mxu0
    %v3189 = vsel %vm967, %v2472, 0
    %v3192 = vsel %vm967, %v2285, 0
    %3194 = vmatprep.subr.mxu0 0.0
    %3195 = vmatpush1.xpose.msra.mxu0 0.0
    %3196 = vmatprep.subr.mxu0 0.0
    %3197 = vmatpush1.xpose.msra.mxu0 0.0
    %3198 = vmatprep.subr.mxu0 0.0
    %3199 = vmatpush1.xpose.msra.mxu0 0.0
    %3200 = vmatprep.subr.mxu0 0.0
    %3201 = vmatpush1.xpose.msra.mxu0 0.0
    %3202 = vmatprep.subr.mxu0 0.0
    %3203 = vmatpush1.xpose.msra.mxu0 0.0
    %3204 = vmatprep.subr.mxu0 0.0
    %3205 = vmatpush1.xpose.msra.mxu0 0.0
    %3206 = vmatprep.subr.mxu0 0.0
    %3207 = vmatpush1.xpose.msra.mxu0 0.0
    %3208 = vmatprep.subr.mxu0 0.0
    %3209 = vmatpush1.xpose.msra.mxu0 0.0
    %3210 = vmatprep.subr.mxu0 0.0
    %3211 = vmatpush1.xpose.msra.mxu0 0.0
    %3212 = vmatprep.subr.mxu0 0.0
    %3213 = vmatpush1.xpose.msra.mxu0 0.0
    %3214 = vmatprep.subr.mxu0 0.0
    %3215 = vmatpush1.xpose.msra.mxu0 0.0
    %3216 = vmatprep.subr.mxu0 0.0
    %3217 = vmatpush1.xpose.msra.mxu0 0.0
    %3218 = vmatprep.subr.mxu0 0.0
    %3219 = vmatpush1.xpose.msra.mxu0 0.0
    %3220 = vmatprep.subr.mxu0 0.0
    %3221 = vmatpush1.xpose.msra.mxu0 0.0
    %3222 = vmatprep.subr.mxu0 0.0
    %3223 = vmatpush1.xpose.msra.mxu0 0.0
    %3224 = vmatprep.subr.mxu0 0.0
    %3225 = vmatpush1.xpose.msra.mxu0 %v3192
    %3226 = vmatprep.subr.mxu0 0.0
    %3227 = vmatpush2.xpose.msra.mxu0 0.0
    %3228 = vmatprep.subr.mxu0 0.0
    %3229 = vmatpush2.xpose.msra.mxu0 0.0
    %3230 = vmatprep.subr.mxu0 0.0
    %3231 = vmatpush2.xpose.msra.mxu0 0.0
    %3232 = vmatprep.subr.mxu0 0.0
    %3233 = vmatpush2.xpose.msra.mxu0 0.0
    %3234 = vmatprep.subr.mxu0 0.0
    %3235 = vmatpush2.xpose.msra.mxu0 0.0
    %3236 = vmatprep.subr.mxu0 0.0
    %3237 = vmatpush2.xpose.msra.mxu0 0.0
    %3238 = vmatprep.subr.mxu0 0.0
    %3239 = vmatpush2.xpose.msra.mxu0 0.0
    %3240 = vmatprep.subr.mxu0 0.0
    %3241 = vmatpush2.xpose.msra.mxu0 0.0
    %3242 = vmatprep.subr.mxu0 0.0
    %3243 = vmatpush2.xpose.msra.mxu0 0.0
    %3244 = vmatprep.subr.mxu0 0.0
    %3245 = vmatpush2.xpose.msra.mxu0 0.0
    %3246 = vmatprep.subr.mxu0 0.0
    %3247 = vmatpush2.xpose.msra.mxu0 0.0
    %3248 = vmatprep.subr.mxu0 0.0
    %3249 = vmatpush2.xpose.msra.mxu0 0.0
    %3250 = vmatprep.subr.mxu0 0.0
    %3251 = vmatpush2.xpose.msra.mxu0 0.0
    %3252 = vmatprep.subr.mxu0 0.0
    %3253 = vmatpush2.xpose.msra.mxu0 0.0
    %3254 = vmatprep.subr.mxu0 0.0
    %3255 = vmatpush2.xpose.msra.mxu0 0.0
    %3256 = vmatprep.subr.mxu0 0.0
    %3257 = vmatpush2.xpose.msra.mxu0 0.0
    %3258 = vmatprep.mubr.f32.mxu0 0.0
    %3259 = vmatmul.mubr.f32.gmra.mxu0 %v3189
    %v3260 = vpop.f32.mrf.mxu0
    %v3261 = vadd.f32 0.0, %v3260
    %v3262 = vpop.f32.mrf.mxu0
    %3263 = vdwg.mxu0
    %v3265 = vsel %vm967, %v2504, 0
    %v3268 = vsel %vm967, %v2286, 0
    %3270 = vmatprep.subr.mxu0 0.0
    %3271 = vmatpush1.xpose.msra.mxu0 0.0
    %3272 = vmatprep.subr.mxu0 0.0
    %3273 = vmatpush1.xpose.msra.mxu0 0.0
    %3274 = vmatprep.subr.mxu0 0.0
    %3275 = vmatpush1.xpose.msra.mxu0 0.0
    %3276 = vmatprep.subr.mxu0 0.0
    %3277 = vmatpush1.xpose.msra.mxu0 0.0
    %3278 = vmatprep.subr.mxu0 0.0
    %3279 = vmatpush1.xpose.msra.mxu0 0.0
    %3280 = vmatprep.subr.mxu0 0.0
    %3281 = vmatpush1.xpose.msra.mxu0 0.0
    %3282 = vmatprep.subr.mxu0 0.0
    %3283 = vmatpush1.xpose.msra.mxu0 0.0
    %3284 = vmatprep.subr.mxu0 0.0
    %3285 = vmatpush1.xpose.msra.mxu0 0.0
    %3286 = vmatprep.subr.mxu0 0.0
    %3287 = vmatpush1.xpose.msra.mxu0 0.0
    %3288 = vmatprep.subr.mxu0 0.0
    %3289 = vmatpush1.xpose.msra.mxu0 0.0
    %3290 = vmatprep.subr.mxu0 0.0
    %3291 = vmatpush1.xpose.msra.mxu0 0.0
    %3292 = vmatprep.subr.mxu0 0.0
    %3293 = vmatpush1.xpose.msra.mxu0 0.0
    %3294 = vmatprep.subr.mxu0 0.0
    %3295 = vmatpush1.xpose.msra.mxu0 0.0
    %3296 = vmatprep.subr.mxu0 0.0
    %3297 = vmatpush1.xpose.msra.mxu0 0.0
    %3298 = vmatprep.subr.mxu0 0.0
    %3299 = vmatpush1.xpose.msra.mxu0 0.0
    %3300 = vmatprep.subr.mxu0 0.0
    %3301 = vmatpush1.xpose.msra.mxu0 %v3268
    %3302 = vmatprep.subr.mxu0 0.0
    %3303 = vmatpush2.xpose.msra.mxu0 0.0
    %3304 = vmatprep.subr.mxu0 0.0
    %3305 = vmatpush2.xpose.msra.mxu0 0.0
    %3306 = vmatprep.subr.mxu0 0.0
    %3307 = vmatpush2.xpose.msra.mxu0 0.0
    %3308 = vmatprep.subr.mxu0 0.0
    %3309 = vmatpush2.xpose.msra.mxu0 0.0
    %3310 = vmatprep.subr.mxu0 0.0
    %3311 = vmatpush2.xpose.msra.mxu0 0.0
    %3312 = vmatprep.subr.mxu0 0.0
    %3313 = vmatpush2.xpose.msra.mxu0 0.0
    %3314 = vmatprep.subr.mxu0 0.0
    %3315 = vmatpush2.xpose.msra.mxu0 0.0
    %3316 = vmatprep.subr.mxu0 0.0
    %3317 = vmatpush2.xpose.msra.mxu0 0.0
    %3318 = vmatprep.subr.mxu0 0.0
    %3319 = vmatpush2.xpose.msra.mxu0 0.0
    %3320 = vmatprep.subr.mxu0 0.0
    %3321 = vmatpush2.xpose.msra.mxu0 0.0
    %3322 = vmatprep.subr.mxu0 0.0
    %3323 = vmatpush2.xpose.msra.mxu0 0.0
    %3324 = vmatprep.subr.mxu0 0.0
    %3325 = vmatpush2.xpose.msra.mxu0 0.0
    %3326 = vmatprep.subr.mxu0 0.0
    %3327 = vmatpush2.xpose.msra.mxu0 0.0
    %3328 = vmatprep.subr.mxu0 0.0
    %3329 = vmatpush2.xpose.msra.mxu0 0.0
    %3330 = vmatprep.subr.mxu0 0.0
    %3331 = vmatpush2.xpose.msra.mxu0 0.0
    %3332 = vmatprep.subr.mxu0 0.0
    %3333 = vmatpush2.xpose.msra.mxu0 0.0
    %3334 = vmatprep.mubr.f32.mxu0 0.0
    %3335 = vmatmul.mubr.f32.gmra.mxu0 %v3265
    %v3336 = vpop.f32.mrf.mxu0
    %v3337 = vadd.f32 0.0, %v3336
    %v3338 = vpop.f32.mrf.mxu0
    %3339 = vdwg.mxu0
    %v3341 = vsel %vm967, %v2536, 0
    %v3344 = vsel %vm967, %v2287, 0
    %3346 = vmatprep.subr.mxu0 0.0
    %3347 = vmatpush1.xpose.msra.mxu0 0.0
    %3348 = vmatprep.subr.mxu0 0.0
    %3349 = vmatpush1.xpose.msra.mxu0 0.0
    %3350 = vmatprep.subr.mxu0 0.0
    %3351 = vmatpush1.xpose.msra.mxu0 0.0
    %3352 = vmatprep.subr.mxu0 0.0
    %3353 = vmatpush1.xpose.msra.mxu0 0.0
    %3354 = vmatprep.subr.mxu0 0.0
    %3355 = vmatpush1.xpose.msra.mxu0 0.0
    %3356 = vmatprep.subr.mxu0 0.0
    %3357 = vmatpush1.xpose.msra.mxu0 0.0
    %3358 = vmatprep.subr.mxu0 0.0
    %3359 = vmatpush1.xpose.msra.mxu0 0.0
    %3360 = vmatprep.subr.mxu0 0.0
    %3361 = vmatpush1.xpose.msra.mxu0 0.0
    %3362 = vmatprep.subr.mxu0 0.0
    %3363 = vmatpush1.xpose.msra.mxu0 0.0
    %3364 = vmatprep.subr.mxu0 0.0
    %3365 = vmatpush1.xpose.msra.mxu0 0.0
    %3366 = vmatprep.subr.mxu0 0.0
    %3367 = vmatpush1.xpose.msra.mxu0 0.0
    %3368 = vmatprep.subr.mxu0 0.0
    %3369 = vmatpush1.xpose.msra.mxu0 0.0
    %3370 = vmatprep.subr.mxu0 0.0
    %3371 = vmatpush1.xpose.msra.mxu0 0.0
    %3372 = vmatprep.subr.mxu0 0.0
    %3373 = vmatpush1.xpose.msra.mxu0 0.0
    %3374 = vmatprep.subr.mxu0 0.0
    %3375 = vmatpush1.xpose.msra.mxu0 0.0
    %3376 = vmatprep.subr.mxu0 0.0
    %3377 = vmatpush1.xpose.msra.mxu0 %v3344
    %3378 = vmatprep.subr.mxu0 0.0
    %3379 = vmatpush2.xpose.msra.mxu0 0.0
    %3380 = vmatprep.subr.mxu0 0.0
    %3381 = vmatpush2.xpose.msra.mxu0 0.0
    %3382 = vmatprep.subr.mxu0 0.0
    %3383 = vmatpush2.xpose.msra.mxu0 0.0
    %3384 = vmatprep.subr.mxu0 0.0
    %3385 = vmatpush2.xpose.msra.mxu0 0.0
    %3386 = vmatprep.subr.mxu0 0.0
    %3387 = vmatpush2.xpose.msra.mxu0 0.0
    %3388 = vmatprep.subr.mxu0 0.0
    %3389 = vmatpush2.xpose.msra.mxu0 0.0
    %3390 = vmatprep.subr.mxu0 0.0
    %3391 = vmatpush2.xpose.msra.mxu0 0.0
    %3392 = vmatprep.subr.mxu0 0.0
    %3393 = vmatpush2.xpose.msra.mxu0 0.0
    %3394 = vmatprep.subr.mxu0 0.0
    %3395 = vmatpush2.xpose.msra.mxu0 0.0
    %3396 = vmatprep.subr.mxu0 0.0
    %3397 = vmatpush2.xpose.msra.mxu0 0.0
    %3398 = vmatprep.subr.mxu0 0.0
    %3399 = vmatpush2.xpose.msra.mxu0 0.0
    %3400 = vmatprep.subr.mxu0 0.0
    %3401 = vmatpush2.xpose.msra.mxu0 0.0
    %3402 = vmatprep.subr.mxu0 0.0
    %3403 = vmatpush2.xpose.msra.mxu0 0.0
    %3404 = vmatprep.subr.mxu0 0.0
    %3405 = vmatpush2.xpose.msra.mxu0 0.0
    %3406 = vmatprep.subr.mxu0 0.0
    %3407 = vmatpush2.xpose.msra.mxu0 0.0
    %3408 = vmatprep.subr.mxu0 0.0
    %3409 = vmatpush2.xpose.msra.mxu0 0.0
    %3410 = vmatprep.mubr.f32.mxu0 0.0
    %3411 = vmatmul.mubr.f32.gmra.mxu0 %v3341
    %v3412 = vpop.f32.mrf.mxu0
    %v3413 = vadd.f32 0.0, %v3412
    %v3414 = vpop.f32.mrf.mxu0
    %3415 = vdwg.mxu0
    %v3417 = vsel %vm967, %v2568, 0
    %v3420 = vsel %vm967, %v2288, 0
    %3422 = vmatprep.subr.mxu0 0.0
    %3423 = vmatpush1.xpose.msra.mxu0 0.0
    %3424 = vmatprep.subr.mxu0 0.0
    %3425 = vmatpush1.xpose.msra.mxu0 0.0
    %3426 = vmatprep.subr.mxu0 0.0
    %3427 = vmatpush1.xpose.msra.mxu0 0.0
    %3428 = vmatprep.subr.mxu0 0.0
    %3429 = vmatpush1.xpose.msra.mxu0 0.0
    %3430 = vmatprep.subr.mxu0 0.0
    %3431 = vmatpush1.xpose.msra.mxu0 0.0
    %3432 = vmatprep.subr.mxu0 0.0
    %3433 = vmatpush1.xpose.msra.mxu0 0.0
    %3434 = vmatprep.subr.mxu0 0.0
    %3435 = vmatpush1.xpose.msra.mxu0 0.0
    %3436 = vmatprep.subr.mxu0 0.0
    %3437 = vmatpush1.xpose.msra.mxu0 0.0
    %3438 = vmatprep.subr.mxu0 0.0
    %3439 = vmatpush1.xpose.msra.mxu0 0.0
    %3440 = vmatprep.subr.mxu0 0.0
    %3441 = vmatpush1.xpose.msra.mxu0 0.0
    %3442 = vmatprep.subr.mxu0 0.0
    %3443 = vmatpush1.xpose.msra.mxu0 0.0
    %3444 = vmatprep.subr.mxu0 0.0
    %3445 = vmatpush1.xpose.msra.mxu0 0.0
    %3446 = vmatprep.subr.mxu0 0.0
    %3447 = vmatpush1.xpose.msra.mxu0 0.0
    %3448 = vmatprep.subr.mxu0 0.0
    %3449 = vmatpush1.xpose.msra.mxu0 0.0
    %3450 = vmatprep.subr.mxu0 0.0
    %3451 = vmatpush1.xpose.msra.mxu0 0.0
    %3452 = vmatprep.subr.mxu0 0.0
    %3453 = vmatpush1.xpose.msra.mxu0 %v3420
    %3454 = vmatprep.subr.mxu0 0.0
    %3455 = vmatpush2.xpose.msra.mxu0 0.0
    %3456 = vmatprep.subr.mxu0 0.0
    %3457 = vmatpush2.xpose.msra.mxu0 0.0
    %3458 = vmatprep.subr.mxu0 0.0
    %3459 = vmatpush2.xpose.msra.mxu0 0.0
    %3460 = vmatprep.subr.mxu0 0.0
    %3461 = vmatpush2.xpose.msra.mxu0 0.0
    %3462 = vmatprep.subr.mxu0 0.0
    %3463 = vmatpush2.xpose.msra.mxu0 0.0
    %3464 = vmatprep.subr.mxu0 0.0
    %3465 = vmatpush2.xpose.msra.mxu0 0.0
    %3466 = vmatprep.subr.mxu0 0.0
    %3467 = vmatpush2.xpose.msra.mxu0 0.0
    %3468 = vmatprep.subr.mxu0 0.0
    %3469 = vmatpush2.xpose.msra.mxu0 0.0
    %3470 = vmatprep.subr.mxu0 0.0
    %3471 = vmatpush2.xpose.msra.mxu0 0.0
    %3472 = vmatprep.subr.mxu0 0.0
    %3473 = vmatpush2.xpose.msra.mxu0 0.0
    %3474 = vmatprep.subr.mxu0 0.0
    %3475 = vmatpush2.xpose.msra.mxu0 0.0
    %3476 = vmatprep.subr.mxu0 0.0
    %3477 = vmatpush2.xpose.msra.mxu0 0.0
    %3478 = vmatprep.subr.mxu0 0.0
    %3479 = vmatpush2.xpose.msra.mxu0 0.0
    %3480 = vmatprep.subr.mxu0 0.0
    %3481 = vmatpush2.xpose.msra.mxu0 0.0
    %3482 = vmatprep.subr.mxu0 0.0
    %3483 = vmatpush2.xpose.msra.mxu0 0.0
    %3484 = vmatprep.subr.mxu0 0.0
    %3485 = vmatpush2.xpose.msra.mxu0 0.0
    %3486 = vmatprep.mubr.f32.mxu0 0.0
    %3487 = vmatmul.mubr.f32.gmra.mxu0 %v3417
    %v3488 = vpop.f32.mrf.mxu0
    %v3489 = vadd.f32 0.0, %v3488
    %v3490 = vpop.f32.mrf.mxu0
    %3491 = vdwg.mxu0
    %v3493 = vsel %vm967, %v2600, 0
    %v3496 = vsel %vm967, %v2289, 0
    %3498 = vmatprep.subr.mxu0 0.0
    %3499 = vmatpush1.xpose.msra.mxu0 0.0
    %3500 = vmatprep.subr.mxu0 0.0
    %3501 = vmatpush1.xpose.msra.mxu0 0.0
    %3502 = vmatprep.subr.mxu0 0.0
    %3503 = vmatpush1.xpose.msra.mxu0 0.0
    %3504 = vmatprep.subr.mxu0 0.0
    %3505 = vmatpush1.xpose.msra.mxu0 0.0
    %3506 = vmatprep.subr.mxu0 0.0
    %3507 = vmatpush1.xpose.msra.mxu0 0.0
    %3508 = vmatprep.subr.mxu0 0.0
    %3509 = vmatpush1.xpose.msra.mxu0 0.0
    %3510 = vmatprep.subr.mxu0 0.0
    %3511 = vmatpush1.xpose.msra.mxu0 0.0
    %3512 = vmatprep.subr.mxu0 0.0
    %3513 = vmatpush1.xpose.msra.mxu0 0.0
    %3514 = vmatprep.subr.mxu0 0.0
    %3515 = vmatpush1.xpose.msra.mxu0 0.0
    %3516 = vmatprep.subr.mxu0 0.0
    %3517 = vmatpush1.xpose.msra.mxu0 0.0
    %3518 = vmatprep.subr.mxu0 0.0
    %3519 = vmatpush1.xpose.msra.mxu0 0.0
    %3520 = vmatprep.subr.mxu0 0.0
    %3521 = vmatpush1.xpose.msra.mxu0 0.0
    %3522 = vmatprep.subr.mxu0 0.0
    %3523 = vmatpush1.xpose.msra.mxu0 0.0
    %3524 = vmatprep.subr.mxu0 0.0
    %3525 = vmatpush1.xpose.msra.mxu0 0.0
    %3526 = vmatprep.subr.mxu0 0.0
    %3527 = vmatpush1.xpose.msra.mxu0 0.0
    %3528 = vmatprep.subr.mxu0 0.0
    %3529 = vmatpush1.xpose.msra.mxu0 %v3496
    %3530 = vmatprep.subr.mxu0 0.0
    %3531 = vmatpush2.xpose.msra.mxu0 0.0
    %3532 = vmatprep.subr.mxu0 0.0
    %3533 = vmatpush2.xpose.msra.mxu0 0.0
    %3534 = vmatprep.subr.mxu0 0.0
    %3535 = vmatpush2.xpose.msra.mxu0 0.0
    %3536 = vmatprep.subr.mxu0 0.0
    %3537 = vmatpush2.xpose.msra.mxu0 0.0
    %3538 = vmatprep.subr.mxu0 0.0
    %3539 = vmatpush2.xpose.msra.mxu0 0.0
    %3540 = vmatprep.subr.mxu0 0.0
    %3541 = vmatpush2.xpose.msra.mxu0 0.0
    %3542 = vmatprep.subr.mxu0 0.0
    %3543 = vmatpush2.xpose.msra.mxu0 0.0
    %3544 = vmatprep.subr.mxu0 0.0
    %3545 = vmatpush2.xpose.msra.mxu0 0.0
    %3546 = vmatprep.subr.mxu0 0.0
    %3547 = vmatpush2.xpose.msra.mxu0 0.0
    %3548 = vmatprep.subr.mxu0 0.0
    %3549 = vmatpush2.xpose.msra.mxu0 0.0
    %3550 = vmatprep.subr.mxu0 0.0
    %3551 = vmatpush2.xpose.msra.mxu0 0.0
    %3552 = vmatprep.subr.mxu0 0.0
    %3553 = vmatpush2.xpose.msra.mxu0 0.0
    %3554 = vmatprep.subr.mxu0 0.0
    %3555 = vmatpush2.xpose.msra.mxu0 0.0
    %3556 = vmatprep.subr.mxu0 0.0
    %3557 = vmatpush2.xpose.msra.mxu0 0.0
    %3558 = vmatprep.subr.mxu0 0.0
    %3559 = vmatpush2.xpose.msra.mxu0 0.0
    %3560 = vmatprep.subr.mxu0 0.0
    %3561 = vmatpush2.xpose.msra.mxu0 0.0
    %3562 = vmatprep.mubr.f32.mxu0 0.0
    %3563 = vmatmul.mubr.f32.gmra.mxu0 %v3493
    %v3564 = vpop.f32.mrf.mxu0
    %v3565 = vadd.f32 0.0, %v3564
    %v3566 = vpop.f32.mrf.mxu0
    %3567 = vdwg.mxu0
    %v3569 = vsel %vm967, %v2632, 0
    %v3572 = vsel %vm967, %v2290, 0
    %3574 = vmatprep.subr.mxu0 0.0
    %3575 = vmatpush1.xpose.msra.mxu0 0.0
    %3576 = vmatprep.subr.mxu0 0.0
    %3577 = vmatpush1.xpose.msra.mxu0 0.0
    %3578 = vmatprep.subr.mxu0 0.0
    %3579 = vmatpush1.xpose.msra.mxu0 0.0
    %3580 = vmatprep.subr.mxu0 0.0
    %3581 = vmatpush1.xpose.msra.mxu0 0.0
    %3582 = vmatprep.subr.mxu0 0.0
    %3583 = vmatpush1.xpose.msra.mxu0 0.0
    %3584 = vmatprep.subr.mxu0 0.0
    %3585 = vmatpush1.xpose.msra.mxu0 0.0
    %3586 = vmatprep.subr.mxu0 0.0
    %3587 = vmatpush1.xpose.msra.mxu0 0.0
    %3588 = vmatprep.subr.mxu0 0.0
    %3589 = vmatpush1.xpose.msra.mxu0 0.0
    %3590 = vmatprep.subr.mxu0 0.0
    %3591 = vmatpush1.xpose.msra.mxu0 0.0
    %3592 = vmatprep.subr.mxu0 0.0
    %3593 = vmatpush1.xpose.msra.mxu0 0.0
    %3594 = vmatprep.subr.mxu0 0.0
    %3595 = vmatpush1.xpose.msra.mxu0 0.0
    %3596 = vmatprep.subr.mxu0 0.0
    %3597 = vmatpush1.xpose.msra.mxu0 0.0
    %3598 = vmatprep.subr.mxu0 0.0
    %3599 = vmatpush1.xpose.msra.mxu0 0.0
    %3600 = vmatprep.subr.mxu0 0.0
    %3601 = vmatpush1.xpose.msra.mxu0 0.0
    %3602 = vmatprep.subr.mxu0 0.0
    %3603 = vmatpush1.xpose.msra.mxu0 0.0
    %3604 = vmatprep.subr.mxu0 0.0
    %3605 = vmatpush1.xpose.msra.mxu0 %v3572
    %3606 = vmatprep.subr.mxu0 0.0
    %3607 = vmatpush2.xpose.msra.mxu0 0.0
    %3608 = vmatprep.subr.mxu0 0.0
    %3609 = vmatpush2.xpose.msra.mxu0 0.0
    %3610 = vmatprep.subr.mxu0 0.0
    %3611 = vmatpush2.xpose.msra.mxu0 0.0
    %3612 = vmatprep.subr.mxu0 0.0
    %3613 = vmatpush2.xpose.msra.mxu0 0.0
    %3614 = vmatprep.subr.mxu0 0.0
    %3615 = vmatpush2.xpose.msra.mxu0 0.0
    %3616 = vmatprep.subr.mxu0 0.0
    %3617 = vmatpush2.xpose.msra.mxu0 0.0
    %3618 = vmatprep.subr.mxu0 0.0
    %3619 = vmatpush2.xpose.msra.mxu0 0.0
    %3620 = vmatprep.subr.mxu0 0.0
    %3621 = vmatpush2.xpose.msra.mxu0 0.0
    %3622 = vmatprep.subr.mxu0 0.0
    %3623 = vmatpush2.xpose.msra.mxu0 0.0
    %3624 = vmatprep.subr.mxu0 0.0
    %3625 = vmatpush2.xpose.msra.mxu0 0.0
    %3626 = vmatprep.subr.mxu0 0.0
    %3627 = vmatpush2.xpose.msra.mxu0 0.0
    %3628 = vmatprep.subr.mxu0 0.0
    %3629 = vmatpush2.xpose.msra.mxu0 0.0
    %3630 = vmatprep.subr.mxu0 0.0
    %3631 = vmatpush2.xpose.msra.mxu0 0.0
    %3632 = vmatprep.subr.mxu0 0.0
    %3633 = vmatpush2.xpose.msra.mxu0 0.0
    %3634 = vmatprep.subr.mxu0 0.0
    %3635 = vmatpush2.xpose.msra.mxu0 0.0
    %3636 = vmatprep.subr.mxu0 0.0
    %3637 = vmatpush2.xpose.msra.mxu0 0.0
    %3638 = vmatprep.mubr.f32.mxu0 0.0
    %3639 = vmatmul.mubr.f32.gmra.mxu0 %v3569
    %v3640 = vpop.f32.mrf.mxu0
    %v3641 = vadd.f32 0.0, %v3640
    %v3642 = vpop.f32.mrf.mxu0
    %3643 = vdwg.mxu0
    %v3645 = vsel %vm967, %v2664, 0
    %v3648 = vsel %vm967, %v2291, 0
    %3650 = vmatprep.subr.mxu0 0.0
    %3651 = vmatpush1.xpose.msra.mxu0 0.0
    %3652 = vmatprep.subr.mxu0 0.0
    %3653 = vmatpush1.xpose.msra.mxu0 0.0
    %3654 = vmatprep.subr.mxu0 0.0
    %3655 = vmatpush1.xpose.msra.mxu0 0.0
    %3656 = vmatprep.subr.mxu0 0.0
    %3657 = vmatpush1.xpose.msra.mxu0 0.0
    %3658 = vmatprep.subr.mxu0 0.0
    %3659 = vmatpush1.xpose.msra.mxu0 0.0
    %3660 = vmatprep.subr.mxu0 0.0
    %3661 = vmatpush1.xpose.msra.mxu0 0.0
    %3662 = vmatprep.subr.mxu0 0.0
    %3663 = vmatpush1.xpose.msra.mxu0 0.0
    %3664 = vmatprep.subr.mxu0 0.0
    %3665 = vmatpush1.xpose.msra.mxu0 0.0
    %3666 = vmatprep.subr.mxu0 0.0
    %3667 = vmatpush1.xpose.msra.mxu0 0.0
    %3668 = vmatprep.subr.mxu0 0.0
    %3669 = vmatpush1.xpose.msra.mxu0 0.0
    %3670 = vmatprep.subr.mxu0 0.0
    %3671 = vmatpush1.xpose.msra.mxu0 0.0
    %3672 = vmatprep.subr.mxu0 0.0
    %3673 = vmatpush1.xpose.msra.mxu0 0.0
    %3674 = vmatprep.subr.mxu0 0.0
    %3675 = vmatpush1.xpose.msra.mxu0 0.0
    %3676 = vmatprep.subr.mxu0 0.0
    %3677 = vmatpush1.xpose.msra.mxu0 0.0
    %3678 = vmatprep.subr.mxu0 0.0
    %3679 = vmatpush1.xpose.msra.mxu0 0.0
    %3680 = vmatprep.subr.mxu0 0.0
    %3681 = vmatpush1.xpose.msra.mxu0 %v3648
    %3682 = vmatprep.subr.mxu0 0.0
    %3683 = vmatpush2.xpose.msra.mxu0 0.0
    %3684 = vmatprep.subr.mxu0 0.0
    %3685 = vmatpush2.xpose.msra.mxu0 0.0
    %3686 = vmatprep.subr.mxu0 0.0
    %3687 = vmatpush2.xpose.msra.mxu0 0.0
    %3688 = vmatprep.subr.mxu0 0.0
    %3689 = vmatpush2.xpose.msra.mxu0 0.0
    %3690 = vmatprep.subr.mxu0 0.0
    %3691 = vmatpush2.xpose.msra.mxu0 0.0
    %3692 = vmatprep.subr.mxu0 0.0
    %3693 = vmatpush2.xpose.msra.mxu0 0.0
    %3694 = vmatprep.subr.mxu0 0.0
    %3695 = vmatpush2.xpose.msra.mxu0 0.0
    %3696 = vmatprep.subr.mxu0 0.0
    %3697 = vmatpush2.xpose.msra.mxu0 0.0
    %3698 = vmatprep.subr.mxu0 0.0
    %3699 = vmatpush2.xpose.msra.mxu0 0.0
    %3700 = vmatprep.subr.mxu0 0.0
    %3701 = vmatpush2.xpose.msra.mxu0 0.0
    %3702 = vmatprep.subr.mxu0 0.0
    %3703 = vmatpush2.xpose.msra.mxu0 0.0
    %3704 = vmatprep.subr.mxu0 0.0
    %3705 = vmatpush2.xpose.msra.mxu0 0.0
    %3706 = vmatprep.subr.mxu0 0.0
    %3707 = vmatpush2.xpose.msra.mxu0 0.0
    %3708 = vmatprep.subr.mxu0 0.0
    %3709 = vmatpush2.xpose.msra.mxu0 0.0
    %3710 = vmatprep.subr.mxu0 0.0
    %3711 = vmatpush2.xpose.msra.mxu0 0.0
    %3712 = vmatprep.subr.mxu0 0.0
    %3713 = vmatpush2.xpose.msra.mxu0 0.0
    %3714 = vmatprep.mubr.f32.mxu0 0.0
    %3715 = vmatmul.mubr.f32.gmra.mxu0 %v3645
    %v3716 = vpop.f32.mrf.mxu0
    %v3717 = vadd.f32 0.0, %v3716
    %v3718 = vpop.f32.mrf.mxu0
    %3719 = vdwg.mxu0
    %v3721 = vsel %vm967, %v2696, 0
    %v3724 = vsel %vm967, %v2292, 0
    %3726 = vmatprep.subr.mxu0 0.0
    %3727 = vmatpush1.xpose.msra.mxu0 0.0
    %3728 = vmatprep.subr.mxu0 0.0
    %3729 = vmatpush1.xpose.msra.mxu0 0.0
    %3730 = vmatprep.subr.mxu0 0.0
    %3731 = vmatpush1.xpose.msra.mxu0 0.0
    %3732 = vmatprep.subr.mxu0 0.0
    %3733 = vmatpush1.xpose.msra.mxu0 0.0
    %3734 = vmatprep.subr.mxu0 0.0
    %3735 = vmatpush1.xpose.msra.mxu0 0.0
    %3736 = vmatprep.subr.mxu0 0.0
    %3737 = vmatpush1.xpose.msra.mxu0 0.0
    %3738 = vmatprep.subr.mxu0 0.0
    %3739 = vmatpush1.xpose.msra.mxu0 0.0
    %3740 = vmatprep.subr.mxu0 0.0
    %3741 = vmatpush1.xpose.msra.mxu0 0.0
    %3742 = vmatprep.subr.mxu0 0.0
    %3743 = vmatpush1.xpose.msra.mxu0 0.0
    %3744 = vmatprep.subr.mxu0 0.0
    %3745 = vmatpush1.xpose.msra.mxu0 0.0
    %3746 = vmatprep.subr.mxu0 0.0
    %3747 = vmatpush1.xpose.msra.mxu0 0.0
    %3748 = vmatprep.subr.mxu0 0.0
    %3749 = vmatpush1.xpose.msra.mxu0 0.0
    %3750 = vmatprep.subr.mxu0 0.0
    %3751 = vmatpush1.xpose.msra.mxu0 0.0
    %3752 = vmatprep.subr.mxu0 0.0
    %3753 = vmatpush1.xpose.msra.mxu0 0.0
    %3754 = vmatprep.subr.mxu0 0.0
    %3755 = vmatpush1.xpose.msra.mxu0 0.0
    %3756 = vmatprep.subr.mxu0 0.0
    %3757 = vmatpush1.xpose.msra.mxu0 %v3724
    %3758 = vmatprep.subr.mxu0 0.0
    %3759 = vmatpush2.xpose.msra.mxu0 0.0
    %3760 = vmatprep.subr.mxu0 0.0
    %3761 = vmatpush2.xpose.msra.mxu0 0.0
    %3762 = vmatprep.subr.mxu0 0.0
    %3763 = vmatpush2.xpose.msra.mxu0 0.0
    %3764 = vmatprep.subr.mxu0 0.0
    %3765 = vmatpush2.xpose.msra.mxu0 0.0
    %3766 = vmatprep.subr.mxu0 0.0
    %3767 = vmatpush2.xpose.msra.mxu0 0.0
    %3768 = vmatprep.subr.mxu0 0.0
    %3769 = vmatpush2.xpose.msra.mxu0 0.0
    %3770 = vmatprep.subr.mxu0 0.0
    %3771 = vmatpush2.xpose.msra.mxu0 0.0
    %3772 = vmatprep.subr.mxu0 0.0
    %3773 = vmatpush2.xpose.msra.mxu0 0.0
    %3774 = vmatprep.subr.mxu0 0.0
    %3775 = vmatpush2.xpose.msra.mxu0 0.0
    %3776 = vmatprep.subr.mxu0 0.0
    %3777 = vmatpush2.xpose.msra.mxu0 0.0
    %3778 = vmatprep.subr.mxu0 0.0
    %3779 = vmatpush2.xpose.msra.mxu0 0.0
    %3780 = vmatprep.subr.mxu0 0.0
    %3781 = vmatpush2.xpose.msra.mxu0 0.0
    %3782 = vmatprep.subr.mxu0 0.0
    %3783 = vmatpush2.xpose.msra.mxu0 0.0
    %3784 = vmatprep.subr.mxu0 0.0
    %3785 = vmatpush2.xpose.msra.mxu0 0.0
    %3786 = vmatprep.subr.mxu0 0.0
    %3787 = vmatpush2.xpose.msra.mxu0 0.0
    %3788 = vmatprep.subr.mxu0 0.0
    %3789 = vmatpush2.xpose.msra.mxu0 0.0
    %3790 = vmatprep.mubr.f32.mxu0 0.0
    %3791 = vmatmul.mubr.f32.gmra.mxu0 %v3721
    %v3792 = vpop.f32.mrf.mxu0
    %v3793 = vadd.f32 0.0, %v3792
    %v3794 = vpop.f32.mrf.mxu0
    %3795 = vdwg.mxu0
    %v3797 = vsel %vm967, %v2728, 0
    %v3800 = vsel %vm967, %v2293, 0
    %3802 = vmatprep.subr.mxu0 0.0
    %3803 = vmatpush1.xpose.msra.mxu0 0.0
    %3804 = vmatprep.subr.mxu0 0.0
    %3805 = vmatpush1.xpose.msra.mxu0 0.0
    %3806 = vmatprep.subr.mxu0 0.0
    %3807 = vmatpush1.xpose.msra.mxu0 0.0
    %3808 = vmatprep.subr.mxu0 0.0
    %3809 = vmatpush1.xpose.msra.mxu0 0.0
    %3810 = vmatprep.subr.mxu0 0.0
    %3811 = vmatpush1.xpose.msra.mxu0 0.0
    %3812 = vmatprep.subr.mxu0 0.0
    %3813 = vmatpush1.xpose.msra.mxu0 0.0
    %3814 = vmatprep.subr.mxu0 0.0
    %3815 = vmatpush1.xpose.msra.mxu0 0.0
    %3816 = vmatprep.subr.mxu0 0.0
    %3817 = vmatpush1.xpose.msra.mxu0 0.0
    %3818 = vmatprep.subr.mxu0 0.0
    %3819 = vmatpush1.xpose.msra.mxu0 0.0
    %3820 = vmatprep.subr.mxu0 0.0
    %3821 = vmatpush1.xpose.msra.mxu0 0.0
    %3822 = vmatprep.subr.mxu0 0.0
    %3823 = vmatpush1.xpose.msra.mxu0 0.0
    %3824 = vmatprep.subr.mxu0 0.0
    %3825 = vmatpush1.xpose.msra.mxu0 0.0
    %3826 = vmatprep.subr.mxu0 0.0
    %3827 = vmatpush1.xpose.msra.mxu0 0.0
    %3828 = vmatprep.subr.mxu0 0.0
    %3829 = vmatpush1.xpose.msra.mxu0 0.0
    %3830 = vmatprep.subr.mxu0 0.0
    %3831 = vmatpush1.xpose.msra.mxu0 0.0
    %3832 = vmatprep.subr.mxu0 0.0
    %3833 = vmatpush1.xpose.msra.mxu0 %v3800
    %3834 = vmatprep.subr.mxu0 0.0
    %3835 = vmatpush2.xpose.msra.mxu0 0.0
    %3836 = vmatprep.subr.mxu0 0.0
    %3837 = vmatpush2.xpose.msra.mxu0 0.0
    %3838 = vmatprep.subr.mxu0 0.0
    %3839 = vmatpush2.xpose.msra.mxu0 0.0
    %3840 = vmatprep.subr.mxu0 0.0
    %3841 = vmatpush2.xpose.msra.mxu0 0.0
    %3842 = vmatprep.subr.mxu0 0.0
    %3843 = vmatpush2.xpose.msra.mxu0 0.0
    %3844 = vmatprep.subr.mxu0 0.0
    %3845 = vmatpush2.xpose.msra.mxu0 0.0
    %3846 = vmatprep.subr.mxu0 0.0
    %3847 = vmatpush2.xpose.msra.mxu0 0.0
    %3848 = vmatprep.subr.mxu0 0.0
    %3849 = vmatpush2.xpose.msra.mxu0 0.0
    %3850 = vmatprep.subr.mxu0 0.0
    %3851 = vmatpush2.xpose.msra.mxu0 0.0
    %3852 = vmatprep.subr.mxu0 0.0
    %3853 = vmatpush2.xpose.msra.mxu0 0.0
    %3854 = vmatprep.subr.mxu0 0.0
    %3855 = vmatpush2.xpose.msra.mxu0 0.0
    %3856 = vmatprep.subr.mxu0 0.0
    %3857 = vmatpush2.xpose.msra.mxu0 0.0
    %3858 = vmatprep.subr.mxu0 0.0
    %3859 = vmatpush2.xpose.msra.mxu0 0.0
    %3860 = vmatprep.subr.mxu0 0.0
    %3861 = vmatpush2.xpose.msra.mxu0 0.0
    %3862 = vmatprep.subr.mxu0 0.0
    %3863 = vmatpush2.xpose.msra.mxu0 0.0
    %3864 = vmatprep.subr.mxu0 0.0
    %3865 = vmatpush2.xpose.msra.mxu0 0.0
    %3866 = vmatprep.mubr.f32.mxu0 0.0
    %3867 = vmatmul.mubr.f32.gmra.mxu0 %v3797
    %v3868 = vpop.f32.mrf.mxu0
    %v3869 = vadd.f32 0.0, %v3868
    %v3870 = vpop.f32.mrf.mxu0
    %3871 = vdwg.mxu0
    %v3873 = vsel %vm967, %v2760, 0
    %v3876 = vsel %vm967, %v2294, 0
    %3878 = vmatprep.subr.mxu0 0.0
    %3879 = vmatpush1.xpose.msra.mxu0 0.0
    %3880 = vmatprep.subr.mxu0 0.0
    %3881 = vmatpush1.xpose.msra.mxu0 0.0
    %3882 = vmatprep.subr.mxu0 0.0
    %3883 = vmatpush1.xpose.msra.mxu0 0.0
    %3884 = vmatprep.subr.mxu0 0.0
    %3885 = vmatpush1.xpose.msra.mxu0 0.0
    %3886 = vmatprep.subr.mxu0 0.0
    %3887 = vmatpush1.xpose.msra.mxu0 0.0
    %3888 = vmatprep.subr.mxu0 0.0
    %3889 = vmatpush1.xpose.msra.mxu0 0.0
    %3890 = vmatprep.subr.mxu0 0.0
    %3891 = vmatpush1.xpose.msra.mxu0 0.0
    %3892 = vmatprep.subr.mxu0 0.0
    %3893 = vmatpush1.xpose.msra.mxu0 0.0
    %3894 = vmatprep.subr.mxu0 0.0
    %3895 = vmatpush1.xpose.msra.mxu0 0.0
    %3896 = vmatprep.subr.mxu0 0.0
    %3897 = vmatpush1.xpose.msra.mxu0 0.0
    %3898 = vmatprep.subr.mxu0 0.0
    %3899 = vmatpush1.xpose.msra.mxu0 0.0
    %3900 = vmatprep.subr.mxu0 0.0
    %3901 = vmatpush1.xpose.msra.mxu0 0.0
    %3902 = vmatprep.subr.mxu0 0.0
    %3903 = vmatpush1.xpose.msra.mxu0 0.0
    %3904 = vmatprep.subr.mxu0 0.0
    %3905 = vmatpush1.xpose.msra.mxu0 0.0
    %3906 = vmatprep.subr.mxu0 0.0
    %3907 = vmatpush1.xpose.msra.mxu0 0.0
    %3908 = vmatprep.subr.mxu0 0.0
    %3909 = vmatpush1.xpose.msra.mxu0 %v3876
    %3910 = vmatprep.subr.mxu0 0.0
    %3911 = vmatpush2.xpose.msra.mxu0 0.0
    %3912 = vmatprep.subr.mxu0 0.0
    %3913 = vmatpush2.xpose.msra.mxu0 0.0
    %3914 = vmatprep.subr.mxu0 0.0
    %3915 = vmatpush2.xpose.msra.mxu0 0.0
    %3916 = vmatprep.subr.mxu0 0.0
    %3917 = vmatpush2.xpose.msra.mxu0 0.0
    %3918 = vmatprep.subr.mxu0 0.0
    %3919 = vmatpush2.xpose.msra.mxu0 0.0
    %3920 = vmatprep.subr.mxu0 0.0
    %3921 = vmatpush2.xpose.msra.mxu0 0.0
    %3922 = vmatprep.subr.mxu0 0.0
    %3923 = vmatpush2.xpose.msra.mxu0 0.0
    %3924 = vmatprep.subr.mxu0 0.0
    %3925 = vmatpush2.xpose.msra.mxu0 0.0
    %3926 = vmatprep.subr.mxu0 0.0
    %3927 = vmatpush2.xpose.msra.mxu0 0.0
    %3928 = vmatprep.subr.mxu0 0.0
    %3929 = vmatpush2.xpose.msra.mxu0 0.0
    %3930 = vmatprep.subr.mxu0 0.0
    %3931 = vmatpush2.xpose.msra.mxu0 0.0
    %3932 = vmatprep.subr.mxu0 0.0
    %3933 = vmatpush2.xpose.msra.mxu0 0.0
    %3934 = vmatprep.subr.mxu0 0.0
    %3935 = vmatpush2.xpose.msra.mxu0 0.0
    %3936 = vmatprep.subr.mxu0 0.0
    %3937 = vmatpush2.xpose.msra.mxu0 0.0
    %3938 = vmatprep.subr.mxu0 0.0
    %3939 = vmatpush2.xpose.msra.mxu0 0.0
    %3940 = vmatprep.subr.mxu0 0.0
    %3941 = vmatpush2.xpose.msra.mxu0 0.0
    %3942 = vmatprep.mubr.f32.mxu0 0.0
    %3943 = vmatmul.mubr.f32.gmra.mxu0 %v3873
    %v3944 = vpop.f32.mrf.mxu0
    %v3945 = vadd.f32 0.0, %v3944
    %v3946 = vpop.f32.mrf.mxu0
    %3947 = vdwg.mxu0
    %v3949 = vsel %vm967, %v2792, 0
    %v3952 = vsel %vm967, %v2295, 0
    %3954 = vmatprep.subr.mxu0 0.0
    %3955 = vmatpush1.xpose.msra.mxu0 0.0
    %3956 = vmatprep.subr.mxu0 0.0
    %3957 = vmatpush1.xpose.msra.mxu0 0.0
    %3958 = vmatprep.subr.mxu0 0.0
    %3959 = vmatpush1.xpose.msra.mxu0 0.0
    %3960 = vmatprep.subr.mxu0 0.0
    %3961 = vmatpush1.xpose.msra.mxu0 0.0
    %3962 = vmatprep.subr.mxu0 0.0
    %3963 = vmatpush1.xpose.msra.mxu0 0.0
    %3964 = vmatprep.subr.mxu0 0.0
    %3965 = vmatpush1.xpose.msra.mxu0 0.0
    %3966 = vmatprep.subr.mxu0 0.0
    %3967 = vmatpush1.xpose.msra.mxu0 0.0
    %3968 = vmatprep.subr.mxu0 0.0
    %3969 = vmatpush1.xpose.msra.mxu0 0.0
    %3970 = vmatprep.subr.mxu0 0.0
    %3971 = vmatpush1.xpose.msra.mxu0 0.0
    %3972 = vmatprep.subr.mxu0 0.0
    %3973 = vmatpush1.xpose.msra.mxu0 0.0
    %3974 = vmatprep.subr.mxu0 0.0
    %3975 = vmatpush1.xpose.msra.mxu0 0.0
    %3976 = vmatprep.subr.mxu0 0.0
    %3977 = vmatpush1.xpose.msra.mxu0 0.0
    %3978 = vmatprep.subr.mxu0 0.0
    %3979 = vmatpush1.xpose.msra.mxu0 0.0
    %3980 = vmatprep.subr.mxu0 0.0
    %3981 = vmatpush1.xpose.msra.mxu0 0.0
    %3982 = vmatprep.subr.mxu0 0.0
    %3983 = vmatpush1.xpose.msra.mxu0 0.0
    %3984 = vmatprep.subr.mxu0 0.0
    %3985 = vmatpush1.xpose.msra.mxu0 %v3952
    %3986 = vmatprep.subr.mxu0 0.0
    %3987 = vmatpush2.xpose.msra.mxu0 0.0
    %3988 = vmatprep.subr.mxu0 0.0
    %3989 = vmatpush2.xpose.msra.mxu0 0.0
    %3990 = vmatprep.subr.mxu0 0.0
    %3991 = vmatpush2.xpose.msra.mxu0 0.0
    %3992 = vmatprep.subr.mxu0 0.0
    %3993 = vmatpush2.xpose.msra.mxu0 0.0
    %3994 = vmatprep.subr.mxu0 0.0
    %3995 = vmatpush2.xpose.msra.mxu0 0.0
    %3996 = vmatprep.subr.mxu0 0.0
    %3997 = vmatpush2.xpose.msra.mxu0 0.0
    %3998 = vmatprep.subr.mxu0 0.0
    %3999 = vmatpush2.xpose.msra.mxu0 0.0
    %4000 = vmatprep.subr.mxu0 0.0
    %4001 = vmatpush2.xpose.msra.mxu0 0.0
    %4002 = vmatprep.subr.mxu0 0.0
    %4003 = vmatpush2.xpose.msra.mxu0 0.0
    %4004 = vmatprep.subr.mxu0 0.0
    %4005 = vmatpush2.xpose.msra.mxu0 0.0
    %4006 = vmatprep.subr.mxu0 0.0
    %4007 = vmatpush2.xpose.msra.mxu0 0.0
    %4008 = vmatprep.subr.mxu0 0.0
    %4009 = vmatpush2.xpose.msra.mxu0 0.0
    %4010 = vmatprep.subr.mxu0 0.0
    %4011 = vmatpush2.xpose.msra.mxu0 0.0
    %4012 = vmatprep.subr.mxu0 0.0
    %4013 = vmatpush2.xpose.msra.mxu0 0.0
    %4014 = vmatprep.subr.mxu0 0.0
    %4015 = vmatpush2.xpose.msra.mxu0 0.0
    %4016 = vmatprep.subr.mxu0 0.0
    %4017 = vmatpush2.xpose.msra.mxu0 0.0
    %4018 = vmatprep.mubr.f32.mxu0 0.0
    %4019 = vmatmul.mubr.f32.gmra.mxu0 %v3949
    %v4020 = vpop.f32.mrf.mxu0
    %v4021 = vadd.f32 0.0, %v4020
    %v4022 = vpop.f32.mrf.mxu0
    %4023 = vdwg.mxu0
    %4024 = vxpose.xlu0.b32.start [1/16] %v2881, 128
    %4025 = vxpose.xlu0.b32.cont [2/16] 0.0, 128
    %4026 = vxpose.xlu0.b32.cont [3/16] 0.0, 128
    %4027 = vxpose.xlu0.b32.cont [4/16] 0.0, 128
    %4028 = vxpose.xlu0.b32.cont [5/16] 0.0, 128
    %4029 = vxpose.xlu0.b32.cont [6/16] 0.0, 128
    %4030 = vxpose.xlu0.b32.cont [7/16] 0.0, 128
    %4031 = vxpose.xlu0.b32.cont [8/16] 0.0, 128
    %4032 = vxpose.xlu0.b32.cont [9/16] 0.0, 128
    %4033 = vxpose.xlu0.b32.cont [10/16] 0.0, 128
    %4034 = vxpose.xlu0.b32.cont [11/16] 0.0, 128
    %4035 = vxpose.xlu0.b32.cont [12/16] 0.0, 128
    %4036 = vxpose.xlu0.b32.cont [13/16] 0.0, 128
    %4037 = vxpose.xlu0.b32.cont [14/16] 0.0, 128
    %4038 = vxpose.xlu0.b32.cont [15/16] 0.0, 128
    %4039 = vxpose.xlu0.b32.end [16/16] 0.0, 128
    %v4040 = vpop.trf.xlu0
    %v4041 = vpop.trf.xlu0
    %v4042 = vpop.trf.xlu0
    %v4043 = vpop.trf.xlu0
    %v4044 = vpop.trf.xlu0
    %v4045 = vpop.trf.xlu0
    %v4046 = vpop.trf.xlu0
    %v4047 = vpop.trf.xlu0
    %v4048 = vpop.trf.xlu0
    %v4049 = vpop.trf.xlu0
    %v4050 = vpop.trf.xlu0
    %v4051 = vpop.trf.xlu0
    %v4052 = vpop.trf.xlu0
    %v4053 = vpop.trf.xlu0
    %v4054 = vpop.trf.xlu0
    %v4055 = vpop.trf.xlu0
    %4056 = vxpose.xlu0.b32.start [1/16] %v2957, 128
    %4057 = vxpose.xlu0.b32.cont [2/16] 0.0, 128
    %4058 = vxpose.xlu0.b32.cont [3/16] 0.0, 128
    %4059 = vxpose.xlu0.b32.cont [4/16] 0.0, 128
    %4060 = vxpose.xlu0.b32.cont [5/16] 0.0, 128
    %4061 = vxpose.xlu0.b32.cont [6/16] 0.0, 128
    %4062 = vxpose.xlu0.b32.cont [7/16] 0.0, 128
    %4063 = vxpose.xlu0.b32.cont [8/16] 0.0, 128
    %4064 = vxpose.xlu0.b32.cont [9/16] 0.0, 128
    %4065 = vxpose.xlu0.b32.cont [10/16] 0.0, 128
    %4066 = vxpose.xlu0.b32.cont [11/16] 0.0, 128
    %4067 = vxpose.xlu0.b32.cont [12/16] 0.0, 128
    %4068 = vxpose.xlu0.b32.cont [13/16] 0.0, 128
    %4069 = vxpose.xlu0.b32.cont [14/16] 0.0, 128
    %4070 = vxpose.xlu0.b32.cont [15/16] 0.0, 128
    %4071 = vxpose.xlu0.b32.end [16/16] 0.0, 128
    %v4072 = vpop.trf.xlu0
    %v4073 = vpop.trf.xlu0
    %v4074 = vpop.trf.xlu0
    %v4075 = vpop.trf.xlu0
    %v4076 = vpop.trf.xlu0
    %v4077 = vpop.trf.xlu0
    %v4078 = vpop.trf.xlu0
    %v4079 = vpop.trf.xlu0
    %v4080 = vpop.trf.xlu0
    %v4081 = vpop.trf.xlu0
    %v4082 = vpop.trf.xlu0
    %v4083 = vpop.trf.xlu0
    %v4084 = vpop.trf.xlu0
    %v4085 = vpop.trf.xlu0
    %v4086 = vpop.trf.xlu0
    %v4087 = vpop.trf.xlu0
    %4088 = vxpose.xlu0.b32.start [1/16] %v3033, 128
    %4089 = vxpose.xlu0.b32.cont [2/16] 0.0, 128
    %4090 = vxpose.xlu0.b32.cont [3/16] 0.0, 128
    %4091 = vxpose.xlu0.b32.cont [4/16] 0.0, 128
    %4092 = vxpose.xlu0.b32.cont [5/16] 0.0, 128
    %4093 = vxpose.xlu0.b32.cont [6/16] 0.0, 128
    %4094 = vxpose.xlu0.b32.cont [7/16] 0.0, 128
    %4095 = vxpose.xlu0.b32.cont [8/16] 0.0, 128
    %4096 = vxpose.xlu0.b32.cont [9/16] 0.0, 128
    %4097 = vxpose.xlu0.b32.cont [10/16] 0.0, 128
    %4098 = vxpose.xlu0.b32.cont [11/16] 0.0, 128
    %4099 = vxpose.xlu0.b32.cont [12/16] 0.0, 128
    %4100 = vxpose.xlu0.b32.cont [13/16] 0.0, 128
    %4101 = vxpose.xlu0.b32.cont [14/16] 0.0, 128
    %4102 = vxpose.xlu0.b32.cont [15/16] 0.0, 128
    %4103 = vxpose.xlu0.b32.end [16/16] 0.0, 128
    %v4104 = vpop.trf.xlu0
    %v4105 = vpop.trf.xlu0
    %v4106 = vpop.trf.xlu0
    %v4107 = vpop.trf.xlu0
    %v4108 = vpop.trf.xlu0
    %v4109 = vpop.trf.xlu0
    %v4110 = vpop.trf.xlu0
    %v4111 = vpop.trf.xlu0
    %v4112 = vpop.trf.xlu0
    %v4113 = vpop.trf.xlu0
    %v4114 = vpop.trf.xlu0
    %v4115 = vpop.trf.xlu0
    %v4116 = vpop.trf.xlu0
    %v4117 = vpop.trf.xlu0
    %v4118 = vpop.trf.xlu0
    %v4119 = vpop.trf.xlu0
    %4120 = vxpose.xlu0.b32.start [1/16] %v3109, 128
    %4121 = vxpose.xlu0.b32.cont [2/16] 0.0, 128
    %4122 = vxpose.xlu0.b32.cont [3/16] 0.0, 128
    %4123 = vxpose.xlu0.b32.cont [4/16] 0.0, 128
    %4124 = vxpose.xlu0.b32.cont [5/16] 0.0, 128
    %4125 = vxpose.xlu0.b32.cont [6/16] 0.0, 128
    %4126 = vxpose.xlu0.b32.cont [7/16] 0.0, 128
    %4127 = vxpose.xlu0.b32.cont [8/16] 0.0, 128
    %4128 = vxpose.xlu0.b32.cont [9/16] 0.0, 128
    %4129 = vxpose.xlu0.b32.cont [10/16] 0.0, 128
    %4130 = vxpose.xlu0.b32.cont [11/16] 0.0, 128
    %4131 = vxpose.xlu0.b32.cont [12/16] 0.0, 128
    %4132 = vxpose.xlu0.b32.cont [13/16] 0.0, 128
    %4133 = vxpose.xlu0.b32.cont [14/16] 0.0, 128
    %4134 = vxpose.xlu0.b32.cont [15/16] 0.0, 128
    %4135 = vxpose.xlu0.b32.end [16/16] 0.0, 128
    %v4136 = vpop.trf.xlu0
    %v4137 = vpop.trf.xlu0
    %v4138 = vpop.trf.xlu0
    %v4139 = vpop.trf.xlu0
    %v4140 = vpop.trf.xlu0
    %v4141 = vpop.trf.xlu0
    %v4142 = vpop.trf.xlu0
    %v4143 = vpop.trf.xlu0
    %v4144 = vpop.trf.xlu0
    %v4145 = vpop.trf.xlu0
    %v4146 = vpop.trf.xlu0
    %v4147 = vpop.trf.xlu0
    %v4148 = vpop.trf.xlu0
    %v4149 = vpop.trf.xlu0
    %v4150 = vpop.trf.xlu0
    %v4151 = vpop.trf.xlu0
    %4152 = vxpose.xlu0.b32.start [1/16] %v3185, 128
    %4153 = vxpose.xlu0.b32.cont [2/16] 0.0, 128
    %4154 = vxpose.xlu0.b32.cont [3/16] 0.0, 128
    %4155 = vxpose.xlu0.b32.cont [4/16] 0.0, 128
    %4156 = vxpose.xlu0.b32.cont [5/16] 0.0, 128
    %4157 = vxpose.xlu0.b32.cont [6/16] 0.0, 128
    %4158 = vxpose.xlu0.b32.cont [7/16] 0.0, 128
    %4159 = vxpose.xlu0.b32.cont [8/16] 0.0, 128
    %4160 = vxpose.xlu0.b32.cont [9/16] 0.0, 128
    %4161 = vxpose.xlu0.b32.cont [10/16] 0.0, 128
    %4162 = vxpose.xlu0.b32.cont [11/16] 0.0, 128
    %4163 = vxpose.xlu0.b32.cont [12/16] 0.0, 128
    %4164 = vxpose.xlu0.b32.cont [13/16] 0.0, 128
    %4165 = vxpose.xlu0.b32.cont [14/16] 0.0, 128
    %4166 = vxpose.xlu0.b32.cont [15/16] 0.0, 128
    %4167 = vxpose.xlu0.b32.end [16/16] 0.0, 128
    %v4168 = vpop.trf.xlu0
    %v4169 = vpop.trf.xlu0
    %v4170 = vpop.trf.xlu0
    %v4171 = vpop.trf.xlu0
    %v4172 = vpop.trf.xlu0
    %v4173 = vpop.trf.xlu0
    %v4174 = vpop.trf.xlu0
    %v4175 = vpop.trf.xlu0
    %v4176 = vpop.trf.xlu0
    %v4177 = vpop.trf.xlu0
    %v4178 = vpop.trf.xlu0
    %v4179 = vpop.trf.xlu0
    %v4180 = vpop.trf.xlu0
    %v4181 = vpop.trf.xlu0
    %v4182 = vpop.trf.xlu0
    %v4183 = vpop.trf.xlu0
    %4184 = vxpose.xlu0.b32.start [1/16] %v3261, 128
    %4185 = vxpose.xlu0.b32.cont [2/16] 0.0, 128
    %4186 = vxpose.xlu0.b32.cont [3/16] 0.0, 128
    %4187 = vxpose.xlu0.b32.cont [4/16] 0.0, 128
    %4188 = vxpose.xlu0.b32.cont [5/16] 0.0, 128
    %4189 = vxpose.xlu0.b32.cont [6/16] 0.0, 128
    %4190 = vxpose.xlu0.b32.cont [7/16] 0.0, 128
    %4191 = vxpose.xlu0.b32.cont [8/16] 0.0, 128
    %4192 = vxpose.xlu0.b32.cont [9/16] 0.0, 128
    %4193 = vxpose.xlu0.b32.cont [10/16] 0.0, 128
    %4194 = vxpose.xlu0.b32.cont [11/16] 0.0, 128
    %4195 = vxpose.xlu0.b32.cont [12/16] 0.0, 128
    %4196 = vxpose.xlu0.b32.cont [13/16] 0.0, 128
    %4197 = vxpose.xlu0.b32.cont [14/16] 0.0, 128
    %4198 = vxpose.xlu0.b32.cont [15/16] 0.0, 128
    %4199 = vxpose.xlu0.b32.end [16/16] 0.0, 128
    %v4200 = vpop.trf.xlu0
    %v4201 = vpop.trf.xlu0
    %v4202 = vpop.trf.xlu0
    %v4203 = vpop.trf.xlu0
    %v4204 = vpop.trf.xlu0
    %v4205 = vpop.trf.xlu0
    %v4206 = vpop.trf.xlu0
    %v4207 = vpop.trf.xlu0
    %v4208 = vpop.trf.xlu0
    %v4209 = vpop.trf.xlu0
    %v4210 = vpop.trf.xlu0
    %v4211 = vpop.trf.xlu0
    %v4212 = vpop.trf.xlu0
    %v4213 = vpop.trf.xlu0
    %v4214 = vpop.trf.xlu0
    %v4215 = vpop.trf.xlu0
    %4216 = vxpose.xlu0.b32.start [1/16] %v3337, 128
    %4217 = vxpose.xlu0.b32.cont [2/16] 0.0, 128
    %4218 = vxpose.xlu0.b32.cont [3/16] 0.0, 128
    %4219 = vxpose.xlu0.b32.cont [4/16] 0.0, 128
    %4220 = vxpose.xlu0.b32.cont [5/16] 0.0, 128
    %4221 = vxpose.xlu0.b32.cont [6/16] 0.0, 128
    %4222 = vxpose.xlu0.b32.cont [7/16] 0.0, 128
    %4223 = vxpose.xlu0.b32.cont [8/16] 0.0, 128
    %4224 = vxpose.xlu0.b32.cont [9/16] 0.0, 128
    %4225 = vxpose.xlu0.b32.cont [10/16] 0.0, 128
    %4226 = vxpose.xlu0.b32.cont [11/16] 0.0, 128
    %4227 = vxpose.xlu0.b32.cont [12/16] 0.0, 128
    %4228 = vxpose.xlu0.b32.cont [13/16] 0.0, 128
    %4229 = vxpose.xlu0.b32.cont [14/16] 0.0, 128
    %4230 = vxpose.xlu0.b32.cont [15/16] 0.0, 128
    %4231 = vxpose.xlu0.b32.end [16/16] 0.0, 128
    %v4232 = vpop.trf.xlu0
    %v4233 = vpop.trf.xlu0
    %v4234 = vpop.trf.xlu0
    %v4235 = vpop.trf.xlu0
    %v4236 = vpop.trf.xlu0
    %v4237 = vpop.trf.xlu0
    %v4238 = vpop.trf.xlu0
    %v4239 = vpop.trf.xlu0
    %v4240 = vpop.trf.xlu0
    %v4241 = vpop.trf.xlu0
    %v4242 = vpop.trf.xlu0
    %v4243 = vpop.trf.xlu0
    %v4244 = vpop.trf.xlu0
    %v4245 = vpop.trf.xlu0
    %v4246 = vpop.trf.xlu0
    %v4247 = vpop.trf.xlu0
    %4248 = vxpose.xlu0.b32.start [1/16] %v3413, 128
    %4249 = vxpose.xlu0.b32.cont [2/16] 0.0, 128
    %4250 = vxpose.xlu0.b32.cont [3/16] 0.0, 128
    %4251 = vxpose.xlu0.b32.cont [4/16] 0.0, 128
    %4252 = vxpose.xlu0.b32.cont [5/16] 0.0, 128
    %4253 = vxpose.xlu0.b32.cont [6/16] 0.0, 128
    %4254 = vxpose.xlu0.b32.cont [7/16] 0.0, 128
    %4255 = vxpose.xlu0.b32.cont [8/16] 0.0, 128
    %4256 = vxpose.xlu0.b32.cont [9/16] 0.0, 128
    %4257 = vxpose.xlu0.b32.cont [10/16] 0.0, 128
    %4258 = vxpose.xlu0.b32.cont [11/16] 0.0, 128
    %4259 = vxpose.xlu0.b32.cont [12/16] 0.0, 128
    %4260 = vxpose.xlu0.b32.cont [13/16] 0.0, 128
    %4261 = vxpose.xlu0.b32.cont [14/16] 0.0, 128
    %4262 = vxpose.xlu0.b32.cont [15/16] 0.0, 128
    %4263 = vxpose.xlu0.b32.end [16/16] 0.0, 128
    %v4264 = vpop.trf.xlu0
    %v4265 = vpop.trf.xlu0
    %v4266 = vpop.trf.xlu0
    %v4267 = vpop.trf.xlu0
    %v4268 = vpop.trf.xlu0
    %v4269 = vpop.trf.xlu0
    %v4270 = vpop.trf.xlu0
    %v4271 = vpop.trf.xlu0
    %v4272 = vpop.trf.xlu0
    %v4273 = vpop.trf.xlu0
    %v4274 = vpop.trf.xlu0
    %v4275 = vpop.trf.xlu0
    %v4276 = vpop.trf.xlu0
    %v4277 = vpop.trf.xlu0
    %v4278 = vpop.trf.xlu0
    %v4279 = vpop.trf.xlu0
    %4280 = vxpose.xlu0.b32.start [1/16] %v3489, 128
    %4281 = vxpose.xlu0.b32.cont [2/16] 0.0, 128
    %4282 = vxpose.xlu0.b32.cont [3/16] 0.0, 128
    %4283 = vxpose.xlu0.b32.cont [4/16] 0.0, 128
    %4284 = vxpose.xlu0.b32.cont [5/16] 0.0, 128
    %4285 = vxpose.xlu0.b32.cont [6/16] 0.0, 128
    %4286 = vxpose.xlu0.b32.cont [7/16] 0.0, 128
    %4287 = vxpose.xlu0.b32.cont [8/16] 0.0, 128
    %4288 = vxpose.xlu0.b32.cont [9/16] 0.0, 128
    %4289 = vxpose.xlu0.b32.cont [10/16] 0.0, 128
    %4290 = vxpose.xlu0.b32.cont [11/16] 0.0, 128
    %4291 = vxpose.xlu0.b32.cont [12/16] 0.0, 128
    %4292 = vxpose.xlu0.b32.cont [13/16] 0.0, 128
    %4293 = vxpose.xlu0.b32.cont [14/16] 0.0, 128
    %4294 = vxpose.xlu0.b32.cont [15/16] 0.0, 128
    %4295 = vxpose.xlu0.b32.end [16/16] 0.0, 128
    %v4296 = vpop.trf.xlu0
    %v4297 = vpop.trf.xlu0
    %v4298 = vpop.trf.xlu0
    %v4299 = vpop.trf.xlu0
    %v4300 = vpop.trf.xlu0
    %v4301 = vpop.trf.xlu0
    %v4302 = vpop.trf.xlu0
    %v4303 = vpop.trf.xlu0
    %v4304 = vpop.trf.xlu0
    %v4305 = vpop.trf.xlu0
    %v4306 = vpop.trf.xlu0
    %v4307 = vpop.trf.xlu0
    %v4308 = vpop.trf.xlu0
    %v4309 = vpop.trf.xlu0
    %v4310 = vpop.trf.xlu0
    %v4311 = vpop.trf.xlu0
    %4312 = vxpose.xlu0.b32.start [1/16] %v3565, 128
    %4313 = vxpose.xlu0.b32.cont [2/16] 0.0, 128
    %4314 = vxpose.xlu0.b32.cont [3/16] 0.0, 128
    %4315 = vxpose.xlu0.b32.cont [4/16] 0.0, 128
    %4316 = vxpose.xlu0.b32.cont [5/16] 0.0, 128
    %4317 = vxpose.xlu0.b32.cont [6/16] 0.0, 128
    %4318 = vxpose.xlu0.b32.cont [7/16] 0.0, 128
    %4319 = vxpose.xlu0.b32.cont [8/16] 0.0, 128
    %4320 = vxpose.xlu0.b32.cont [9/16] 0.0, 128
    %4321 = vxpose.xlu0.b32.cont [10/16] 0.0, 128
    %4322 = vxpose.xlu0.b32.cont [11/16] 0.0, 128
    %4323 = vxpose.xlu0.b32.cont [12/16] 0.0, 128
    %4324 = vxpose.xlu0.b32.cont [13/16] 0.0, 128
    %4325 = vxpose.xlu0.b32.cont [14/16] 0.0, 128
    %4326 = vxpose.xlu0.b32.cont [15/16] 0.0, 128
    %4327 = vxpose.xlu0.b32.end [16/16] 0.0, 128
    %v4328 = vpop.trf.xlu0
    %v4329 = vpop.trf.xlu0
    %v4330 = vpop.trf.xlu0
    %v4331 = vpop.trf.xlu0
    %v4332 = vpop.trf.xlu0
    %v4333 = vpop.trf.xlu0
    %v4334 = vpop.trf.xlu0
    %v4335 = vpop.trf.xlu0
    %v4336 = vpop.trf.xlu0
    %v4337 = vpop.trf.xlu0
    %v4338 = vpop.trf.xlu0
    %v4339 = vpop.trf.xlu0
    %v4340 = vpop.trf.xlu0
    %v4341 = vpop.trf.xlu0
    %v4342 = vpop.trf.xlu0
    %v4343 = vpop.trf.xlu0
    %4344 = vxpose.xlu0.b32.start [1/16] %v3641, 128
    %4345 = vxpose.xlu0.b32.cont [2/16] 0.0, 128
    %4346 = vxpose.xlu0.b32.cont [3/16] 0.0, 128
    %4347 = vxpose.xlu0.b32.cont [4/16] 0.0, 128
    %4348 = vxpose.xlu0.b32.cont [5/16] 0.0, 128
    %4349 = vxpose.xlu0.b32.cont [6/16] 0.0, 128
    %4350 = vxpose.xlu0.b32.cont [7/16] 0.0, 128
    %4351 = vxpose.xlu0.b32.cont [8/16] 0.0, 128
    %4352 = vxpose.xlu0.b32.cont [9/16] 0.0, 128
    %4353 = vxpose.xlu0.b32.cont [10/16] 0.0, 128
    %4354 = vxpose.xlu0.b32.cont [11/16] 0.0, 128
    %4355 = vxpose.xlu0.b32.cont [12/16] 0.0, 128
    %4356 = vxpose.xlu0.b32.cont [13/16] 0.0, 128
    %4357 = vxpose.xlu0.b32.cont [14/16] 0.0, 128
    %4358 = vxpose.xlu0.b32.cont [15/16] 0.0, 128
    %4359 = vxpose.xlu0.b32.end [16/16] 0.0, 128
    %v4360 = vpop.trf.xlu0
    %v4361 = vpop.trf.xlu0
    %v4362 = vpop.trf.xlu0
    %v4363 = vpop.trf.xlu0
    %v4364 = vpop.trf.xlu0
    %v4365 = vpop.trf.xlu0
    %v4366 = vpop.trf.xlu0
    %v4367 = vpop.trf.xlu0
    %v4368 = vpop.trf.xlu0
    %v4369 = vpop.trf.xlu0
    %v4370 = vpop.trf.xlu0
    %v4371 = vpop.trf.xlu0
    %v4372 = vpop.trf.xlu0
    %v4373 = vpop.trf.xlu0
    %v4374 = vpop.trf.xlu0
    %v4375 = vpop.trf.xlu0
    %4376 = vxpose.xlu0.b32.start [1/16] %v3717, 128
    %4377 = vxpose.xlu0.b32.cont [2/16] 0.0, 128
    %4378 = vxpose.xlu0.b32.cont [3/16] 0.0, 128
    %4379 = vxpose.xlu0.b32.cont [4/16] 0.0, 128
    %4380 = vxpose.xlu0.b32.cont [5/16] 0.0, 128
    %4381 = vxpose.xlu0.b32.cont [6/16] 0.0, 128
    %4382 = vxpose.xlu0.b32.cont [7/16] 0.0, 128
    %4383 = vxpose.xlu0.b32.cont [8/16] 0.0, 128
    %4384 = vxpose.xlu0.b32.cont [9/16] 0.0, 128
    %4385 = vxpose.xlu0.b32.cont [10/16] 0.0, 128
    %4386 = vxpose.xlu0.b32.cont [11/16] 0.0, 128
    %4387 = vxpose.xlu0.b32.cont [12/16] 0.0, 128
    %4388 = vxpose.xlu0.b32.cont [13/16] 0.0, 128
    %4389 = vxpose.xlu0.b32.cont [14/16] 0.0, 128
    %4390 = vxpose.xlu0.b32.cont [15/16] 0.0, 128
    %4391 = vxpose.xlu0.b32.end [16/16] 0.0, 128
    %v4392 = vpop.trf.xlu0
    %v4393 = vpop.trf.xlu0
    %v4394 = vpop.trf.xlu0
    %v4395 = vpop.trf.xlu0
    %v4396 = vpop.trf.xlu0
    %v4397 = vpop.trf.xlu0
    %v4398 = vpop.trf.xlu0
    %v4399 = vpop.trf.xlu0
    %v4400 = vpop.trf.xlu0
    %v4401 = vpop.trf.xlu0
    %v4402 = vpop.trf.xlu0
    %v4403 = vpop.trf.xlu0
    %v4404 = vpop.trf.xlu0
    %v4405 = vpop.trf.xlu0
    %v4406 = vpop.trf.xlu0
    %v4407 = vpop.trf.xlu0
    %4408 = vxpose.xlu0.b32.start [1/16] %v3793, 128
    %4409 = vxpose.xlu0.b32.cont [2/16] 0.0, 128
    %4410 = vxpose.xlu0.b32.cont [3/16] 0.0, 128
    %4411 = vxpose.xlu0.b32.cont [4/16] 0.0, 128
    %4412 = vxpose.xlu0.b32.cont [5/16] 0.0, 128
    %4413 = vxpose.xlu0.b32.cont [6/16] 0.0, 128
    %4414 = vxpose.xlu0.b32.cont [7/16] 0.0, 128
    %4415 = vxpose.xlu0.b32.cont [8/16] 0.0, 128
    %4416 = vxpose.xlu0.b32.cont [9/16] 0.0, 128
    %4417 = vxpose.xlu0.b32.cont [10/16] 0.0, 128
    %4418 = vxpose.xlu0.b32.cont [11/16] 0.0, 128
    %4419 = vxpose.xlu0.b32.cont [12/16] 0.0, 128
    %4420 = vxpose.xlu0.b32.cont [13/16] 0.0, 128
    %4421 = vxpose.xlu0.b32.cont [14/16] 0.0, 128
    %4422 = vxpose.xlu0.b32.cont [15/16] 0.0, 128
    %4423 = vxpose.xlu0.b32.end [16/16] 0.0, 128
    %v4424 = vpop.trf.xlu0
    %v4425 = vpop.trf.xlu0
    %v4426 = vpop.trf.xlu0
    %v4427 = vpop.trf.xlu0
    %v4428 = vpop.trf.xlu0
    %v4429 = vpop.trf.xlu0
    %v4430 = vpop.trf.xlu0
    %v4431 = vpop.trf.xlu0
    %v4432 = vpop.trf.xlu0
    %v4433 = vpop.trf.xlu0
    %v4434 = vpop.trf.xlu0
    %v4435 = vpop.trf.xlu0
    %v4436 = vpop.trf.xlu0
    %v4437 = vpop.trf.xlu0
    %v4438 = vpop.trf.xlu0
    %v4439 = vpop.trf.xlu0
    %4440 = vxpose.xlu0.b32.start [1/16] %v3869, 128
    %4441 = vxpose.xlu0.b32.cont [2/16] 0.0, 128
    %4442 = vxpose.xlu0.b32.cont [3/16] 0.0, 128
    %4443 = vxpose.xlu0.b32.cont [4/16] 0.0, 128
    %4444 = vxpose.xlu0.b32.cont [5/16] 0.0, 128
    %4445 = vxpose.xlu0.b32.cont [6/16] 0.0, 128
    %4446 = vxpose.xlu0.b32.cont [7/16] 0.0, 128
    %4447 = vxpose.xlu0.b32.cont [8/16] 0.0, 128
    %4448 = vxpose.xlu0.b32.cont [9/16] 0.0, 128
    %4449 = vxpose.xlu0.b32.cont [10/16] 0.0, 128
    %4450 = vxpose.xlu0.b32.cont [11/16] 0.0, 128
    %4451 = vxpose.xlu0.b32.cont [12/16] 0.0, 128
    %4452 = vxpose.xlu0.b32.cont [13/16] 0.0, 128
    %4453 = vxpose.xlu0.b32.cont [14/16] 0.0, 128
    %4454 = vxpose.xlu0.b32.cont [15/16] 0.0, 128
    %4455 = vxpose.xlu0.b32.end [16/16] 0.0, 128
    %v4456 = vpop.trf.xlu0
    %v4457 = vpop.trf.xlu0
    %v4458 = vpop.trf.xlu0
    %v4459 = vpop.trf.xlu0
    %v4460 = vpop.trf.xlu0
    %v4461 = vpop.trf.xlu0
    %v4462 = vpop.trf.xlu0
    %v4463 = vpop.trf.xlu0
    %v4464 = vpop.trf.xlu0
    %v4465 = vpop.trf.xlu0
    %v4466 = vpop.trf.xlu0
    %v4467 = vpop.trf.xlu0
    %v4468 = vpop.trf.xlu0
    %v4469 = vpop.trf.xlu0
    %v4470 = vpop.trf.xlu0
    %v4471 = vpop.trf.xlu0
    %4472 = vxpose.xlu0.b32.start [1/16] %v3945, 128
    %4473 = vxpose.xlu0.b32.cont [2/16] 0.0, 128
    %4474 = vxpose.xlu0.b32.cont [3/16] 0.0, 128
    %4475 = vxpose.xlu0.b32.cont [4/16] 0.0, 128
    %4476 = vxpose.xlu0.b32.cont [5/16] 0.0, 128
    %4477 = vxpose.xlu0.b32.cont [6/16] 0.0, 128
    %4478 = vxpose.xlu0.b32.cont [7/16] 0.0, 128
    %4479 = vxpose.xlu0.b32.cont [8/16] 0.0, 128
    %4480 = vxpose.xlu0.b32.cont [9/16] 0.0, 128
    %4481 = vxpose.xlu0.b32.cont [10/16] 0.0, 128
    %4482 = vxpose.xlu0.b32.cont [11/16] 0.0, 128
    %4483 = vxpose.xlu0.b32.cont [12/16] 0.0, 128
    %4484 = vxpose.xlu0.b32.cont [13/16] 0.0, 128
    %4485 = vxpose.xlu0.b32.cont [14/16] 0.0, 128
    %4486 = vxpose.xlu0.b32.cont [15/16] 0.0, 128
    %4487 = vxpose.xlu0.b32.end [16/16] 0.0, 128
    %v4488 = vpop.trf.xlu0
    %v4489 = vpop.trf.xlu0
    %v4490 = vpop.trf.xlu0
    %v4491 = vpop.trf.xlu0
    %v4492 = vpop.trf.xlu0
    %v4493 = vpop.trf.xlu0
    %v4494 = vpop.trf.xlu0
    %v4495 = vpop.trf.xlu0
    %v4496 = vpop.trf.xlu0
    %v4497 = vpop.trf.xlu0
    %v4498 = vpop.trf.xlu0
    %v4499 = vpop.trf.xlu0
    %v4500 = vpop.trf.xlu0
    %v4501 = vpop.trf.xlu0
    %v4502 = vpop.trf.xlu0
    %v4503 = vpop.trf.xlu0
    %4504 = vxpose.xlu0.b32.start [1/16] %v4021, 128
    %4505 = vxpose.xlu0.b32.cont [2/16] 0.0, 128
    %4506 = vxpose.xlu0.b32.cont [3/16] 0.0, 128
    %4507 = vxpose.xlu0.b32.cont [4/16] 0.0, 128
    %4508 = vxpose.xlu0.b32.cont [5/16] 0.0, 128
    %4509 = vxpose.xlu0.b32.cont [6/16] 0.0, 128
    %4510 = vxpose.xlu0.b32.cont [7/16] 0.0, 128
    %4511 = vxpose.xlu0.b32.cont [8/16] 0.0, 128
    %4512 = vxpose.xlu0.b32.cont [9/16] 0.0, 128
    %4513 = vxpose.xlu0.b32.cont [10/16] 0.0, 128
    %4514 = vxpose.xlu0.b32.cont [11/16] 0.0, 128
    %4515 = vxpose.xlu0.b32.cont [12/16] 0.0, 128
    %4516 = vxpose.xlu0.b32.cont [13/16] 0.0, 128
    %4517 = vxpose.xlu0.b32.cont [14/16] 0.0, 128
    %4518 = vxpose.xlu0.b32.cont [15/16] 0.0, 128
    %4519 = vxpose.xlu0.b32.end [16/16] 0.0, 128
    %v4520 = vpop.trf.xlu0
    %v4521 = vpop.trf.xlu0
    %v4522 = vpop.trf.xlu0
    %v4523 = vpop.trf.xlu0
    %v4524 = vpop.trf.xlu0
    %v4525 = vpop.trf.xlu0
    %v4526 = vpop.trf.xlu0
    %v4527 = vpop.trf.xlu0
    %v4528 = vpop.trf.xlu0
    %v4529 = vpop.trf.xlu0
    %v4530 = vpop.trf.xlu0
    %v4531 = vpop.trf.xlu0
    %v4532 = vpop.trf.xlu0
    %v4533 = vpop.trf.xlu0
    %v4534 = vpop.trf.xlu0
    %v4535 = vpop.trf.xlu0
    %v4536 = vcombine.low %v4040, %v4104
    %v4537 = vcombine.high %v4040, %v4104
    %v4539 = vunpack.c.l.s4 1983009808
    %v4540 = vunpack.c.0.s8 %v4539
    %v4541 = vlaneseq
    %v4542 = vshrl.u32 %v4541, 7
    %v4543 = vsub.s32 %v4540, %v4542
    %v4544 = vrot.slane %v4536, %v4543
    %v4546 = vunpack.c.l.s4 1983009808
    %v4547 = vunpack.c.0.s8 %v4546
    %v4548 = vlaneseq
    %v4549 = vshrl.u32 %v4548, 7
    %v4550 = vsub.s32 %v4547, %v4549
    %v4551 = vrot.slane %v4537, %v4550
    %v4552 = vcombine.low %v4072, %v4136
    %v4553 = vcombine.high %v4072, %v4136
    %v4555 = vunpack.c.l.s4 1983009808
    %v4556 = vunpack.c.0.s8 %v4555
    %v4557 = vlaneseq
    %v4558 = vshrl.u32 %v4557, 7
    %v4559 = vsub.s32 %v4556, %v4558
    %v4560 = vrot.slane %v4552, %v4559
    %v4562 = vunpack.c.l.s4 1983009808
    %v4563 = vunpack.c.0.s8 %v4562
    %v4564 = vlaneseq
    %v4565 = vshrl.u32 %v4564, 7
    %v4566 = vsub.s32 %v4563, %v4565
    %v4567 = vrot.slane %v4553, %v4566
    %v4568 = vcombine.low %v4168, %v4232
    %v4569 = vcombine.high %v4168, %v4232
    %v4571 = vunpack.c.l.s4 1983009808
    %v4572 = vunpack.c.0.s8 %v4571
    %v4573 = vlaneseq
    %v4574 = vshrl.u32 %v4573, 7
    %v4575 = vsub.s32 %v4572, %v4574
    %v4576 = vrot.slane %v4568, %v4575
    %v4578 = vunpack.c.l.s4 1983009808
    %v4579 = vunpack.c.0.s8 %v4578
    %v4580 = vlaneseq
    %v4581 = vshrl.u32 %v4580, 7
    %v4582 = vsub.s32 %v4579, %v4581
    %v4583 = vrot.slane %v4569, %v4582
    %v4584 = vcombine.low %v4200, %v4264
    %v4585 = vcombine.high %v4200, %v4264
    %v4587 = vunpack.c.l.s4 1983009808
    %v4588 = vunpack.c.0.s8 %v4587
    %v4589 = vlaneseq
    %v4590 = vshrl.u32 %v4589, 7
    %v4591 = vsub.s32 %v4588, %v4590
    %v4592 = vrot.slane %v4584, %v4591
    %v4594 = vunpack.c.l.s4 1983009808
    %v4595 = vunpack.c.0.s8 %v4594
    %v4596 = vlaneseq
    %v4597 = vshrl.u32 %v4596, 7
    %v4598 = vsub.s32 %v4595, %v4597
    %v4599 = vrot.slane %v4585, %v4598
    %v4600 = vcombine.low %v4544, %v4560
    %v4601 = vcombine.high %v4544, %v4560
    %v4603 = vunpack.c.l.s4 1934713408
    %v4604 = vunpack.c.0.s8 %v4603
    %v4605 = vlaneseq
    %v4606 = vshrl.u32 %v4605, 7
    %v4607 = vsub.s32 %v4604, %v4606
    %v4608 = vrot.slane %v4600, %v4607
    %v4610 = vunpack.c.l.s4 1934713408
    %v4611 = vunpack.c.0.s8 %v4610
    %v4612 = vlaneseq
    %v4613 = vshrl.u32 %v4612, 7
    %v4614 = vsub.s32 %v4611, %v4613
    %v4615 = vrot.slane %v4601, %v4614
    %v4616 = vcombine.low %v4551, %v4567
    %v4617 = vcombine.high %v4551, %v4567
    %v4619 = vunpack.c.l.s4 1934713408
    %v4620 = vunpack.c.0.s8 %v4619
    %v4621 = vlaneseq
    %v4622 = vshrl.u32 %v4621, 7
    %v4623 = vsub.s32 %v4620, %v4622
    %v4624 = vrot.slane %v4616, %v4623
    %v4626 = vunpack.c.l.s4 1934713408
    %v4627 = vunpack.c.0.s8 %v4626
    %v4628 = vlaneseq
    %v4629 = vshrl.u32 %v4628, 7
    %v4630 = vsub.s32 %v4627, %v4629
    %v4631 = vrot.slane %v4617, %v4630
    %v4632 = vcombine.low %v4576, %v4592
    %v4633 = vcombine.high %v4576, %v4592
    %v4635 = vunpack.c.l.s4 1934713408
    %v4636 = vunpack.c.0.s8 %v4635
    %v4637 = vlaneseq
    %v4638 = vshrl.u32 %v4637, 7
    %v4639 = vsub.s32 %v4636, %v4638
    %v4640 = vrot.slane %v4632, %v4639
    %v4642 = vunpack.c.l.s4 1934713408
    %v4643 = vunpack.c.0.s8 %v4642
    %v4644 = vlaneseq
    %v4645 = vshrl.u32 %v4644, 7
    %v4646 = vsub.s32 %v4643, %v4645
    %v4647 = vrot.slane %v4633, %v4646
    %v4648 = vcombine.low %v4583, %v4599
    %v4649 = vcombine.high %v4583, %v4599
    %v4651 = vunpack.c.l.s4 1934713408
    %v4652 = vunpack.c.0.s8 %v4651
    %v4653 = vlaneseq
    %v4654 = vshrl.u32 %v4653, 7
    %v4655 = vsub.s32 %v4652, %v4654
    %v4656 = vrot.slane %v4648, %v4655
    %v4658 = vunpack.c.l.s4 1934713408
    %v4659 = vunpack.c.0.s8 %v4658
    %v4660 = vlaneseq
    %v4661 = vshrl.u32 %v4660, 7
    %v4662 = vsub.s32 %v4659, %v4661
    %v4663 = vrot.slane %v4649, %v4662
    %v4664 = vcombine.low %v4608, %v4640
    %v4665 = vcombine.high %v4608, %v4640
    %v4666 = vcombine.low %v4615, %v4647
    %v4667 = vcombine.high %v4615, %v4647
    %v4668 = vcombine.low %v4624, %v4656
    %v4669 = vcombine.high %v4624, %v4656
    %v4670 = vcombine.low %v4631, %v4663
    %v4671 = vcombine.high %v4631, %v4663
    %v4672 = vcombine.low %v4296, %v4360
    %v4673 = vcombine.high %v4296, %v4360
    %v4675 = vunpack.c.l.s4 1983009808
    %v4676 = vunpack.c.0.s8 %v4675
    %v4677 = vlaneseq
    %v4678 = vshrl.u32 %v4677, 7
    %v4679 = vsub.s32 %v4676, %v4678
    %v4680 = vrot.slane %v4672, %v4679
    %v4682 = vunpack.c.l.s4 1983009808
    %v4683 = vunpack.c.0.s8 %v4682
    %v4684 = vlaneseq
    %v4685 = vshrl.u32 %v4684, 7
    %v4686 = vsub.s32 %v4683, %v4685
    %v4687 = vrot.slane %v4673, %v4686
    %v4688 = vcombine.low %v4328, %v4392
    %v4689 = vcombine.high %v4328, %v4392
    %v4691 = vunpack.c.l.s4 1983009808
    %v4692 = vunpack.c.0.s8 %v4691
    %v4693 = vlaneseq
    %v4694 = vshrl.u32 %v4693, 7
    %v4695 = vsub.s32 %v4692, %v4694
    %v4696 = vrot.slane %v4688, %v4695
    %v4698 = vunpack.c.l.s4 1983009808
    %v4699 = vunpack.c.0.s8 %v4698
    %v4700 = vlaneseq
    %v4701 = vshrl.u32 %v4700, 7
    %v4702 = vsub.s32 %v4699, %v4701
    %v4703 = vrot.slane %v4689, %v4702
    %v4704 = vcombine.low %v4424, %v4488
    %v4705 = vcombine.high %v4424, %v4488
    %v4707 = vunpack.c.l.s4 1983009808
    %v4708 = vunpack.c.0.s8 %v4707
    %v4709 = vlaneseq
    %v4710 = vshrl.u32 %v4709, 7
    %v4711 = vsub.s32 %v4708, %v4710
    %v4712 = vrot.slane %v4704, %v4711
    %v4714 = vunpack.c.l.s4 1983009808
    %v4715 = vunpack.c.0.s8 %v4714
    %v4716 = vlaneseq
    %v4717 = vshrl.u32 %v4716, 7
    %v4718 = vsub.s32 %v4715, %v4717
    %v4719 = vrot.slane %v4705, %v4718
    %v4720 = vcombine.low %v4456, %v4520
    %v4721 = vcombine.high %v4456, %v4520
    %v4723 = vunpack.c.l.s4 1983009808
    %v4724 = vunpack.c.0.s8 %v4723
    %v4725 = vlaneseq
    %v4726 = vshrl.u32 %v4725, 7
    %v4727 = vsub.s32 %v4724, %v4726
    %v4728 = vrot.slane %v4720, %v4727
    %v4730 = vunpack.c.l.s4 1983009808
    %v4731 = vunpack.c.0.s8 %v4730
    %v4732 = vlaneseq
    %v4733 = vshrl.u32 %v4732, 7
    %v4734 = vsub.s32 %v4731, %v4733
    %v4735 = vrot.slane %v4721, %v4734
    %v4736 = vcombine.low %v4680, %v4696
    %v4737 = vcombine.high %v4680, %v4696
    %v4739 = vunpack.c.l.s4 1934713408
    %v4740 = vunpack.c.0.s8 %v4739
    %v4741 = vlaneseq
    %v4742 = vshrl.u32 %v4741, 7
    %v4743 = vsub.s32 %v4740, %v4742
    %v4744 = vrot.slane %v4736, %v4743
    %v4746 = vunpack.c.l.s4 1934713408
    %v4747 = vunpack.c.0.s8 %v4746
    %v4748 = vlaneseq
    %v4749 = vshrl.u32 %v4748, 7
    %v4750 = vsub.s32 %v4747, %v4749
    %v4751 = vrot.slane %v4737, %v4750
    %v4752 = vcombine.low %v4687, %v4703
    %v4753 = vcombine.high %v4687, %v4703
    %v4755 = vunpack.c.l.s4 1934713408
    %v4756 = vunpack.c.0.s8 %v4755
    %v4757 = vlaneseq
    %v4758 = vshrl.u32 %v4757, 7
    %v4759 = vsub.s32 %v4756, %v4758
    %v4760 = vrot.slane %v4752, %v4759
    %v4762 = vunpack.c.l.s4 1934713408
    %v4763 = vunpack.c.0.s8 %v4762
    %v4764 = vlaneseq
    %v4765 = vshrl.u32 %v4764, 7
    %v4766 = vsub.s32 %v4763, %v4765
    %v4767 = vrot.slane %v4753, %v4766
    %v4768 = vcombine.low %v4712, %v4728
    %v4769 = vcombine.high %v4712, %v4728
    %v4771 = vunpack.c.l.s4 1934713408
    %v4772 = vunpack.c.0.s8 %v4771
    %v4773 = vlaneseq
    %v4774 = vshrl.u32 %v4773, 7
    %v4775 = vsub.s32 %v4772, %v4774
    %v4776 = vrot.slane %v4768, %v4775
    %v4778 = vunpack.c.l.s4 1934713408
    %v4779 = vunpack.c.0.s8 %v4778
    %v4780 = vlaneseq
    %v4781 = vshrl.u32 %v4780, 7
    %v4782 = vsub.s32 %v4779, %v4781
    %v4783 = vrot.slane %v4769, %v4782
    %v4784 = vcombine.low %v4719, %v4735
    %v4785 = vcombine.high %v4719, %v4735
    %v4787 = vunpack.c.l.s4 1934713408
    %v4788 = vunpack.c.0.s8 %v4787
    %v4789 = vlaneseq
    %v4790 = vshrl.u32 %v4789, 7
    %v4791 = vsub.s32 %v4788, %v4790
    %v4792 = vrot.slane %v4784, %v4791
    %v4794 = vunpack.c.l.s4 1934713408
    %v4795 = vunpack.c.0.s8 %v4794
    %v4796 = vlaneseq
    %v4797 = vshrl.u32 %v4796, 7
    %v4798 = vsub.s32 %v4795, %v4797
    %v4799 = vrot.slane %v4785, %v4798
    %v4800 = vcombine.low %v4744, %v4776
    %v4801 = vcombine.high %v4744, %v4776
    %v4802 = vcombine.low %v4751, %v4783
    %v4803 = vcombine.high %v4751, %v4783
    %v4804 = vcombine.low %v4760, %v4792
    %v4805 = vcombine.high %v4760, %v4792
    %v4806 = vcombine.low %v4767, %v4799
    %v4807 = vcombine.high %v4767, %v4799
    %v4808 = vcombine.low %v4664, %v4666
    %v4809 = vcombine.high %v4664, %v4666
    %v4811 = vunpack.c.l.s4 1983009808
    %v4812 = vunpack.c.0.s8 %v4811
    %v4813 = vlaneseq
    %v4814 = vshrl.u32 %v4813, 7
    %v4815 = vsub.s32 %v4812, %v4814
    %v4816 = vrot.slane %v4808, %v4815
    %v4818 = vunpack.c.l.s4 1983009808
    %v4819 = vunpack.c.0.s8 %v4818
    %v4820 = vlaneseq
    %v4821 = vshrl.u32 %v4820, 7
    %v4822 = vsub.s32 %v4819, %v4821
    %v4823 = vrot.slane %v4809, %v4822
    %v4824 = vcombine.low %v4665, %v4667
    %v4825 = vcombine.high %v4665, %v4667
    %v4827 = vunpack.c.l.s4 1983009808
    %v4828 = vunpack.c.0.s8 %v4827
    %v4829 = vlaneseq
    %v4830 = vshrl.u32 %v4829, 7
    %v4831 = vsub.s32 %v4828, %v4830
    %v4832 = vrot.slane %v4824, %v4831
    %v4834 = vunpack.c.l.s4 1983009808
    %v4835 = vunpack.c.0.s8 %v4834
    %v4836 = vlaneseq
    %v4837 = vshrl.u32 %v4836, 7
    %v4838 = vsub.s32 %v4835, %v4837
    %v4839 = vrot.slane %v4825, %v4838
    %v4840 = vcombine.low %v4668, %v4670
    %v4841 = vcombine.high %v4668, %v4670
    %v4843 = vunpack.c.l.s4 1983009808
    %v4844 = vunpack.c.0.s8 %v4843
    %v4845 = vlaneseq
    %v4846 = vshrl.u32 %v4845, 7
    %v4847 = vsub.s32 %v4844, %v4846
    %v4848 = vrot.slane %v4840, %v4847
    %v4850 = vunpack.c.l.s4 1983009808
    %v4851 = vunpack.c.0.s8 %v4850
    %v4852 = vlaneseq
    %v4853 = vshrl.u32 %v4852, 7
    %v4854 = vsub.s32 %v4851, %v4853
    %v4855 = vrot.slane %v4841, %v4854
    %v4856 = vcombine.low %v4669, %v4671
    %v4857 = vcombine.high %v4669, %v4671
    %v4859 = vunpack.c.l.s4 1983009808
    %v4860 = vunpack.c.0.s8 %v4859
    %v4861 = vlaneseq
    %v4862 = vshrl.u32 %v4861, 7
    %v4863 = vsub.s32 %v4860, %v4862
    %v4864 = vrot.slane %v4856, %v4863
    %v4866 = vunpack.c.l.s4 1983009808
    %v4867 = vunpack.c.0.s8 %v4866
    %v4868 = vlaneseq
    %v4869 = vshrl.u32 %v4868, 7
    %v4870 = vsub.s32 %v4867, %v4869
    %v4871 = vrot.slane %v4857, %v4870
    %v4872 = vcombine.low %v4816, %v4832
    %v4873 = vcombine.high %v4816, %v4832
    %v4875 = vunpack.c.l.s4 1934713408
    %v4876 = vunpack.c.0.s8 %v4875
    %v4877 = vlaneseq
    %v4878 = vshrl.u32 %v4877, 7
    %v4879 = vsub.s32 %v4876, %v4878
    %v4880 = vrot.slane %v4872, %v4879
    %v4882 = vunpack.c.l.s4 1934713408
    %v4883 = vunpack.c.0.s8 %v4882
    %v4884 = vlaneseq
    %v4885 = vshrl.u32 %v4884, 7
    %v4886 = vsub.s32 %v4883, %v4885
    %v4887 = vrot.slane %v4873, %v4886
    %v4888 = vcombine.low %v4823, %v4839
    %v4889 = vcombine.high %v4823, %v4839
    %v4891 = vunpack.c.l.s4 1934713408
    %v4892 = vunpack.c.0.s8 %v4891
    %v4893 = vlaneseq
    %v4894 = vshrl.u32 %v4893, 7
    %v4895 = vsub.s32 %v4892, %v4894
    %v4896 = vrot.slane %v4888, %v4895
    %v4898 = vunpack.c.l.s4 1934713408
    %v4899 = vunpack.c.0.s8 %v4898
    %v4900 = vlaneseq
    %v4901 = vshrl.u32 %v4900, 7
    %v4902 = vsub.s32 %v4899, %v4901
    %v4903 = vrot.slane %v4889, %v4902
    %v4904 = vcombine.low %v4848, %v4864
    %v4905 = vcombine.high %v4848, %v4864
    %v4907 = vunpack.c.l.s4 1934713408
    %v4908 = vunpack.c.0.s8 %v4907
    %v4909 = vlaneseq
    %v4910 = vshrl.u32 %v4909, 7
    %v4911 = vsub.s32 %v4908, %v4910
    %v4912 = vrot.slane %v4904, %v4911
    %v4914 = vunpack.c.l.s4 1934713408
    %v4915 = vunpack.c.0.s8 %v4914
    %v4916 = vlaneseq
    %v4917 = vshrl.u32 %v4916, 7
    %v4918 = vsub.s32 %v4915, %v4917
    %v4919 = vrot.slane %v4905, %v4918
    %v4920 = vcombine.low %v4855, %v4871
    %v4921 = vcombine.high %v4855, %v4871
    %v4923 = vunpack.c.l.s4 1934713408
    %v4924 = vunpack.c.0.s8 %v4923
    %v4925 = vlaneseq
    %v4926 = vshrl.u32 %v4925, 7
    %v4927 = vsub.s32 %v4924, %v4926
    %v4928 = vrot.slane %v4920, %v4927
    %v4930 = vunpack.c.l.s4 1934713408
    %v4931 = vunpack.c.0.s8 %v4930
    %v4932 = vlaneseq
    %v4933 = vshrl.u32 %v4932, 7
    %v4934 = vsub.s32 %v4931, %v4933
    %v4935 = vrot.slane %v4921, %v4934
    %v4936 = vcombine.low %v4880, %v4912
    %v4937 = vcombine.high %v4880, %v4912
    %v4938 = vcombine.low %v4887, %v4919
    %v4939 = vcombine.high %v4887, %v4919
    %v4940 = vcombine.low %v4896, %v4928
    %v4941 = vcombine.high %v4896, %v4928
    %v4942 = vcombine.low %v4903, %v4935
    %v4943 = vcombine.high %v4903, %v4935
    %v4944 = vcombine.low %v4800, %v4802
    %v4945 = vcombine.high %v4800, %v4802
    %v4947 = vunpack.c.l.s4 1983009808
    %v4948 = vunpack.c.0.s8 %v4947
    %v4949 = vlaneseq
    %v4950 = vshrl.u32 %v4949, 7
    %v4951 = vsub.s32 %v4948, %v4950
    %v4952 = vrot.slane %v4944, %v4951
    %v4954 = vunpack.c.l.s4 1983009808
    %v4955 = vunpack.c.0.s8 %v4954
    %v4956 = vlaneseq
    %v4957 = vshrl.u32 %v4956, 7
    %v4958 = vsub.s32 %v4955, %v4957
    %v4959 = vrot.slane %v4945, %v4958
    %v4960 = vcombine.low %v4801, %v4803
    %v4961 = vcombine.high %v4801, %v4803
    %v4963 = vunpack.c.l.s4 1983009808
    %v4964 = vunpack.c.0.s8 %v4963
    %v4965 = vlaneseq
    %v4966 = vshrl.u32 %v4965, 7
    %v4967 = vsub.s32 %v4964, %v4966
    %v4968 = vrot.slane %v4960, %v4967
    %v4970 = vunpack.c.l.s4 1983009808
    %v4971 = vunpack.c.0.s8 %v4970
    %v4972 = vlaneseq
    %v4973 = vshrl.u32 %v4972, 7
    %v4974 = vsub.s32 %v4971, %v4973
    %v4975 = vrot.slane %v4961, %v4974
    %v4976 = vcombine.low %v4804, %v4806
    %v4977 = vcombine.high %v4804, %v4806
    %v4979 = vunpack.c.l.s4 1983009808
    %v4980 = vunpack.c.0.s8 %v4979
    %v4981 = vlaneseq
    %v4982 = vshrl.u32 %v4981, 7
    %v4983 = vsub.s32 %v4980, %v4982
    %v4984 = vrot.slane %v4976, %v4983
    %v4986 = vunpack.c.l.s4 1983009808
    %v4987 = vunpack.c.0.s8 %v4986
    %v4988 = vlaneseq
    %v4989 = vshrl.u32 %v4988, 7
    %v4990 = vsub.s32 %v4987, %v4989
    %v4991 = vrot.slane %v4977, %v4990
    %v4992 = vcombine.low %v4805, %v4807
    %v4993 = vcombine.high %v4805, %v4807
    %v4995 = vunpack.c.l.s4 1983009808
    %v4996 = vunpack.c.0.s8 %v4995
    %v4997 = vlaneseq
    %v4998 = vshrl.u32 %v4997, 7
    %v4999 = vsub.s32 %v4996, %v4998
    %v5000 = vrot.slane %v4992, %v4999
    %v5002 = vunpack.c.l.s4 1983009808
    %v5003 = vunpack.c.0.s8 %v5002
    %v5004 = vlaneseq
    %v5005 = vshrl.u32 %v5004, 7
    %v5006 = vsub.s32 %v5003, %v5005
    %v5007 = vrot.slane %v4993, %v5006
    %v5008 = vcombine.low %v4952, %v4968
    %v5009 = vcombine.high %v4952, %v4968
    %v5011 = vunpack.c.l.s4 1934713408
    %v5012 = vunpack.c.0.s8 %v5011
    %v5013 = vlaneseq
    %v5014 = vshrl.u32 %v5013, 7
    %v5015 = vsub.s32 %v5012, %v5014
    %v5016 = vrot.slane %v5008, %v5015
    %v5018 = vunpack.c.l.s4 1934713408
    %v5019 = vunpack.c.0.s8 %v5018
    %v5020 = vlaneseq
    %v5021 = vshrl.u32 %v5020, 7
    %v5022 = vsub.s32 %v5019, %v5021
    %v5023 = vrot.slane %v5009, %v5022
    %v5024 = vcombine.low %v4959, %v4975
    %v5025 = vcombine.high %v4959, %v4975
    %v5027 = vunpack.c.l.s4 1934713408
    %v5028 = vunpack.c.0.s8 %v5027
    %v5029 = vlaneseq
    %v5030 = vshrl.u32 %v5029, 7
    %v5031 = vsub.s32 %v5028, %v5030
    %v5032 = vrot.slane %v5024, %v5031
    %v5034 = vunpack.c.l.s4 1934713408
    %v5035 = vunpack.c.0.s8 %v5034
    %v5036 = vlaneseq
    %v5037 = vshrl.u32 %v5036, 7
    %v5038 = vsub.s32 %v5035, %v5037
    %v5039 = vrot.slane %v5025, %v5038
    %v5040 = vcombine.low %v4984, %v5000
    %v5041 = vcombine.high %v4984, %v5000
    %v5043 = vunpack.c.l.s4 1934713408
    %v5044 = vunpack.c.0.s8 %v5043
    %v5045 = vlaneseq
    %v5046 = vshrl.u32 %v5045, 7
    %v5047 = vsub.s32 %v5044, %v5046
    %v5048 = vrot.slane %v5040, %v5047
    %v5050 = vunpack.c.l.s4 1934713408
    %v5051 = vunpack.c.0.s8 %v5050
    %v5052 = vlaneseq
    %v5053 = vshrl.u32 %v5052, 7
    %v5054 = vsub.s32 %v5051, %v5053
    %v5055 = vrot.slane %v5041, %v5054
    %v5056 = vcombine.low %v4991, %v5007
    %v5057 = vcombine.high %v4991, %v5007
    %v5059 = vunpack.c.l.s4 1934713408
    %v5060 = vunpack.c.0.s8 %v5059
    %v5061 = vlaneseq
    %v5062 = vshrl.u32 %v5061, 7
    %v5063 = vsub.s32 %v5060, %v5062
    %v5064 = vrot.slane %v5056, %v5063
    %v5066 = vunpack.c.l.s4 1934713408
    %v5067 = vunpack.c.0.s8 %v5066
    %v5068 = vlaneseq
    %v5069 = vshrl.u32 %v5068, 7
    %v5070 = vsub.s32 %v5067, %v5069
    %v5071 = vrot.slane %v5057, %v5070
    %v5072 = vcombine.low %v5016, %v5048
    %v5073 = vcombine.high %v5016, %v5048
    %v5074 = vcombine.low %v5023, %v5055
    %v5075 = vcombine.high %v5023, %v5055
    %v5076 = vcombine.low %v5032, %v5064
    %v5077 = vcombine.high %v5032, %v5064
    %v5078 = vcombine.low %v5039, %v5071
    %v5079 = vcombine.high %v5039, %v5071
    %5081 = vrot.lane.b32.xlu0 %v4937, 8
    %v5082 = vpop.permute.xlu0 %5081
    %5085 = vrot.lane.b32.xlu0 %v4938, 16
    %v5086 = vpop.permute.xlu0 %5085
    %5089 = vrot.lane.b32.xlu0 %v4939, 24
    %v5090 = vpop.permute.xlu0 %5089
    %5093 = vrot.lane.b32.xlu0 %v4940, 32
    %v5094 = vpop.permute.xlu0 %5093
    %5097 = vrot.lane.b32.xlu0 %v4941, 40
    %v5098 = vpop.permute.xlu0 %5097
    %5101 = vrot.lane.b32.xlu0 %v4942, 48
    %v5102 = vpop.permute.xlu0 %5101
    %5105 = vrot.lane.b32.xlu0 %v4943, 56
    %v5106 = vpop.permute.xlu0 %5105
    %5109 = vrot.lane.b32.xlu0 %v5072, 64
    %v5110 = vpop.permute.xlu0 %5109
    %5113 = vrot.lane.b32.xlu0 %v5073, 72
    %v5114 = vpop.permute.xlu0 %5113
    %5117 = vrot.lane.b32.xlu0 %v5074, 80
    %v5118 = vpop.permute.xlu0 %5117
    %5121 = vrot.lane.b32.xlu0 %v5075, 88
    %v5122 = vpop.permute.xlu0 %5121
    %5125 = vrot.lane.b32.xlu0 %v5076, 96
    %v5126 = vpop.permute.xlu0 %5125
    %5129 = vrot.lane.b32.xlu0 %v5077, 104
    %v5130 = vpop.permute.xlu0 %5129
    %5133 = vrot.lane.b32.xlu0 %v5078, 112
    %v5134 = vpop.permute.xlu0 %5133
    %5137 = vrot.lane.b32.xlu0 %v5079, 120
    %v5138 = vpop.permute.xlu0 %5137
    %v5140 = vsel %vm967, %v4936, %v5082
    %vm5141 = vcmask 130048
    %v5142 = vsel %vm5141, %v5140, %v5086
    %vm5143 = vcmask 195584
    %v5144 = vsel %vm5143, %v5142, %v5090
    %vm5145 = vcmask 261120
    %v5146 = vsel %vm5145, %v5144, %v5094
    %vm5147 = vcmask 326656
    %v5148 = vsel %vm5147, %v5146, %v5098
    %vm5149 = vcmask 392192
    %v5150 = vsel %vm5149, %v5148, %v5102
    %vm5151 = vcmask 457728
    %v5152 = vsel %vm5151, %v5150, %v5106
    %vm5153 = vcmask 523264
    %v5154 = vsel %vm5153, %v5152, %v5110
    %vm5155 = vcmask 588800
    %v5156 = vsel %vm5155, %v5154, %v5114
    %vm5157 = vcmask 654336
    %v5158 = vsel %vm5157, %v5156, %v5118
    %vm5159 = vcmask 719872
    %v5160 = vsel %vm5159, %v5158, %v5122
    %vm5161 = vcmask 785408
    %v5162 = vsel %vm5161, %v5160, %v5126
    %vm5163 = vcmask 850944
    %v5164 = vsel %vm5163, %v5162, %v5130
    %vm5165 = vcmask 916480
    %v5166 = vsel %vm5165, %v5164, %v5134
    %vm5167 = vcmask 982016
    %v5168 = vsel %vm5167, %v5166, %v5138
    %5169 = vst [vmem:[#allocation2] sm:$0xff] %v5168
    %5171 = vrot.lane.b32.xlu0 %v287, 120
    %v5172 = vpop.permute.xlu0 %5171
    %5173 = vrot.lane.b32.xlu0 %v287, 112
    %v5174 = vpop.permute.xlu0 %5173
    %5175 = vrot.lane.b32.xlu0 %v287, 104
    %v5176 = vpop.permute.xlu0 %5175
    %5177 = vrot.lane.b32.xlu0 %v287, 96
    %v5178 = vpop.permute.xlu0 %5177
    %5179 = vrot.lane.b32.xlu0 %v287, 88
    %v5180 = vpop.permute.xlu0 %5179
    %5181 = vrot.lane.b32.xlu0 %v287, 80
    %v5182 = vpop.permute.xlu0 %5181
    %5183 = vrot.lane.b32.xlu0 %v287, 72
    %v5184 = vpop.permute.xlu0 %5183
    %5185 = vrot.lane.b32.xlu0 %v287, 64
    %v5186 = vpop.permute.xlu0 %5185
    %5187 = vrot.lane.b32.xlu0 %v287, 56
    %v5188 = vpop.permute.xlu0 %5187
    %5189 = vrot.lane.b32.xlu0 %v287, 48
    %v5190 = vpop.permute.xlu0 %5189
    %5191 = vrot.lane.b32.xlu0 %v287, 40
    %v5192 = vpop.permute.xlu0 %5191
    %5193 = vrot.lane.b32.xlu0 %v287, 32
    %v5194 = vpop.permute.xlu0 %5193
    %5195 = vrot.lane.b32.xlu0 %v287, 24
    %v5196 = vpop.permute.xlu0 %5195
    %5197 = vrot.lane.b32.xlu0 %v287, 16
    %v5198 = vpop.permute.xlu0 %5197
    %5199 = vrot.lane.b32.xlu0 %v287, 8
    %v5200 = vpop.permute.xlu0 %5199
    %5202 = vrot.lane.b32.xlu0 %v289, 120
    %v5203 = vpop.permute.xlu0 %5202
    %5205 = vrot.lane.b32.xlu0 %v289, 112
    %v5206 = vpop.permute.xlu0 %5205
    %5208 = vrot.lane.b32.xlu0 %v289, 104
    %v5209 = vpop.permute.xlu0 %5208
    %5211 = vrot.lane.b32.xlu0 %v289, 96
    %v5212 = vpop.permute.xlu0 %5211
    %5214 = vrot.lane.b32.xlu0 %v289, 88
    %v5215 = vpop.permute.xlu0 %5214
    %5217 = vrot.lane.b32.xlu0 %v289, 80
    %v5218 = vpop.permute.xlu0 %5217
    %5220 = vrot.lane.b32.xlu0 %v289, 72
    %v5221 = vpop.permute.xlu0 %5220
    %5223 = vrot.lane.b32.xlu0 %v289, 64
    %v5224 = vpop.permute.xlu0 %5223
    %5226 = vrot.lane.b32.xlu0 %v289, 56
    %v5227 = vpop.permute.xlu0 %5226
    %5229 = vrot.lane.b32.xlu0 %v289, 48
    %v5230 = vpop.permute.xlu0 %5229
    %5232 = vrot.lane.b32.xlu0 %v289, 40
    %v5233 = vpop.permute.xlu0 %5232
    %5235 = vrot.lane.b32.xlu0 %v289, 32
    %v5236 = vpop.permute.xlu0 %5235
    %5238 = vrot.lane.b32.xlu0 %v289, 24
    %v5239 = vpop.permute.xlu0 %5238
    %5241 = vrot.lane.b32.xlu0 %v289, 16
    %v5242 = vpop.permute.xlu0 %5241
    %5244 = vrot.lane.b32.xlu0 %v289, 8
    %v5245 = vpop.permute.xlu0 %5244
    %5248 = vrot.lane.b32.xlu0 %v329, 120
    %v5249 = vpop.permute.xlu0 %5248
    %5251 = vrot.lane.b32.xlu0 %v329, 112
    %v5252 = vpop.permute.xlu0 %5251
    %5254 = vrot.lane.b32.xlu0 %v329, 104
    %v5255 = vpop.permute.xlu0 %5254
    %5257 = vrot.lane.b32.xlu0 %v329, 96
    %v5258 = vpop.permute.xlu0 %5257
    %5260 = vrot.lane.b32.xlu0 %v329, 88
    %v5261 = vpop.permute.xlu0 %5260
    %5263 = vrot.lane.b32.xlu0 %v329, 80
    %v5264 = vpop.permute.xlu0 %5263
    %5266 = vrot.lane.b32.xlu0 %v329, 72
    %v5267 = vpop.permute.xlu0 %5266
    %5269 = vrot.lane.b32.xlu0 %v329, 64
    %v5270 = vpop.permute.xlu0 %5269
    %5272 = vrot.lane.b32.xlu0 %v329, 56
    %v5273 = vpop.permute.xlu0 %5272
    %5275 = vrot.lane.b32.xlu0 %v329, 48
    %v5276 = vpop.permute.xlu0 %5275
    %5278 = vrot.lane.b32.xlu0 %v329, 40
    %v5279 = vpop.permute.xlu0 %5278
    %5281 = vrot.lane.b32.xlu0 %v329, 32
    %v5282 = vpop.permute.xlu0 %5281
    %5284 = vrot.lane.b32.xlu0 %v329, 24
    %v5285 = vpop.permute.xlu0 %5284
    %5287 = vrot.lane.b32.xlu0 %v329, 16
    %v5288 = vpop.permute.xlu0 %5287
    %5290 = vrot.lane.b32.xlu0 %v329, 8
    %v5291 = vpop.permute.xlu0 %5290
    %5293 = vxpose.xlu0.b32.start [1/16] %v289, 128
    %5294 = vxpose.xlu0.b32.cont [2/16] 0.0, 128
    %5295 = vxpose.xlu0.b32.cont [3/16] 0.0, 128
    %5296 = vxpose.xlu0.b32.cont [4/16] 0.0, 128
    %5297 = vxpose.xlu0.b32.cont [5/16] 0.0, 128
    %5298 = vxpose.xlu0.b32.cont [6/16] 0.0, 128
    %5299 = vxpose.xlu0.b32.cont [7/16] 0.0, 128
    %5300 = vxpose.xlu0.b32.cont [8/16] 0.0, 128
    %5301 = vxpose.xlu0.b32.cont [9/16] 0.0, 128
    %5302 = vxpose.xlu0.b32.cont [10/16] 0.0, 128
    %5303 = vxpose.xlu0.b32.cont [11/16] 0.0, 128
    %5304 = vxpose.xlu0.b32.cont [12/16] 0.0, 128
    %5305 = vxpose.xlu0.b32.cont [13/16] 0.0, 128
    %5306 = vxpose.xlu0.b32.cont [14/16] 0.0, 128
    %5307 = vxpose.xlu0.b32.cont [15/16] 0.0, 128
    %5308 = vxpose.xlu0.b32.end [16/16] 0.0, 128
    %v5309 = vpop.trf.xlu0
    %v5310 = vpop.trf.xlu0
    %v5311 = vpop.trf.xlu0
    %v5312 = vpop.trf.xlu0
    %v5313 = vpop.trf.xlu0
    %v5314 = vpop.trf.xlu0
    %v5315 = vpop.trf.xlu0
    %v5316 = vpop.trf.xlu0
    %v5317 = vpop.trf.xlu0
    %v5318 = vpop.trf.xlu0
    %v5319 = vpop.trf.xlu0
    %v5320 = vpop.trf.xlu0
    %v5321 = vpop.trf.xlu0
    %v5322 = vpop.trf.xlu0
    %v5323 = vpop.trf.xlu0
    %v5324 = vpop.trf.xlu0
    %5325 = vxpose.xlu0.b32.start [1/16] %v5203, 128
    %5326 = vxpose.xlu0.b32.cont [2/16] 0.0, 128
    %5327 = vxpose.xlu0.b32.cont [3/16] 0.0, 128
    %5328 = vxpose.xlu0.b32.cont [4/16] 0.0, 128
    %5329 = vxpose.xlu0.b32.cont [5/16] 0.0, 128
    %5330 = vxpose.xlu0.b32.cont [6/16] 0.0, 128
    %5331 = vxpose.xlu0.b32.cont [7/16] 0.0, 128
    %5332 = vxpose.xlu0.b32.cont [8/16] 0.0, 128
    %5333 = vxpose.xlu0.b32.cont [9/16] 0.0, 128
    %5334 = vxpose.xlu0.b32.cont [10/16] 0.0, 128
    %5335 = vxpose.xlu0.b32.cont [11/16] 0.0, 128
    %5336 = vxpose.xlu0.b32.cont [12/16] 0.0, 128
    %5337 = vxpose.xlu0.b32.cont [13/16] 0.0, 128
    %5338 = vxpose.xlu0.b32.cont [14/16] 0.0, 128
    %5339 = vxpose.xlu0.b32.cont [15/16] 0.0, 128
    %5340 = vxpose.xlu0.b32.end [16/16] 0.0, 128
    %v5341 = vpop.trf.xlu0
    %v5342 = vpop.trf.xlu0
    %v5343 = vpop.trf.xlu0
    %v5344 = vpop.trf.xlu0
    %v5345 = vpop.trf.xlu0
    %v5346 = vpop.trf.xlu0
    %v5347 = vpop.trf.xlu0
    %v5348 = vpop.trf.xlu0
    %v5349 = vpop.trf.xlu0
    %v5350 = vpop.trf.xlu0
    %v5351 = vpop.trf.xlu0
    %v5352 = vpop.trf.xlu0
    %v5353 = vpop.trf.xlu0
    %v5354 = vpop.trf.xlu0
    %v5355 = vpop.trf.xlu0
    %v5356 = vpop.trf.xlu0
    %5357 = vxpose.xlu0.b32.start [1/16] %v5206, 128
    %5358 = vxpose.xlu0.b32.cont [2/16] 0.0, 128
    %5359 = vxpose.xlu0.b32.cont [3/16] 0.0, 128
    %5360 = vxpose.xlu0.b32.cont [4/16] 0.0, 128
    %5361 = vxpose.xlu0.b32.cont [5/16] 0.0, 128
    %5362 = vxpose.xlu0.b32.cont [6/16] 0.0, 128
    %5363 = vxpose.xlu0.b32.cont [7/16] 0.0, 128
    %5364 = vxpose.xlu0.b32.cont [8/16] 0.0, 128
    %5365 = vxpose.xlu0.b32.cont [9/16] 0.0, 128
    %5366 = vxpose.xlu0.b32.cont [10/16] 0.0, 128
    %5367 = vxpose.xlu0.b32.cont [11/16] 0.0, 128
    %5368 = vxpose.xlu0.b32.cont [12/16] 0.0, 128
    %5369 = vxpose.xlu0.b32.cont [13/16] 0.0, 128
    %5370 = vxpose.xlu0.b32.cont [14/16] 0.0, 128
    %5371 = vxpose.xlu0.b32.cont [15/16] 0.0, 128
    %5372 = vxpose.xlu0.b32.end [16/16] 0.0, 128
    %v5373 = vpop.trf.xlu0
    %v5374 = vpop.trf.xlu0
    %v5375 = vpop.trf.xlu0
    %v5376 = vpop.trf.xlu0
    %v5377 = vpop.trf.xlu0
    %v5378 = vpop.trf.xlu0
    %v5379 = vpop.trf.xlu0
    %v5380 = vpop.trf.xlu0
    %v5381 = vpop.trf.xlu0
    %v5382 = vpop.trf.xlu0
    %v5383 = vpop.trf.xlu0
    %v5384 = vpop.trf.xlu0
    %v5385 = vpop.trf.xlu0
    %v5386 = vpop.trf.xlu0
    %v5387 = vpop.trf.xlu0
    %v5388 = vpop.trf.xlu0
    %5389 = vxpose.xlu0.b32.start [1/16] %v5209, 128
    %5390 = vxpose.xlu0.b32.cont [2/16] 0.0, 128
    %5391 = vxpose.xlu0.b32.cont [3/16] 0.0, 128
    %5392 = vxpose.xlu0.b32.cont [4/16] 0.0, 128
    %5393 = vxpose.xlu0.b32.cont [5/16] 0.0, 128
    %5394 = vxpose.xlu0.b32.cont [6/16] 0.0, 128
    %5395 = vxpose.xlu0.b32.cont [7/16] 0.0, 128
    %5396 = vxpose.xlu0.b32.cont [8/16] 0.0, 128
    %5397 = vxpose.xlu0.b32.cont [9/16] 0.0, 128
    %5398 = vxpose.xlu0.b32.cont [10/16] 0.0, 128
    %5399 = vxpose.xlu0.b32.cont [11/16] 0.0, 128
    %5400 = vxpose.xlu0.b32.cont [12/16] 0.0, 128
    %5401 = vxpose.xlu0.b32.cont [13/16] 0.0, 128
    %5402 = vxpose.xlu0.b32.cont [14/16] 0.0, 128
    %5403 = vxpose.xlu0.b32.cont [15/16] 0.0, 128
    %5404 = vxpose.xlu0.b32.end [16/16] 0.0, 128
    %v5405 = vpop.trf.xlu0
    %v5406 = vpop.trf.xlu0
    %v5407 = vpop.trf.xlu0
    %v5408 = vpop.trf.xlu0
    %v5409 = vpop.trf.xlu0
    %v5410 = vpop.trf.xlu0
    %v5411 = vpop.trf.xlu0
    %v5412 = vpop.trf.xlu0
    %v5413 = vpop.trf.xlu0
    %v5414 = vpop.trf.xlu0
    %v5415 = vpop.trf.xlu0
    %v5416 = vpop.trf.xlu0
    %v5417 = vpop.trf.xlu0
    %v5418 = vpop.trf.xlu0
    %v5419 = vpop.trf.xlu0
    %v5420 = vpop.trf.xlu0
    %5421 = vxpose.xlu0.b32.start [1/16] %v5212, 128
    %5422 = vxpose.xlu0.b32.cont [2/16] 0.0, 128
    %5423 = vxpose.xlu0.b32.cont [3/16] 0.0, 128
    %5424 = vxpose.xlu0.b32.cont [4/16] 0.0, 128
    %5425 = vxpose.xlu0.b32.cont [5/16] 0.0, 128
    %5426 = vxpose.xlu0.b32.cont [6/16] 0.0, 128
    %5427 = vxpose.xlu0.b32.cont [7/16] 0.0, 128
    %5428 = vxpose.xlu0.b32.cont [8/16] 0.0, 128
    %5429 = vxpose.xlu0.b32.cont [9/16] 0.0, 128
    %5430 = vxpose.xlu0.b32.cont [10/16] 0.0, 128
    %5431 = vxpose.xlu0.b32.cont [11/16] 0.0, 128
    %5432 = vxpose.xlu0.b32.cont [12/16] 0.0, 128
    %5433 = vxpose.xlu0.b32.cont [13/16] 0.0, 128
    %5434 = vxpose.xlu0.b32.cont [14/16] 0.0, 128
    %5435 = vxpose.xlu0.b32.cont [15/16] 0.0, 128
    %5436 = vxpose.xlu0.b32.end [16/16] 0.0, 128
    %v5437 = vpop.trf.xlu0
    %v5438 = vpop.trf.xlu0
    %v5439 = vpop.trf.xlu0
    %v5440 = vpop.trf.xlu0
    %v5441 = vpop.trf.xlu0
    %v5442 = vpop.trf.xlu0
    %v5443 = vpop.trf.xlu0
    %v5444 = vpop.trf.xlu0
    %v5445 = vpop.trf.xlu0
    %v5446 = vpop.trf.xlu0
    %v5447 = vpop.trf.xlu0
    %v5448 = vpop.trf.xlu0
    %v5449 = vpop.trf.xlu0
    %v5450 = vpop.trf.xlu0
    %v5451 = vpop.trf.xlu0
    %v5452 = vpop.trf.xlu0
    %5453 = vxpose.xlu0.b32.start [1/16] %v5215, 128
    %5454 = vxpose.xlu0.b32.cont [2/16] 0.0, 128
    %5455 = vxpose.xlu0.b32.cont [3/16] 0.0, 128
    %5456 = vxpose.xlu0.b32.cont [4/16] 0.0, 128
    %5457 = vxpose.xlu0.b32.cont [5/16] 0.0, 128
    %5458 = vxpose.xlu0.b32.cont [6/16] 0.0, 128
    %5459 = vxpose.xlu0.b32.cont [7/16] 0.0, 128
    %5460 = vxpose.xlu0.b32.cont [8/16] 0.0, 128
    %5461 = vxpose.xlu0.b32.cont [9/16] 0.0, 128
    %5462 = vxpose.xlu0.b32.cont [10/16] 0.0, 128
    %5463 = vxpose.xlu0.b32.cont [11/16] 0.0, 128
    %5464 = vxpose.xlu0.b32.cont [12/16] 0.0, 128
    %5465 = vxpose.xlu0.b32.cont [13/16] 0.0, 128
    %5466 = vxpose.xlu0.b32.cont [14/16] 0.0, 128
    %5467 = vxpose.xlu0.b32.cont [15/16] 0.0, 128
    %5468 = vxpose.xlu0.b32.end [16/16] 0.0, 128
    %v5469 = vpop.trf.xlu0
    %v5470 = vpop.trf.xlu0
    %v5471 = vpop.trf.xlu0
    %v5472 = vpop.trf.xlu0
    %v5473 = vpop.trf.xlu0
    %v5474 = vpop.trf.xlu0
    %v5475 = vpop.trf.xlu0
    %v5476 = vpop.trf.xlu0
    %v5477 = vpop.trf.xlu0
    %v5478 = vpop.trf.xlu0
    %v5479 = vpop.trf.xlu0
    %v5480 = vpop.trf.xlu0
    %v5481 = vpop.trf.xlu0
    %v5482 = vpop.trf.xlu0
    %v5483 = vpop.trf.xlu0
    %v5484 = vpop.trf.xlu0
    %5485 = vxpose.xlu0.b32.start [1/16] %v5218, 128
    %5486 = vxpose.xlu0.b32.cont [2/16] 0.0, 128
    %5487 = vxpose.xlu0.b32.cont [3/16] 0.0, 128
    %5488 = vxpose.xlu0.b32.cont [4/16] 0.0, 128
    %5489 = vxpose.xlu0.b32.cont [5/16] 0.0, 128
    %5490 = vxpose.xlu0.b32.cont [6/16] 0.0, 128
    %5491 = vxpose.xlu0.b32.cont [7/16] 0.0, 128
    %5492 = vxpose.xlu0.b32.cont [8/16] 0.0, 128
    %5493 = vxpose.xlu0.b32.cont [9/16] 0.0, 128
    %5494 = vxpose.xlu0.b32.cont [10/16] 0.0, 128
    %5495 = vxpose.xlu0.b32.cont [11/16] 0.0, 128
    %5496 = vxpose.xlu0.b32.cont [12/16] 0.0, 128
    %5497 = vxpose.xlu0.b32.cont [13/16] 0.0, 128
    %5498 = vxpose.xlu0.b32.cont [14/16] 0.0, 128
    %5499 = vxpose.xlu0.b32.cont [15/16] 0.0, 128
    %5500 = vxpose.xlu0.b32.end [16/16] 0.0, 128
    %v5501 = vpop.trf.xlu0
    %v5502 = vpop.trf.xlu0
    %v5503 = vpop.trf.xlu0
    %v5504 = vpop.trf.xlu0
    %v5505 = vpop.trf.xlu0
    %v5506 = vpop.trf.xlu0
    %v5507 = vpop.trf.xlu0
    %v5508 = vpop.trf.xlu0
    %v5509 = vpop.trf.xlu0
    %v5510 = vpop.trf.xlu0
    %v5511 = vpop.trf.xlu0
    %v5512 = vpop.trf.xlu0
    %v5513 = vpop.trf.xlu0
    %v5514 = vpop.trf.xlu0
    %v5515 = vpop.trf.xlu0
    %v5516 = vpop.trf.xlu0
    %5517 = vxpose.xlu0.b32.start [1/16] %v5221, 128
    %5518 = vxpose.xlu0.b32.cont [2/16] 0.0, 128
    %5519 = vxpose.xlu0.b32.cont [3/16] 0.0, 128
    %5520 = vxpose.xlu0.b32.cont [4/16] 0.0, 128
    %5521 = vxpose.xlu0.b32.cont [5/16] 0.0, 128
    %5522 = vxpose.xlu0.b32.cont [6/16] 0.0, 128
    %5523 = vxpose.xlu0.b32.cont [7/16] 0.0, 128
    %5524 = vxpose.xlu0.b32.cont [8/16] 0.0, 128
    %5525 = vxpose.xlu0.b32.cont [9/16] 0.0, 128
    %5526 = vxpose.xlu0.b32.cont [10/16] 0.0, 128
    %5527 = vxpose.xlu0.b32.cont [11/16] 0.0, 128
    %5528 = vxpose.xlu0.b32.cont [12/16] 0.0, 128
    %5529 = vxpose.xlu0.b32.cont [13/16] 0.0, 128
    %5530 = vxpose.xlu0.b32.cont [14/16] 0.0, 128
    %5531 = vxpose.xlu0.b32.cont [15/16] 0.0, 128
    %5532 = vxpose.xlu0.b32.end [16/16] 0.0, 128
    %v5533 = vpop.trf.xlu0
    %v5534 = vpop.trf.xlu0
    %v5535 = vpop.trf.xlu0
    %v5536 = vpop.trf.xlu0
    %v5537 = vpop.trf.xlu0
    %v5538 = vpop.trf.xlu0
    %v5539 = vpop.trf.xlu0
    %v5540 = vpop.trf.xlu0
    %v5541 = vpop.trf.xlu0
    %v5542 = vpop.trf.xlu0
    %v5543 = vpop.trf.xlu0
    %v5544 = vpop.trf.xlu0
    %v5545 = vpop.trf.xlu0
    %v5546 = vpop.trf.xlu0
    %v5547 = vpop.trf.xlu0
    %v5548 = vpop.trf.xlu0
    %5549 = vxpose.xlu0.b32.start [1/16] %v5224, 128
    %5550 = vxpose.xlu0.b32.cont [2/16] 0.0, 128
    %5551 = vxpose.xlu0.b32.cont [3/16] 0.0, 128
    %5552 = vxpose.xlu0.b32.cont [4/16] 0.0, 128
    %5553 = vxpose.xlu0.b32.cont [5/16] 0.0, 128
    %5554 = vxpose.xlu0.b32.cont [6/16] 0.0, 128
    %5555 = vxpose.xlu0.b32.cont [7/16] 0.0, 128
    %5556 = vxpose.xlu0.b32.cont [8/16] 0.0, 128
    %5557 = vxpose.xlu0.b32.cont [9/16] 0.0, 128
    %5558 = vxpose.xlu0.b32.cont [10/16] 0.0, 128
    %5559 = vxpose.xlu0.b32.cont [11/16] 0.0, 128
    %5560 = vxpose.xlu0.b32.cont [12/16] 0.0, 128
    %5561 = vxpose.xlu0.b32.cont [13/16] 0.0, 128
    %5562 = vxpose.xlu0.b32.cont [14/16] 0.0, 128
    %5563 = vxpose.xlu0.b32.cont [15/16] 0.0, 128
    %5564 = vxpose.xlu0.b32.end [16/16] 0.0, 128
    %v5565 = vpop.trf.xlu0
    %v5566 = vpop.trf.xlu0
    %v5567 = vpop.trf.xlu0
    %v5568 = vpop.trf.xlu0
    %v5569 = vpop.trf.xlu0
    %v5570 = vpop.trf.xlu0
    %v5571 = vpop.trf.xlu0
    %v5572 = vpop.trf.xlu0
    %v5573 = vpop.trf.xlu0
    %v5574 = vpop.trf.xlu0
    %v5575 = vpop.trf.xlu0
    %v5576 = vpop.trf.xlu0
    %v5577 = vpop.trf.xlu0
    %v5578 = vpop.trf.xlu0
    %v5579 = vpop.trf.xlu0
    %v5580 = vpop.trf.xlu0
    %5581 = vxpose.xlu0.b32.start [1/16] %v5227, 128
    %5582 = vxpose.xlu0.b32.cont [2/16] 0.0, 128
    %5583 = vxpose.xlu0.b32.cont [3/16] 0.0, 128
    %5584 = vxpose.xlu0.b32.cont [4/16] 0.0, 128
    %5585 = vxpose.xlu0.b32.cont [5/16] 0.0, 128
    %5586 = vxpose.xlu0.b32.cont [6/16] 0.0, 128
    %5587 = vxpose.xlu0.b32.cont [7/16] 0.0, 128
    %5588 = vxpose.xlu0.b32.cont [8/16] 0.0, 128
    %5589 = vxpose.xlu0.b32.cont [9/16] 0.0, 128
    %5590 = vxpose.xlu0.b32.cont [10/16] 0.0, 128
    %5591 = vxpose.xlu0.b32.cont [11/16] 0.0, 128
    %5592 = vxpose.xlu0.b32.cont [12/16] 0.0, 128
    %5593 = vxpose.xlu0.b32.cont [13/16] 0.0, 128
    %5594 = vxpose.xlu0.b32.cont [14/16] 0.0, 128
    %5595 = vxpose.xlu0.b32.cont [15/16] 0.0, 128
    %5596 = vxpose.xlu0.b32.end [16/16] 0.0, 128
    %v5597 = vpop.trf.xlu0
    %v5598 = vpop.trf.xlu0
    %v5599 = vpop.trf.xlu0
    %v5600 = vpop.trf.xlu0
    %v5601 = vpop.trf.xlu0
    %v5602 = vpop.trf.xlu0
    %v5603 = vpop.trf.xlu0
    %v5604 = vpop.trf.xlu0
    %v5605 = vpop.trf.xlu0
    %v5606 = vpop.trf.xlu0
    %v5607 = vpop.trf.xlu0
    %v5608 = vpop.trf.xlu0
    %v5609 = vpop.trf.xlu0
    %v5610 = vpop.trf.xlu0
    %v5611 = vpop.trf.xlu0
    %v5612 = vpop.trf.xlu0
    %5613 = vxpose.xlu0.b32.start [1/16] %v5230, 128
    %5614 = vxpose.xlu0.b32.cont [2/16] 0.0, 128
    %5615 = vxpose.xlu0.b32.cont [3/16] 0.0, 128
    %5616 = vxpose.xlu0.b32.cont [4/16] 0.0, 128
    %5617 = vxpose.xlu0.b32.cont [5/16] 0.0, 128
    %5618 = vxpose.xlu0.b32.cont [6/16] 0.0, 128
    %5619 = vxpose.xlu0.b32.cont [7/16] 0.0, 128
    %5620 = vxpose.xlu0.b32.cont [8/16] 0.0, 128
    %5621 = vxpose.xlu0.b32.cont [9/16] 0.0, 128
    %5622 = vxpose.xlu0.b32.cont [10/16] 0.0, 128
    %5623 = vxpose.xlu0.b32.cont [11/16] 0.0, 128
    %5624 = vxpose.xlu0.b32.cont [12/16] 0.0, 128
    %5625 = vxpose.xlu0.b32.cont [13/16] 0.0, 128
    %5626 = vxpose.xlu0.b32.cont [14/16] 0.0, 128
    %5627 = vxpose.xlu0.b32.cont [15/16] 0.0, 128
    %5628 = vxpose.xlu0.b32.end [16/16] 0.0, 128
    %v5629 = vpop.trf.xlu0
    %v5630 = vpop.trf.xlu0
    %v5631 = vpop.trf.xlu0
    %v5632 = vpop.trf.xlu0
    %v5633 = vpop.trf.xlu0
    %v5634 = vpop.trf.xlu0
    %v5635 = vpop.trf.xlu0
    %v5636 = vpop.trf.xlu0
    %v5637 = vpop.trf.xlu0
    %v5638 = vpop.trf.xlu0
    %v5639 = vpop.trf.xlu0
    %v5640 = vpop.trf.xlu0
    %v5641 = vpop.trf.xlu0
    %v5642 = vpop.trf.xlu0
    %v5643 = vpop.trf.xlu0
    %v5644 = vpop.trf.xlu0
    %5645 = vxpose.xlu0.b32.start [1/16] %v5233, 128
    %5646 = vxpose.xlu0.b32.cont [2/16] 0.0, 128
    %5647 = vxpose.xlu0.b32.cont [3/16] 0.0, 128
    %5648 = vxpose.xlu0.b32.cont [4/16] 0.0, 128
    %5649 = vxpose.xlu0.b32.cont [5/16] 0.0, 128
    %5650 = vxpose.xlu0.b32.cont [6/16] 0.0, 128
    %5651 = vxpose.xlu0.b32.cont [7/16] 0.0, 128
    %5652 = vxpose.xlu0.b32.cont [8/16] 0.0, 128
    %5653 = vxpose.xlu0.b32.cont [9/16] 0.0, 128
    %5654 = vxpose.xlu0.b32.cont [10/16] 0.0, 128
    %5655 = vxpose.xlu0.b32.cont [11/16] 0.0, 128
    %5656 = vxpose.xlu0.b32.cont [12/16] 0.0, 128
    %5657 = vxpose.xlu0.b32.cont [13/16] 0.0, 128
    %5658 = vxpose.xlu0.b32.cont [14/16] 0.0, 128
    %5659 = vxpose.xlu0.b32.cont [15/16] 0.0, 128
    %5660 = vxpose.xlu0.b32.end [16/16] 0.0, 128
    %v5661 = vpop.trf.xlu0
    %v5662 = vpop.trf.xlu0
    %v5663 = vpop.trf.xlu0
    %v5664 = vpop.trf.xlu0
    %v5665 = vpop.trf.xlu0
    %v5666 = vpop.trf.xlu0
    %v5667 = vpop.trf.xlu0
    %v5668 = vpop.trf.xlu0
    %v5669 = vpop.trf.xlu0
    %v5670 = vpop.trf.xlu0
    %v5671 = vpop.trf.xlu0
    %v5672 = vpop.trf.xlu0
    %v5673 = vpop.trf.xlu0
    %v5674 = vpop.trf.xlu0
    %v5675 = vpop.trf.xlu0
    %v5676 = vpop.trf.xlu0
    %5677 = vxpose.xlu0.b32.start [1/16] %v5236, 128
    %5678 = vxpose.xlu0.b32.cont [2/16] 0.0, 128
    %5679 = vxpose.xlu0.b32.cont [3/16] 0.0, 128
    %5680 = vxpose.xlu0.b32.cont [4/16] 0.0, 128
    %5681 = vxpose.xlu0.b32.cont [5/16] 0.0, 128
    %5682 = vxpose.xlu0.b32.cont [6/16] 0.0, 128
    %5683 = vxpose.xlu0.b32.cont [7/16] 0.0, 128
    %5684 = vxpose.xlu0.b32.cont [8/16] 0.0, 128
    %5685 = vxpose.xlu0.b32.cont [9/16] 0.0, 128
    %5686 = vxpose.xlu0.b32.cont [10/16] 0.0, 128
    %5687 = vxpose.xlu0.b32.cont [11/16] 0.0, 128
    %5688 = vxpose.xlu0.b32.cont [12/16] 0.0, 128
    %5689 = vxpose.xlu0.b32.cont [13/16] 0.0, 128
    %5690 = vxpose.xlu0.b32.cont [14/16] 0.0, 128
    %5691 = vxpose.xlu0.b32.cont [15/16] 0.0, 128
    %5692 = vxpose.xlu0.b32.end [16/16] 0.0, 128
    %v5693 = vpop.trf.xlu0
    %v5694 = vpop.trf.xlu0
    %v5695 = vpop.trf.xlu0
    %v5696 = vpop.trf.xlu0
    %v5697 = vpop.trf.xlu0
    %v5698 = vpop.trf.xlu0
    %v5699 = vpop.trf.xlu0
    %v5700 = vpop.trf.xlu0
    %v5701 = vpop.trf.xlu0
    %v5702 = vpop.trf.xlu0
    %v5703 = vpop.trf.xlu0
    %v5704 = vpop.trf.xlu0
    %v5705 = vpop.trf.xlu0
    %v5706 = vpop.trf.xlu0
    %v5707 = vpop.trf.xlu0
    %v5708 = vpop.trf.xlu0
    %5709 = vxpose.xlu0.b32.start [1/16] %v5239, 128
    %5710 = vxpose.xlu0.b32.cont [2/16] 0.0, 128
    %5711 = vxpose.xlu0.b32.cont [3/16] 0.0, 128
    %5712 = vxpose.xlu0.b32.cont [4/16] 0.0, 128
    %5713 = vxpose.xlu0.b32.cont [5/16] 0.0, 128
    %5714 = vxpose.xlu0.b32.cont [6/16] 0.0, 128
    %5715 = vxpose.xlu0.b32.cont [7/16] 0.0, 128
    %5716 = vxpose.xlu0.b32.cont [8/16] 0.0, 128
    %5717 = vxpose.xlu0.b32.cont [9/16] 0.0, 128
    %5718 = vxpose.xlu0.b32.cont [10/16] 0.0, 128
    %5719 = vxpose.xlu0.b32.cont [11/16] 0.0, 128
    %5720 = vxpose.xlu0.b32.cont [12/16] 0.0, 128
    %5721 = vxpose.xlu0.b32.cont [13/16] 0.0, 128
    %5722 = vxpose.xlu0.b32.cont [14/16] 0.0, 128
    %5723 = vxpose.xlu0.b32.cont [15/16] 0.0, 128
    %5724 = vxpose.xlu0.b32.end [16/16] 0.0, 128
    %v5725 = vpop.trf.xlu0
    %v5726 = vpop.trf.xlu0
    %v5727 = vpop.trf.xlu0
    %v5728 = vpop.trf.xlu0
    %v5729 = vpop.trf.xlu0
    %v5730 = vpop.trf.xlu0
    %v5731 = vpop.trf.xlu0
    %v5732 = vpop.trf.xlu0
    %v5733 = vpop.trf.xlu0
    %v5734 = vpop.trf.xlu0
    %v5735 = vpop.trf.xlu0
    %v5736 = vpop.trf.xlu0
    %v5737 = vpop.trf.xlu0
    %v5738 = vpop.trf.xlu0
    %v5739 = vpop.trf.xlu0
    %v5740 = vpop.trf.xlu0
    %5741 = vxpose.xlu0.b32.start [1/16] %v5242, 128
    %5742 = vxpose.xlu0.b32.cont [2/16] 0.0, 128
    %5743 = vxpose.xlu0.b32.cont [3/16] 0.0, 128
    %5744 = vxpose.xlu0.b32.cont [4/16] 0.0, 128
    %5745 = vxpose.xlu0.b32.cont [5/16] 0.0, 128
    %5746 = vxpose.xlu0.b32.cont [6/16] 0.0, 128
    %5747 = vxpose.xlu0.b32.cont [7/16] 0.0, 128
    %5748 = vxpose.xlu0.b32.cont [8/16] 0.0, 128
    %5749 = vxpose.xlu0.b32.cont [9/16] 0.0, 128
    %5750 = vxpose.xlu0.b32.cont [10/16] 0.0, 128
    %5751 = vxpose.xlu0.b32.cont [11/16] 0.0, 128
    %5752 = vxpose.xlu0.b32.cont [12/16] 0.0, 128
    %5753 = vxpose.xlu0.b32.cont [13/16] 0.0, 128
    %5754 = vxpose.xlu0.b32.cont [14/16] 0.0, 128
    %5755 = vxpose.xlu0.b32.cont [15/16] 0.0, 128
    %5756 = vxpose.xlu0.b32.end [16/16] 0.0, 128
    %v5757 = vpop.trf.xlu0
    %v5758 = vpop.trf.xlu0
    %v5759 = vpop.trf.xlu0
    %v5760 = vpop.trf.xlu0
    %v5761 = vpop.trf.xlu0
    %v5762 = vpop.trf.xlu0
    %v5763 = vpop.trf.xlu0
    %v5764 = vpop.trf.xlu0
    %v5765 = vpop.trf.xlu0
    %v5766 = vpop.trf.xlu0
    %v5767 = vpop.trf.xlu0
    %v5768 = vpop.trf.xlu0
    %v5769 = vpop.trf.xlu0
    %v5770 = vpop.trf.xlu0
    %v5771 = vpop.trf.xlu0
    %v5772 = vpop.trf.xlu0
    %5773 = vxpose.xlu0.b32.start [1/16] %v5245, 128
    %5774 = vxpose.xlu0.b32.cont [2/16] 0.0, 128
    %5775 = vxpose.xlu0.b32.cont [3/16] 0.0, 128
    %5776 = vxpose.xlu0.b32.cont [4/16] 0.0, 128
    %5777 = vxpose.xlu0.b32.cont [5/16] 0.0, 128
    %5778 = vxpose.xlu0.b32.cont [6/16] 0.0, 128
    %5779 = vxpose.xlu0.b32.cont [7/16] 0.0, 128
    %5780 = vxpose.xlu0.b32.cont [8/16] 0.0, 128
    %5781 = vxpose.xlu0.b32.cont [9/16] 0.0, 128
    %5782 = vxpose.xlu0.b32.cont [10/16] 0.0, 128
    %5783 = vxpose.xlu0.b32.cont [11/16] 0.0, 128
    %5784 = vxpose.xlu0.b32.cont [12/16] 0.0, 128
    %5785 = vxpose.xlu0.b32.cont [13/16] 0.0, 128
    %5786 = vxpose.xlu0.b32.cont [14/16] 0.0, 128
    %5787 = vxpose.xlu0.b32.cont [15/16] 0.0, 128
    %5788 = vxpose.xlu0.b32.end [16/16] 0.0, 128
    %v5789 = vpop.trf.xlu0
    %v5790 = vpop.trf.xlu0
    %v5791 = vpop.trf.xlu0
    %v5792 = vpop.trf.xlu0
    %v5793 = vpop.trf.xlu0
    %v5794 = vpop.trf.xlu0
    %v5795 = vpop.trf.xlu0
    %v5796 = vpop.trf.xlu0
    %v5797 = vpop.trf.xlu0
    %v5798 = vpop.trf.xlu0
    %v5799 = vpop.trf.xlu0
    %v5800 = vpop.trf.xlu0
    %v5801 = vpop.trf.xlu0
    %v5802 = vpop.trf.xlu0
    %v5803 = vpop.trf.xlu0
    %v5804 = vpop.trf.xlu0
    %v5805 = vsel %vm967, %v287, 0
    %5807 = vmatprep.subr.mxu0 0.0
    %5808 = vmatpush1.msra.mxu0 0.0
    %5809 = vmatprep.subr.mxu0 0.0
    %5810 = vmatpush1.msra.mxu0 0.0
    %5811 = vmatprep.subr.mxu0 0.0
    %5812 = vmatpush1.msra.mxu0 0.0
    %5813 = vmatprep.subr.mxu0 0.0
    %5814 = vmatpush1.msra.mxu0 0.0
    %5815 = vmatprep.subr.mxu0 0.0
    %5816 = vmatpush1.msra.mxu0 0.0
    %5817 = vmatprep.subr.mxu0 0.0
    %5818 = vmatpush1.msra.mxu0 0.0
    %5819 = vmatprep.subr.mxu0 0.0
    %5820 = vmatpush1.msra.mxu0 0.0
    %5821 = vmatprep.subr.mxu0 0.0
    %5822 = vmatpush1.msra.mxu0 0.0
    %5823 = vmatprep.subr.mxu0 0.0
    %5824 = vmatpush1.msra.mxu0 0.0
    %5825 = vmatprep.subr.mxu0 0.0
    %5826 = vmatpush1.msra.mxu0 0.0
    %5827 = vmatprep.subr.mxu0 0.0
    %5828 = vmatpush1.msra.mxu0 0.0
    %5829 = vmatprep.subr.mxu0 0.0
    %5830 = vmatpush1.msra.mxu0 0.0
    %5831 = vmatprep.subr.mxu0 0.0
    %5832 = vmatpush1.msra.mxu0 0.0
    %5833 = vmatprep.subr.mxu0 0.0
    %5834 = vmatpush1.msra.mxu0 0.0
    %5835 = vmatprep.subr.mxu0 0.0
    %5836 = vmatpush1.msra.mxu0 0.0
    %5837 = vmatprep.subr.mxu0 0.0
    %5838 = vmatpush1.msra.mxu0 %v5309
    %5839 = vmatprep.subr.mxu0 0.0
    %5840 = vmatpush2.msra.mxu0 0.0
    %5841 = vmatprep.subr.mxu0 0.0
    %5842 = vmatpush2.msra.mxu0 0.0
    %5843 = vmatprep.subr.mxu0 0.0
    %5844 = vmatpush2.msra.mxu0 0.0
    %5845 = vmatprep.subr.mxu0 0.0
    %5846 = vmatpush2.msra.mxu0 0.0
    %5847 = vmatprep.subr.mxu0 0.0
    %5848 = vmatpush2.msra.mxu0 0.0
    %5849 = vmatprep.subr.mxu0 0.0
    %5850 = vmatpush2.msra.mxu0 0.0
    %5851 = vmatprep.subr.mxu0 0.0
    %5852 = vmatpush2.msra.mxu0 0.0
    %5853 = vmatprep.subr.mxu0 0.0
    %5854 = vmatpush2.msra.mxu0 0.0
    %5855 = vmatprep.subr.mxu0 0.0
    %5856 = vmatpush2.msra.mxu0 0.0
    %5857 = vmatprep.subr.mxu0 0.0
    %5858 = vmatpush2.msra.mxu0 0.0
    %5859 = vmatprep.subr.mxu0 0.0
    %5860 = vmatpush2.msra.mxu0 0.0
    %5861 = vmatprep.subr.mxu0 0.0
    %5862 = vmatpush2.msra.mxu0 0.0
    %5863 = vmatprep.subr.mxu0 0.0
    %5864 = vmatpush2.msra.mxu0 0.0
    %5865 = vmatprep.subr.mxu0 0.0
    %5866 = vmatpush2.msra.mxu0 0.0
    %5867 = vmatprep.subr.mxu0 0.0
    %5868 = vmatpush2.msra.mxu0 0.0
    %5869 = vmatprep.subr.mxu0 0.0
    %5870 = vmatpush2.msra.mxu0 0.0
    %5871 = vmatprep.mubr.f32.mxu0 0.0
    %5872 = vmatmul.mubr.f32.gmra.mxu0 %v5805
    %v5873 = vpop.f32.mrf.mxu0
    %v5874 = vadd.f32 0.0, %v5873
    %v5875 = vpop.f32.mrf.mxu0
    %5876 = vdwg.mxu0
    %v5877 = vsel %vm967, %v5172, 0
    %5879 = vmatprep.subr.mxu0 0.0
    %5880 = vmatpush1.msra.mxu0 0.0
    %5881 = vmatprep.subr.mxu0 0.0
    %5882 = vmatpush1.msra.mxu0 0.0
    %5883 = vmatprep.subr.mxu0 0.0
    %5884 = vmatpush1.msra.mxu0 0.0
    %5885 = vmatprep.subr.mxu0 0.0
    %5886 = vmatpush1.msra.mxu0 0.0
    %5887 = vmatprep.subr.mxu0 0.0
    %5888 = vmatpush1.msra.mxu0 0.0
    %5889 = vmatprep.subr.mxu0 0.0
    %5890 = vmatpush1.msra.mxu0 0.0
    %5891 = vmatprep.subr.mxu0 0.0
    %5892 = vmatpush1.msra.mxu0 0.0
    %5893 = vmatprep.subr.mxu0 0.0
    %5894 = vmatpush1.msra.mxu0 0.0
    %5895 = vmatprep.subr.mxu0 0.0
    %5896 = vmatpush1.msra.mxu0 0.0
    %5897 = vmatprep.subr.mxu0 0.0
    %5898 = vmatpush1.msra.mxu0 0.0
    %5899 = vmatprep.subr.mxu0 0.0
    %5900 = vmatpush1.msra.mxu0 0.0
    %5901 = vmatprep.subr.mxu0 0.0
    %5902 = vmatpush1.msra.mxu0 0.0
    %5903 = vmatprep.subr.mxu0 0.0
    %5904 = vmatpush1.msra.mxu0 0.0
    %5905 = vmatprep.subr.mxu0 0.0
    %5906 = vmatpush1.msra.mxu0 0.0
    %5907 = vmatprep.subr.mxu0 0.0
    %5908 = vmatpush1.msra.mxu0 0.0
    %5909 = vmatprep.subr.mxu0 0.0
    %5910 = vmatpush1.msra.mxu0 %v5341
    %5911 = vmatprep.subr.mxu0 0.0
    %5912 = vmatpush2.msra.mxu0 0.0
    %5913 = vmatprep.subr.mxu0 0.0
    %5914 = vmatpush2.msra.mxu0 0.0
    %5915 = vmatprep.subr.mxu0 0.0
    %5916 = vmatpush2.msra.mxu0 0.0
    %5917 = vmatprep.subr.mxu0 0.0
    %5918 = vmatpush2.msra.mxu0 0.0
    %5919 = vmatprep.subr.mxu0 0.0
    %5920 = vmatpush2.msra.mxu0 0.0
    %5921 = vmatprep.subr.mxu0 0.0
    %5922 = vmatpush2.msra.mxu0 0.0
    %5923 = vmatprep.subr.mxu0 0.0
    %5924 = vmatpush2.msra.mxu0 0.0
    %5925 = vmatprep.subr.mxu0 0.0
    %5926 = vmatpush2.msra.mxu0 0.0
    %5927 = vmatprep.subr.mxu0 0.0
    %5928 = vmatpush2.msra.mxu0 0.0
    %5929 = vmatprep.subr.mxu0 0.0
    %5930 = vmatpush2.msra.mxu0 0.0
    %5931 = vmatprep.subr.mxu0 0.0
    %5932 = vmatpush2.msra.mxu0 0.0
    %5933 = vmatprep.subr.mxu0 0.0
    %5934 = vmatpush2.msra.mxu0 0.0
    %5935 = vmatprep.subr.mxu0 0.0
    %5936 = vmatpush2.msra.mxu0 0.0
    %5937 = vmatprep.subr.mxu0 0.0
    %5938 = vmatpush2.msra.mxu0 0.0
    %5939 = vmatprep.subr.mxu0 0.0
    %5940 = vmatpush2.msra.mxu0 0.0
    %5941 = vmatprep.subr.mxu0 0.0
    %5942 = vmatpush2.msra.mxu0 0.0
    %5943 = vmatprep.mubr.f32.mxu0 0.0
    %5944 = vmatmul.mubr.f32.gmra.mxu0 %v5877
    %v5945 = vpop.f32.mrf.mxu0
    %v5946 = vadd.f32 0.0, %v5945
    %v5947 = vpop.f32.mrf.mxu0
    %5948 = vdwg.mxu0
    %v5949 = vsel %vm967, %v5174, 0
    %5951 = vmatprep.subr.mxu0 0.0
    %5952 = vmatpush1.msra.mxu0 0.0
    %5953 = vmatprep.subr.mxu0 0.0
    %5954 = vmatpush1.msra.mxu0 0.0
    %5955 = vmatprep.subr.mxu0 0.0
    %5956 = vmatpush1.msra.mxu0 0.0
    %5957 = vmatprep.subr.mxu0 0.0
    %5958 = vmatpush1.msra.mxu0 0.0
    %5959 = vmatprep.subr.mxu0 0.0
    %5960 = vmatpush1.msra.mxu0 0.0
    %5961 = vmatprep.subr.mxu0 0.0
    %5962 = vmatpush1.msra.mxu0 0.0
    %5963 = vmatprep.subr.mxu0 0.0
    %5964 = vmatpush1.msra.mxu0 0.0
    %5965 = vmatprep.subr.mxu0 0.0
    %5966 = vmatpush1.msra.mxu0 0.0
    %5967 = vmatprep.subr.mxu0 0.0
    %5968 = vmatpush1.msra.mxu0 0.0
    %5969 = vmatprep.subr.mxu0 0.0
    %5970 = vmatpush1.msra.mxu0 0.0
    %5971 = vmatprep.subr.mxu0 0.0
    %5972 = vmatpush1.msra.mxu0 0.0
    %5973 = vmatprep.subr.mxu0 0.0
    %5974 = vmatpush1.msra.mxu0 0.0
    %5975 = vmatprep.subr.mxu0 0.0
    %5976 = vmatpush1.msra.mxu0 0.0
    %5977 = vmatprep.subr.mxu0 0.0
    %5978 = vmatpush1.msra.mxu0 0.0
    %5979 = vmatprep.subr.mxu0 0.0
    %5980 = vmatpush1.msra.mxu0 0.0
    %5981 = vmatprep.subr.mxu0 0.0
    %5982 = vmatpush1.msra.mxu0 %v5373
    %5983 = vmatprep.subr.mxu0 0.0
    %5984 = vmatpush2.msra.mxu0 0.0
    %5985 = vmatprep.subr.mxu0 0.0
    %5986 = vmatpush2.msra.mxu0 0.0
    %5987 = vmatprep.subr.mxu0 0.0
    %5988 = vmatpush2.msra.mxu0 0.0
    %5989 = vmatprep.subr.mxu0 0.0
    %5990 = vmatpush2.msra.mxu0 0.0
    %5991 = vmatprep.subr.mxu0 0.0
    %5992 = vmatpush2.msra.mxu0 0.0
    %5993 = vmatprep.subr.mxu0 0.0
    %5994 = vmatpush2.msra.mxu0 0.0
    %5995 = vmatprep.subr.mxu0 0.0
    %5996 = vmatpush2.msra.mxu0 0.0
    %5997 = vmatprep.subr.mxu0 0.0
    %5998 = vmatpush2.msra.mxu0 0.0
    %5999 = vmatprep.subr.mxu0 0.0
    %6000 = vmatpush2.msra.mxu0 0.0
    %6001 = vmatprep.subr.mxu0 0.0
    %6002 = vmatpush2.msra.mxu0 0.0
    %6003 = vmatprep.subr.mxu0 0.0
    %6004 = vmatpush2.msra.mxu0 0.0
    %6005 = vmatprep.subr.mxu0 0.0
    %6006 = vmatpush2.msra.mxu0 0.0
    %6007 = vmatprep.subr.mxu0 0.0
    %6008 = vmatpush2.msra.mxu0 0.0
    %6009 = vmatprep.subr.mxu0 0.0
    %6010 = vmatpush2.msra.mxu0 0.0
    %6011 = vmatprep.subr.mxu0 0.0
    %6012 = vmatpush2.msra.mxu0 0.0
    %6013 = vmatprep.subr.mxu0 0.0
    %6014 = vmatpush2.msra.mxu0 0.0
    %6015 = vmatprep.mubr.f32.mxu0 0.0
    %6016 = vmatmul.mubr.f32.gmra.mxu0 %v5949
    %v6017 = vpop.f32.mrf.mxu0
    %v6018 = vadd.f32 0.0, %v6017
    %v6019 = vpop.f32.mrf.mxu0
    %6020 = vdwg.mxu0
    %v6021 = vsel %vm967, %v5176, 0
    %6023 = vmatprep.subr.mxu0 0.0
    %6024 = vmatpush1.msra.mxu0 0.0
    %6025 = vmatprep.subr.mxu0 0.0
    %6026 = vmatpush1.msra.mxu0 0.0
    %6027 = vmatprep.subr.mxu0 0.0
    %6028 = vmatpush1.msra.mxu0 0.0
    %6029 = vmatprep.subr.mxu0 0.0
    %6030 = vmatpush1.msra.mxu0 0.0
    %6031 = vmatprep.subr.mxu0 0.0
    %6032 = vmatpush1.msra.mxu0 0.0
    %6033 = vmatprep.subr.mxu0 0.0
    %6034 = vmatpush1.msra.mxu0 0.0
    %6035 = vmatprep.subr.mxu0 0.0
    %6036 = vmatpush1.msra.mxu0 0.0
    %6037 = vmatprep.subr.mxu0 0.0
    %6038 = vmatpush1.msra.mxu0 0.0
    %6039 = vmatprep.subr.mxu0 0.0
    %6040 = vmatpush1.msra.mxu0 0.0
    %6041 = vmatprep.subr.mxu0 0.0
    %6042 = vmatpush1.msra.mxu0 0.0
    %6043 = vmatprep.subr.mxu0 0.0
    %6044 = vmatpush1.msra.mxu0 0.0
    %6045 = vmatprep.subr.mxu0 0.0
    %6046 = vmatpush1.msra.mxu0 0.0
    %6047 = vmatprep.subr.mxu0 0.0
    %6048 = vmatpush1.msra.mxu0 0.0
    %6049 = vmatprep.subr.mxu0 0.0
    %6050 = vmatpush1.msra.mxu0 0.0
    %6051 = vmatprep.subr.mxu0 0.0
    %6052 = vmatpush1.msra.mxu0 0.0
    %6053 = vmatprep.subr.mxu0 0.0
    %6054 = vmatpush1.msra.mxu0 %v5405
    %6055 = vmatprep.subr.mxu0 0.0
    %6056 = vmatpush2.msra.mxu0 0.0
    %6057 = vmatprep.subr.mxu0 0.0
    %6058 = vmatpush2.msra.mxu0 0.0
    %6059 = vmatprep.subr.mxu0 0.0
    %6060 = vmatpush2.msra.mxu0 0.0
    %6061 = vmatprep.subr.mxu0 0.0
    %6062 = vmatpush2.msra.mxu0 0.0
    %6063 = vmatprep.subr.mxu0 0.0
    %6064 = vmatpush2.msra.mxu0 0.0
    %6065 = vmatprep.subr.mxu0 0.0
    %6066 = vmatpush2.msra.mxu0 0.0
    %6067 = vmatprep.subr.mxu0 0.0
    %6068 = vmatpush2.msra.mxu0 0.0
    %6069 = vmatprep.subr.mxu0 0.0
    %6070 = vmatpush2.msra.mxu0 0.0
    %6071 = vmatprep.subr.mxu0 0.0
    %6072 = vmatpush2.msra.mxu0 0.0
    %6073 = vmatprep.subr.mxu0 0.0
    %6074 = vmatpush2.msra.mxu0 0.0
    %6075 = vmatprep.subr.mxu0 0.0
    %6076 = vmatpush2.msra.mxu0 0.0
    %6077 = vmatprep.subr.mxu0 0.0
    %6078 = vmatpush2.msra.mxu0 0.0
    %6079 = vmatprep.subr.mxu0 0.0
    %6080 = vmatpush2.msra.mxu0 0.0
    %6081 = vmatprep.subr.mxu0 0.0
    %6082 = vmatpush2.msra.mxu0 0.0
    %6083 = vmatprep.subr.mxu0 0.0
    %6084 = vmatpush2.msra.mxu0 0.0
    %6085 = vmatprep.subr.mxu0 0.0
    %6086 = vmatpush2.msra.mxu0 0.0
    %6087 = vmatprep.mubr.f32.mxu0 0.0
    %6088 = vmatmul.mubr.f32.gmra.mxu0 %v6021
    %v6089 = vpop.f32.mrf.mxu0
    %v6090 = vadd.f32 0.0, %v6089
    %v6091 = vpop.f32.mrf.mxu0
    %6092 = vdwg.mxu0
    %v6093 = vsel %vm967, %v5178, 0
    %6095 = vmatprep.subr.mxu0 0.0
    %6096 = vmatpush1.msra.mxu0 0.0
    %6097 = vmatprep.subr.mxu0 0.0
    %6098 = vmatpush1.msra.mxu0 0.0
    %6099 = vmatprep.subr.mxu0 0.0
    %6100 = vmatpush1.msra.mxu0 0.0
    %6101 = vmatprep.subr.mxu0 0.0
    %6102 = vmatpush1.msra.mxu0 0.0
    %6103 = vmatprep.subr.mxu0 0.0
    %6104 = vmatpush1.msra.mxu0 0.0
    %6105 = vmatprep.subr.mxu0 0.0
    %6106 = vmatpush1.msra.mxu0 0.0
    %6107 = vmatprep.subr.mxu0 0.0
    %6108 = vmatpush1.msra.mxu0 0.0
    %6109 = vmatprep.subr.mxu0 0.0
    %6110 = vmatpush1.msra.mxu0 0.0
    %6111 = vmatprep.subr.mxu0 0.0
    %6112 = vmatpush1.msra.mxu0 0.0
    %6113 = vmatprep.subr.mxu0 0.0
    %6114 = vmatpush1.msra.mxu0 0.0
    %6115 = vmatprep.subr.mxu0 0.0
    %6116 = vmatpush1.msra.mxu0 0.0
    %6117 = vmatprep.subr.mxu0 0.0
    %6118 = vmatpush1.msra.mxu0 0.0
    %6119 = vmatprep.subr.mxu0 0.0
    %6120 = vmatpush1.msra.mxu0 0.0
    %6121 = vmatprep.subr.mxu0 0.0
    %6122 = vmatpush1.msra.mxu0 0.0
    %6123 = vmatprep.subr.mxu0 0.0
    %6124 = vmatpush1.msra.mxu0 0.0
    %6125 = vmatprep.subr.mxu0 0.0
    %6126 = vmatpush1.msra.mxu0 %v5437
    %6127 = vmatprep.subr.mxu0 0.0
    %6128 = vmatpush2.msra.mxu0 0.0
    %6129 = vmatprep.subr.mxu0 0.0
    %6130 = vmatpush2.msra.mxu0 0.0
    %6131 = vmatprep.subr.mxu0 0.0
    %6132 = vmatpush2.msra.mxu0 0.0
    %6133 = vmatprep.subr.mxu0 0.0
    %6134 = vmatpush2.msra.mxu0 0.0
    %6135 = vmatprep.subr.mxu0 0.0
    %6136 = vmatpush2.msra.mxu0 0.0
    %6137 = vmatprep.subr.mxu0 0.0
    %6138 = vmatpush2.msra.mxu0 0.0
    %6139 = vmatprep.subr.mxu0 0.0
    %6140 = vmatpush2.msra.mxu0 0.0
    %6141 = vmatprep.subr.mxu0 0.0
    %6142 = vmatpush2.msra.mxu0 0.0
    %6143 = vmatprep.subr.mxu0 0.0
    %6144 = vmatpush2.msra.mxu0 0.0
    %6145 = vmatprep.subr.mxu0 0.0
    %6146 = vmatpush2.msra.mxu0 0.0
    %6147 = vmatprep.subr.mxu0 0.0
    %6148 = vmatpush2.msra.mxu0 0.0
    %6149 = vmatprep.subr.mxu0 0.0
    %6150 = vmatpush2.msra.mxu0 0.0
    %6151 = vmatprep.subr.mxu0 0.0
    %6152 = vmatpush2.msra.mxu0 0.0
    %6153 = vmatprep.subr.mxu0 0.0
    %6154 = vmatpush2.msra.mxu0 0.0
    %6155 = vmatprep.subr.mxu0 0.0
    %6156 = vmatpush2.msra.mxu0 0.0
    %6157 = vmatprep.subr.mxu0 0.0
    %6158 = vmatpush2.msra.mxu0 0.0
    %6159 = vmatprep.mubr.f32.mxu0 0.0
    %6160 = vmatmul.mubr.f32.gmra.mxu0 %v6093
    %v6161 = vpop.f32.mrf.mxu0
    %v6162 = vadd.f32 0.0, %v6161
    %v6163 = vpop.f32.mrf.mxu0
    %6164 = vdwg.mxu0
    %v6165 = vsel %vm967, %v5180, 0
    %6167 = vmatprep.subr.mxu0 0.0
    %6168 = vmatpush1.msra.mxu0 0.0
    %6169 = vmatprep.subr.mxu0 0.0
    %6170 = vmatpush1.msra.mxu0 0.0
    %6171 = vmatprep.subr.mxu0 0.0
    %6172 = vmatpush1.msra.mxu0 0.0
    %6173 = vmatprep.subr.mxu0 0.0
    %6174 = vmatpush1.msra.mxu0 0.0
    %6175 = vmatprep.subr.mxu0 0.0
    %6176 = vmatpush1.msra.mxu0 0.0
    %6177 = vmatprep.subr.mxu0 0.0
    %6178 = vmatpush1.msra.mxu0 0.0
    %6179 = vmatprep.subr.mxu0 0.0
    %6180 = vmatpush1.msra.mxu0 0.0
    %6181 = vmatprep.subr.mxu0 0.0
    %6182 = vmatpush1.msra.mxu0 0.0
    %6183 = vmatprep.subr.mxu0 0.0
    %6184 = vmatpush1.msra.mxu0 0.0
    %6185 = vmatprep.subr.mxu0 0.0
    %6186 = vmatpush1.msra.mxu0 0.0
    %6187 = vmatprep.subr.mxu0 0.0
    %6188 = vmatpush1.msra.mxu0 0.0
    %6189 = vmatprep.subr.mxu0 0.0
    %6190 = vmatpush1.msra.mxu0 0.0
    %6191 = vmatprep.subr.mxu0 0.0
    %6192 = vmatpush1.msra.mxu0 0.0
    %6193 = vmatprep.subr.mxu0 0.0
    %6194 = vmatpush1.msra.mxu0 0.0
    %6195 = vmatprep.subr.mxu0 0.0
    %6196 = vmatpush1.msra.mxu0 0.0
    %6197 = vmatprep.subr.mxu0 0.0
    %6198 = vmatpush1.msra.mxu0 %v5469
    %6199 = vmatprep.subr.mxu0 0.0
    %6200 = vmatpush2.msra.mxu0 0.0
    %6201 = vmatprep.subr.mxu0 0.0
    %6202 = vmatpush2.msra.mxu0 0.0
    %6203 = vmatprep.subr.mxu0 0.0
    %6204 = vmatpush2.msra.mxu0 0.0
    %6205 = vmatprep.subr.mxu0 0.0
    %6206 = vmatpush2.msra.mxu0 0.0
    %6207 = vmatprep.subr.mxu0 0.0
    %6208 = vmatpush2.msra.mxu0 0.0
    %6209 = vmatprep.subr.mxu0 0.0
    %6210 = vmatpush2.msra.mxu0 0.0
    %6211 = vmatprep.subr.mxu0 0.0
    %6212 = vmatpush2.msra.mxu0 0.0
    %6213 = vmatprep.subr.mxu0 0.0
    %6214 = vmatpush2.msra.mxu0 0.0
    %6215 = vmatprep.subr.mxu0 0.0
    %6216 = vmatpush2.msra.mxu0 0.0
    %6217 = vmatprep.subr.mxu0 0.0
    %6218 = vmatpush2.msra.mxu0 0.0
    %6219 = vmatprep.subr.mxu0 0.0
    %6220 = vmatpush2.msra.mxu0 0.0
    %6221 = vmatprep.subr.mxu0 0.0
    %6222 = vmatpush2.msra.mxu0 0.0
    %6223 = vmatprep.subr.mxu0 0.0
    %6224 = vmatpush2.msra.mxu0 0.0
    %6225 = vmatprep.subr.mxu0 0.0
    %6226 = vmatpush2.msra.mxu0 0.0
    %6227 = vmatprep.subr.mxu0 0.0
    %6228 = vmatpush2.msra.mxu0 0.0
    %6229 = vmatprep.subr.mxu0 0.0
    %6230 = vmatpush2.msra.mxu0 0.0
    %6231 = vmatprep.mubr.f32.mxu0 0.0
    %6232 = vmatmul.mubr.f32.gmra.mxu0 %v6165
    %v6233 = vpop.f32.mrf.mxu0
    %v6234 = vadd.f32 0.0, %v6233
    %v6235 = vpop.f32.mrf.mxu0
    %6236 = vdwg.mxu0
    %v6237 = vsel %vm967, %v5182, 0
    %6239 = vmatprep.subr.mxu0 0.0
    %6240 = vmatpush1.msra.mxu0 0.0
    %6241 = vmatprep.subr.mxu0 0.0
    %6242 = vmatpush1.msra.mxu0 0.0
    %6243 = vmatprep.subr.mxu0 0.0
    %6244 = vmatpush1.msra.mxu0 0.0
    %6245 = vmatprep.subr.mxu0 0.0
    %6246 = vmatpush1.msra.mxu0 0.0
    %6247 = vmatprep.subr.mxu0 0.0
    %6248 = vmatpush1.msra.mxu0 0.0
    %6249 = vmatprep.subr.mxu0 0.0
    %6250 = vmatpush1.msra.mxu0 0.0
    %6251 = vmatprep.subr.mxu0 0.0
    %6252 = vmatpush1.msra.mxu0 0.0
    %6253 = vmatprep.subr.mxu0 0.0
    %6254 = vmatpush1.msra.mxu0 0.0
    %6255 = vmatprep.subr.mxu0 0.0
    %6256 = vmatpush1.msra.mxu0 0.0
    %6257 = vmatprep.subr.mxu0 0.0
    %6258 = vmatpush1.msra.mxu0 0.0
    %6259 = vmatprep.subr.mxu0 0.0
    %6260 = vmatpush1.msra.mxu0 0.0
    %6261 = vmatprep.subr.mxu0 0.0
    %6262 = vmatpush1.msra.mxu0 0.0
    %6263 = vmatprep.subr.mxu0 0.0
    %6264 = vmatpush1.msra.mxu0 0.0
    %6265 = vmatprep.subr.mxu0 0.0
    %6266 = vmatpush1.msra.mxu0 0.0
    %6267 = vmatprep.subr.mxu0 0.0
    %6268 = vmatpush1.msra.mxu0 0.0
    %6269 = vmatprep.subr.mxu0 0.0
    %6270 = vmatpush1.msra.mxu0 %v5501
    %6271 = vmatprep.subr.mxu0 0.0
    %6272 = vmatpush2.msra.mxu0 0.0
    %6273 = vmatprep.subr.mxu0 0.0
    %6274 = vmatpush2.msra.mxu0 0.0
    %6275 = vmatprep.subr.mxu0 0.0
    %6276 = vmatpush2.msra.mxu0 0.0
    %6277 = vmatprep.subr.mxu0 0.0
    %6278 = vmatpush2.msra.mxu0 0.0
    %6279 = vmatprep.subr.mxu0 0.0
    %6280 = vmatpush2.msra.mxu0 0.0
    %6281 = vmatprep.subr.mxu0 0.0
    %6282 = vmatpush2.msra.mxu0 0.0
    %6283 = vmatprep.subr.mxu0 0.0
    %6284 = vmatpush2.msra.mxu0 0.0
    %6285 = vmatprep.subr.mxu0 0.0
    %6286 = vmatpush2.msra.mxu0 0.0
    %6287 = vmatprep.subr.mxu0 0.0
    %6288 = vmatpush2.msra.mxu0 0.0
    %6289 = vmatprep.subr.mxu0 0.0
    %6290 = vmatpush2.msra.mxu0 0.0
    %6291 = vmatprep.subr.mxu0 0.0
    %6292 = vmatpush2.msra.mxu0 0.0
    %6293 = vmatprep.subr.mxu0 0.0
    %6294 = vmatpush2.msra.mxu0 0.0
    %6295 = vmatprep.subr.mxu0 0.0
    %6296 = vmatpush2.msra.mxu0 0.0
    %6297 = vmatprep.subr.mxu0 0.0
    %6298 = vmatpush2.msra.mxu0 0.0
    %6299 = vmatprep.subr.mxu0 0.0
    %6300 = vmatpush2.msra.mxu0 0.0
    %6301 = vmatprep.subr.mxu0 0.0
    %6302 = vmatpush2.msra.mxu0 0.0
    %6303 = vmatprep.mubr.f32.mxu0 0.0
    %6304 = vmatmul.mubr.f32.gmra.mxu0 %v6237
    %v6305 = vpop.f32.mrf.mxu0
    %v6306 = vadd.f32 0.0, %v6305
    %v6307 = vpop.f32.mrf.mxu0
    %6308 = vdwg.mxu0
    %v6309 = vsel %vm967, %v5184, 0
    %6311 = vmatprep.subr.mxu0 0.0
    %6312 = vmatpush1.msra.mxu0 0.0
    %6313 = vmatprep.subr.mxu0 0.0
    %6314 = vmatpush1.msra.mxu0 0.0
    %6315 = vmatprep.subr.mxu0 0.0
    %6316 = vmatpush1.msra.mxu0 0.0
    %6317 = vmatprep.subr.mxu0 0.0
    %6318 = vmatpush1.msra.mxu0 0.0
    %6319 = vmatprep.subr.mxu0 0.0
    %6320 = vmatpush1.msra.mxu0 0.0
    %6321 = vmatprep.subr.mxu0 0.0
    %6322 = vmatpush1.msra.mxu0 0.0
    %6323 = vmatprep.subr.mxu0 0.0
    %6324 = vmatpush1.msra.mxu0 0.0
    %6325 = vmatprep.subr.mxu0 0.0
    %6326 = vmatpush1.msra.mxu0 0.0
    %6327 = vmatprep.subr.mxu0 0.0
    %6328 = vmatpush1.msra.mxu0 0.0
    %6329 = vmatprep.subr.mxu0 0.0
    %6330 = vmatpush1.msra.mxu0 0.0
    %6331 = vmatprep.subr.mxu0 0.0
    %6332 = vmatpush1.msra.mxu0 0.0
    %6333 = vmatprep.subr.mxu0 0.0
    %6334 = vmatpush1.msra.mxu0 0.0
    %6335 = vmatprep.subr.mxu0 0.0
    %6336 = vmatpush1.msra.mxu0 0.0
    %6337 = vmatprep.subr.mxu0 0.0
    %6338 = vmatpush1.msra.mxu0 0.0
    %6339 = vmatprep.subr.mxu0 0.0
    %6340 = vmatpush1.msra.mxu0 0.0
    %6341 = vmatprep.subr.mxu0 0.0
    %6342 = vmatpush1.msra.mxu0 %v5533
    %6343 = vmatprep.subr.mxu0 0.0
    %6344 = vmatpush2.msra.mxu0 0.0
    %6345 = vmatprep.subr.mxu0 0.0
    %6346 = vmatpush2.msra.mxu0 0.0
    %6347 = vmatprep.subr.mxu0 0.0
    %6348 = vmatpush2.msra.mxu0 0.0
    %6349 = vmatprep.subr.mxu0 0.0
    %6350 = vmatpush2.msra.mxu0 0.0
    %6351 = vmatprep.subr.mxu0 0.0
    %6352 = vmatpush2.msra.mxu0 0.0
    %6353 = vmatprep.subr.mxu0 0.0
    %6354 = vmatpush2.msra.mxu0 0.0
    %6355 = vmatprep.subr.mxu0 0.0
    %6356 = vmatpush2.msra.mxu0 0.0
    %6357 = vmatprep.subr.mxu0 0.0
    %6358 = vmatpush2.msra.mxu0 0.0
    %6359 = vmatprep.subr.mxu0 0.0
    %6360 = vmatpush2.msra.mxu0 0.0
    %6361 = vmatprep.subr.mxu0 0.0
    %6362 = vmatpush2.msra.mxu0 0.0
    %6363 = vmatprep.subr.mxu0 0.0
    %6364 = vmatpush2.msra.mxu0 0.0
    %6365 = vmatprep.subr.mxu0 0.0
    %6366 = vmatpush2.msra.mxu0 0.0
    %6367 = vmatprep.subr.mxu0 0.0
    %6368 = vmatpush2.msra.mxu0 0.0
    %6369 = vmatprep.subr.mxu0 0.0
    %6370 = vmatpush2.msra.mxu0 0.0
    %6371 = vmatprep.subr.mxu0 0.0
    %6372 = vmatpush2.msra.mxu0 0.0
    %6373 = vmatprep.subr.mxu0 0.0
    %6374 = vmatpush2.msra.mxu0 0.0
    %6375 = vmatprep.mubr.f32.mxu0 0.0
    %6376 = vmatmul.mubr.f32.gmra.mxu0 %v6309
    %v6377 = vpop.f32.mrf.mxu0
    %v6378 = vadd.f32 0.0, %v6377
    %v6379 = vpop.f32.mrf.mxu0
    %6380 = vdwg.mxu0
    %v6381 = vsel %vm967, %v5186, 0
    %6383 = vmatprep.subr.mxu0 0.0
    %6384 = vmatpush1.msra.mxu0 0.0
    %6385 = vmatprep.subr.mxu0 0.0
    %6386 = vmatpush1.msra.mxu0 0.0
    %6387 = vmatprep.subr.mxu0 0.0
    %6388 = vmatpush1.msra.mxu0 0.0
    %6389 = vmatprep.subr.mxu0 0.0
    %6390 = vmatpush1.msra.mxu0 0.0
    %6391 = vmatprep.subr.mxu0 0.0
    %6392 = vmatpush1.msra.mxu0 0.0
    %6393 = vmatprep.subr.mxu0 0.0
    %6394 = vmatpush1.msra.mxu0 0.0
    %6395 = vmatprep.subr.mxu0 0.0
    %6396 = vmatpush1.msra.mxu0 0.0
    %6397 = vmatprep.subr.mxu0 0.0
    %6398 = vmatpush1.msra.mxu0 0.0
    %6399 = vmatprep.subr.mxu0 0.0
    %6400 = vmatpush1.msra.mxu0 0.0
    %6401 = vmatprep.subr.mxu0 0.0
    %6402 = vmatpush1.msra.mxu0 0.0
    %6403 = vmatprep.subr.mxu0 0.0
    %6404 = vmatpush1.msra.mxu0 0.0
    %6405 = vmatprep.subr.mxu0 0.0
    %6406 = vmatpush1.msra.mxu0 0.0
    %6407 = vmatprep.subr.mxu0 0.0
    %6408 = vmatpush1.msra.mxu0 0.0
    %6409 = vmatprep.subr.mxu0 0.0
    %6410 = vmatpush1.msra.mxu0 0.0
    %6411 = vmatprep.subr.mxu0 0.0
    %6412 = vmatpush1.msra.mxu0 0.0
    %6413 = vmatprep.subr.mxu0 0.0
    %6414 = vmatpush1.msra.mxu0 %v5565
    %6415 = vmatprep.subr.mxu0 0.0
    %6416 = vmatpush2.msra.mxu0 0.0
    %6417 = vmatprep.subr.mxu0 0.0
    %6418 = vmatpush2.msra.mxu0 0.0
    %6419 = vmatprep.subr.mxu0 0.0
    %6420 = vmatpush2.msra.mxu0 0.0
    %6421 = vmatprep.subr.mxu0 0.0
    %6422 = vmatpush2.msra.mxu0 0.0
    %6423 = vmatprep.subr.mxu0 0.0
    %6424 = vmatpush2.msra.mxu0 0.0
    %6425 = vmatprep.subr.mxu0 0.0
    %6426 = vmatpush2.msra.mxu0 0.0
    %6427 = vmatprep.subr.mxu0 0.0
    %6428 = vmatpush2.msra.mxu0 0.0
    %6429 = vmatprep.subr.mxu0 0.0
    %6430 = vmatpush2.msra.mxu0 0.0
    %6431 = vmatprep.subr.mxu0 0.0
    %6432 = vmatpush2.msra.mxu0 0.0
    %6433 = vmatprep.subr.mxu0 0.0
    %6434 = vmatpush2.msra.mxu0 0.0
    %6435 = vmatprep.subr.mxu0 0.0
    %6436 = vmatpush2.msra.mxu0 0.0
    %6437 = vmatprep.subr.mxu0 0.0
    %6438 = vmatpush2.msra.mxu0 0.0
    %6439 = vmatprep.subr.mxu0 0.0
    %6440 = vmatpush2.msra.mxu0 0.0
    %6441 = vmatprep.subr.mxu0 0.0
    %6442 = vmatpush2.msra.mxu0 0.0
    %6443 = vmatprep.subr.mxu0 0.0
    %6444 = vmatpush2.msra.mxu0 0.0
    %6445 = vmatprep.subr.mxu0 0.0
    %6446 = vmatpush2.msra.mxu0 0.0
    %6447 = vmatprep.mubr.f32.mxu0 0.0
    %6448 = vmatmul.mubr.f32.gmra.mxu0 %v6381
    %v6449 = vpop.f32.mrf.mxu0
    %v6450 = vadd.f32 0.0, %v6449
    %v6451 = vpop.f32.mrf.mxu0
    %6452 = vdwg.mxu0
    %v6453 = vsel %vm967, %v5188, 0
    %6455 = vmatprep.subr.mxu0 0.0
    %6456 = vmatpush1.msra.mxu0 0.0
    %6457 = vmatprep.subr.mxu0 0.0
    %6458 = vmatpush1.msra.mxu0 0.0
    %6459 = vmatprep.subr.mxu0 0.0
    %6460 = vmatpush1.msra.mxu0 0.0
    %6461 = vmatprep.subr.mxu0 0.0
    %6462 = vmatpush1.msra.mxu0 0.0
    %6463 = vmatprep.subr.mxu0 0.0
    %6464 = vmatpush1.msra.mxu0 0.0
    %6465 = vmatprep.subr.mxu0 0.0
    %6466 = vmatpush1.msra.mxu0 0.0
    %6467 = vmatprep.subr.mxu0 0.0
    %6468 = vmatpush1.msra.mxu0 0.0
    %6469 = vmatprep.subr.mxu0 0.0
    %6470 = vmatpush1.msra.mxu0 0.0
    %6471 = vmatprep.subr.mxu0 0.0
    %6472 = vmatpush1.msra.mxu0 0.0
    %6473 = vmatprep.subr.mxu0 0.0
    %6474 = vmatpush1.msra.mxu0 0.0
    %6475 = vmatprep.subr.mxu0 0.0
    %6476 = vmatpush1.msra.mxu0 0.0
    %6477 = vmatprep.subr.mxu0 0.0
    %6478 = vmatpush1.msra.mxu0 0.0
    %6479 = vmatprep.subr.mxu0 0.0
    %6480 = vmatpush1.msra.mxu0 0.0
    %6481 = vmatprep.subr.mxu0 0.0
    %6482 = vmatpush1.msra.mxu0 0.0
    %6483 = vmatprep.subr.mxu0 0.0
    %6484 = vmatpush1.msra.mxu0 0.0
    %6485 = vmatprep.subr.mxu0 0.0
    %6486 = vmatpush1.msra.mxu0 %v5597
    %6487 = vmatprep.subr.mxu0 0.0
    %6488 = vmatpush2.msra.mxu0 0.0
    %6489 = vmatprep.subr.mxu0 0.0
    %6490 = vmatpush2.msra.mxu0 0.0
    %6491 = vmatprep.subr.mxu0 0.0
    %6492 = vmatpush2.msra.mxu0 0.0
    %6493 = vmatprep.subr.mxu0 0.0
    %6494 = vmatpush2.msra.mxu0 0.0
    %6495 = vmatprep.subr.mxu0 0.0
    %6496 = vmatpush2.msra.mxu0 0.0
    %6497 = vmatprep.subr.mxu0 0.0
    %6498 = vmatpush2.msra.mxu0 0.0
    %6499 = vmatprep.subr.mxu0 0.0
    %6500 = vmatpush2.msra.mxu0 0.0
    %6501 = vmatprep.subr.mxu0 0.0
    %6502 = vmatpush2.msra.mxu0 0.0
    %6503 = vmatprep.subr.mxu0 0.0
    %6504 = vmatpush2.msra.mxu0 0.0
    %6505 = vmatprep.subr.mxu0 0.0
    %6506 = vmatpush2.msra.mxu0 0.0
    %6507 = vmatprep.subr.mxu0 0.0
    %6508 = vmatpush2.msra.mxu0 0.0
    %6509 = vmatprep.subr.mxu0 0.0
    %6510 = vmatpush2.msra.mxu0 0.0
    %6511 = vmatprep.subr.mxu0 0.0
    %6512 = vmatpush2.msra.mxu0 0.0
    %6513 = vmatprep.subr.mxu0 0.0
    %6514 = vmatpush2.msra.mxu0 0.0
    %6515 = vmatprep.subr.mxu0 0.0
    %6516 = vmatpush2.msra.mxu0 0.0
    %6517 = vmatprep.subr.mxu0 0.0
    %6518 = vmatpush2.msra.mxu0 0.0
    %6519 = vmatprep.mubr.f32.mxu0 0.0
    %6520 = vmatmul.mubr.f32.gmra.mxu0 %v6453
    %v6521 = vpop.f32.mrf.mxu0
    %v6522 = vadd.f32 0.0, %v6521
    %v6523 = vpop.f32.mrf.mxu0
    %6524 = vdwg.mxu0
    %v6525 = vsel %vm967, %v5190, 0
    %6527 = vmatprep.subr.mxu0 0.0
    %6528 = vmatpush1.msra.mxu0 0.0
    %6529 = vmatprep.subr.mxu0 0.0
    %6530 = vmatpush1.msra.mxu0 0.0
    %6531 = vmatprep.subr.mxu0 0.0
    %6532 = vmatpush1.msra.mxu0 0.0
    %6533 = vmatprep.subr.mxu0 0.0
    %6534 = vmatpush1.msra.mxu0 0.0
    %6535 = vmatprep.subr.mxu0 0.0
    %6536 = vmatpush1.msra.mxu0 0.0
    %6537 = vmatprep.subr.mxu0 0.0
    %6538 = vmatpush1.msra.mxu0 0.0
    %6539 = vmatprep.subr.mxu0 0.0
    %6540 = vmatpush1.msra.mxu0 0.0
    %6541 = vmatprep.subr.mxu0 0.0
    %6542 = vmatpush1.msra.mxu0 0.0
    %6543 = vmatprep.subr.mxu0 0.0
    %6544 = vmatpush1.msra.mxu0 0.0
    %6545 = vmatprep.subr.mxu0 0.0
    %6546 = vmatpush1.msra.mxu0 0.0
    %6547 = vmatprep.subr.mxu0 0.0
    %6548 = vmatpush1.msra.mxu0 0.0
    %6549 = vmatprep.subr.mxu0 0.0
    %6550 = vmatpush1.msra.mxu0 0.0
    %6551 = vmatprep.subr.mxu0 0.0
    %6552 = vmatpush1.msra.mxu0 0.0
    %6553 = vmatprep.subr.mxu0 0.0
    %6554 = vmatpush1.msra.mxu0 0.0
    %6555 = vmatprep.subr.mxu0 0.0
    %6556 = vmatpush1.msra.mxu0 0.0
    %6557 = vmatprep.subr.mxu0 0.0
    %6558 = vmatpush1.msra.mxu0 %v5629
    %6559 = vmatprep.subr.mxu0 0.0
    %6560 = vmatpush2.msra.mxu0 0.0
    %6561 = vmatprep.subr.mxu0 0.0
    %6562 = vmatpush2.msra.mxu0 0.0
    %6563 = vmatprep.subr.mxu0 0.0
    %6564 = vmatpush2.msra.mxu0 0.0
    %6565 = vmatprep.subr.mxu0 0.0
    %6566 = vmatpush2.msra.mxu0 0.0
    %6567 = vmatprep.subr.mxu0 0.0
    %6568 = vmatpush2.msra.mxu0 0.0
    %6569 = vmatprep.subr.mxu0 0.0
    %6570 = vmatpush2.msra.mxu0 0.0
    %6571 = vmatprep.subr.mxu0 0.0
    %6572 = vmatpush2.msra.mxu0 0.0
    %6573 = vmatprep.subr.mxu0 0.0
    %6574 = vmatpush2.msra.mxu0 0.0
    %6575 = vmatprep.subr.mxu0 0.0
    %6576 = vmatpush2.msra.mxu0 0.0
    %6577 = vmatprep.subr.mxu0 0.0
    %6578 = vmatpush2.msra.mxu0 0.0
    %6579 = vmatprep.subr.mxu0 0.0
    %6580 = vmatpush2.msra.mxu0 0.0
    %6581 = vmatprep.subr.mxu0 0.0
    %6582 = vmatpush2.msra.mxu0 0.0
    %6583 = vmatprep.subr.mxu0 0.0
    %6584 = vmatpush2.msra.mxu0 0.0
    %6585 = vmatprep.subr.mxu0 0.0
    %6586 = vmatpush2.msra.mxu0 0.0
    %6587 = vmatprep.subr.mxu0 0.0
    %6588 = vmatpush2.msra.mxu0 0.0
    %6589 = vmatprep.subr.mxu0 0.0
    %6590 = vmatpush2.msra.mxu0 0.0
    %6591 = vmatprep.mubr.f32.mxu0 0.0
    %6592 = vmatmul.mubr.f32.gmra.mxu0 %v6525
    %v6593 = vpop.f32.mrf.mxu0
    %v6594 = vadd.f32 0.0, %v6593
    %v6595 = vpop.f32.mrf.mxu0
    %6596 = vdwg.mxu0
    %v6597 = vsel %vm967, %v5192, 0
    %6599 = vmatprep.subr.mxu0 0.0
    %6600 = vmatpush1.msra.mxu0 0.0
    %6601 = vmatprep.subr.mxu0 0.0
    %6602 = vmatpush1.msra.mxu0 0.0
    %6603 = vmatprep.subr.mxu0 0.0
    %6604 = vmatpush1.msra.mxu0 0.0
    %6605 = vmatprep.subr.mxu0 0.0
    %6606 = vmatpush1.msra.mxu0 0.0
    %6607 = vmatprep.subr.mxu0 0.0
    %6608 = vmatpush1.msra.mxu0 0.0
    %6609 = vmatprep.subr.mxu0 0.0
    %6610 = vmatpush1.msra.mxu0 0.0
    %6611 = vmatprep.subr.mxu0 0.0
    %6612 = vmatpush1.msra.mxu0 0.0
    %6613 = vmatprep.subr.mxu0 0.0
    %6614 = vmatpush1.msra.mxu0 0.0
    %6615 = vmatprep.subr.mxu0 0.0
    %6616 = vmatpush1.msra.mxu0 0.0
    %6617 = vmatprep.subr.mxu0 0.0
    %6618 = vmatpush1.msra.mxu0 0.0
    %6619 = vmatprep.subr.mxu0 0.0
    %6620 = vmatpush1.msra.mxu0 0.0
    %6621 = vmatprep.subr.mxu0 0.0
    %6622 = vmatpush1.msra.mxu0 0.0
    %6623 = vmatprep.subr.mxu0 0.0
    %6624 = vmatpush1.msra.mxu0 0.0
    %6625 = vmatprep.subr.mxu0 0.0
    %6626 = vmatpush1.msra.mxu0 0.0
    %6627 = vmatprep.subr.mxu0 0.0
    %6628 = vmatpush1.msra.mxu0 0.0
    %6629 = vmatprep.subr.mxu0 0.0
    %6630 = vmatpush1.msra.mxu0 %v5661
    %6631 = vmatprep.subr.mxu0 0.0
    %6632 = vmatpush2.msra.mxu0 0.0
    %6633 = vmatprep.subr.mxu0 0.0
    %6634 = vmatpush2.msra.mxu0 0.0
    %6635 = vmatprep.subr.mxu0 0.0
    %6636 = vmatpush2.msra.mxu0 0.0
    %6637 = vmatprep.subr.mxu0 0.0
    %6638 = vmatpush2.msra.mxu0 0.0
    %6639 = vmatprep.subr.mxu0 0.0
    %6640 = vmatpush2.msra.mxu0 0.0
    %6641 = vmatprep.subr.mxu0 0.0
    %6642 = vmatpush2.msra.mxu0 0.0
    %6643 = vmatprep.subr.mxu0 0.0
    %6644 = vmatpush2.msra.mxu0 0.0
    %6645 = vmatprep.subr.mxu0 0.0
    %6646 = vmatpush2.msra.mxu0 0.0
    %6647 = vmatprep.subr.mxu0 0.0
    %6648 = vmatpush2.msra.mxu0 0.0
    %6649 = vmatprep.subr.mxu0 0.0
    %6650 = vmatpush2.msra.mxu0 0.0
    %6651 = vmatprep.subr.mxu0 0.0
    %6652 = vmatpush2.msra.mxu0 0.0
    %6653 = vmatprep.subr.mxu0 0.0
    %6654 = vmatpush2.msra.mxu0 0.0
    %6655 = vmatprep.subr.mxu0 0.0
    %6656 = vmatpush2.msra.mxu0 0.0
    %6657 = vmatprep.subr.mxu0 0.0
    %6658 = vmatpush2.msra.mxu0 0.0
    %6659 = vmatprep.subr.mxu0 0.0
    %6660 = vmatpush2.msra.mxu0 0.0
    %6661 = vmatprep.subr.mxu0 0.0
    %6662 = vmatpush2.msra.mxu0 0.0
    %6663 = vmatprep.mubr.f32.mxu0 0.0
    %6664 = vmatmul.mubr.f32.gmra.mxu0 %v6597
    %v6665 = vpop.f32.mrf.mxu0
    %v6666 = vadd.f32 0.0, %v6665
    %v6667 = vpop.f32.mrf.mxu0
    %6668 = vdwg.mxu0
    %v6669 = vsel %vm967, %v5194, 0
    %6671 = vmatprep.subr.mxu0 0.0
    %6672 = vmatpush1.msra.mxu0 0.0
    %6673 = vmatprep.subr.mxu0 0.0
    %6674 = vmatpush1.msra.mxu0 0.0
    %6675 = vmatprep.subr.mxu0 0.0
    %6676 = vmatpush1.msra.mxu0 0.0
    %6677 = vmatprep.subr.mxu0 0.0
    %6678 = vmatpush1.msra.mxu0 0.0
    %6679 = vmatprep.subr.mxu0 0.0
    %6680 = vmatpush1.msra.mxu0 0.0
    %6681 = vmatprep.subr.mxu0 0.0
    %6682 = vmatpush1.msra.mxu0 0.0
    %6683 = vmatprep.subr.mxu0 0.0
    %6684 = vmatpush1.msra.mxu0 0.0
    %6685 = vmatprep.subr.mxu0 0.0
    %6686 = vmatpush1.msra.mxu0 0.0
    %6687 = vmatprep.subr.mxu0 0.0
    %6688 = vmatpush1.msra.mxu0 0.0
    %6689 = vmatprep.subr.mxu0 0.0
    %6690 = vmatpush1.msra.mxu0 0.0
    %6691 = vmatprep.subr.mxu0 0.0
    %6692 = vmatpush1.msra.mxu0 0.0
    %6693 = vmatprep.subr.mxu0 0.0
    %6694 = vmatpush1.msra.mxu0 0.0
    %6695 = vmatprep.subr.mxu0 0.0
    %6696 = vmatpush1.msra.mxu0 0.0
    %6697 = vmatprep.subr.mxu0 0.0
    %6698 = vmatpush1.msra.mxu0 0.0
    %6699 = vmatprep.subr.mxu0 0.0
    %6700 = vmatpush1.msra.mxu0 0.0
    %6701 = vmatprep.subr.mxu0 0.0
    %6702 = vmatpush1.msra.mxu0 %v5693
    %6703 = vmatprep.subr.mxu0 0.0
    %6704 = vmatpush2.msra.mxu0 0.0
    %6705 = vmatprep.subr.mxu0 0.0
    %6706 = vmatpush2.msra.mxu0 0.0
    %6707 = vmatprep.subr.mxu0 0.0
    %6708 = vmatpush2.msra.mxu0 0.0
    %6709 = vmatprep.subr.mxu0 0.0
    %6710 = vmatpush2.msra.mxu0 0.0
    %6711 = vmatprep.subr.mxu0 0.0
    %6712 = vmatpush2.msra.mxu0 0.0
    %6713 = vmatprep.subr.mxu0 0.0
    %6714 = vmatpush2.msra.mxu0 0.0
    %6715 = vmatprep.subr.mxu0 0.0
    %6716 = vmatpush2.msra.mxu0 0.0
    %6717 = vmatprep.subr.mxu0 0.0
    %6718 = vmatpush2.msra.mxu0 0.0
    %6719 = vmatprep.subr.mxu0 0.0
    %6720 = vmatpush2.msra.mxu0 0.0
    %6721 = vmatprep.subr.mxu0 0.0
    %6722 = vmatpush2.msra.mxu0 0.0
    %6723 = vmatprep.subr.mxu0 0.0
    %6724 = vmatpush2.msra.mxu0 0.0
    %6725 = vmatprep.subr.mxu0 0.0
    %6726 = vmatpush2.msra.mxu0 0.0
    %6727 = vmatprep.subr.mxu0 0.0
    %6728 = vmatpush2.msra.mxu0 0.0
    %6729 = vmatprep.subr.mxu0 0.0
    %6730 = vmatpush2.msra.mxu0 0.0
    %6731 = vmatprep.subr.mxu0 0.0
    %6732 = vmatpush2.msra.mxu0 0.0
    %6733 = vmatprep.subr.mxu0 0.0
    %6734 = vmatpush2.msra.mxu0 0.0
    %6735 = vmatprep.mubr.f32.mxu0 0.0
    %6736 = vmatmul.mubr.f32.gmra.mxu0 %v6669
    %v6737 = vpop.f32.mrf.mxu0
    %v6738 = vadd.f32 0.0, %v6737
    %v6739 = vpop.f32.mrf.mxu0
    %6740 = vdwg.mxu0
    %v6741 = vsel %vm967, %v5196, 0
    %6743 = vmatprep.subr.mxu0 0.0
    %6744 = vmatpush1.msra.mxu0 0.0
    %6745 = vmatprep.subr.mxu0 0.0
    %6746 = vmatpush1.msra.mxu0 0.0
    %6747 = vmatprep.subr.mxu0 0.0
    %6748 = vmatpush1.msra.mxu0 0.0
    %6749 = vmatprep.subr.mxu0 0.0
    %6750 = vmatpush1.msra.mxu0 0.0
    %6751 = vmatprep.subr.mxu0 0.0
    %6752 = vmatpush1.msra.mxu0 0.0
    %6753 = vmatprep.subr.mxu0 0.0
    %6754 = vmatpush1.msra.mxu0 0.0
    %6755 = vmatprep.subr.mxu0 0.0
    %6756 = vmatpush1.msra.mxu0 0.0
    %6757 = vmatprep.subr.mxu0 0.0
    %6758 = vmatpush1.msra.mxu0 0.0
    %6759 = vmatprep.subr.mxu0 0.0
    %6760 = vmatpush1.msra.mxu0 0.0
    %6761 = vmatprep.subr.mxu0 0.0
    %6762 = vmatpush1.msra.mxu0 0.0
    %6763 = vmatprep.subr.mxu0 0.0
    %6764 = vmatpush1.msra.mxu0 0.0
    %6765 = vmatprep.subr.mxu0 0.0
    %6766 = vmatpush1.msra.mxu0 0.0
    %6767 = vmatprep.subr.mxu0 0.0
    %6768 = vmatpush1.msra.mxu0 0.0
    %6769 = vmatprep.subr.mxu0 0.0
    %6770 = vmatpush1.msra.mxu0 0.0
    %6771 = vmatprep.subr.mxu0 0.0
    %6772 = vmatpush1.msra.mxu0 0.0
    %6773 = vmatprep.subr.mxu0 0.0
    %6774 = vmatpush1.msra.mxu0 %v5725
    %6775 = vmatprep.subr.mxu0 0.0
    %6776 = vmatpush2.msra.mxu0 0.0
    %6777 = vmatprep.subr.mxu0 0.0
    %6778 = vmatpush2.msra.mxu0 0.0
    %6779 = vmatprep.subr.mxu0 0.0
    %6780 = vmatpush2.msra.mxu0 0.0
    %6781 = vmatprep.subr.mxu0 0.0
    %6782 = vmatpush2.msra.mxu0 0.0
    %6783 = vmatprep.subr.mxu0 0.0
    %6784 = vmatpush2.msra.mxu0 0.0
    %6785 = vmatprep.subr.mxu0 0.0
    %6786 = vmatpush2.msra.mxu0 0.0
    %6787 = vmatprep.subr.mxu0 0.0
    %6788 = vmatpush2.msra.mxu0 0.0
    %6789 = vmatprep.subr.mxu0 0.0
    %6790 = vmatpush2.msra.mxu0 0.0
    %6791 = vmatprep.subr.mxu0 0.0
    %6792 = vmatpush2.msra.mxu0 0.0
    %6793 = vmatprep.subr.mxu0 0.0
    %6794 = vmatpush2.msra.mxu0 0.0
    %6795 = vmatprep.subr.mxu0 0.0
    %6796 = vmatpush2.msra.mxu0 0.0
    %6797 = vmatprep.subr.mxu0 0.0
    %6798 = vmatpush2.msra.mxu0 0.0
    %6799 = vmatprep.subr.mxu0 0.0
    %6800 = vmatpush2.msra.mxu0 0.0
    %6801 = vmatprep.subr.mxu0 0.0
    %6802 = vmatpush2.msra.mxu0 0.0
    %6803 = vmatprep.subr.mxu0 0.0
    %6804 = vmatpush2.msra.mxu0 0.0
    %6805 = vmatprep.subr.mxu0 0.0
    %6806 = vmatpush2.msra.mxu0 0.0
    %6807 = vmatprep.mubr.f32.mxu0 0.0
    %6808 = vmatmul.mubr.f32.gmra.mxu0 %v6741
    %v6809 = vpop.f32.mrf.mxu0
    %v6810 = vadd.f32 0.0, %v6809
    %v6811 = vpop.f32.mrf.mxu0
    %6812 = vdwg.mxu0
    %v6813 = vsel %vm967, %v5198, 0
    %6815 = vmatprep.subr.mxu0 0.0
    %6816 = vmatpush1.msra.mxu0 0.0
    %6817 = vmatprep.subr.mxu0 0.0
    %6818 = vmatpush1.msra.mxu0 0.0
    %6819 = vmatprep.subr.mxu0 0.0
    %6820 = vmatpush1.msra.mxu0 0.0
    %6821 = vmatprep.subr.mxu0 0.0
    %6822 = vmatpush1.msra.mxu0 0.0
    %6823 = vmatprep.subr.mxu0 0.0
    %6824 = vmatpush1.msra.mxu0 0.0
    %6825 = vmatprep.subr.mxu0 0.0
    %6826 = vmatpush1.msra.mxu0 0.0
    %6827 = vmatprep.subr.mxu0 0.0
    %6828 = vmatpush1.msra.mxu0 0.0
    %6829 = vmatprep.subr.mxu0 0.0
    %6830 = vmatpush1.msra.mxu0 0.0
    %6831 = vmatprep.subr.mxu0 0.0
    %6832 = vmatpush1.msra.mxu0 0.0
    %6833 = vmatprep.subr.mxu0 0.0
    %6834 = vmatpush1.msra.mxu0 0.0
    %6835 = vmatprep.subr.mxu0 0.0
    %6836 = vmatpush1.msra.mxu0 0.0
    %6837 = vmatprep.subr.mxu0 0.0
    %6838 = vmatpush1.msra.mxu0 0.0
    %6839 = vmatprep.subr.mxu0 0.0
    %6840 = vmatpush1.msra.mxu0 0.0
    %6841 = vmatprep.subr.mxu0 0.0
    %6842 = vmatpush1.msra.mxu0 0.0
    %6843 = vmatprep.subr.mxu0 0.0
    %6844 = vmatpush1.msra.mxu0 0.0
    %6845 = vmatprep.subr.mxu0 0.0
    %6846 = vmatpush1.msra.mxu0 %v5757
    %6847 = vmatprep.subr.mxu0 0.0
    %6848 = vmatpush2.msra.mxu0 0.0
    %6849 = vmatprep.subr.mxu0 0.0
    %6850 = vmatpush2.msra.mxu0 0.0
    %6851 = vmatprep.subr.mxu0 0.0
    %6852 = vmatpush2.msra.mxu0 0.0
    %6853 = vmatprep.subr.mxu0 0.0
    %6854 = vmatpush2.msra.mxu0 0.0
    %6855 = vmatprep.subr.mxu0 0.0
    %6856 = vmatpush2.msra.mxu0 0.0
    %6857 = vmatprep.subr.mxu0 0.0
    %6858 = vmatpush2.msra.mxu0 0.0
    %6859 = vmatprep.subr.mxu0 0.0
    %6860 = vmatpush2.msra.mxu0 0.0
    %6861 = vmatprep.subr.mxu0 0.0
    %6862 = vmatpush2.msra.mxu0 0.0
    %6863 = vmatprep.subr.mxu0 0.0
    %6864 = vmatpush2.msra.mxu0 0.0
    %6865 = vmatprep.subr.mxu0 0.0
    %6866 = vmatpush2.msra.mxu0 0.0
    %6867 = vmatprep.subr.mxu0 0.0
    %6868 = vmatpush2.msra.mxu0 0.0
    %6869 = vmatprep.subr.mxu0 0.0
    %6870 = vmatpush2.msra.mxu0 0.0
    %6871 = vmatprep.subr.mxu0 0.0
    %6872 = vmatpush2.msra.mxu0 0.0
    %6873 = vmatprep.subr.mxu0 0.0
    %6874 = vmatpush2.msra.mxu0 0.0
    %6875 = vmatprep.subr.mxu0 0.0
    %6876 = vmatpush2.msra.mxu0 0.0
    %6877 = vmatprep.subr.mxu0 0.0
    %6878 = vmatpush2.msra.mxu0 0.0
    %6879 = vmatprep.mubr.f32.mxu0 0.0
    %6880 = vmatmul.mubr.f32.gmra.mxu0 %v6813
    %v6881 = vpop.f32.mrf.mxu0
    %v6882 = vadd.f32 0.0, %v6881
    %v6883 = vpop.f32.mrf.mxu0
    %6884 = vdwg.mxu0
    %v6885 = vsel %vm967, %v5200, 0
    %6887 = vmatprep.subr.mxu0 0.0
    %6888 = vmatpush1.msra.mxu0 0.0
    %6889 = vmatprep.subr.mxu0 0.0
    %6890 = vmatpush1.msra.mxu0 0.0
    %6891 = vmatprep.subr.mxu0 0.0
    %6892 = vmatpush1.msra.mxu0 0.0
    %6893 = vmatprep.subr.mxu0 0.0
    %6894 = vmatpush1.msra.mxu0 0.0
    %6895 = vmatprep.subr.mxu0 0.0
    %6896 = vmatpush1.msra.mxu0 0.0
    %6897 = vmatprep.subr.mxu0 0.0
    %6898 = vmatpush1.msra.mxu0 0.0
    %6899 = vmatprep.subr.mxu0 0.0
    %6900 = vmatpush1.msra.mxu0 0.0
    %6901 = vmatprep.subr.mxu0 0.0
    %6902 = vmatpush1.msra.mxu0 0.0
    %6903 = vmatprep.subr.mxu0 0.0
    %6904 = vmatpush1.msra.mxu0 0.0
    %6905 = vmatprep.subr.mxu0 0.0
    %6906 = vmatpush1.msra.mxu0 0.0
    %6907 = vmatprep.subr.mxu0 0.0
    %6908 = vmatpush1.msra.mxu0 0.0
    %6909 = vmatprep.subr.mxu0 0.0
    %6910 = vmatpush1.msra.mxu0 0.0
    %6911 = vmatprep.subr.mxu0 0.0
    %6912 = vmatpush1.msra.mxu0 0.0
    %6913 = vmatprep.subr.mxu0 0.0
    %6914 = vmatpush1.msra.mxu0 0.0
    %6915 = vmatprep.subr.mxu0 0.0
    %6916 = vmatpush1.msra.mxu0 0.0
    %6917 = vmatprep.subr.mxu0 0.0
    %6918 = vmatpush1.msra.mxu0 %v5789
    %6919 = vmatprep.subr.mxu0 0.0
    %6920 = vmatpush2.msra.mxu0 0.0
    %6921 = vmatprep.subr.mxu0 0.0
    %6922 = vmatpush2.msra.mxu0 0.0
    %6923 = vmatprep.subr.mxu0 0.0
    %6924 = vmatpush2.msra.mxu0 0.0
    %6925 = vmatprep.subr.mxu0 0.0
    %6926 = vmatpush2.msra.mxu0 0.0
    %6927 = vmatprep.subr.mxu0 0.0
    %6928 = vmatpush2.msra.mxu0 0.0
    %6929 = vmatprep.subr.mxu0 0.0
    %6930 = vmatpush2.msra.mxu0 0.0
    %6931 = vmatprep.subr.mxu0 0.0
    %6932 = vmatpush2.msra.mxu0 0.0
    %6933 = vmatprep.subr.mxu0 0.0
    %6934 = vmatpush2.msra.mxu0 0.0
    %6935 = vmatprep.subr.mxu0 0.0
    %6936 = vmatpush2.msra.mxu0 0.0
    %6937 = vmatprep.subr.mxu0 0.0
    %6938 = vmatpush2.msra.mxu0 0.0
    %6939 = vmatprep.subr.mxu0 0.0
    %6940 = vmatpush2.msra.mxu0 0.0
    %6941 = vmatprep.subr.mxu0 0.0
    %6942 = vmatpush2.msra.mxu0 0.0
    %6943 = vmatprep.subr.mxu0 0.0
    %6944 = vmatpush2.msra.mxu0 0.0
    %6945 = vmatprep.subr.mxu0 0.0
    %6946 = vmatpush2.msra.mxu0 0.0
    %6947 = vmatprep.subr.mxu0 0.0
    %6948 = vmatpush2.msra.mxu0 0.0
    %6949 = vmatprep.subr.mxu0 0.0
    %6950 = vmatpush2.msra.mxu0 0.0
    %6951 = vmatprep.mubr.f32.mxu0 0.0
    %6952 = vmatmul.mubr.f32.gmra.mxu0 %v6885
    %v6953 = vpop.f32.mrf.mxu0
    %v6954 = vadd.f32 0.0, %v6953
    %v6955 = vpop.f32.mrf.mxu0
    %6956 = vdwg.mxu0
    %v6957 = vsel %vm967, %v5874, -inf
    %6958 = vmax.xlane.f32.xlu0 %v6957
    %v6959 = vpop.xlane.xlu0 %6958
    %v6960 = vsel %vm967, %v5946, -inf
    %6961 = vmax.xlane.f32.xlu0 %v6960
    %v6962 = vpop.xlane.xlu0 %6961
    %v6963 = vsel %vm967, %v6018, -inf
    %6964 = vmax.xlane.f32.xlu0 %v6963
    %v6965 = vpop.xlane.xlu0 %6964
    %v6966 = vsel %vm967, %v6090, -inf
    %6967 = vmax.xlane.f32.xlu0 %v6966
    %v6968 = vpop.xlane.xlu0 %6967
    %v6969 = vsel %vm967, %v6162, -inf
    %6970 = vmax.xlane.f32.xlu0 %v6969
    %v6971 = vpop.xlane.xlu0 %6970
    %v6972 = vsel %vm967, %v6234, -inf
    %6973 = vmax.xlane.f32.xlu0 %v6972
    %v6974 = vpop.xlane.xlu0 %6973
    %v6975 = vsel %vm967, %v6306, -inf
    %6976 = vmax.xlane.f32.xlu0 %v6975
    %v6977 = vpop.xlane.xlu0 %6976
    %v6978 = vsel %vm967, %v6378, -inf
    %6979 = vmax.xlane.f32.xlu0 %v6978
    %v6980 = vpop.xlane.xlu0 %6979
    %v6981 = vsel %vm967, %v6450, -inf
    %6982 = vmax.xlane.f32.xlu0 %v6981
    %v6983 = vpop.xlane.xlu0 %6982
    %v6984 = vsel %vm967, %v6522, -inf
    %6985 = vmax.xlane.f32.xlu0 %v6984
    %v6986 = vpop.xlane.xlu0 %6985
    %v6987 = vsel %vm967, %v6594, -inf
    %6988 = vmax.xlane.f32.xlu0 %v6987
    %v6989 = vpop.xlane.xlu0 %6988
    %v6990 = vsel %vm967, %v6666, -inf
    %6991 = vmax.xlane.f32.xlu0 %v6990
    %v6992 = vpop.xlane.xlu0 %6991
    %v6993 = vsel %vm967, %v6738, -inf
    %6994 = vmax.xlane.f32.xlu0 %v6993
    %v6995 = vpop.xlane.xlu0 %6994
    %v6996 = vsel %vm967, %v6810, -inf
    %6997 = vmax.xlane.f32.xlu0 %v6996
    %v6998 = vpop.xlane.xlu0 %6997
    %v6999 = vsel %vm967, %v6882, -inf
    %7000 = vmax.xlane.f32.xlu0 %v6999
    %v7001 = vpop.xlane.xlu0 %7000
    %v7002 = vsel %vm967, %v6954, -inf
    %7003 = vmax.xlane.f32.xlu0 %v7002
    %v7004 = vpop.xlane.xlu0 %7003
    %v7005 = vsub.f32 %v5874, %v6959
    %v7006 = vsub.f32 %v5946, %v6962
    %v7007 = vsub.f32 %v6018, %v6965
    %v7008 = vsub.f32 %v6090, %v6968
    %v7009 = vsub.f32 %v6162, %v6971
    %v7010 = vsub.f32 %v6234, %v6974
    %v7011 = vsub.f32 %v6306, %v6977
    %v7012 = vsub.f32 %v6378, %v6980
    %v7013 = vsub.f32 %v6450, %v6983
    %v7014 = vsub.f32 %v6522, %v6986
    %v7015 = vsub.f32 %v6594, %v6989
    %v7016 = vsub.f32 %v6666, %v6992
    %v7017 = vsub.f32 %v6738, %v6995
    %v7018 = vsub.f32 %v6810, %v6998
    %v7019 = vsub.f32 %v6882, %v7001
    %v7020 = vsub.f32 %v6954, %v7004
    %v7021 = vmul.f32 %v7005, 1.442695
    %v7022 = vpow.pop %v7021
    %v7023 = vmul.f32 %v7006, 1.442695
    %v7024 = vpow.pop %v7023
    %v7025 = vmul.f32 %v7007, 1.442695
    %v7026 = vpow.pop %v7025
    %v7027 = vmul.f32 %v7008, 1.442695
    %v7028 = vpow.pop %v7027
    %v7029 = vmul.f32 %v7009, 1.442695
    %v7030 = vpow.pop %v7029
    %v7031 = vmul.f32 %v7010, 1.442695
    %v7032 = vpow.pop %v7031
    %v7033 = vmul.f32 %v7011, 1.442695
    %v7034 = vpow.pop %v7033
    %v7035 = vmul.f32 %v7012, 1.442695
    %v7036 = vpow.pop %v7035
    %v7037 = vmul.f32 %v7013, 1.442695
    %v7038 = vpow.pop %v7037
    %v7039 = vmul.f32 %v7014, 1.442695
    %v7040 = vpow.pop %v7039
    %v7041 = vmul.f32 %v7015, 1.442695
    %v7042 = vpow.pop %v7041
    %v7043 = vmul.f32 %v7016, 1.442695
    %v7044 = vpow.pop %v7043
    %v7045 = vmul.f32 %v7017, 1.442695
    %v7046 = vpow.pop %v7045
    %v7047 = vmul.f32 %v7018, 1.442695
    %v7048 = vpow.pop %v7047
    %v7049 = vmul.f32 %v7019, 1.442695
    %v7050 = vpow.pop %v7049
    %v7051 = vmul.f32 %v7020, 1.442695
    %v7052 = vpow.pop %v7051
    %v7053 = vsel %vm967, %v7022, 0.0
    %7054 = vadd.xlane.f32.xlu0 %v7053
    %v7055 = vpop.xlane.xlu0 %7054
    %v7056 = vsel %vm967, %v7024, 0.0
    %7057 = vadd.xlane.f32.xlu0 %v7056
    %v7058 = vpop.xlane.xlu0 %7057
    %v7059 = vsel %vm967, %v7026, 0.0
    %7060 = vadd.xlane.f32.xlu0 %v7059
    %v7061 = vpop.xlane.xlu0 %7060
    %v7062 = vsel %vm967, %v7028, 0.0
    %7063 = vadd.xlane.f32.xlu0 %v7062
    %v7064 = vpop.xlane.xlu0 %7063
    %v7065 = vsel %vm967, %v7030, 0.0
    %7066 = vadd.xlane.f32.xlu0 %v7065
    %v7067 = vpop.xlane.xlu0 %7066
    %v7068 = vsel %vm967, %v7032, 0.0
    %7069 = vadd.xlane.f32.xlu0 %v7068
    %v7070 = vpop.xlane.xlu0 %7069
    %v7071 = vsel %vm967, %v7034, 0.0
    %7072 = vadd.xlane.f32.xlu0 %v7071
    %v7073 = vpop.xlane.xlu0 %7072
    %v7074 = vsel %vm967, %v7036, 0.0
    %7075 = vadd.xlane.f32.xlu0 %v7074
    %v7076 = vpop.xlane.xlu0 %7075
    %v7077 = vsel %vm967, %v7038, 0.0
    %7078 = vadd.xlane.f32.xlu0 %v7077
    %v7079 = vpop.xlane.xlu0 %7078
    %v7080 = vsel %vm967, %v7040, 0.0
    %7081 = vadd.xlane.f32.xlu0 %v7080
    %v7082 = vpop.xlane.xlu0 %7081
    %v7083 = vsel %vm967, %v7042, 0.0
    %7084 = vadd.xlane.f32.xlu0 %v7083
    %v7085 = vpop.xlane.xlu0 %7084
    %v7086 = vsel %vm967, %v7044, 0.0
    %7087 = vadd.xlane.f32.xlu0 %v7086
    %v7088 = vpop.xlane.xlu0 %7087
    %v7089 = vsel %vm967, %v7046, 0.0
    %7090 = vadd.xlane.f32.xlu0 %v7089
    %v7091 = vpop.xlane.xlu0 %7090
    %v7092 = vsel %vm967, %v7048, 0.0
    %7093 = vadd.xlane.f32.xlu0 %v7092
    %v7094 = vpop.xlane.xlu0 %7093
    %v7095 = vsel %vm967, %v7050, 0.0
    %7096 = vadd.xlane.f32.xlu0 %v7095
    %v7097 = vpop.xlane.xlu0 %7096
    %v7098 = vsel %vm967, %v7052, 0.0
    %7099 = vadd.xlane.f32.xlu0 %v7098
    %v7100 = vpop.xlane.xlu0 %7099
    %v7101 = vrcp.pop %v7055
    %v7102 = vrcp.pop %v7058
    %v7103 = vrcp.pop %v7061
    %v7104 = vrcp.pop %v7064
    %v7105 = vrcp.pop %v7067
    %v7106 = vrcp.pop %v7070
    %v7107 = vrcp.pop %v7073
    %v7108 = vrcp.pop %v7076
    %v7109 = vrcp.pop %v7079
    %v7110 = vrcp.pop %v7082
    %v7111 = vrcp.pop %v7085
    %v7112 = vrcp.pop %v7088
    %v7113 = vrcp.pop %v7091
    %v7114 = vrcp.pop %v7094
    %v7115 = vrcp.pop %v7097
    %v7116 = vrcp.pop %v7100
    %v7117 = vmul.f32 %v7022, %v7101
    %v7118 = vmul.f32 %v7024, %v7102
    %v7119 = vmul.f32 %v7026, %v7103
    %v7120 = vmul.f32 %v7028, %v7104
    %v7121 = vmul.f32 %v7030, %v7105
    %v7122 = vmul.f32 %v7032, %v7106
    %v7123 = vmul.f32 %v7034, %v7107
    %v7124 = vmul.f32 %v7036, %v7108
    %v7125 = vmul.f32 %v7038, %v7109
    %v7126 = vmul.f32 %v7040, %v7110
    %v7127 = vmul.f32 %v7042, %v7111
    %v7128 = vmul.f32 %v7044, %v7112
    %v7129 = vmul.f32 %v7046, %v7113
    %v7130 = vmul.f32 %v7048, %v7114
    %v7131 = vmul.f32 %v7050, %v7115
    %v7132 = vmul.f32 %v7052, %v7116
    %7133 = vxpose.xlu0.b32.start [1/16] %v329, 128
    %7134 = vxpose.xlu0.b32.cont [2/16] 0.0, 128
    %7135 = vxpose.xlu0.b32.cont [3/16] 0.0, 128
    %7136 = vxpose.xlu0.b32.cont [4/16] 0.0, 128
    %7137 = vxpose.xlu0.b32.cont [5/16] 0.0, 128
    %7138 = vxpose.xlu0.b32.cont [6/16] 0.0, 128
    %7139 = vxpose.xlu0.b32.cont [7/16] 0.0, 128
    %7140 = vxpose.xlu0.b32.cont [8/16] 0.0, 128
    %7141 = vxpose.xlu0.b32.cont [9/16] 0.0, 128
    %7142 = vxpose.xlu0.b32.cont [10/16] 0.0, 128
    %7143 = vxpose.xlu0.b32.cont [11/16] 0.0, 128
    %7144 = vxpose.xlu0.b32.cont [12/16] 0.0, 128
    %7145 = vxpose.xlu0.b32.cont [13/16] 0.0, 128
    %7146 = vxpose.xlu0.b32.cont [14/16] 0.0, 128
    %7147 = vxpose.xlu0.b32.cont [15/16] 0.0, 128
    %7148 = vxpose.xlu0.b32.end [16/16] 0.0, 128
    %v7149 = vpop.trf.xlu0
    %v7150 = vpop.trf.xlu0
    %v7151 = vpop.trf.xlu0
    %v7152 = vpop.trf.xlu0
    %v7153 = vpop.trf.xlu0
    %v7154 = vpop.trf.xlu0
    %v7155 = vpop.trf.xlu0
    %v7156 = vpop.trf.xlu0
    %v7157 = vpop.trf.xlu0
    %v7158 = vpop.trf.xlu0
    %v7159 = vpop.trf.xlu0
    %v7160 = vpop.trf.xlu0
    %v7161 = vpop.trf.xlu0
    %v7162 = vpop.trf.xlu0
    %v7163 = vpop.trf.xlu0
    %v7164 = vpop.trf.xlu0
    %7165 = vxpose.xlu0.b32.start [1/16] %v5249, 128
    %7166 = vxpose.xlu0.b32.cont [2/16] 0.0, 128
    %7167 = vxpose.xlu0.b32.cont [3/16] 0.0, 128
    %7168 = vxpose.xlu0.b32.cont [4/16] 0.0, 128
    %7169 = vxpose.xlu0.b32.cont [5/16] 0.0, 128
    %7170 = vxpose.xlu0.b32.cont [6/16] 0.0, 128
    %7171 = vxpose.xlu0.b32.cont [7/16] 0.0, 128
    %7172 = vxpose.xlu0.b32.cont [8/16] 0.0, 128
    %7173 = vxpose.xlu0.b32.cont [9/16] 0.0, 128
    %7174 = vxpose.xlu0.b32.cont [10/16] 0.0, 128
    %7175 = vxpose.xlu0.b32.cont [11/16] 0.0, 128
    %7176 = vxpose.xlu0.b32.cont [12/16] 0.0, 128
    %7177 = vxpose.xlu0.b32.cont [13/16] 0.0, 128
    %7178 = vxpose.xlu0.b32.cont [14/16] 0.0, 128
    %7179 = vxpose.xlu0.b32.cont [15/16] 0.0, 128
    %7180 = vxpose.xlu0.b32.end [16/16] 0.0, 128
    %v7181 = vpop.trf.xlu0
    %v7182 = vpop.trf.xlu0
    %v7183 = vpop.trf.xlu0
    %v7184 = vpop.trf.xlu0
    %v7185 = vpop.trf.xlu0
    %v7186 = vpop.trf.xlu0
    %v7187 = vpop.trf.xlu0
    %v7188 = vpop.trf.xlu0
    %v7189 = vpop.trf.xlu0
    %v7190 = vpop.trf.xlu0
    %v7191 = vpop.trf.xlu0
    %v7192 = vpop.trf.xlu0
    %v7193 = vpop.trf.xlu0
    %v7194 = vpop.trf.xlu0
    %v7195 = vpop.trf.xlu0
    %v7196 = vpop.trf.xlu0
    %7197 = vxpose.xlu0.b32.start [1/16] %v5252, 128
    %7198 = vxpose.xlu0.b32.cont [2/16] 0.0, 128
    %7199 = vxpose.xlu0.b32.cont [3/16] 0.0, 128
    %7200 = vxpose.xlu0.b32.cont [4/16] 0.0, 128
    %7201 = vxpose.xlu0.b32.cont [5/16] 0.0, 128
    %7202 = vxpose.xlu0.b32.cont [6/16] 0.0, 128
    %7203 = vxpose.xlu0.b32.cont [7/16] 0.0, 128
    %7204 = vxpose.xlu0.b32.cont [8/16] 0.0, 128
    %7205 = vxpose.xlu0.b32.cont [9/16] 0.0, 128
    %7206 = vxpose.xlu0.b32.cont [10/16] 0.0, 128
    %7207 = vxpose.xlu0.b32.cont [11/16] 0.0, 128
    %7208 = vxpose.xlu0.b32.cont [12/16] 0.0, 128
    %7209 = vxpose.xlu0.b32.cont [13/16] 0.0, 128
    %7210 = vxpose.xlu0.b32.cont [14/16] 0.0, 128
    %7211 = vxpose.xlu0.b32.cont [15/16] 0.0, 128
    %7212 = vxpose.xlu0.b32.end [16/16] 0.0, 128
    %v7213 = vpop.trf.xlu0
    %v7214 = vpop.trf.xlu0
    %v7215 = vpop.trf.xlu0
    %v7216 = vpop.trf.xlu0
    %v7217 = vpop.trf.xlu0
    %v7218 = vpop.trf.xlu0
    %v7219 = vpop.trf.xlu0
    %v7220 = vpop.trf.xlu0
    %v7221 = vpop.trf.xlu0
    %v7222 = vpop.trf.xlu0
    %v7223 = vpop.trf.xlu0
    %v7224 = vpop.trf.xlu0
    %v7225 = vpop.trf.xlu0
    %v7226 = vpop.trf.xlu0
    %v7227 = vpop.trf.xlu0
    %v7228 = vpop.trf.xlu0
    %7229 = vxpose.xlu0.b32.start [1/16] %v5255, 128
    %7230 = vxpose.xlu0.b32.cont [2/16] 0.0, 128
    %7231 = vxpose.xlu0.b32.cont [3/16] 0.0, 128
    %7232 = vxpose.xlu0.b32.cont [4/16] 0.0, 128
    %7233 = vxpose.xlu0.b32.cont [5/16] 0.0, 128
    %7234 = vxpose.xlu0.b32.cont [6/16] 0.0, 128
    %7235 = vxpose.xlu0.b32.cont [7/16] 0.0, 128
    %7236 = vxpose.xlu0.b32.cont [8/16] 0.0, 128
    %7237 = vxpose.xlu0.b32.cont [9/16] 0.0, 128
    %7238 = vxpose.xlu0.b32.cont [10/16] 0.0, 128
    %7239 = vxpose.xlu0.b32.cont [11/16] 0.0, 128
    %7240 = vxpose.xlu0.b32.cont [12/16] 0.0, 128
    %7241 = vxpose.xlu0.b32.cont [13/16] 0.0, 128
    %7242 = vxpose.xlu0.b32.cont [14/16] 0.0, 128
    %7243 = vxpose.xlu0.b32.cont [15/16] 0.0, 128
    %7244 = vxpose.xlu0.b32.end [16/16] 0.0, 128
    %v7245 = vpop.trf.xlu0
    %v7246 = vpop.trf.xlu0
    %v7247 = vpop.trf.xlu0
    %v7248 = vpop.trf.xlu0
    %v7249 = vpop.trf.xlu0
    %v7250 = vpop.trf.xlu0
    %v7251 = vpop.trf.xlu0
    %v7252 = vpop.trf.xlu0
    %v7253 = vpop.trf.xlu0
    %v7254 = vpop.trf.xlu0
    %v7255 = vpop.trf.xlu0
    %v7256 = vpop.trf.xlu0
    %v7257 = vpop.trf.xlu0
    %v7258 = vpop.trf.xlu0
    %v7259 = vpop.trf.xlu0
    %v7260 = vpop.trf.xlu0
    %7261 = vxpose.xlu0.b32.start [1/16] %v5258, 128
    %7262 = vxpose.xlu0.b32.cont [2/16] 0.0, 128
    %7263 = vxpose.xlu0.b32.cont [3/16] 0.0, 128
    %7264 = vxpose.xlu0.b32.cont [4/16] 0.0, 128
    %7265 = vxpose.xlu0.b32.cont [5/16] 0.0, 128
    %7266 = vxpose.xlu0.b32.cont [6/16] 0.0, 128
    %7267 = vxpose.xlu0.b32.cont [7/16] 0.0, 128
    %7268 = vxpose.xlu0.b32.cont [8/16] 0.0, 128
    %7269 = vxpose.xlu0.b32.cont [9/16] 0.0, 128
    %7270 = vxpose.xlu0.b32.cont [10/16] 0.0, 128
    %7271 = vxpose.xlu0.b32.cont [11/16] 0.0, 128
    %7272 = vxpose.xlu0.b32.cont [12/16] 0.0, 128
    %7273 = vxpose.xlu0.b32.cont [13/16] 0.0, 128
    %7274 = vxpose.xlu0.b32.cont [14/16] 0.0, 128
    %7275 = vxpose.xlu0.b32.cont [15/16] 0.0, 128
    %7276 = vxpose.xlu0.b32.end [16/16] 0.0, 128
    %v7277 = vpop.trf.xlu0
    %v7278 = vpop.trf.xlu0
    %v7279 = vpop.trf.xlu0
    %v7280 = vpop.trf.xlu0
    %v7281 = vpop.trf.xlu0
    %v7282 = vpop.trf.xlu0
    %v7283 = vpop.trf.xlu0
    %v7284 = vpop.trf.xlu0
    %v7285 = vpop.trf.xlu0
    %v7286 = vpop.trf.xlu0
    %v7287 = vpop.trf.xlu0
    %v7288 = vpop.trf.xlu0
    %v7289 = vpop.trf.xlu0
    %v7290 = vpop.trf.xlu0
    %v7291 = vpop.trf.xlu0
    %v7292 = vpop.trf.xlu0
    %7293 = vxpose.xlu0.b32.start [1/16] %v5261, 128
    %7294 = vxpose.xlu0.b32.cont [2/16] 0.0, 128
    %7295 = vxpose.xlu0.b32.cont [3/16] 0.0, 128
    %7296 = vxpose.xlu0.b32.cont [4/16] 0.0, 128
    %7297 = vxpose.xlu0.b32.cont [5/16] 0.0, 128
    %7298 = vxpose.xlu0.b32.cont [6/16] 0.0, 128
    %7299 = vxpose.xlu0.b32.cont [7/16] 0.0, 128
    %7300 = vxpose.xlu0.b32.cont [8/16] 0.0, 128
    %7301 = vxpose.xlu0.b32.cont [9/16] 0.0, 128
    %7302 = vxpose.xlu0.b32.cont [10/16] 0.0, 128
    %7303 = vxpose.xlu0.b32.cont [11/16] 0.0, 128
    %7304 = vxpose.xlu0.b32.cont [12/16] 0.0, 128
    %7305 = vxpose.xlu0.b32.cont [13/16] 0.0, 128
    %7306 = vxpose.xlu0.b32.cont [14/16] 0.0, 128
    %7307 = vxpose.xlu0.b32.cont [15/16] 0.0, 128
    %7308 = vxpose.xlu0.b32.end [16/16] 0.0, 128
    %v7309 = vpop.trf.xlu0
    %v7310 = vpop.trf.xlu0
    %v7311 = vpop.trf.xlu0
    %v7312 = vpop.trf.xlu0
    %v7313 = vpop.trf.xlu0
    %v7314 = vpop.trf.xlu0
    %v7315 = vpop.trf.xlu0
    %v7316 = vpop.trf.xlu0
    %v7317 = vpop.trf.xlu0
    %v7318 = vpop.trf.xlu0
    %v7319 = vpop.trf.xlu0
    %v7320 = vpop.trf.xlu0
    %v7321 = vpop.trf.xlu0
    %v7322 = vpop.trf.xlu0
    %v7323 = vpop.trf.xlu0
    %v7324 = vpop.trf.xlu0
    %7325 = vxpose.xlu0.b32.start [1/16] %v5264, 128
    %7326 = vxpose.xlu0.b32.cont [2/16] 0.0, 128
    %7327 = vxpose.xlu0.b32.cont [3/16] 0.0, 128
    %7328 = vxpose.xlu0.b32.cont [4/16] 0.0, 128
    %7329 = vxpose.xlu0.b32.cont [5/16] 0.0, 128
    %7330 = vxpose.xlu0.b32.cont [6/16] 0.0, 128
    %7331 = vxpose.xlu0.b32.cont [7/16] 0.0, 128
    %7332 = vxpose.xlu0.b32.cont [8/16] 0.0, 128
    %7333 = vxpose.xlu0.b32.cont [9/16] 0.0, 128
    %7334 = vxpose.xlu0.b32.cont [10/16] 0.0, 128
    %7335 = vxpose.xlu0.b32.cont [11/16] 0.0, 128
    %7336 = vxpose.xlu0.b32.cont [12/16] 0.0, 128
    %7337 = vxpose.xlu0.b32.cont [13/16] 0.0, 128
    %7338 = vxpose.xlu0.b32.cont [14/16] 0.0, 128
    %7339 = vxpose.xlu0.b32.cont [15/16] 0.0, 128
    %7340 = vxpose.xlu0.b32.end [16/16] 0.0, 128
    %v7341 = vpop.trf.xlu0
    %v7342 = vpop.trf.xlu0
    %v7343 = vpop.trf.xlu0
    %v7344 = vpop.trf.xlu0
    %v7345 = vpop.trf.xlu0
    %v7346 = vpop.trf.xlu0
    %v7347 = vpop.trf.xlu0
    %v7348 = vpop.trf.xlu0
    %v7349 = vpop.trf.xlu0
    %v7350 = vpop.trf.xlu0
    %v7351 = vpop.trf.xlu0
    %v7352 = vpop.trf.xlu0
    %v7353 = vpop.trf.xlu0
    %v7354 = vpop.trf.xlu0
    %v7355 = vpop.trf.xlu0
    %v7356 = vpop.trf.xlu0
    %7357 = vxpose.xlu0.b32.start [1/16] %v5267, 128
    %7358 = vxpose.xlu0.b32.cont [2/16] 0.0, 128
    %7359 = vxpose.xlu0.b32.cont [3/16] 0.0, 128
    %7360 = vxpose.xlu0.b32.cont [4/16] 0.0, 128
    %7361 = vxpose.xlu0.b32.cont [5/16] 0.0, 128
    %7362 = vxpose.xlu0.b32.cont [6/16] 0.0, 128
    %7363 = vxpose.xlu0.b32.cont [7/16] 0.0, 128
    %7364 = vxpose.xlu0.b32.cont [8/16] 0.0, 128
    %7365 = vxpose.xlu0.b32.cont [9/16] 0.0, 128
    %7366 = vxpose.xlu0.b32.cont [10/16] 0.0, 128
    %7367 = vxpose.xlu0.b32.cont [11/16] 0.0, 128
    %7368 = vxpose.xlu0.b32.cont [12/16] 0.0, 128
    %7369 = vxpose.xlu0.b32.cont [13/16] 0.0, 128
    %7370 = vxpose.xlu0.b32.cont [14/16] 0.0, 128
    %7371 = vxpose.xlu0.b32.cont [15/16] 0.0, 128
    %7372 = vxpose.xlu0.b32.end [16/16] 0.0, 128
    %v7373 = vpop.trf.xlu0
    %v7374 = vpop.trf.xlu0
    %v7375 = vpop.trf.xlu0
    %v7376 = vpop.trf.xlu0
    %v7377 = vpop.trf.xlu0
    %v7378 = vpop.trf.xlu0
    %v7379 = vpop.trf.xlu0
    %v7380 = vpop.trf.xlu0
    %v7381 = vpop.trf.xlu0
    %v7382 = vpop.trf.xlu0
    %v7383 = vpop.trf.xlu0
    %v7384 = vpop.trf.xlu0
    %v7385 = vpop.trf.xlu0
    %v7386 = vpop.trf.xlu0
    %v7387 = vpop.trf.xlu0
    %v7388 = vpop.trf.xlu0
    %7389 = vxpose.xlu0.b32.start [1/16] %v5270, 128
    %7390 = vxpose.xlu0.b32.cont [2/16] 0.0, 128
    %7391 = vxpose.xlu0.b32.cont [3/16] 0.0, 128
    %7392 = vxpose.xlu0.b32.cont [4/16] 0.0, 128
    %7393 = vxpose.xlu0.b32.cont [5/16] 0.0, 128
    %7394 = vxpose.xlu0.b32.cont [6/16] 0.0, 128
    %7395 = vxpose.xlu0.b32.cont [7/16] 0.0, 128
    %7396 = vxpose.xlu0.b32.cont [8/16] 0.0, 128
    %7397 = vxpose.xlu0.b32.cont [9/16] 0.0, 128
    %7398 = vxpose.xlu0.b32.cont [10/16] 0.0, 128
    %7399 = vxpose.xlu0.b32.cont [11/16] 0.0, 128
    %7400 = vxpose.xlu0.b32.cont [12/16] 0.0, 128
    %7401 = vxpose.xlu0.b32.cont [13/16] 0.0, 128
    %7402 = vxpose.xlu0.b32.cont [14/16] 0.0, 128
    %7403 = vxpose.xlu0.b32.cont [15/16] 0.0, 128
    %7404 = vxpose.xlu0.b32.end [16/16] 0.0, 128
    %v7405 = vpop.trf.xlu0
    %v7406 = vpop.trf.xlu0
    %v7407 = vpop.trf.xlu0
    %v7408 = vpop.trf.xlu0
    %v7409 = vpop.trf.xlu0
    %v7410 = vpop.trf.xlu0
    %v7411 = vpop.trf.xlu0
    %v7412 = vpop.trf.xlu0
    %v7413 = vpop.trf.xlu0
    %v7414 = vpop.trf.xlu0
    %v7415 = vpop.trf.xlu0
    %v7416 = vpop.trf.xlu0
    %v7417 = vpop.trf.xlu0
    %v7418 = vpop.trf.xlu0
    %v7419 = vpop.trf.xlu0
    %v7420 = vpop.trf.xlu0
    %7421 = vxpose.xlu0.b32.start [1/16] %v5273, 128
    %7422 = vxpose.xlu0.b32.cont [2/16] 0.0, 128
    %7423 = vxpose.xlu0.b32.cont [3/16] 0.0, 128
    %7424 = vxpose.xlu0.b32.cont [4/16] 0.0, 128
    %7425 = vxpose.xlu0.b32.cont [5/16] 0.0, 128
    %7426 = vxpose.xlu0.b32.cont [6/16] 0.0, 128
    %7427 = vxpose.xlu0.b32.cont [7/16] 0.0, 128
    %7428 = vxpose.xlu0.b32.cont [8/16] 0.0, 128
    %7429 = vxpose.xlu0.b32.cont [9/16] 0.0, 128
    %7430 = vxpose.xlu0.b32.cont [10/16] 0.0, 128
    %7431 = vxpose.xlu0.b32.cont [11/16] 0.0, 128
    %7432 = vxpose.xlu0.b32.cont [12/16] 0.0, 128
    %7433 = vxpose.xlu0.b32.cont [13/16] 0.0, 128
    %7434 = vxpose.xlu0.b32.cont [14/16] 0.0, 128
    %7435 = vxpose.xlu0.b32.cont [15/16] 0.0, 128
    %7436 = vxpose.xlu0.b32.end [16/16] 0.0, 128
    %v7437 = vpop.trf.xlu0
    %v7438 = vpop.trf.xlu0
    %v7439 = vpop.trf.xlu0
    %v7440 = vpop.trf.xlu0
    %v7441 = vpop.trf.xlu0
    %v7442 = vpop.trf.xlu0
    %v7443 = vpop.trf.xlu0
    %v7444 = vpop.trf.xlu0
    %v7445 = vpop.trf.xlu0
    %v7446 = vpop.trf.xlu0
    %v7447 = vpop.trf.xlu0
    %v7448 = vpop.trf.xlu0
    %v7449 = vpop.trf.xlu0
    %v7450 = vpop.trf.xlu0
    %v7451 = vpop.trf.xlu0
    %v7452 = vpop.trf.xlu0
    %7453 = vxpose.xlu0.b32.start [1/16] %v5276, 128
    %7454 = vxpose.xlu0.b32.cont [2/16] 0.0, 128
    %7455 = vxpose.xlu0.b32.cont [3/16] 0.0, 128
    %7456 = vxpose.xlu0.b32.cont [4/16] 0.0, 128
    %7457 = vxpose.xlu0.b32.cont [5/16] 0.0, 128
    %7458 = vxpose.xlu0.b32.cont [6/16] 0.0, 128
    %7459 = vxpose.xlu0.b32.cont [7/16] 0.0, 128
    %7460 = vxpose.xlu0.b32.cont [8/16] 0.0, 128
    %7461 = vxpose.xlu0.b32.cont [9/16] 0.0, 128
    %7462 = vxpose.xlu0.b32.cont [10/16] 0.0, 128
    %7463 = vxpose.xlu0.b32.cont [11/16] 0.0, 128
    %7464 = vxpose.xlu0.b32.cont [12/16] 0.0, 128
    %7465 = vxpose.xlu0.b32.cont [13/16] 0.0, 128
    %7466 = vxpose.xlu0.b32.cont [14/16] 0.0, 128
    %7467 = vxpose.xlu0.b32.cont [15/16] 0.0, 128
    %7468 = vxpose.xlu0.b32.end [16/16] 0.0, 128
    %v7469 = vpop.trf.xlu0
    %v7470 = vpop.trf.xlu0
    %v7471 = vpop.trf.xlu0
    %v7472 = vpop.trf.xlu0
    %v7473 = vpop.trf.xlu0
    %v7474 = vpop.trf.xlu0
    %v7475 = vpop.trf.xlu0
    %v7476 = vpop.trf.xlu0
    %v7477 = vpop.trf.xlu0
    %v7478 = vpop.trf.xlu0
    %v7479 = vpop.trf.xlu0
    %v7480 = vpop.trf.xlu0
    %v7481 = vpop.trf.xlu0
    %v7482 = vpop.trf.xlu0
    %v7483 = vpop.trf.xlu0
    %v7484 = vpop.trf.xlu0
    %7485 = vxpose.xlu0.b32.start [1/16] %v5279, 128
    %7486 = vxpose.xlu0.b32.cont [2/16] 0.0, 128
    %7487 = vxpose.xlu0.b32.cont [3/16] 0.0, 128
    %7488 = vxpose.xlu0.b32.cont [4/16] 0.0, 128
    %7489 = vxpose.xlu0.b32.cont [5/16] 0.0, 128
    %7490 = vxpose.xlu0.b32.cont [6/16] 0.0, 128
    %7491 = vxpose.xlu0.b32.cont [7/16] 0.0, 128
    %7492 = vxpose.xlu0.b32.cont [8/16] 0.0, 128
    %7493 = vxpose.xlu0.b32.cont [9/16] 0.0, 128
    %7494 = vxpose.xlu0.b32.cont [10/16] 0.0, 128
    %7495 = vxpose.xlu0.b32.cont [11/16] 0.0, 128
    %7496 = vxpose.xlu0.b32.cont [12/16] 0.0, 128
    %7497 = vxpose.xlu0.b32.cont [13/16] 0.0, 128
    %7498 = vxpose.xlu0.b32.cont [14/16] 0.0, 128
    %7499 = vxpose.xlu0.b32.cont [15/16] 0.0, 128
    %7500 = vxpose.xlu0.b32.end [16/16] 0.0, 128
    %v7501 = vpop.trf.xlu0
    %v7502 = vpop.trf.xlu0
    %v7503 = vpop.trf.xlu0
    %v7504 = vpop.trf.xlu0
    %v7505 = vpop.trf.xlu0
    %v7506 = vpop.trf.xlu0
    %v7507 = vpop.trf.xlu0
    %v7508 = vpop.trf.xlu0
    %v7509 = vpop.trf.xlu0
    %v7510 = vpop.trf.xlu0
    %v7511 = vpop.trf.xlu0
    %v7512 = vpop.trf.xlu0
    %v7513 = vpop.trf.xlu0
    %v7514 = vpop.trf.xlu0
    %v7515 = vpop.trf.xlu0
    %v7516 = vpop.trf.xlu0
    %7517 = vxpose.xlu0.b32.start [1/16] %v5282, 128
    %7518 = vxpose.xlu0.b32.cont [2/16] 0.0, 128
    %7519 = vxpose.xlu0.b32.cont [3/16] 0.0, 128
    %7520 = vxpose.xlu0.b32.cont [4/16] 0.0, 128
    %7521 = vxpose.xlu0.b32.cont [5/16] 0.0, 128
    %7522 = vxpose.xlu0.b32.cont [6/16] 0.0, 128
    %7523 = vxpose.xlu0.b32.cont [7/16] 0.0, 128
    %7524 = vxpose.xlu0.b32.cont [8/16] 0.0, 128
    %7525 = vxpose.xlu0.b32.cont [9/16] 0.0, 128
    %7526 = vxpose.xlu0.b32.cont [10/16] 0.0, 128
    %7527 = vxpose.xlu0.b32.cont [11/16] 0.0, 128
    %7528 = vxpose.xlu0.b32.cont [12/16] 0.0, 128
    %7529 = vxpose.xlu0.b32.cont [13/16] 0.0, 128
    %7530 = vxpose.xlu0.b32.cont [14/16] 0.0, 128
    %7531 = vxpose.xlu0.b32.cont [15/16] 0.0, 128
    %7532 = vxpose.xlu0.b32.end [16/16] 0.0, 128
    %v7533 = vpop.trf.xlu0
    %v7534 = vpop.trf.xlu0
    %v7535 = vpop.trf.xlu0
    %v7536 = vpop.trf.xlu0
    %v7537 = vpop.trf.xlu0
    %v7538 = vpop.trf.xlu0
    %v7539 = vpop.trf.xlu0
    %v7540 = vpop.trf.xlu0
    %v7541 = vpop.trf.xlu0
    %v7542 = vpop.trf.xlu0
    %v7543 = vpop.trf.xlu0
    %v7544 = vpop.trf.xlu0
    %v7545 = vpop.trf.xlu0
    %v7546 = vpop.trf.xlu0
    %v7547 = vpop.trf.xlu0
    %v7548 = vpop.trf.xlu0
    %7549 = vxpose.xlu0.b32.start [1/16] %v5285, 128
    %7550 = vxpose.xlu0.b32.cont [2/16] 0.0, 128
    %7551 = vxpose.xlu0.b32.cont [3/16] 0.0, 128
    %7552 = vxpose.xlu0.b32.cont [4/16] 0.0, 128
    %7553 = vxpose.xlu0.b32.cont [5/16] 0.0, 128
    %7554 = vxpose.xlu0.b32.cont [6/16] 0.0, 128
    %7555 = vxpose.xlu0.b32.cont [7/16] 0.0, 128
    %7556 = vxpose.xlu0.b32.cont [8/16] 0.0, 128
    %7557 = vxpose.xlu0.b32.cont [9/16] 0.0, 128
    %7558 = vxpose.xlu0.b32.cont [10/16] 0.0, 128
    %7559 = vxpose.xlu0.b32.cont [11/16] 0.0, 128
    %7560 = vxpose.xlu0.b32.cont [12/16] 0.0, 128
    %7561 = vxpose.xlu0.b32.cont [13/16] 0.0, 128
    %7562 = vxpose.xlu0.b32.cont [14/16] 0.0, 128
    %7563 = vxpose.xlu0.b32.cont [15/16] 0.0, 128
    %7564 = vxpose.xlu0.b32.end [16/16] 0.0, 128
    %v7565 = vpop.trf.xlu0
    %v7566 = vpop.trf.xlu0
    %v7567 = vpop.trf.xlu0
    %v7568 = vpop.trf.xlu0
    %v7569 = vpop.trf.xlu0
    %v7570 = vpop.trf.xlu0
    %v7571 = vpop.trf.xlu0
    %v7572 = vpop.trf.xlu0
    %v7573 = vpop.trf.xlu0
    %v7574 = vpop.trf.xlu0
    %v7575 = vpop.trf.xlu0
    %v7576 = vpop.trf.xlu0
    %v7577 = vpop.trf.xlu0
    %v7578 = vpop.trf.xlu0
    %v7579 = vpop.trf.xlu0
    %v7580 = vpop.trf.xlu0
    %7581 = vxpose.xlu0.b32.start [1/16] %v5288, 128
    %7582 = vxpose.xlu0.b32.cont [2/16] 0.0, 128
    %7583 = vxpose.xlu0.b32.cont [3/16] 0.0, 128
    %7584 = vxpose.xlu0.b32.cont [4/16] 0.0, 128
    %7585 = vxpose.xlu0.b32.cont [5/16] 0.0, 128
    %7586 = vxpose.xlu0.b32.cont [6/16] 0.0, 128
    %7587 = vxpose.xlu0.b32.cont [7/16] 0.0, 128
    %7588 = vxpose.xlu0.b32.cont [8/16] 0.0, 128
    %7589 = vxpose.xlu0.b32.cont [9/16] 0.0, 128
    %7590 = vxpose.xlu0.b32.cont [10/16] 0.0, 128
    %7591 = vxpose.xlu0.b32.cont [11/16] 0.0, 128
    %7592 = vxpose.xlu0.b32.cont [12/16] 0.0, 128
    %7593 = vxpose.xlu0.b32.cont [13/16] 0.0, 128
    %7594 = vxpose.xlu0.b32.cont [14/16] 0.0, 128
    %7595 = vxpose.xlu0.b32.cont [15/16] 0.0, 128
    %7596 = vxpose.xlu0.b32.end [16/16] 0.0, 128
    %v7597 = vpop.trf.xlu0
    %v7598 = vpop.trf.xlu0
    %v7599 = vpop.trf.xlu0
    %v7600 = vpop.trf.xlu0
    %v7601 = vpop.trf.xlu0
    %v7602 = vpop.trf.xlu0
    %v7603 = vpop.trf.xlu0
    %v7604 = vpop.trf.xlu0
    %v7605 = vpop.trf.xlu0
    %v7606 = vpop.trf.xlu0
    %v7607 = vpop.trf.xlu0
    %v7608 = vpop.trf.xlu0
    %v7609 = vpop.trf.xlu0
    %v7610 = vpop.trf.xlu0
    %v7611 = vpop.trf.xlu0
    %v7612 = vpop.trf.xlu0
    %7613 = vxpose.xlu0.b32.start [1/16] %v5291, 128
    %7614 = vxpose.xlu0.b32.cont [2/16] 0.0, 128
    %7615 = vxpose.xlu0.b32.cont [3/16] 0.0, 128
    %7616 = vxpose.xlu0.b32.cont [4/16] 0.0, 128
    %7617 = vxpose.xlu0.b32.cont [5/16] 0.0, 128
    %7618 = vxpose.xlu0.b32.cont [6/16] 0.0, 128
    %7619 = vxpose.xlu0.b32.cont [7/16] 0.0, 128
    %7620 = vxpose.xlu0.b32.cont [8/16] 0.0, 128
    %7621 = vxpose.xlu0.b32.cont [9/16] 0.0, 128
    %7622 = vxpose.xlu0.b32.cont [10/16] 0.0, 128
    %7623 = vxpose.xlu0.b32.cont [11/16] 0.0, 128
    %7624 = vxpose.xlu0.b32.cont [12/16] 0.0, 128
    %7625 = vxpose.xlu0.b32.cont [13/16] 0.0, 128
    %7626 = vxpose.xlu0.b32.cont [14/16] 0.0, 128
    %7627 = vxpose.xlu0.b32.cont [15/16] 0.0, 128
    %7628 = vxpose.xlu0.b32.end [16/16] 0.0, 128
    %v7629 = vpop.trf.xlu0
    %v7630 = vpop.trf.xlu0
    %v7631 = vpop.trf.xlu0
    %v7632 = vpop.trf.xlu0
    %v7633 = vpop.trf.xlu0
    %v7634 = vpop.trf.xlu0
    %v7635 = vpop.trf.xlu0
    %v7636 = vpop.trf.xlu0
    %v7637 = vpop.trf.xlu0
    %v7638 = vpop.trf.xlu0
    %v7639 = vpop.trf.xlu0
    %v7640 = vpop.trf.xlu0
    %v7641 = vpop.trf.xlu0
    %v7642 = vpop.trf.xlu0
    %v7643 = vpop.trf.xlu0
    %v7644 = vpop.trf.xlu0
    %v7646 = vsel %vm967, %v7149, 0
    %v7649 = vsel %vm967, %v7117, 0
    %7651 = vmatprep.subr.mxu0 0.0
    %7652 = vmatpush1.xpose.msra.mxu0 0.0
    %7653 = vmatprep.subr.mxu0 0.0
    %7654 = vmatpush1.xpose.msra.mxu0 0.0
    %7655 = vmatprep.subr.mxu0 0.0
    %7656 = vmatpush1.xpose.msra.mxu0 0.0
    %7657 = vmatprep.subr.mxu0 0.0
    %7658 = vmatpush1.xpose.msra.mxu0 0.0
    %7659 = vmatprep.subr.mxu0 0.0
    %7660 = vmatpush1.xpose.msra.mxu0 0.0
    %7661 = vmatprep.subr.mxu0 0.0
    %7662 = vmatpush1.xpose.msra.mxu0 0.0
    %7663 = vmatprep.subr.mxu0 0.0
    %7664 = vmatpush1.xpose.msra.mxu0 0.0
    %7665 = vmatprep.subr.mxu0 0.0
    %7666 = vmatpush1.xpose.msra.mxu0 0.0
    %7667 = vmatprep.subr.mxu0 0.0
    %7668 = vmatpush1.xpose.msra.mxu0 0.0
    %7669 = vmatprep.subr.mxu0 0.0
    %7670 = vmatpush1.xpose.msra.mxu0 0.0
    %7671 = vmatprep.subr.mxu0 0.0
    %7672 = vmatpush1.xpose.msra.mxu0 0.0
    %7673 = vmatprep.subr.mxu0 0.0
    %7674 = vmatpush1.xpose.msra.mxu0 0.0
    %7675 = vmatprep.subr.mxu0 0.0
    %7676 = vmatpush1.xpose.msra.mxu0 0.0
    %7677 = vmatprep.subr.mxu0 0.0
    %7678 = vmatpush1.xpose.msra.mxu0 0.0
    %7679 = vmatprep.subr.mxu0 0.0
    %7680 = vmatpush1.xpose.msra.mxu0 0.0
    %7681 = vmatprep.subr.mxu0 0.0
    %7682 = vmatpush1.xpose.msra.mxu0 %v7649
    %7683 = vmatprep.subr.mxu0 0.0
    %7684 = vmatpush2.xpose.msra.mxu0 0.0
    %7685 = vmatprep.subr.mxu0 0.0
    %7686 = vmatpush2.xpose.msra.mxu0 0.0
    %7687 = vmatprep.subr.mxu0 0.0
    %7688 = vmatpush2.xpose.msra.mxu0 0.0
    %7689 = vmatprep.subr.mxu0 0.0
    %7690 = vmatpush2.xpose.msra.mxu0 0.0
    %7691 = vmatprep.subr.mxu0 0.0
    %7692 = vmatpush2.xpose.msra.mxu0 0.0
    %7693 = vmatprep.subr.mxu0 0.0
    %7694 = vmatpush2.xpose.msra.mxu0 0.0
    %7695 = vmatprep.subr.mxu0 0.0
    %7696 = vmatpush2.xpose.msra.mxu0 0.0
    %7697 = vmatprep.subr.mxu0 0.0
    %7698 = vmatpush2.xpose.msra.mxu0 0.0
    %7699 = vmatprep.subr.mxu0 0.0
    %7700 = vmatpush2.xpose.msra.mxu0 0.0
    %7701 = vmatprep.subr.mxu0 0.0
    %7702 = vmatpush2.xpose.msra.mxu0 0.0
    %7703 = vmatprep.subr.mxu0 0.0
    %7704 = vmatpush2.xpose.msra.mxu0 0.0
    %7705 = vmatprep.subr.mxu0 0.0
    %7706 = vmatpush2.xpose.msra.mxu0 0.0
    %7707 = vmatprep.subr.mxu0 0.0
    %7708 = vmatpush2.xpose.msra.mxu0 0.0
    %7709 = vmatprep.subr.mxu0 0.0
    %7710 = vmatpush2.xpose.msra.mxu0 0.0
    %7711 = vmatprep.subr.mxu0 0.0
    %7712 = vmatpush2.xpose.msra.mxu0 0.0
    %7713 = vmatprep.subr.mxu0 0.0
    %7714 = vmatpush2.xpose.msra.mxu0 0.0
    %7715 = vmatprep.mubr.f32.mxu0 0.0
    %7716 = vmatmul.mubr.f32.gmra.mxu0 %v7646
    %v7717 = vpop.f32.mrf.mxu0
    %v7718 = vadd.f32 0.0, %v7717
    %v7719 = vpop.f32.mrf.mxu0
    %7720 = vdwg.mxu0
    %v7722 = vsel %vm967, %v7181, 0
    %v7725 = vsel %vm967, %v7118, 0
    %7727 = vmatprep.subr.mxu0 0.0
    %7728 = vmatpush1.xpose.msra.mxu0 0.0
    %7729 = vmatprep.subr.mxu0 0.0
    %7730 = vmatpush1.xpose.msra.mxu0 0.0
    %7731 = vmatprep.subr.mxu0 0.0
    %7732 = vmatpush1.xpose.msra.mxu0 0.0
    %7733 = vmatprep.subr.mxu0 0.0
    %7734 = vmatpush1.xpose.msra.mxu0 0.0
    %7735 = vmatprep.subr.mxu0 0.0
    %7736 = vmatpush1.xpose.msra.mxu0 0.0
    %7737 = vmatprep.subr.mxu0 0.0
    %7738 = vmatpush1.xpose.msra.mxu0 0.0
    %7739 = vmatprep.subr.mxu0 0.0
    %7740 = vmatpush1.xpose.msra.mxu0 0.0
    %7741 = vmatprep.subr.mxu0 0.0
    %7742 = vmatpush1.xpose.msra.mxu0 0.0
    %7743 = vmatprep.subr.mxu0 0.0
    %7744 = vmatpush1.xpose.msra.mxu0 0.0
    %7745 = vmatprep.subr.mxu0 0.0
    %7746 = vmatpush1.xpose.msra.mxu0 0.0
    %7747 = vmatprep.subr.mxu0 0.0
    %7748 = vmatpush1.xpose.msra.mxu0 0.0
    %7749 = vmatprep.subr.mxu0 0.0
    %7750 = vmatpush1.xpose.msra.mxu0 0.0
    %7751 = vmatprep.subr.mxu0 0.0
    %7752 = vmatpush1.xpose.msra.mxu0 0.0
    %7753 = vmatprep.subr.mxu0 0.0
    %7754 = vmatpush1.xpose.msra.mxu0 0.0
    %7755 = vmatprep.subr.mxu0 0.0
    %7756 = vmatpush1.xpose.msra.mxu0 0.0
    %7757 = vmatprep.subr.mxu0 0.0
    %7758 = vmatpush1.xpose.msra.mxu0 %v7725
    %7759 = vmatprep.subr.mxu0 0.0
    %7760 = vmatpush2.xpose.msra.mxu0 0.0
    %7761 = vmatprep.subr.mxu0 0.0
    %7762 = vmatpush2.xpose.msra.mxu0 0.0
    %7763 = vmatprep.subr.mxu0 0.0
    %7764 = vmatpush2.xpose.msra.mxu0 0.0
    %7765 = vmatprep.subr.mxu0 0.0
    %7766 = vmatpush2.xpose.msra.mxu0 0.0
    %7767 = vmatprep.subr.mxu0 0.0
    %7768 = vmatpush2.xpose.msra.mxu0 0.0
    %7769 = vmatprep.subr.mxu0 0.0
    %7770 = vmatpush2.xpose.msra.mxu0 0.0
    %7771 = vmatprep.subr.mxu0 0.0
    %7772 = vmatpush2.xpose.msra.mxu0 0.0
    %7773 = vmatprep.subr.mxu0 0.0
    %7774 = vmatpush2.xpose.msra.mxu0 0.0
    %7775 = vmatprep.subr.mxu0 0.0
    %7776 = vmatpush2.xpose.msra.mxu0 0.0
    %7777 = vmatprep.subr.mxu0 0.0
    %7778 = vmatpush2.xpose.msra.mxu0 0.0
    %7779 = vmatprep.subr.mxu0 0.0
    %7780 = vmatpush2.xpose.msra.mxu0 0.0
    %7781 = vmatprep.subr.mxu0 0.0
    %7782 = vmatpush2.xpose.msra.mxu0 0.0
    %7783 = vmatprep.subr.mxu0 0.0
    %7784 = vmatpush2.xpose.msra.mxu0 0.0
    %7785 = vmatprep.subr.mxu0 0.0
    %7786 = vmatpush2.xpose.msra.mxu0 0.0
    %7787 = vmatprep.subr.mxu0 0.0
    %7788 = vmatpush2.xpose.msra.mxu0 0.0
    %7789 = vmatprep.subr.mxu0 0.0
    %7790 = vmatpush2.xpose.msra.mxu0 0.0
    %7791 = vmatprep.mubr.f32.mxu0 0.0
    %7792 = vmatmul.mubr.f32.gmra.mxu0 %v7722
    %v7793 = vpop.f32.mrf.mxu0
    %v7794 = vadd.f32 0.0, %v7793
    %v7795 = vpop.f32.mrf.mxu0
    %7796 = vdwg.mxu0
    %v7798 = vsel %vm967, %v7213, 0
    %v7801 = vsel %vm967, %v7119, 0
    %7803 = vmatprep.subr.mxu0 0.0
    %7804 = vmatpush1.xpose.msra.mxu0 0.0
    %7805 = vmatprep.subr.mxu0 0.0
    %7806 = vmatpush1.xpose.msra.mxu0 0.0
    %7807 = vmatprep.subr.mxu0 0.0
    %7808 = vmatpush1.xpose.msra.mxu0 0.0
    %7809 = vmatprep.subr.mxu0 0.0
    %7810 = vmatpush1.xpose.msra.mxu0 0.0
    %7811 = vmatprep.subr.mxu0 0.0
    %7812 = vmatpush1.xpose.msra.mxu0 0.0
    %7813 = vmatprep.subr.mxu0 0.0
    %7814 = vmatpush1.xpose.msra.mxu0 0.0
    %7815 = vmatprep.subr.mxu0 0.0
    %7816 = vmatpush1.xpose.msra.mxu0 0.0
    %7817 = vmatprep.subr.mxu0 0.0
    %7818 = vmatpush1.xpose.msra.mxu0 0.0
    %7819 = vmatprep.subr.mxu0 0.0
    %7820 = vmatpush1.xpose.msra.mxu0 0.0
    %7821 = vmatprep.subr.mxu0 0.0
    %7822 = vmatpush1.xpose.msra.mxu0 0.0
    %7823 = vmatprep.subr.mxu0 0.0
    %7824 = vmatpush1.xpose.msra.mxu0 0.0
    %7825 = vmatprep.subr.mxu0 0.0
    %7826 = vmatpush1.xpose.msra.mxu0 0.0
    %7827 = vmatprep.subr.mxu0 0.0
    %7828 = vmatpush1.xpose.msra.mxu0 0.0
    %7829 = vmatprep.subr.mxu0 0.0
    %7830 = vmatpush1.xpose.msra.mxu0 0.0
    %7831 = vmatprep.subr.mxu0 0.0
    %7832 = vmatpush1.xpose.msra.mxu0 0.0
    %7833 = vmatprep.subr.mxu0 0.0
    %7834 = vmatpush1.xpose.msra.mxu0 %v7801
    %7835 = vmatprep.subr.mxu0 0.0
    %7836 = vmatpush2.xpose.msra.mxu0 0.0
    %7837 = vmatprep.subr.mxu0 0.0
    %7838 = vmatpush2.xpose.msra.mxu0 0.0
    %7839 = vmatprep.subr.mxu0 0.0
    %7840 = vmatpush2.xpose.msra.mxu0 0.0
    %7841 = vmatprep.subr.mxu0 0.0
    %7842 = vmatpush2.xpose.msra.mxu0 0.0
    %7843 = vmatprep.subr.mxu0 0.0
    %7844 = vmatpush2.xpose.msra.mxu0 0.0
    %7845 = vmatprep.subr.mxu0 0.0
    %7846 = vmatpush2.xpose.msra.mxu0 0.0
    %7847 = vmatprep.subr.mxu0 0.0
    %7848 = vmatpush2.xpose.msra.mxu0 0.0
    %7849 = vmatprep.subr.mxu0 0.0
    %7850 = vmatpush2.xpose.msra.mxu0 0.0
    %7851 = vmatprep.subr.mxu0 0.0
    %7852 = vmatpush2.xpose.msra.mxu0 0.0
    %7853 = vmatprep.subr.mxu0 0.0
    %7854 = vmatpush2.xpose.msra.mxu0 0.0
    %7855 = vmatprep.subr.mxu0 0.0
    %7856 = vmatpush2.xpose.msra.mxu0 0.0
    %7857 = vmatprep.subr.mxu0 0.0
    %7858 = vmatpush2.xpose.msra.mxu0 0.0
    %7859 = vmatprep.subr.mxu0 0.0
    %7860 = vmatpush2.xpose.msra.mxu0 0.0
    %7861 = vmatprep.subr.mxu0 0.0
    %7862 = vmatpush2.xpose.msra.mxu0 0.0
    %7863 = vmatprep.subr.mxu0 0.0
    %7864 = vmatpush2.xpose.msra.mxu0 0.0
    %7865 = vmatprep.subr.mxu0 0.0
    %7866 = vmatpush2.xpose.msra.mxu0 0.0
    %7867 = vmatprep.mubr.f32.mxu0 0.0
    %7868 = vmatmul.mubr.f32.gmra.mxu0 %v7798
    %v7869 = vpop.f32.mrf.mxu0
    %v7870 = vadd.f32 0.0, %v7869
    %v7871 = vpop.f32.mrf.mxu0
    %7872 = vdwg.mxu0
    %v7874 = vsel %vm967, %v7245, 0
    %v7877 = vsel %vm967, %v7120, 0
    %7879 = vmatprep.subr.mxu0 0.0
    %7880 = vmatpush1.xpose.msra.mxu0 0.0
    %7881 = vmatprep.subr.mxu0 0.0
    %7882 = vmatpush1.xpose.msra.mxu0 0.0
    %7883 = vmatprep.subr.mxu0 0.0
    %7884 = vmatpush1.xpose.msra.mxu0 0.0
    %7885 = vmatprep.subr.mxu0 0.0
    %7886 = vmatpush1.xpose.msra.mxu0 0.0
    %7887 = vmatprep.subr.mxu0 0.0
    %7888 = vmatpush1.xpose.msra.mxu0 0.0
    %7889 = vmatprep.subr.mxu0 0.0
    %7890 = vmatpush1.xpose.msra.mxu0 0.0
    %7891 = vmatprep.subr.mxu0 0.0
    %7892 = vmatpush1.xpose.msra.mxu0 0.0
    %7893 = vmatprep.subr.mxu0 0.0
    %7894 = vmatpush1.xpose.msra.mxu0 0.0
    %7895 = vmatprep.subr.mxu0 0.0
    %7896 = vmatpush1.xpose.msra.mxu0 0.0
    %7897 = vmatprep.subr.mxu0 0.0
    %7898 = vmatpush1.xpose.msra.mxu0 0.0
    %7899 = vmatprep.subr.mxu0 0.0
    %7900 = vmatpush1.xpose.msra.mxu0 0.0
    %7901 = vmatprep.subr.mxu0 0.0
    %7902 = vmatpush1.xpose.msra.mxu0 0.0
    %7903 = vmatprep.subr.mxu0 0.0
    %7904 = vmatpush1.xpose.msra.mxu0 0.0
    %7905 = vmatprep.subr.mxu0 0.0
    %7906 = vmatpush1.xpose.msra.mxu0 0.0
    %7907 = vmatprep.subr.mxu0 0.0
    %7908 = vmatpush1.xpose.msra.mxu0 0.0
    %7909 = vmatprep.subr.mxu0 0.0
    %7910 = vmatpush1.xpose.msra.mxu0 %v7877
    %7911 = vmatprep.subr.mxu0 0.0
    %7912 = vmatpush2.xpose.msra.mxu0 0.0
    %7913 = vmatprep.subr.mxu0 0.0
    %7914 = vmatpush2.xpose.msra.mxu0 0.0
    %7915 = vmatprep.subr.mxu0 0.0
    %7916 = vmatpush2.xpose.msra.mxu0 0.0
    %7917 = vmatprep.subr.mxu0 0.0
    %7918 = vmatpush2.xpose.msra.mxu0 0.0
    %7919 = vmatprep.subr.mxu0 0.0
    %7920 = vmatpush2.xpose.msra.mxu0 0.0
    %7921 = vmatprep.subr.mxu0 0.0
    %7922 = vmatpush2.xpose.msra.mxu0 0.0
    %7923 = vmatprep.subr.mxu0 0.0
    %7924 = vmatpush2.xpose.msra.mxu0 0.0
    %7925 = vmatprep.subr.mxu0 0.0
    %7926 = vmatpush2.xpose.msra.mxu0 0.0
    %7927 = vmatprep.subr.mxu0 0.0
    %7928 = vmatpush2.xpose.msra.mxu0 0.0
    %7929 = vmatprep.subr.mxu0 0.0
    %7930 = vmatpush2.xpose.msra.mxu0 0.0
    %7931 = vmatprep.subr.mxu0 0.0
    %7932 = vmatpush2.xpose.msra.mxu0 0.0
    %7933 = vmatprep.subr.mxu0 0.0
    %7934 = vmatpush2.xpose.msra.mxu0 0.0
    %7935 = vmatprep.subr.mxu0 0.0
    %7936 = vmatpush2.xpose.msra.mxu0 0.0
    %7937 = vmatprep.subr.mxu0 0.0
    %7938 = vmatpush2.xpose.msra.mxu0 0.0
    %7939 = vmatprep.subr.mxu0 0.0
    %7940 = vmatpush2.xpose.msra.mxu0 0.0
    %7941 = vmatprep.subr.mxu0 0.0
    %7942 = vmatpush2.xpose.msra.mxu0 0.0
    %7943 = vmatprep.mubr.f32.mxu0 0.0
    %7944 = vmatmul.mubr.f32.gmra.mxu0 %v7874
    %v7945 = vpop.f32.mrf.mxu0
    %v7946 = vadd.f32 0.0, %v7945
    %v7947 = vpop.f32.mrf.mxu0
    %7948 = vdwg.mxu0
    %v7950 = vsel %vm967, %v7277, 0
    %v7953 = vsel %vm967, %v7121, 0
    %7955 = vmatprep.subr.mxu0 0.0
    %7956 = vmatpush1.xpose.msra.mxu0 0.0
    %7957 = vmatprep.subr.mxu0 0.0
    %7958 = vmatpush1.xpose.msra.mxu0 0.0
    %7959 = vmatprep.subr.mxu0 0.0
    %7960 = vmatpush1.xpose.msra.mxu0 0.0
    %7961 = vmatprep.subr.mxu0 0.0
    %7962 = vmatpush1.xpose.msra.mxu0 0.0
    %7963 = vmatprep.subr.mxu0 0.0
    %7964 = vmatpush1.xpose.msra.mxu0 0.0
    %7965 = vmatprep.subr.mxu0 0.0
    %7966 = vmatpush1.xpose.msra.mxu0 0.0
    %7967 = vmatprep.subr.mxu0 0.0
    %7968 = vmatpush1.xpose.msra.mxu0 0.0
    %7969 = vmatprep.subr.mxu0 0.0
    %7970 = vmatpush1.xpose.msra.mxu0 0.0
    %7971 = vmatprep.subr.mxu0 0.0
    %7972 = vmatpush1.xpose.msra.mxu0 0.0
    %7973 = vmatprep.subr.mxu0 0.0
    %7974 = vmatpush1.xpose.msra.mxu0 0.0
    %7975 = vmatprep.subr.mxu0 0.0
    %7976 = vmatpush1.xpose.msra.mxu0 0.0
    %7977 = vmatprep.subr.mxu0 0.0
    %7978 = vmatpush1.xpose.msra.mxu0 0.0
    %7979 = vmatprep.subr.mxu0 0.0
    %7980 = vmatpush1.xpose.msra.mxu0 0.0
    %7981 = vmatprep.subr.mxu0 0.0
    %7982 = vmatpush1.xpose.msra.mxu0 0.0
    %7983 = vmatprep.subr.mxu0 0.0
    %7984 = vmatpush1.xpose.msra.mxu0 0.0
    %7985 = vmatprep.subr.mxu0 0.0
    %7986 = vmatpush1.xpose.msra.mxu0 %v7953
    %7987 = vmatprep.subr.mxu0 0.0
    %7988 = vmatpush2.xpose.msra.mxu0 0.0
    %7989 = vmatprep.subr.mxu0 0.0
    %7990 = vmatpush2.xpose.msra.mxu0 0.0
    %7991 = vmatprep.subr.mxu0 0.0
    %7992 = vmatpush2.xpose.msra.mxu0 0.0
    %7993 = vmatprep.subr.mxu0 0.0
    %7994 = vmatpush2.xpose.msra.mxu0 0.0
    %7995 = vmatprep.subr.mxu0 0.0
    %7996 = vmatpush2.xpose.msra.mxu0 0.0
    %7997 = vmatprep.subr.mxu0 0.0
    %7998 = vmatpush2.xpose.msra.mxu0 0.0
    %7999 = vmatprep.subr.mxu0 0.0
    %8000 = vmatpush2.xpose.msra.mxu0 0.0
    %8001 = vmatprep.subr.mxu0 0.0
    %8002 = vmatpush2.xpose.msra.mxu0 0.0
    %8003 = vmatprep.subr.mxu0 0.0
    %8004 = vmatpush2.xpose.msra.mxu0 0.0
    %8005 = vmatprep.subr.mxu0 0.0
    %8006 = vmatpush2.xpose.msra.mxu0 0.0
    %8007 = vmatprep.subr.mxu0 0.0
    %8008 = vmatpush2.xpose.msra.mxu0 0.0
    %8009 = vmatprep.subr.mxu0 0.0
    %8010 = vmatpush2.xpose.msra.mxu0 0.0
    %8011 = vmatprep.subr.mxu0 0.0
    %8012 = vmatpush2.xpose.msra.mxu0 0.0
    %8013 = vmatprep.subr.mxu0 0.0
    %8014 = vmatpush2.xpose.msra.mxu0 0.0
    %8015 = vmatprep.subr.mxu0 0.0
    %8016 = vmatpush2.xpose.msra.mxu0 0.0
    %8017 = vmatprep.subr.mxu0 0.0
    %8018 = vmatpush2.xpose.msra.mxu0 0.0
    %8019 = vmatprep.mubr.f32.mxu0 0.0
    %8020 = vmatmul.mubr.f32.gmra.mxu0 %v7950
    %v8021 = vpop.f32.mrf.mxu0
    %v8022 = vadd.f32 0.0, %v8021
    %v8023 = vpop.f32.mrf.mxu0
    %8024 = vdwg.mxu0
    %v8026 = vsel %vm967, %v7309, 0
    %v8029 = vsel %vm967, %v7122, 0
    %8031 = vmatprep.subr.mxu0 0.0
    %8032 = vmatpush1.xpose.msra.mxu0 0.0
    %8033 = vmatprep.subr.mxu0 0.0
    %8034 = vmatpush1.xpose.msra.mxu0 0.0
    %8035 = vmatprep.subr.mxu0 0.0
    %8036 = vmatpush1.xpose.msra.mxu0 0.0
    %8037 = vmatprep.subr.mxu0 0.0
    %8038 = vmatpush1.xpose.msra.mxu0 0.0
    %8039 = vmatprep.subr.mxu0 0.0
    %8040 = vmatpush1.xpose.msra.mxu0 0.0
    %8041 = vmatprep.subr.mxu0 0.0
    %8042 = vmatpush1.xpose.msra.mxu0 0.0
    %8043 = vmatprep.subr.mxu0 0.0
    %8044 = vmatpush1.xpose.msra.mxu0 0.0
    %8045 = vmatprep.subr.mxu0 0.0
    %8046 = vmatpush1.xpose.msra.mxu0 0.0
    %8047 = vmatprep.subr.mxu0 0.0
    %8048 = vmatpush1.xpose.msra.mxu0 0.0
    %8049 = vmatprep.subr.mxu0 0.0
    %8050 = vmatpush1.xpose.msra.mxu0 0.0
    %8051 = vmatprep.subr.mxu0 0.0
    %8052 = vmatpush1.xpose.msra.mxu0 0.0
    %8053 = vmatprep.subr.mxu0 0.0
    %8054 = vmatpush1.xpose.msra.mxu0 0.0
    %8055 = vmatprep.subr.mxu0 0.0
    %8056 = vmatpush1.xpose.msra.mxu0 0.0
    %8057 = vmatprep.subr.mxu0 0.0
    %8058 = vmatpush1.xpose.msra.mxu0 0.0
    %8059 = vmatprep.subr.mxu0 0.0
    %8060 = vmatpush1.xpose.msra.mxu0 0.0
    %8061 = vmatprep.subr.mxu0 0.0
    %8062 = vmatpush1.xpose.msra.mxu0 %v8029
    %8063 = vmatprep.subr.mxu0 0.0
    %8064 = vmatpush2.xpose.msra.mxu0 0.0
    %8065 = vmatprep.subr.mxu0 0.0
    %8066 = vmatpush2.xpose.msra.mxu0 0.0
    %8067 = vmatprep.subr.mxu0 0.0
    %8068 = vmatpush2.xpose.msra.mxu0 0.0
    %8069 = vmatprep.subr.mxu0 0.0
    %8070 = vmatpush2.xpose.msra.mxu0 0.0
    %8071 = vmatprep.subr.mxu0 0.0
    %8072 = vmatpush2.xpose.msra.mxu0 0.0
    %8073 = vmatprep.subr.mxu0 0.0
    %8074 = vmatpush2.xpose.msra.mxu0 0.0
    %8075 = vmatprep.subr.mxu0 0.0
    %8076 = vmatpush2.xpose.msra.mxu0 0.0
    %8077 = vmatprep.subr.mxu0 0.0
    %8078 = vmatpush2.xpose.msra.mxu0 0.0
    %8079 = vmatprep.subr.mxu0 0.0
    %8080 = vmatpush2.xpose.msra.mxu0 0.0
    %8081 = vmatprep.subr.mxu0 0.0
    %8082 = vmatpush2.xpose.msra.mxu0 0.0
    %8083 = vmatprep.subr.mxu0 0.0
    %8084 = vmatpush2.xpose.msra.mxu0 0.0
    %8085 = vmatprep.subr.mxu0 0.0
    %8086 = vmatpush2.xpose.msra.mxu0 0.0
    %8087 = vmatprep.subr.mxu0 0.0
    %8088 = vmatpush2.xpose.msra.mxu0 0.0
    %8089 = vmatprep.subr.mxu0 0.0
    %8090 = vmatpush2.xpose.msra.mxu0 0.0
    %8091 = vmatprep.subr.mxu0 0.0
    %8092 = vmatpush2.xpose.msra.mxu0 0.0
    %8093 = vmatprep.subr.mxu0 0.0
    %8094 = vmatpush2.xpose.msra.mxu0 0.0
    %8095 = vmatprep.mubr.f32.mxu0 0.0
    %8096 = vmatmul.mubr.f32.gmra.mxu0 %v8026
    %v8097 = vpop.f32.mrf.mxu0
    %v8098 = vadd.f32 0.0, %v8097
    %v8099 = vpop.f32.mrf.mxu0
    %8100 = vdwg.mxu0
    %v8102 = vsel %vm967, %v7341, 0
    %v8105 = vsel %vm967, %v7123, 0
    %8107 = vmatprep.subr.mxu0 0.0
    %8108 = vmatpush1.xpose.msra.mxu0 0.0
    %8109 = vmatprep.subr.mxu0 0.0
    %8110 = vmatpush1.xpose.msra.mxu0 0.0
    %8111 = vmatprep.subr.mxu0 0.0
    %8112 = vmatpush1.xpose.msra.mxu0 0.0
    %8113 = vmatprep.subr.mxu0 0.0
    %8114 = vmatpush1.xpose.msra.mxu0 0.0
    %8115 = vmatprep.subr.mxu0 0.0
    %8116 = vmatpush1.xpose.msra.mxu0 0.0
    %8117 = vmatprep.subr.mxu0 0.0
    %8118 = vmatpush1.xpose.msra.mxu0 0.0
    %8119 = vmatprep.subr.mxu0 0.0
    %8120 = vmatpush1.xpose.msra.mxu0 0.0
    %8121 = vmatprep.subr.mxu0 0.0
    %8122 = vmatpush1.xpose.msra.mxu0 0.0
    %8123 = vmatprep.subr.mxu0 0.0
    %8124 = vmatpush1.xpose.msra.mxu0 0.0
    %8125 = vmatprep.subr.mxu0 0.0
    %8126 = vmatpush1.xpose.msra.mxu0 0.0
    %8127 = vmatprep.subr.mxu0 0.0
    %8128 = vmatpush1.xpose.msra.mxu0 0.0
    %8129 = vmatprep.subr.mxu0 0.0
    %8130 = vmatpush1.xpose.msra.mxu0 0.0
    %8131 = vmatprep.subr.mxu0 0.0
    %8132 = vmatpush1.xpose.msra.mxu0 0.0
    %8133 = vmatprep.subr.mxu0 0.0
    %8134 = vmatpush1.xpose.msra.mxu0 0.0
    %8135 = vmatprep.subr.mxu0 0.0
    %8136 = vmatpush1.xpose.msra.mxu0 0.0
    %8137 = vmatprep.subr.mxu0 0.0
    %8138 = vmatpush1.xpose.msra.mxu0 %v8105
    %8139 = vmatprep.subr.mxu0 0.0
    %8140 = vmatpush2.xpose.msra.mxu0 0.0
    %8141 = vmatprep.subr.mxu0 0.0
    %8142 = vmatpush2.xpose.msra.mxu0 0.0
    %8143 = vmatprep.subr.mxu0 0.0
    %8144 = vmatpush2.xpose.msra.mxu0 0.0
    %8145 = vmatprep.subr.mxu0 0.0
    %8146 = vmatpush2.xpose.msra.mxu0 0.0
    %8147 = vmatprep.subr.mxu0 0.0
    %8148 = vmatpush2.xpose.msra.mxu0 0.0
    %8149 = vmatprep.subr.mxu0 0.0
    %8150 = vmatpush2.xpose.msra.mxu0 0.0
    %8151 = vmatprep.subr.mxu0 0.0
    %8152 = vmatpush2.xpose.msra.mxu0 0.0
    %8153 = vmatprep.subr.mxu0 0.0
    %8154 = vmatpush2.xpose.msra.mxu0 0.0
    %8155 = vmatprep.subr.mxu0 0.0
    %8156 = vmatpush2.xpose.msra.mxu0 0.0
    %8157 = vmatprep.subr.mxu0 0.0
    %8158 = vmatpush2.xpose.msra.mxu0 0.0
    %8159 = vmatprep.subr.mxu0 0.0
    %8160 = vmatpush2.xpose.msra.mxu0 0.0
    %8161 = vmatprep.subr.mxu0 0.0
    %8162 = vmatpush2.xpose.msra.mxu0 0.0
    %8163 = vmatprep.subr.mxu0 0.0
    %8164 = vmatpush2.xpose.msra.mxu0 0.0
    %8165 = vmatprep.subr.mxu0 0.0
    %8166 = vmatpush2.xpose.msra.mxu0 0.0
    %8167 = vmatprep.subr.mxu0 0.0
    %8168 = vmatpush2.xpose.msra.mxu0 0.0
    %8169 = vmatprep.subr.mxu0 0.0
    %8170 = vmatpush2.xpose.msra.mxu0 0.0
    %8171 = vmatprep.mubr.f32.mxu0 0.0
    %8172 = vmatmul.mubr.f32.gmra.mxu0 %v8102
    %v8173 = vpop.f32.mrf.mxu0
    %v8174 = vadd.f32 0.0, %v8173
    %v8175 = vpop.f32.mrf.mxu0
    %8176 = vdwg.mxu0
    %v8178 = vsel %vm967, %v7373, 0
    %v8181 = vsel %vm967, %v7124, 0
    %8183 = vmatprep.subr.mxu0 0.0
    %8184 = vmatpush1.xpose.msra.mxu0 0.0
    %8185 = vmatprep.subr.mxu0 0.0
    %8186 = vmatpush1.xpose.msra.mxu0 0.0
    %8187 = vmatprep.subr.mxu0 0.0
    %8188 = vmatpush1.xpose.msra.mxu0 0.0
    %8189 = vmatprep.subr.mxu0 0.0
    %8190 = vmatpush1.xpose.msra.mxu0 0.0
    %8191 = vmatprep.subr.mxu0 0.0
    %8192 = vmatpush1.xpose.msra.mxu0 0.0
    %8193 = vmatprep.subr.mxu0 0.0
    %8194 = vmatpush1.xpose.msra.mxu0 0.0
    %8195 = vmatprep.subr.mxu0 0.0
    %8196 = vmatpush1.xpose.msra.mxu0 0.0
    %8197 = vmatprep.subr.mxu0 0.0
    %8198 = vmatpush1.xpose.msra.mxu0 0.0
    %8199 = vmatprep.subr.mxu0 0.0
    %8200 = vmatpush1.xpose.msra.mxu0 0.0
    %8201 = vmatprep.subr.mxu0 0.0
    %8202 = vmatpush1.xpose.msra.mxu0 0.0
    %8203 = vmatprep.subr.mxu0 0.0
    %8204 = vmatpush1.xpose.msra.mxu0 0.0
    %8205 = vmatprep.subr.mxu0 0.0
    %8206 = vmatpush1.xpose.msra.mxu0 0.0
    %8207 = vmatprep.subr.mxu0 0.0
    %8208 = vmatpush1.xpose.msra.mxu0 0.0
    %8209 = vmatprep.subr.mxu0 0.0
    %8210 = vmatpush1.xpose.msra.mxu0 0.0
    %8211 = vmatprep.subr.mxu0 0.0
    %8212 = vmatpush1.xpose.msra.mxu0 0.0
    %8213 = vmatprep.subr.mxu0 0.0
    %8214 = vmatpush1.xpose.msra.mxu0 %v8181
    %8215 = vmatprep.subr.mxu0 0.0
    %8216 = vmatpush2.xpose.msra.mxu0 0.0
    %8217 = vmatprep.subr.mxu0 0.0
    %8218 = vmatpush2.xpose.msra.mxu0 0.0
    %8219 = vmatprep.subr.mxu0 0.0
    %8220 = vmatpush2.xpose.msra.mxu0 0.0
    %8221 = vmatprep.subr.mxu0 0.0
    %8222 = vmatpush2.xpose.msra.mxu0 0.0
    %8223 = vmatprep.subr.mxu0 0.0
    %8224 = vmatpush2.xpose.msra.mxu0 0.0
    %8225 = vmatprep.subr.mxu0 0.0
    %8226 = vmatpush2.xpose.msra.mxu0 0.0
    %8227 = vmatprep.subr.mxu0 0.0
    %8228 = vmatpush2.xpose.msra.mxu0 0.0
    %8229 = vmatprep.subr.mxu0 0.0
    %8230 = vmatpush2.xpose.msra.mxu0 0.0
    %8231 = vmatprep.subr.mxu0 0.0
    %8232 = vmatpush2.xpose.msra.mxu0 0.0
    %8233 = vmatprep.subr.mxu0 0.0
    %8234 = vmatpush2.xpose.msra.mxu0 0.0
    %8235 = vmatprep.subr.mxu0 0.0
    %8236 = vmatpush2.xpose.msra.mxu0 0.0
    %8237 = vmatprep.subr.mxu0 0.0
    %8238 = vmatpush2.xpose.msra.mxu0 0.0
    %8239 = vmatprep.subr.mxu0 0.0
    %8240 = vmatpush2.xpose.msra.mxu0 0.0
    %8241 = vmatprep.subr.mxu0 0.0
    %8242 = vmatpush2.xpose.msra.mxu0 0.0
    %8243 = vmatprep.subr.mxu0 0.0
    %8244 = vmatpush2.xpose.msra.mxu0 0.0
    %8245 = vmatprep.subr.mxu0 0.0
    %8246 = vmatpush2.xpose.msra.mxu0 0.0
    %8247 = vmatprep.mubr.f32.mxu0 0.0
    %8248 = vmatmul.mubr.f32.gmra.mxu0 %v8178
    %v8249 = vpop.f32.mrf.mxu0
    %v8250 = vadd.f32 0.0, %v8249
    %v8251 = vpop.f32.mrf.mxu0
    %8252 = vdwg.mxu0
    %v8254 = vsel %vm967, %v7405, 0
    %v8257 = vsel %vm967, %v7125, 0
    %8259 = vmatprep.subr.mxu0 0.0
    %8260 = vmatpush1.xpose.msra.mxu0 0.0
    %8261 = vmatprep.subr.mxu0 0.0
    %8262 = vmatpush1.xpose.msra.mxu0 0.0
    %8263 = vmatprep.subr.mxu0 0.0
    %8264 = vmatpush1.xpose.msra.mxu0 0.0
    %8265 = vmatprep.subr.mxu0 0.0
    %8266 = vmatpush1.xpose.msra.mxu0 0.0
    %8267 = vmatprep.subr.mxu0 0.0
    %8268 = vmatpush1.xpose.msra.mxu0 0.0
    %8269 = vmatprep.subr.mxu0 0.0
    %8270 = vmatpush1.xpose.msra.mxu0 0.0
    %8271 = vmatprep.subr.mxu0 0.0
    %8272 = vmatpush1.xpose.msra.mxu0 0.0
    %8273 = vmatprep.subr.mxu0 0.0
    %8274 = vmatpush1.xpose.msra.mxu0 0.0
    %8275 = vmatprep.subr.mxu0 0.0
    %8276 = vmatpush1.xpose.msra.mxu0 0.0
    %8277 = vmatprep.subr.mxu0 0.0
    %8278 = vmatpush1.xpose.msra.mxu0 0.0
    %8279 = vmatprep.subr.mxu0 0.0
    %8280 = vmatpush1.xpose.msra.mxu0 0.0
    %8281 = vmatprep.subr.mxu0 0.0
    %8282 = vmatpush1.xpose.msra.mxu0 0.0
    %8283 = vmatprep.subr.mxu0 0.0
    %8284 = vmatpush1.xpose.msra.mxu0 0.0
    %8285 = vmatprep.subr.mxu0 0.0
    %8286 = vmatpush1.xpose.msra.mxu0 0.0
    %8287 = vmatprep.subr.mxu0 0.0
    %8288 = vmatpush1.xpose.msra.mxu0 0.0
    %8289 = vmatprep.subr.mxu0 0.0
    %8290 = vmatpush1.xpose.msra.mxu0 %v8257
    %8291 = vmatprep.subr.mxu0 0.0
    %8292 = vmatpush2.xpose.msra.mxu0 0.0
    %8293 = vmatprep.subr.mxu0 0.0
    %8294 = vmatpush2.xpose.msra.mxu0 0.0
    %8295 = vmatprep.subr.mxu0 0.0
    %8296 = vmatpush2.xpose.msra.mxu0 0.0
    %8297 = vmatprep.subr.mxu0 0.0
    %8298 = vmatpush2.xpose.msra.mxu0 0.0
    %8299 = vmatprep.subr.mxu0 0.0
    %8300 = vmatpush2.xpose.msra.mxu0 0.0
    %8301 = vmatprep.subr.mxu0 0.0
    %8302 = vmatpush2.xpose.msra.mxu0 0.0
    %8303 = vmatprep.subr.mxu0 0.0
    %8304 = vmatpush2.xpose.msra.mxu0 0.0
    %8305 = vmatprep.subr.mxu0 0.0
    %8306 = vmatpush2.xpose.msra.mxu0 0.0
    %8307 = vmatprep.subr.mxu0 0.0
    %8308 = vmatpush2.xpose.msra.mxu0 0.0
    %8309 = vmatprep.subr.mxu0 0.0
    %8310 = vmatpush2.xpose.msra.mxu0 0.0
    %8311 = vmatprep.subr.mxu0 0.0
    %8312 = vmatpush2.xpose.msra.mxu0 0.0
    %8313 = vmatprep.subr.mxu0 0.0
    %8314 = vmatpush2.xpose.msra.mxu0 0.0
    %8315 = vmatprep.subr.mxu0 0.0
    %8316 = vmatpush2.xpose.msra.mxu0 0.0
    %8317 = vmatprep.subr.mxu0 0.0
    %8318 = vmatpush2.xpose.msra.mxu0 0.0
    %8319 = vmatprep.subr.mxu0 0.0
    %8320 = vmatpush2.xpose.msra.mxu0 0.0
    %8321 = vmatprep.subr.mxu0 0.0
    %8322 = vmatpush2.xpose.msra.mxu0 0.0
    %8323 = vmatprep.mubr.f32.mxu0 0.0
    %8324 = vmatmul.mubr.f32.gmra.mxu0 %v8254
    %v8325 = vpop.f32.mrf.mxu0
    %v8326 = vadd.f32 0.0, %v8325
    %v8327 = vpop.f32.mrf.mxu0
    %8328 = vdwg.mxu0
    %v8330 = vsel %vm967, %v7437, 0
    %v8333 = vsel %vm967, %v7126, 0
    %8335 = vmatprep.subr.mxu0 0.0
    %8336 = vmatpush1.xpose.msra.mxu0 0.0
    %8337 = vmatprep.subr.mxu0 0.0
    %8338 = vmatpush1.xpose.msra.mxu0 0.0
    %8339 = vmatprep.subr.mxu0 0.0
    %8340 = vmatpush1.xpose.msra.mxu0 0.0
    %8341 = vmatprep.subr.mxu0 0.0
    %8342 = vmatpush1.xpose.msra.mxu0 0.0
    %8343 = vmatprep.subr.mxu0 0.0
    %8344 = vmatpush1.xpose.msra.mxu0 0.0
    %8345 = vmatprep.subr.mxu0 0.0
    %8346 = vmatpush1.xpose.msra.mxu0 0.0
    %8347 = vmatprep.subr.mxu0 0.0
    %8348 = vmatpush1.xpose.msra.mxu0 0.0
    %8349 = vmatprep.subr.mxu0 0.0
    %8350 = vmatpush1.xpose.msra.mxu0 0.0
    %8351 = vmatprep.subr.mxu0 0.0
    %8352 = vmatpush1.xpose.msra.mxu0 0.0
    %8353 = vmatprep.subr.mxu0 0.0
    %8354 = vmatpush1.xpose.msra.mxu0 0.0
    %8355 = vmatprep.subr.mxu0 0.0
    %8356 = vmatpush1.xpose.msra.mxu0 0.0
    %8357 = vmatprep.subr.mxu0 0.0
    %8358 = vmatpush1.xpose.msra.mxu0 0.0
    %8359 = vmatprep.subr.mxu0 0.0
    %8360 = vmatpush1.xpose.msra.mxu0 0.0
    %8361 = vmatprep.subr.mxu0 0.0
    %8362 = vmatpush1.xpose.msra.mxu0 0.0
    %8363 = vmatprep.subr.mxu0 0.0
    %8364 = vmatpush1.xpose.msra.mxu0 0.0
    %8365 = vmatprep.subr.mxu0 0.0
    %8366 = vmatpush1.xpose.msra.mxu0 %v8333
    %8367 = vmatprep.subr.mxu0 0.0
    %8368 = vmatpush2.xpose.msra.mxu0 0.0
    %8369 = vmatprep.subr.mxu0 0.0
    %8370 = vmatpush2.xpose.msra.mxu0 0.0
    %8371 = vmatprep.subr.mxu0 0.0
    %8372 = vmatpush2.xpose.msra.mxu0 0.0
    %8373 = vmatprep.subr.mxu0 0.0
    %8374 = vmatpush2.xpose.msra.mxu0 0.0
    %8375 = vmatprep.subr.mxu0 0.0
    %8376 = vmatpush2.xpose.msra.mxu0 0.0
    %8377 = vmatprep.subr.mxu0 0.0
    %8378 = vmatpush2.xpose.msra.mxu0 0.0
    %8379 = vmatprep.subr.mxu0 0.0
    %8380 = vmatpush2.xpose.msra.mxu0 0.0
    %8381 = vmatprep.subr.mxu0 0.0
    %8382 = vmatpush2.xpose.msra.mxu0 0.0
    %8383 = vmatprep.subr.mxu0 0.0
    %8384 = vmatpush2.xpose.msra.mxu0 0.0
    %8385 = vmatprep.subr.mxu0 0.0
    %8386 = vmatpush2.xpose.msra.mxu0 0.0
    %8387 = vmatprep.subr.mxu0 0.0
    %8388 = vmatpush2.xpose.msra.mxu0 0.0
    %8389 = vmatprep.subr.mxu0 0.0
    %8390 = vmatpush2.xpose.msra.mxu0 0.0
    %8391 = vmatprep.subr.mxu0 0.0
    %8392 = vmatpush2.xpose.msra.mxu0 0.0
    %8393 = vmatprep.subr.mxu0 0.0
    %8394 = vmatpush2.xpose.msra.mxu0 0.0
    %8395 = vmatprep.subr.mxu0 0.0
    %8396 = vmatpush2.xpose.msra.mxu0 0.0
    %8397 = vmatprep.subr.mxu0 0.0
    %8398 = vmatpush2.xpose.msra.mxu0 0.0
    %8399 = vmatprep.mubr.f32.mxu0 0.0
    %8400 = vmatmul.mubr.f32.gmra.mxu0 %v8330
    %v8401 = vpop.f32.mrf.mxu0
    %v8402 = vadd.f32 0.0, %v8401
    %v8403 = vpop.f32.mrf.mxu0
    %8404 = vdwg.mxu0
    %v8406 = vsel %vm967, %v7469, 0
    %v8409 = vsel %vm967, %v7127, 0
    %8411 = vmatprep.subr.mxu0 0.0
    %8412 = vmatpush1.xpose.msra.mxu0 0.0
    %8413 = vmatprep.subr.mxu0 0.0
    %8414 = vmatpush1.xpose.msra.mxu0 0.0
    %8415 = vmatprep.subr.mxu0 0.0
    %8416 = vmatpush1.xpose.msra.mxu0 0.0
    %8417 = vmatprep.subr.mxu0 0.0
    %8418 = vmatpush1.xpose.msra.mxu0 0.0
    %8419 = vmatprep.subr.mxu0 0.0
    %8420 = vmatpush1.xpose.msra.mxu0 0.0
    %8421 = vmatprep.subr.mxu0 0.0
    %8422 = vmatpush1.xpose.msra.mxu0 0.0
    %8423 = vmatprep.subr.mxu0 0.0
    %8424 = vmatpush1.xpose.msra.mxu0 0.0
    %8425 = vmatprep.subr.mxu0 0.0
    %8426 = vmatpush1.xpose.msra.mxu0 0.0
    %8427 = vmatprep.subr.mxu0 0.0
    %8428 = vmatpush1.xpose.msra.mxu0 0.0
    %8429 = vmatprep.subr.mxu0 0.0
    %8430 = vmatpush1.xpose.msra.mxu0 0.0
    %8431 = vmatprep.subr.mxu0 0.0
    %8432 = vmatpush1.xpose.msra.mxu0 0.0
    %8433 = vmatprep.subr.mxu0 0.0
    %8434 = vmatpush1.xpose.msra.mxu0 0.0
    %8435 = vmatprep.subr.mxu0 0.0
    %8436 = vmatpush1.xpose.msra.mxu0 0.0
    %8437 = vmatprep.subr.mxu0 0.0
    %8438 = vmatpush1.xpose.msra.mxu0 0.0
    %8439 = vmatprep.subr.mxu0 0.0
    %8440 = vmatpush1.xpose.msra.mxu0 0.0
    %8441 = vmatprep.subr.mxu0 0.0
    %8442 = vmatpush1.xpose.msra.mxu0 %v8409
    %8443 = vmatprep.subr.mxu0 0.0
    %8444 = vmatpush2.xpose.msra.mxu0 0.0
    %8445 = vmatprep.subr.mxu0 0.0
    %8446 = vmatpush2.xpose.msra.mxu0 0.0
    %8447 = vmatprep.subr.mxu0 0.0
    %8448 = vmatpush2.xpose.msra.mxu0 0.0
    %8449 = vmatprep.subr.mxu0 0.0
    %8450 = vmatpush2.xpose.msra.mxu0 0.0
    %8451 = vmatprep.subr.mxu0 0.0
    %8452 = vmatpush2.xpose.msra.mxu0 0.0
    %8453 = vmatprep.subr.mxu0 0.0
    %8454 = vmatpush2.xpose.msra.mxu0 0.0
    %8455 = vmatprep.subr.mxu0 0.0
    %8456 = vmatpush2.xpose.msra.mxu0 0.0
    %8457 = vmatprep.subr.mxu0 0.0
    %8458 = vmatpush2.xpose.msra.mxu0 0.0
    %8459 = vmatprep.subr.mxu0 0.0
    %8460 = vmatpush2.xpose.msra.mxu0 0.0
    %8461 = vmatprep.subr.mxu0 0.0
    %8462 = vmatpush2.xpose.msra.mxu0 0.0
    %8463 = vmatprep.subr.mxu0 0.0
    %8464 = vmatpush2.xpose.msra.mxu0 0.0
    %8465 = vmatprep.subr.mxu0 0.0
    %8466 = vmatpush2.xpose.msra.mxu0 0.0
    %8467 = vmatprep.subr.mxu0 0.0
    %8468 = vmatpush2.xpose.msra.mxu0 0.0
    %8469 = vmatprep.subr.mxu0 0.0
    %8470 = vmatpush2.xpose.msra.mxu0 0.0
    %8471 = vmatprep.subr.mxu0 0.0
    %8472 = vmatpush2.xpose.msra.mxu0 0.0
    %8473 = vmatprep.subr.mxu0 0.0
    %8474 = vmatpush2.xpose.msra.mxu0 0.0
    %8475 = vmatprep.mubr.f32.mxu0 0.0
    %8476 = vmatmul.mubr.f32.gmra.mxu0 %v8406
    %v8477 = vpop.f32.mrf.mxu0
    %v8478 = vadd.f32 0.0, %v8477
    %v8479 = vpop.f32.mrf.mxu0
    %8480 = vdwg.mxu0
    %v8482 = vsel %vm967, %v7501, 0
    %v8485 = vsel %vm967, %v7128, 0
    %8487 = vmatprep.subr.mxu0 0.0
    %8488 = vmatpush1.xpose.msra.mxu0 0.0
    %8489 = vmatprep.subr.mxu0 0.0
    %8490 = vmatpush1.xpose.msra.mxu0 0.0
    %8491 = vmatprep.subr.mxu0 0.0
    %8492 = vmatpush1.xpose.msra.mxu0 0.0
    %8493 = vmatprep.subr.mxu0 0.0
    %8494 = vmatpush1.xpose.msra.mxu0 0.0
    %8495 = vmatprep.subr.mxu0 0.0
    %8496 = vmatpush1.xpose.msra.mxu0 0.0
    %8497 = vmatprep.subr.mxu0 0.0
    %8498 = vmatpush1.xpose.msra.mxu0 0.0
    %8499 = vmatprep.subr.mxu0 0.0
    %8500 = vmatpush1.xpose.msra.mxu0 0.0
    %8501 = vmatprep.subr.mxu0 0.0
    %8502 = vmatpush1.xpose.msra.mxu0 0.0
    %8503 = vmatprep.subr.mxu0 0.0
    %8504 = vmatpush1.xpose.msra.mxu0 0.0
    %8505 = vmatprep.subr.mxu0 0.0
    %8506 = vmatpush1.xpose.msra.mxu0 0.0
    %8507 = vmatprep.subr.mxu0 0.0
    %8508 = vmatpush1.xpose.msra.mxu0 0.0
    %8509 = vmatprep.subr.mxu0 0.0
    %8510 = vmatpush1.xpose.msra.mxu0 0.0
    %8511 = vmatprep.subr.mxu0 0.0
    %8512 = vmatpush1.xpose.msra.mxu0 0.0
    %8513 = vmatprep.subr.mxu0 0.0
    %8514 = vmatpush1.xpose.msra.mxu0 0.0
    %8515 = vmatprep.subr.mxu0 0.0
    %8516 = vmatpush1.xpose.msra.mxu0 0.0
    %8517 = vmatprep.subr.mxu0 0.0
    %8518 = vmatpush1.xpose.msra.mxu0 %v8485
    %8519 = vmatprep.subr.mxu0 0.0
    %8520 = vmatpush2.xpose.msra.mxu0 0.0
    %8521 = vmatprep.subr.mxu0 0.0
    %8522 = vmatpush2.xpose.msra.mxu0 0.0
    %8523 = vmatprep.subr.mxu0 0.0
    %8524 = vmatpush2.xpose.msra.mxu0 0.0
    %8525 = vmatprep.subr.mxu0 0.0
    %8526 = vmatpush2.xpose.msra.mxu0 0.0
    %8527 = vmatprep.subr.mxu0 0.0
    %8528 = vmatpush2.xpose.msra.mxu0 0.0
    %8529 = vmatprep.subr.mxu0 0.0
    %8530 = vmatpush2.xpose.msra.mxu0 0.0
    %8531 = vmatprep.subr.mxu0 0.0
    %8532 = vmatpush2.xpose.msra.mxu0 0.0
    %8533 = vmatprep.subr.mxu0 0.0
    %8534 = vmatpush2.xpose.msra.mxu0 0.0
    %8535 = vmatprep.subr.mxu0 0.0
    %8536 = vmatpush2.xpose.msra.mxu0 0.0
    %8537 = vmatprep.subr.mxu0 0.0
    %8538 = vmatpush2.xpose.msra.mxu0 0.0
    %8539 = vmatprep.subr.mxu0 0.0
    %8540 = vmatpush2.xpose.msra.mxu0 0.0
    %8541 = vmatprep.subr.mxu0 0.0
    %8542 = vmatpush2.xpose.msra.mxu0 0.0
    %8543 = vmatprep.subr.mxu0 0.0
    %8544 = vmatpush2.xpose.msra.mxu0 0.0
    %8545 = vmatprep.subr.mxu0 0.0
    %8546 = vmatpush2.xpose.msra.mxu0 0.0
    %8547 = vmatprep.subr.mxu0 0.0
    %8548 = vmatpush2.xpose.msra.mxu0 0.0
    %8549 = vmatprep.subr.mxu0 0.0
    %8550 = vmatpush2.xpose.msra.mxu0 0.0
    %8551 = vmatprep.mubr.f32.mxu0 0.0
    %8552 = vmatmul.mubr.f32.gmra.mxu0 %v8482
    %v8553 = vpop.f32.mrf.mxu0
    %v8554 = vadd.f32 0.0, %v8553
    %v8555 = vpop.f32.mrf.mxu0
    %8556 = vdwg.mxu0
    %v8558 = vsel %vm967, %v7533, 0
    %v8561 = vsel %vm967, %v7129, 0
    %8563 = vmatprep.subr.mxu0 0.0
    %8564 = vmatpush1.xpose.msra.mxu0 0.0
    %8565 = vmatprep.subr.mxu0 0.0
    %8566 = vmatpush1.xpose.msra.mxu0 0.0
    %8567 = vmatprep.subr.mxu0 0.0
    %8568 = vmatpush1.xpose.msra.mxu0 0.0
    %8569 = vmatprep.subr.mxu0 0.0
    %8570 = vmatpush1.xpose.msra.mxu0 0.0
    %8571 = vmatprep.subr.mxu0 0.0
    %8572 = vmatpush1.xpose.msra.mxu0 0.0
    %8573 = vmatprep.subr.mxu0 0.0
    %8574 = vmatpush1.xpose.msra.mxu0 0.0
    %8575 = vmatprep.subr.mxu0 0.0
    %8576 = vmatpush1.xpose.msra.mxu0 0.0
    %8577 = vmatprep.subr.mxu0 0.0
    %8578 = vmatpush1.xpose.msra.mxu0 0.0
    %8579 = vmatprep.subr.mxu0 0.0
    %8580 = vmatpush1.xpose.msra.mxu0 0.0
    %8581 = vmatprep.subr.mxu0 0.0
    %8582 = vmatpush1.xpose.msra.mxu0 0.0
    %8583 = vmatprep.subr.mxu0 0.0
    %8584 = vmatpush1.xpose.msra.mxu0 0.0
    %8585 = vmatprep.subr.mxu0 0.0
    %8586 = vmatpush1.xpose.msra.mxu0 0.0
    %8587 = vmatprep.subr.mxu0 0.0
    %8588 = vmatpush1.xpose.msra.mxu0 0.0
    %8589 = vmatprep.subr.mxu0 0.0
    %8590 = vmatpush1.xpose.msra.mxu0 0.0
    %8591 = vmatprep.subr.mxu0 0.0
    %8592 = vmatpush1.xpose.msra.mxu0 0.0
    %8593 = vmatprep.subr.mxu0 0.0
    %8594 = vmatpush1.xpose.msra.mxu0 %v8561
    %8595 = vmatprep.subr.mxu0 0.0
    %8596 = vmatpush2.xpose.msra.mxu0 0.0
    %8597 = vmatprep.subr.mxu0 0.0
    %8598 = vmatpush2.xpose.msra.mxu0 0.0
    %8599 = vmatprep.subr.mxu0 0.0
    %8600 = vmatpush2.xpose.msra.mxu0 0.0
    %8601 = vmatprep.subr.mxu0 0.0
    %8602 = vmatpush2.xpose.msra.mxu0 0.0
    %8603 = vmatprep.subr.mxu0 0.0
    %8604 = vmatpush2.xpose.msra.mxu0 0.0
    %8605 = vmatprep.subr.mxu0 0.0
    %8606 = vmatpush2.xpose.msra.mxu0 0.0
    %8607 = vmatprep.subr.mxu0 0.0
    %8608 = vmatpush2.xpose.msra.mxu0 0.0
    %8609 = vmatprep.subr.mxu0 0.0
    %8610 = vmatpush2.xpose.msra.mxu0 0.0
    %8611 = vmatprep.subr.mxu0 0.0
    %8612 = vmatpush2.xpose.msra.mxu0 0.0
    %8613 = vmatprep.subr.mxu0 0.0
    %8614 = vmatpush2.xpose.msra.mxu0 0.0
    %8615 = vmatprep.subr.mxu0 0.0
    %8616 = vmatpush2.xpose.msra.mxu0 0.0
    %8617 = vmatprep.subr.mxu0 0.0
    %8618 = vmatpush2.xpose.msra.mxu0 0.0
    %8619 = vmatprep.subr.mxu0 0.0
    %8620 = vmatpush2.xpose.msra.mxu0 0.0
    %8621 = vmatprep.subr.mxu0 0.0
    %8622 = vmatpush2.xpose.msra.mxu0 0.0
    %8623 = vmatprep.subr.mxu0 0.0
    %8624 = vmatpush2.xpose.msra.mxu0 0.0
    %8625 = vmatprep.subr.mxu0 0.0
    %8626 = vmatpush2.xpose.msra.mxu0 0.0
    %8627 = vmatprep.mubr.f32.mxu0 0.0
    %8628 = vmatmul.mubr.f32.gmra.mxu0 %v8558
    %v8629 = vpop.f32.mrf.mxu0
    %v8630 = vadd.f32 0.0, %v8629
    %v8631 = vpop.f32.mrf.mxu0
    %8632 = vdwg.mxu0
    %v8634 = vsel %vm967, %v7565, 0
    %v8637 = vsel %vm967, %v7130, 0
    %8639 = vmatprep.subr.mxu0 0.0
    %8640 = vmatpush1.xpose.msra.mxu0 0.0
    %8641 = vmatprep.subr.mxu0 0.0
    %8642 = vmatpush1.xpose.msra.mxu0 0.0
    %8643 = vmatprep.subr.mxu0 0.0
    %8644 = vmatpush1.xpose.msra.mxu0 0.0
    %8645 = vmatprep.subr.mxu0 0.0
    %8646 = vmatpush1.xpose.msra.mxu0 0.0
    %8647 = vmatprep.subr.mxu0 0.0
    %8648 = vmatpush1.xpose.msra.mxu0 0.0
    %8649 = vmatprep.subr.mxu0 0.0
    %8650 = vmatpush1.xpose.msra.mxu0 0.0
    %8651 = vmatprep.subr.mxu0 0.0
    %8652 = vmatpush1.xpose.msra.mxu0 0.0
    %8653 = vmatprep.subr.mxu0 0.0
    %8654 = vmatpush1.xpose.msra.mxu0 0.0
    %8655 = vmatprep.subr.mxu0 0.0
    %8656 = vmatpush1.xpose.msra.mxu0 0.0
    %8657 = vmatprep.subr.mxu0 0.0
    %8658 = vmatpush1.xpose.msra.mxu0 0.0
    %8659 = vmatprep.subr.mxu0 0.0
    %8660 = vmatpush1.xpose.msra.mxu0 0.0
    %8661 = vmatprep.subr.mxu0 0.0
    %8662 = vmatpush1.xpose.msra.mxu0 0.0
    %8663 = vmatprep.subr.mxu0 0.0
    %8664 = vmatpush1.xpose.msra.mxu0 0.0
    %8665 = vmatprep.subr.mxu0 0.0
    %8666 = vmatpush1.xpose.msra.mxu0 0.0
    %8667 = vmatprep.subr.mxu0 0.0
    %8668 = vmatpush1.xpose.msra.mxu0 0.0
    %8669 = vmatprep.subr.mxu0 0.0
    %8670 = vmatpush1.xpose.msra.mxu0 %v8637
    %8671 = vmatprep.subr.mxu0 0.0
    %8672 = vmatpush2.xpose.msra.mxu0 0.0
    %8673 = vmatprep.subr.mxu0 0.0
    %8674 = vmatpush2.xpose.msra.mxu0 0.0
    %8675 = vmatprep.subr.mxu0 0.0
    %8676 = vmatpush2.xpose.msra.mxu0 0.0
    %8677 = vmatprep.subr.mxu0 0.0
    %8678 = vmatpush2.xpose.msra.mxu0 0.0
    %8679 = vmatprep.subr.mxu0 0.0
    %8680 = vmatpush2.xpose.msra.mxu0 0.0
    %8681 = vmatprep.subr.mxu0 0.0
    %8682 = vmatpush2.xpose.msra.mxu0 0.0
    %8683 = vmatprep.subr.mxu0 0.0
    %8684 = vmatpush2.xpose.msra.mxu0 0.0
    %8685 = vmatprep.subr.mxu0 0.0
    %8686 = vmatpush2.xpose.msra.mxu0 0.0
    %8687 = vmatprep.subr.mxu0 0.0
    %8688 = vmatpush2.xpose.msra.mxu0 0.0
    %8689 = vmatprep.subr.mxu0 0.0
    %8690 = vmatpush2.xpose.msra.mxu0 0.0
    %8691 = vmatprep.subr.mxu0 0.0
    %8692 = vmatpush2.xpose.msra.mxu0 0.0
    %8693 = vmatprep.subr.mxu0 0.0
    %8694 = vmatpush2.xpose.msra.mxu0 0.0
    %8695 = vmatprep.subr.mxu0 0.0
    %8696 = vmatpush2.xpose.msra.mxu0 0.0
    %8697 = vmatprep.subr.mxu0 0.0
    %8698 = vmatpush2.xpose.msra.mxu0 0.0
    %8699 = vmatprep.subr.mxu0 0.0
    %8700 = vmatpush2.xpose.msra.mxu0 0.0
    %8701 = vmatprep.subr.mxu0 0.0
    %8702 = vmatpush2.xpose.msra.mxu0 0.0
    %8703 = vmatprep.mubr.f32.mxu0 0.0
    %8704 = vmatmul.mubr.f32.gmra.mxu0 %v8634
    %v8705 = vpop.f32.mrf.mxu0
    %v8706 = vadd.f32 0.0, %v8705
    %v8707 = vpop.f32.mrf.mxu0
    %8708 = vdwg.mxu0
    %v8710 = vsel %vm967, %v7597, 0
    %v8713 = vsel %vm967, %v7131, 0
    %8715 = vmatprep.subr.mxu0 0.0
    %8716 = vmatpush1.xpose.msra.mxu0 0.0
    %8717 = vmatprep.subr.mxu0 0.0
    %8718 = vmatpush1.xpose.msra.mxu0 0.0
    %8719 = vmatprep.subr.mxu0 0.0
    %8720 = vmatpush1.xpose.msra.mxu0 0.0
    %8721 = vmatprep.subr.mxu0 0.0
    %8722 = vmatpush1.xpose.msra.mxu0 0.0
    %8723 = vmatprep.subr.mxu0 0.0
    %8724 = vmatpush1.xpose.msra.mxu0 0.0
    %8725 = vmatprep.subr.mxu0 0.0
    %8726 = vmatpush1.xpose.msra.mxu0 0.0
    %8727 = vmatprep.subr.mxu0 0.0
    %8728 = vmatpush1.xpose.msra.mxu0 0.0
    %8729 = vmatprep.subr.mxu0 0.0
    %8730 = vmatpush1.xpose.msra.mxu0 0.0
    %8731 = vmatprep.subr.mxu0 0.0
    %8732 = vmatpush1.xpose.msra.mxu0 0.0
    %8733 = vmatprep.subr.mxu0 0.0
    %8734 = vmatpush1.xpose.msra.mxu0 0.0
    %8735 = vmatprep.subr.mxu0 0.0
    %8736 = vmatpush1.xpose.msra.mxu0 0.0
    %8737 = vmatprep.subr.mxu0 0.0
    %8738 = vmatpush1.xpose.msra.mxu0 0.0
    %8739 = vmatprep.subr.mxu0 0.0
    %8740 = vmatpush1.xpose.msra.mxu0 0.0
    %8741 = vmatprep.subr.mxu0 0.0
    %8742 = vmatpush1.xpose.msra.mxu0 0.0
    %8743 = vmatprep.subr.mxu0 0.0
    %8744 = vmatpush1.xpose.msra.mxu0 0.0
    %8745 = vmatprep.subr.mxu0 0.0
    %8746 = vmatpush1.xpose.msra.mxu0 %v8713
    %8747 = vmatprep.subr.mxu0 0.0
    %8748 = vmatpush2.xpose.msra.mxu0 0.0
    %8749 = vmatprep.subr.mxu0 0.0
    %8750 = vmatpush2.xpose.msra.mxu0 0.0
    %8751 = vmatprep.subr.mxu0 0.0
    %8752 = vmatpush2.xpose.msra.mxu0 0.0
    %8753 = vmatprep.subr.mxu0 0.0
    %8754 = vmatpush2.xpose.msra.mxu0 0.0
    %8755 = vmatprep.subr.mxu0 0.0
    %8756 = vmatpush2.xpose.msra.mxu0 0.0
    %8757 = vmatprep.subr.mxu0 0.0
    %8758 = vmatpush2.xpose.msra.mxu0 0.0
    %8759 = vmatprep.subr.mxu0 0.0
    %8760 = vmatpush2.xpose.msra.mxu0 0.0
    %8761 = vmatprep.subr.mxu0 0.0
    %8762 = vmatpush2.xpose.msra.mxu0 0.0
    %8763 = vmatprep.subr.mxu0 0.0
    %8764 = vmatpush2.xpose.msra.mxu0 0.0
    %8765 = vmatprep.subr.mxu0 0.0
    %8766 = vmatpush2.xpose.msra.mxu0 0.0
    %8767 = vmatprep.subr.mxu0 0.0
    %8768 = vmatpush2.xpose.msra.mxu0 0.0
    %8769 = vmatprep.subr.mxu0 0.0
    %8770 = vmatpush2.xpose.msra.mxu0 0.0
    %8771 = vmatprep.subr.mxu0 0.0
    %8772 = vmatpush2.xpose.msra.mxu0 0.0
    %8773 = vmatprep.subr.mxu0 0.0
    %8774 = vmatpush2.xpose.msra.mxu0 0.0
    %8775 = vmatprep.subr.mxu0 0.0
    %8776 = vmatpush2.xpose.msra.mxu0 0.0
    %8777 = vmatprep.subr.mxu0 0.0
    %8778 = vmatpush2.xpose.msra.mxu0 0.0
    %8779 = vmatprep.mubr.f32.mxu0 0.0
    %8780 = vmatmul.mubr.f32.gmra.mxu0 %v8710
    %v8781 = vpop.f32.mrf.mxu0
    %v8782 = vadd.f32 0.0, %v8781
    %v8783 = vpop.f32.mrf.mxu0
    %8784 = vdwg.mxu0
    %v8786 = vsel %vm967, %v7629, 0
    %v8789 = vsel %vm967, %v7132, 0
    %8791 = vmatprep.subr.mxu0 0.0
    %8792 = vmatpush1.xpose.msra.mxu0 0.0
    %8793 = vmatprep.subr.mxu0 0.0
    %8794 = vmatpush1.xpose.msra.mxu0 0.0
    %8795 = vmatprep.subr.mxu0 0.0
    %8796 = vmatpush1.xpose.msra.mxu0 0.0
    %8797 = vmatprep.subr.mxu0 0.0
    %8798 = vmatpush1.xpose.msra.mxu0 0.0
    %8799 = vmatprep.subr.mxu0 0.0
    %8800 = vmatpush1.xpose.msra.mxu0 0.0
    %8801 = vmatprep.subr.mxu0 0.0
    %8802 = vmatpush1.xpose.msra.mxu0 0.0
    %8803 = vmatprep.subr.mxu0 0.0
    %8804 = vmatpush1.xpose.msra.mxu0 0.0
    %8805 = vmatprep.subr.mxu0 0.0
    %8806 = vmatpush1.xpose.msra.mxu0 0.0
    %8807 = vmatprep.subr.mxu0 0.0
    %8808 = vmatpush1.xpose.msra.mxu0 0.0
    %8809 = vmatprep.subr.mxu0 0.0
    %8810 = vmatpush1.xpose.msra.mxu0 0.0
    %8811 = vmatprep.subr.mxu0 0.0
    %8812 = vmatpush1.xpose.msra.mxu0 0.0
    %8813 = vmatprep.subr.mxu0 0.0
    %8814 = vmatpush1.xpose.msra.mxu0 0.0
    %8815 = vmatprep.subr.mxu0 0.0
    %8816 = vmatpush1.xpose.msra.mxu0 0.0
    %8817 = vmatprep.subr.mxu0 0.0
    %8818 = vmatpush1.xpose.msra.mxu0 0.0
    %8819 = vmatprep.subr.mxu0 0.0
    %8820 = vmatpush1.xpose.msra.mxu0 0.0
    %8821 = vmatprep.subr.mxu0 0.0
    %8822 = vmatpush1.xpose.msra.mxu0 %v8789
    %8823 = vmatprep.subr.mxu0 0.0
    %8824 = vmatpush2.xpose.msra.mxu0 0.0
    %8825 = vmatprep.subr.mxu0 0.0
    %8826 = vmatpush2.xpose.msra.mxu0 0.0
    %8827 = vmatprep.subr.mxu0 0.0
    %8828 = vmatpush2.xpose.msra.mxu0 0.0
    %8829 = vmatprep.subr.mxu0 0.0
    %8830 = vmatpush2.xpose.msra.mxu0 0.0
    %8831 = vmatprep.subr.mxu0 0.0
    %8832 = vmatpush2.xpose.msra.mxu0 0.0
    %8833 = vmatprep.subr.mxu0 0.0
    %8834 = vmatpush2.xpose.msra.mxu0 0.0
    %8835 = vmatprep.subr.mxu0 0.0
    %8836 = vmatpush2.xpose.msra.mxu0 0.0
    %8837 = vmatprep.subr.mxu0 0.0
    %8838 = vmatpush2.xpose.msra.mxu0 0.0
    %8839 = vmatprep.subr.mxu0 0.0
    %8840 = vmatpush2.xpose.msra.mxu0 0.0
    %8841 = vmatprep.subr.mxu0 0.0
    %8842 = vmatpush2.xpose.msra.mxu0 0.0
    %8843 = vmatprep.subr.mxu0 0.0
    %8844 = vmatpush2.xpose.msra.mxu0 0.0
    %8845 = vmatprep.subr.mxu0 0.0
    %8846 = vmatpush2.xpose.msra.mxu0 0.0
    %8847 = vmatprep.subr.mxu0 0.0
    %8848 = vmatpush2.xpose.msra.mxu0 0.0
    %8849 = vmatprep.subr.mxu0 0.0
    %8850 = vmatpush2.xpose.msra.mxu0 0.0
    %8851 = vmatprep.subr.mxu0 0.0
    %8852 = vmatpush2.xpose.msra.mxu0 0.0
    %8853 = vmatprep.subr.mxu0 0.0
    %8854 = vmatpush2.xpose.msra.mxu0 0.0
    %8855 = vmatprep.mubr.f32.mxu0 0.0
    %8856 = vmatmul.mubr.f32.gmra.mxu0 %v8786
    %v8857 = vpop.f32.mrf.mxu0
    %v8858 = vadd.f32 0.0, %v8857
    %v8859 = vpop.f32.mrf.mxu0
    %8860 = vdwg.mxu0
    %8861 = vxpose.xlu0.b32.start [1/16] %v7718, 128
    %8862 = vxpose.xlu0.b32.cont [2/16] 0.0, 128
    %8863 = vxpose.xlu0.b32.cont [3/16] 0.0, 128
    %8864 = vxpose.xlu0.b32.cont [4/16] 0.0, 128
    %8865 = vxpose.xlu0.b32.cont [5/16] 0.0, 128
    %8866 = vxpose.xlu0.b32.cont [6/16] 0.0, 128
    %8867 = vxpose.xlu0.b32.cont [7/16] 0.0, 128
    %8868 = vxpose.xlu0.b32.cont [8/16] 0.0, 128
    %8869 = vxpose.xlu0.b32.cont [9/16] 0.0, 128
    %8870 = vxpose.xlu0.b32.cont [10/16] 0.0, 128
    %8871 = vxpose.xlu0.b32.cont [11/16] 0.0, 128
    %8872 = vxpose.xlu0.b32.cont [12/16] 0.0, 128
    %8873 = vxpose.xlu0.b32.cont [13/16] 0.0, 128
    %8874 = vxpose.xlu0.b32.cont [14/16] 0.0, 128
    %8875 = vxpose.xlu0.b32.cont [15/16] 0.0, 128
    %8876 = vxpose.xlu0.b32.end [16/16] 0.0, 128
    %v8877 = vpop.trf.xlu0
    %v8878 = vpop.trf.xlu0
    %v8879 = vpop.trf.xlu0
    %v8880 = vpop.trf.xlu0
    %v8881 = vpop.trf.xlu0
    %v8882 = vpop.trf.xlu0
    %v8883 = vpop.trf.xlu0
    %v8884 = vpop.trf.xlu0
    %v8885 = vpop.trf.xlu0
    %v8886 = vpop.trf.xlu0
    %v8887 = vpop.trf.xlu0
    %v8888 = vpop.trf.xlu0
    %v8889 = vpop.trf.xlu0
    %v8890 = vpop.trf.xlu0
    %v8891 = vpop.trf.xlu0
    %v8892 = vpop.trf.xlu0
    %8893 = vxpose.xlu0.b32.start [1/16] %v7794, 128
    %8894 = vxpose.xlu0.b32.cont [2/16] 0.0, 128
    %8895 = vxpose.xlu0.b32.cont [3/16] 0.0, 128
    %8896 = vxpose.xlu0.b32.cont [4/16] 0.0, 128
    %8897 = vxpose.xlu0.b32.cont [5/16] 0.0, 128
    %8898 = vxpose.xlu0.b32.cont [6/16] 0.0, 128
    %8899 = vxpose.xlu0.b32.cont [7/16] 0.0, 128
    %8900 = vxpose.xlu0.b32.cont [8/16] 0.0, 128
    %8901 = vxpose.xlu0.b32.cont [9/16] 0.0, 128
    %8902 = vxpose.xlu0.b32.cont [10/16] 0.0, 128
    %8903 = vxpose.xlu0.b32.cont [11/16] 0.0, 128
    %8904 = vxpose.xlu0.b32.cont [12/16] 0.0, 128
    %8905 = vxpose.xlu0.b32.cont [13/16] 0.0, 128
    %8906 = vxpose.xlu0.b32.cont [14/16] 0.0, 128
    %8907 = vxpose.xlu0.b32.cont [15/16] 0.0, 128
    %8908 = vxpose.xlu0.b32.end [16/16] 0.0, 128
    %v8909 = vpop.trf.xlu0
    %v8910 = vpop.trf.xlu0
    %v8911 = vpop.trf.xlu0
    %v8912 = vpop.trf.xlu0
    %v8913 = vpop.trf.xlu0
    %v8914 = vpop.trf.xlu0
    %v8915 = vpop.trf.xlu0
    %v8916 = vpop.trf.xlu0
    %v8917 = vpop.trf.xlu0
    %v8918 = vpop.trf.xlu0
    %v8919 = vpop.trf.xlu0
    %v8920 = vpop.trf.xlu0
    %v8921 = vpop.trf.xlu0
    %v8922 = vpop.trf.xlu0
    %v8923 = vpop.trf.xlu0
    %v8924 = vpop.trf.xlu0
    %8925 = vxpose.xlu0.b32.start [1/16] %v7870, 128
    %8926 = vxpose.xlu0.b32.cont [2/16] 0.0, 128
    %8927 = vxpose.xlu0.b32.cont [3/16] 0.0, 128
    %8928 = vxpose.xlu0.b32.cont [4/16] 0.0, 128
    %8929 = vxpose.xlu0.b32.cont [5/16] 0.0, 128
    %8930 = vxpose.xlu0.b32.cont [6/16] 0.0, 128
    %8931 = vxpose.xlu0.b32.cont [7/16] 0.0, 128
    %8932 = vxpose.xlu0.b32.cont [8/16] 0.0, 128
    %8933 = vxpose.xlu0.b32.cont [9/16] 0.0, 128
    %8934 = vxpose.xlu0.b32.cont [10/16] 0.0, 128
    %8935 = vxpose.xlu0.b32.cont [11/16] 0.0, 128
    %8936 = vxpose.xlu0.b32.cont [12/16] 0.0, 128
    %8937 = vxpose.xlu0.b32.cont [13/16] 0.0, 128
    %8938 = vxpose.xlu0.b32.cont [14/16] 0.0, 128
    %8939 = vxpose.xlu0.b32.cont [15/16] 0.0, 128
    %8940 = vxpose.xlu0.b32.end [16/16] 0.0, 128
    %v8941 = vpop.trf.xlu0
    %v8942 = vpop.trf.xlu0
    %v8943 = vpop.trf.xlu0
    %v8944 = vpop.trf.xlu0
    %v8945 = vpop.trf.xlu0
    %v8946 = vpop.trf.xlu0
    %v8947 = vpop.trf.xlu0
    %v8948 = vpop.trf.xlu0
    %v8949 = vpop.trf.xlu0
    %v8950 = vpop.trf.xlu0
    %v8951 = vpop.trf.xlu0
    %v8952 = vpop.trf.xlu0
    %v8953 = vpop.trf.xlu0
    %v8954 = vpop.trf.xlu0
    %v8955 = vpop.trf.xlu0
    %v8956 = vpop.trf.xlu0
    %8957 = vxpose.xlu0.b32.start [1/16] %v7946, 128
    %8958 = vxpose.xlu0.b32.cont [2/16] 0.0, 128
    %8959 = vxpose.xlu0.b32.cont [3/16] 0.0, 128
    %8960 = vxpose.xlu0.b32.cont [4/16] 0.0, 128
    %8961 = vxpose.xlu0.b32.cont [5/16] 0.0, 128
    %8962 = vxpose.xlu0.b32.cont [6/16] 0.0, 128
    %8963 = vxpose.xlu0.b32.cont [7/16] 0.0, 128
    %8964 = vxpose.xlu0.b32.cont [8/16] 0.0, 128
    %8965 = vxpose.xlu0.b32.cont [9/16] 0.0, 128
    %8966 = vxpose.xlu0.b32.cont [10/16] 0.0, 128
    %8967 = vxpose.xlu0.b32.cont [11/16] 0.0, 128
    %8968 = vxpose.xlu0.b32.cont [12/16] 0.0, 128
    %8969 = vxpose.xlu0.b32.cont [13/16] 0.0, 128
    %8970 = vxpose.xlu0.b32.cont [14/16] 0.0, 128
    %8971 = vxpose.xlu0.b32.cont [15/16] 0.0, 128
    %8972 = vxpose.xlu0.b32.end [16/16] 0.0, 128
    %v8973 = vpop.trf.xlu0
    %v8974 = vpop.trf.xlu0
    %v8975 = vpop.trf.xlu0
    %v8976 = vpop.trf.xlu0
    %v8977 = vpop.trf.xlu0
    %v8978 = vpop.trf.xlu0
    %v8979 = vpop.trf.xlu0
    %v8980 = vpop.trf.xlu0
    %v8981 = vpop.trf.xlu0
    %v8982 = vpop.trf.xlu0
    %v8983 = vpop.trf.xlu0
    %v8984 = vpop.trf.xlu0
    %v8985 = vpop.trf.xlu0
    %v8986 = vpop.trf.xlu0
    %v8987 = vpop.trf.xlu0
    %v8988 = vpop.trf.xlu0
    %8989 = vxpose.xlu0.b32.start [1/16] %v8022, 128
    %8990 = vxpose.xlu0.b32.cont [2/16] 0.0, 128
    %8991 = vxpose.xlu0.b32.cont [3/16] 0.0, 128
    %8992 = vxpose.xlu0.b32.cont [4/16] 0.0, 128
    %8993 = vxpose.xlu0.b32.cont [5/16] 0.0, 128
    %8994 = vxpose.xlu0.b32.cont [6/16] 0.0, 128
    %8995 = vxpose.xlu0.b32.cont [7/16] 0.0, 128
    %8996 = vxpose.xlu0.b32.cont [8/16] 0.0, 128
    %8997 = vxpose.xlu0.b32.cont [9/16] 0.0, 128
    %8998 = vxpose.xlu0.b32.cont [10/16] 0.0, 128
    %8999 = vxpose.xlu0.b32.cont [11/16] 0.0, 128
    %9000 = vxpose.xlu0.b32.cont [12/16] 0.0, 128
    %9001 = vxpose.xlu0.b32.cont [13/16] 0.0, 128
    %9002 = vxpose.xlu0.b32.cont [14/16] 0.0, 128
    %9003 = vxpose.xlu0.b32.cont [15/16] 0.0, 128
    %9004 = vxpose.xlu0.b32.end [16/16] 0.0, 128
    %v9005 = vpop.trf.xlu0
    %v9006 = vpop.trf.xlu0
    %v9007 = vpop.trf.xlu0
    %v9008 = vpop.trf.xlu0
    %v9009 = vpop.trf.xlu0
    %v9010 = vpop.trf.xlu0
    %v9011 = vpop.trf.xlu0
    %v9012 = vpop.trf.xlu0
    %v9013 = vpop.trf.xlu0
    %v9014 = vpop.trf.xlu0
    %v9015 = vpop.trf.xlu0
    %v9016 = vpop.trf.xlu0
    %v9017 = vpop.trf.xlu0
    %v9018 = vpop.trf.xlu0
    %v9019 = vpop.trf.xlu0
    %v9020 = vpop.trf.xlu0
    %9021 = vxpose.xlu0.b32.start [1/16] %v8098, 128
    %9022 = vxpose.xlu0.b32.cont [2/16] 0.0, 128
    %9023 = vxpose.xlu0.b32.cont [3/16] 0.0, 128
    %9024 = vxpose.xlu0.b32.cont [4/16] 0.0, 128
    %9025 = vxpose.xlu0.b32.cont [5/16] 0.0, 128
    %9026 = vxpose.xlu0.b32.cont [6/16] 0.0, 128
    %9027 = vxpose.xlu0.b32.cont [7/16] 0.0, 128
    %9028 = vxpose.xlu0.b32.cont [8/16] 0.0, 128
    %9029 = vxpose.xlu0.b32.cont [9/16] 0.0, 128
    %9030 = vxpose.xlu0.b32.cont [10/16] 0.0, 128
    %9031 = vxpose.xlu0.b32.cont [11/16] 0.0, 128
    %9032 = vxpose.xlu0.b32.cont [12/16] 0.0, 128
    %9033 = vxpose.xlu0.b32.cont [13/16] 0.0, 128
    %9034 = vxpose.xlu0.b32.cont [14/16] 0.0, 128
    %9035 = vxpose.xlu0.b32.cont [15/16] 0.0, 128
    %9036 = vxpose.xlu0.b32.end [16/16] 0.0, 128
    %v9037 = vpop.trf.xlu0
    %v9038 = vpop.trf.xlu0
    %v9039 = vpop.trf.xlu0
    %v9040 = vpop.trf.xlu0
    %v9041 = vpop.trf.xlu0
    %v9042 = vpop.trf.xlu0
    %v9043 = vpop.trf.xlu0
    %v9044 = vpop.trf.xlu0
    %v9045 = vpop.trf.xlu0
    %v9046 = vpop.trf.xlu0
    %v9047 = vpop.trf.xlu0
    %v9048 = vpop.trf.xlu0
    %v9049 = vpop.trf.xlu0
    %v9050 = vpop.trf.xlu0
    %v9051 = vpop.trf.xlu0
    %v9052 = vpop.trf.xlu0
    %9053 = vxpose.xlu0.b32.start [1/16] %v8174, 128
    %9054 = vxpose.xlu0.b32.cont [2/16] 0.0, 128
    %9055 = vxpose.xlu0.b32.cont [3/16] 0.0, 128
    %9056 = vxpose.xlu0.b32.cont [4/16] 0.0, 128
    %9057 = vxpose.xlu0.b32.cont [5/16] 0.0, 128
    %9058 = vxpose.xlu0.b32.cont [6/16] 0.0, 128
    %9059 = vxpose.xlu0.b32.cont [7/16] 0.0, 128
    %9060 = vxpose.xlu0.b32.cont [8/16] 0.0, 128
    %9061 = vxpose.xlu0.b32.cont [9/16] 0.0, 128
    %9062 = vxpose.xlu0.b32.cont [10/16] 0.0, 128
    %9063 = vxpose.xlu0.b32.cont [11/16] 0.0, 128
    %9064 = vxpose.xlu0.b32.cont [12/16] 0.0, 128
    %9065 = vxpose.xlu0.b32.cont [13/16] 0.0, 128
    %9066 = vxpose.xlu0.b32.cont [14/16] 0.0, 128
    %9067 = vxpose.xlu0.b32.cont [15/16] 0.0, 128
    %9068 = vxpose.xlu0.b32.end [16/16] 0.0, 128
    %v9069 = vpop.trf.xlu0
    %v9070 = vpop.trf.xlu0
    %v9071 = vpop.trf.xlu0
    %v9072 = vpop.trf.xlu0
    %v9073 = vpop.trf.xlu0
    %v9074 = vpop.trf.xlu0
    %v9075 = vpop.trf.xlu0
    %v9076 = vpop.trf.xlu0
    %v9077 = vpop.trf.xlu0
    %v9078 = vpop.trf.xlu0
    %v9079 = vpop.trf.xlu0
    %v9080 = vpop.trf.xlu0
    %v9081 = vpop.trf.xlu0
    %v9082 = vpop.trf.xlu0
    %v9083 = vpop.trf.xlu0
    %v9084 = vpop.trf.xlu0
    %9085 = vxpose.xlu0.b32.start [1/16] %v8250, 128
    %9086 = vxpose.xlu0.b32.cont [2/16] 0.0, 128
    %9087 = vxpose.xlu0.b32.cont [3/16] 0.0, 128
    %9088 = vxpose.xlu0.b32.cont [4/16] 0.0, 128
    %9089 = vxpose.xlu0.b32.cont [5/16] 0.0, 128
    %9090 = vxpose.xlu0.b32.cont [6/16] 0.0, 128
    %9091 = vxpose.xlu0.b32.cont [7/16] 0.0, 128
    %9092 = vxpose.xlu0.b32.cont [8/16] 0.0, 128
    %9093 = vxpose.xlu0.b32.cont [9/16] 0.0, 128
    %9094 = vxpose.xlu0.b32.cont [10/16] 0.0, 128
    %9095 = vxpose.xlu0.b32.cont [11/16] 0.0, 128
    %9096 = vxpose.xlu0.b32.cont [12/16] 0.0, 128
    %9097 = vxpose.xlu0.b32.cont [13/16] 0.0, 128
    %9098 = vxpose.xlu0.b32.cont [14/16] 0.0, 128
    %9099 = vxpose.xlu0.b32.cont [15/16] 0.0, 128
    %9100 = vxpose.xlu0.b32.end [16/16] 0.0, 128
    %v9101 = vpop.trf.xlu0
    %v9102 = vpop.trf.xlu0
    %v9103 = vpop.trf.xlu0
    %v9104 = vpop.trf.xlu0
    %v9105 = vpop.trf.xlu0
    %v9106 = vpop.trf.xlu0
    %v9107 = vpop.trf.xlu0
    %v9108 = vpop.trf.xlu0
    %v9109 = vpop.trf.xlu0
    %v9110 = vpop.trf.xlu0
    %v9111 = vpop.trf.xlu0
    %v9112 = vpop.trf.xlu0
    %v9113 = vpop.trf.xlu0
    %v9114 = vpop.trf.xlu0
    %v9115 = vpop.trf.xlu0
    %v9116 = vpop.trf.xlu0
    %9117 = vxpose.xlu0.b32.start [1/16] %v8326, 128
    %9118 = vxpose.xlu0.b32.cont [2/16] 0.0, 128
    %9119 = vxpose.xlu0.b32.cont [3/16] 0.0, 128
    %9120 = vxpose.xlu0.b32.cont [4/16] 0.0, 128
    %9121 = vxpose.xlu0.b32.cont [5/16] 0.0, 128
    %9122 = vxpose.xlu0.b32.cont [6/16] 0.0, 128
    %9123 = vxpose.xlu0.b32.cont [7/16] 0.0, 128
    %9124 = vxpose.xlu0.b32.cont [8/16] 0.0, 128
    %9125 = vxpose.xlu0.b32.cont [9/16] 0.0, 128
    %9126 = vxpose.xlu0.b32.cont [10/16] 0.0, 128
    %9127 = vxpose.xlu0.b32.cont [11/16] 0.0, 128
    %9128 = vxpose.xlu0.b32.cont [12/16] 0.0, 128
    %9129 = vxpose.xlu0.b32.cont [13/16] 0.0, 128
    %9130 = vxpose.xlu0.b32.cont [14/16] 0.0, 128
    %9131 = vxpose.xlu0.b32.cont [15/16] 0.0, 128
    %9132 = vxpose.xlu0.b32.end [16/16] 0.0, 128
    %v9133 = vpop.trf.xlu0
    %v9134 = vpop.trf.xlu0
    %v9135 = vpop.trf.xlu0
    %v9136 = vpop.trf.xlu0
    %v9137 = vpop.trf.xlu0
    %v9138 = vpop.trf.xlu0
    %v9139 = vpop.trf.xlu0
    %v9140 = vpop.trf.xlu0
    %v9141 = vpop.trf.xlu0
    %v9142 = vpop.trf.xlu0
    %v9143 = vpop.trf.xlu0
    %v9144 = vpop.trf.xlu0
    %v9145 = vpop.trf.xlu0
    %v9146 = vpop.trf.xlu0
    %v9147 = vpop.trf.xlu0
    %v9148 = vpop.trf.xlu0
    %9149 = vxpose.xlu0.b32.start [1/16] %v8402, 128
    %9150 = vxpose.xlu0.b32.cont [2/16] 0.0, 128
    %9151 = vxpose.xlu0.b32.cont [3/16] 0.0, 128
    %9152 = vxpose.xlu0.b32.cont [4/16] 0.0, 128
    %9153 = vxpose.xlu0.b32.cont [5/16] 0.0, 128
    %9154 = vxpose.xlu0.b32.cont [6/16] 0.0, 128
    %9155 = vxpose.xlu0.b32.cont [7/16] 0.0, 128
    %9156 = vxpose.xlu0.b32.cont [8/16] 0.0, 128
    %9157 = vxpose.xlu0.b32.cont [9/16] 0.0, 128
    %9158 = vxpose.xlu0.b32.cont [10/16] 0.0, 128
    %9159 = vxpose.xlu0.b32.cont [11/16] 0.0, 128
    %9160 = vxpose.xlu0.b32.cont [12/16] 0.0, 128
    %9161 = vxpose.xlu0.b32.cont [13/16] 0.0, 128
    %9162 = vxpose.xlu0.b32.cont [14/16] 0.0, 128
    %9163 = vxpose.xlu0.b32.cont [15/16] 0.0, 128
    %9164 = vxpose.xlu0.b32.end [16/16] 0.0, 128
    %v9165 = vpop.trf.xlu0
    %v9166 = vpop.trf.xlu0
    %v9167 = vpop.trf.xlu0
    %v9168 = vpop.trf.xlu0
    %v9169 = vpop.trf.xlu0
    %v9170 = vpop.trf.xlu0
    %v9171 = vpop.trf.xlu0
    %v9172 = vpop.trf.xlu0
    %v9173 = vpop.trf.xlu0
    %v9174 = vpop.trf.xlu0
    %v9175 = vpop.trf.xlu0
    %v9176 = vpop.trf.xlu0
    %v9177 = vpop.trf.xlu0
    %v9178 = vpop.trf.xlu0
    %v9179 = vpop.trf.xlu0
    %v9180 = vpop.trf.xlu0
    %9181 = vxpose.xlu0.b32.start [1/16] %v8478, 128
    %9182 = vxpose.xlu0.b32.cont [2/16] 0.0, 128
    %9183 = vxpose.xlu0.b32.cont [3/16] 0.0, 128
    %9184 = vxpose.xlu0.b32.cont [4/16] 0.0, 128
    %9185 = vxpose.xlu0.b32.cont [5/16] 0.0, 128
    %9186 = vxpose.xlu0.b32.cont [6/16] 0.0, 128
    %9187 = vxpose.xlu0.b32.cont [7/16] 0.0, 128
    %9188 = vxpose.xlu0.b32.cont [8/16] 0.0, 128
    %9189 = vxpose.xlu0.b32.cont [9/16] 0.0, 128
    %9190 = vxpose.xlu0.b32.cont [10/16] 0.0, 128
    %9191 = vxpose.xlu0.b32.cont [11/16] 0.0, 128
    %9192 = vxpose.xlu0.b32.cont [12/16] 0.0, 128
    %9193 = vxpose.xlu0.b32.cont [13/16] 0.0, 128
    %9194 = vxpose.xlu0.b32.cont [14/16] 0.0, 128
    %9195 = vxpose.xlu0.b32.cont [15/16] 0.0, 128
    %9196 = vxpose.xlu0.b32.end [16/16] 0.0, 128
    %v9197 = vpop.trf.xlu0
    %v9198 = vpop.trf.xlu0
    %v9199 = vpop.trf.xlu0
    %v9200 = vpop.trf.xlu0
    %v9201 = vpop.trf.xlu0
    %v9202 = vpop.trf.xlu0
    %v9203 = vpop.trf.xlu0
    %v9204 = vpop.trf.xlu0
    %v9205 = vpop.trf.xlu0
    %v9206 = vpop.trf.xlu0
    %v9207 = vpop.trf.xlu0
    %v9208 = vpop.trf.xlu0
    %v9209 = vpop.trf.xlu0
    %v9210 = vpop.trf.xlu0
    %v9211 = vpop.trf.xlu0
    %v9212 = vpop.trf.xlu0
    %9213 = vxpose.xlu0.b32.start [1/16] %v8554, 128
    %9214 = vxpose.xlu0.b32.cont [2/16] 0.0, 128
    %9215 = vxpose.xlu0.b32.cont [3/16] 0.0, 128
    %9216 = vxpose.xlu0.b32.cont [4/16] 0.0, 128
    %9217 = vxpose.xlu0.b32.cont [5/16] 0.0, 128
    %9218 = vxpose.xlu0.b32.cont [6/16] 0.0, 128
    %9219 = vxpose.xlu0.b32.cont [7/16] 0.0, 128
    %9220 = vxpose.xlu0.b32.cont [8/16] 0.0, 128
    %9221 = vxpose.xlu0.b32.cont [9/16] 0.0, 128
    %9222 = vxpose.xlu0.b32.cont [10/16] 0.0, 128
    %9223 = vxpose.xlu0.b32.cont [11/16] 0.0, 128
    %9224 = vxpose.xlu0.b32.cont [12/16] 0.0, 128
    %9225 = vxpose.xlu0.b32.cont [13/16] 0.0, 128
    %9226 = vxpose.xlu0.b32.cont [14/16] 0.0, 128
    %9227 = vxpose.xlu0.b32.cont [15/16] 0.0, 128
    %9228 = vxpose.xlu0.b32.end [16/16] 0.0, 128
    %v9229 = vpop.trf.xlu0
    %v9230 = vpop.trf.xlu0
    %v9231 = vpop.trf.xlu0
    %v9232 = vpop.trf.xlu0
    %v9233 = vpop.trf.xlu0
    %v9234 = vpop.trf.xlu0
    %v9235 = vpop.trf.xlu0
    %v9236 = vpop.trf.xlu0
    %v9237 = vpop.trf.xlu0
    %v9238 = vpop.trf.xlu0
    %v9239 = vpop.trf.xlu0
    %v9240 = vpop.trf.xlu0
    %v9241 = vpop.trf.xlu0
    %v9242 = vpop.trf.xlu0
    %v9243 = vpop.trf.xlu0
    %v9244 = vpop.trf.xlu0
    %9245 = vxpose.xlu0.b32.start [1/16] %v8630, 128
    %9246 = vxpose.xlu0.b32.cont [2/16] 0.0, 128
    %9247 = vxpose.xlu0.b32.cont [3/16] 0.0, 128
    %9248 = vxpose.xlu0.b32.cont [4/16] 0.0, 128
    %9249 = vxpose.xlu0.b32.cont [5/16] 0.0, 128
    %9250 = vxpose.xlu0.b32.cont [6/16] 0.0, 128
    %9251 = vxpose.xlu0.b32.cont [7/16] 0.0, 128
    %9252 = vxpose.xlu0.b32.cont [8/16] 0.0, 128
    %9253 = vxpose.xlu0.b32.cont [9/16] 0.0, 128
    %9254 = vxpose.xlu0.b32.cont [10/16] 0.0, 128
    %9255 = vxpose.xlu0.b32.cont [11/16] 0.0, 128
    %9256 = vxpose.xlu0.b32.cont [12/16] 0.0, 128
    %9257 = vxpose.xlu0.b32.cont [13/16] 0.0, 128
    %9258 = vxpose.xlu0.b32.cont [14/16] 0.0, 128
    %9259 = vxpose.xlu0.b32.cont [15/16] 0.0, 128
    %9260 = vxpose.xlu0.b32.end [16/16] 0.0, 128
    %v9261 = vpop.trf.xlu0
    %v9262 = vpop.trf.xlu0
    %v9263 = vpop.trf.xlu0
    %v9264 = vpop.trf.xlu0
    %v9265 = vpop.trf.xlu0
    %v9266 = vpop.trf.xlu0
    %v9267 = vpop.trf.xlu0
    %v9268 = vpop.trf.xlu0
    %v9269 = vpop.trf.xlu0
    %v9270 = vpop.trf.xlu0
    %v9271 = vpop.trf.xlu0
    %v9272 = vpop.trf.xlu0
    %v9273 = vpop.trf.xlu0
    %v9274 = vpop.trf.xlu0
    %v9275 = vpop.trf.xlu0
    %v9276 = vpop.trf.xlu0
    %9277 = vxpose.xlu0.b32.start [1/16] %v8706, 128
    %9278 = vxpose.xlu0.b32.cont [2/16] 0.0, 128
    %9279 = vxpose.xlu0.b32.cont [3/16] 0.0, 128
    %9280 = vxpose.xlu0.b32.cont [4/16] 0.0, 128
    %9281 = vxpose.xlu0.b32.cont [5/16] 0.0, 128
    %9282 = vxpose.xlu0.b32.cont [6/16] 0.0, 128
    %9283 = vxpose.xlu0.b32.cont [7/16] 0.0, 128
    %9284 = vxpose.xlu0.b32.cont [8/16] 0.0, 128
    %9285 = vxpose.xlu0.b32.cont [9/16] 0.0, 128
    %9286 = vxpose.xlu0.b32.cont [10/16] 0.0, 128
    %9287 = vxpose.xlu0.b32.cont [11/16] 0.0, 128
    %9288 = vxpose.xlu0.b32.cont [12/16] 0.0, 128
    %9289 = vxpose.xlu0.b32.cont [13/16] 0.0, 128
    %9290 = vxpose.xlu0.b32.cont [14/16] 0.0, 128
    %9291 = vxpose.xlu0.b32.cont [15/16] 0.0, 128
    %9292 = vxpose.xlu0.b32.end [16/16] 0.0, 128
    %v9293 = vpop.trf.xlu0
    %v9294 = vpop.trf.xlu0
    %v9295 = vpop.trf.xlu0
    %v9296 = vpop.trf.xlu0
    %v9297 = vpop.trf.xlu0
    %v9298 = vpop.trf.xlu0
    %v9299 = vpop.trf.xlu0
    %v9300 = vpop.trf.xlu0
    %v9301 = vpop.trf.xlu0
    %v9302 = vpop.trf.xlu0
    %v9303 = vpop.trf.xlu0
    %v9304 = vpop.trf.xlu0
    %v9305 = vpop.trf.xlu0
    %v9306 = vpop.trf.xlu0
    %v9307 = vpop.trf.xlu0
    %v9308 = vpop.trf.xlu0
    %9309 = vxpose.xlu0.b32.start [1/16] %v8782, 128
    %9310 = vxpose.xlu0.b32.cont [2/16] 0.0, 128
    %9311 = vxpose.xlu0.b32.cont [3/16] 0.0, 128
    %9312 = vxpose.xlu0.b32.cont [4/16] 0.0, 128
    %9313 = vxpose.xlu0.b32.cont [5/16] 0.0, 128
    %9314 = vxpose.xlu0.b32.cont [6/16] 0.0, 128
    %9315 = vxpose.xlu0.b32.cont [7/16] 0.0, 128
    %9316 = vxpose.xlu0.b32.cont [8/16] 0.0, 128
    %9317 = vxpose.xlu0.b32.cont [9/16] 0.0, 128
    %9318 = vxpose.xlu0.b32.cont [10/16] 0.0, 128
    %9319 = vxpose.xlu0.b32.cont [11/16] 0.0, 128
    %9320 = vxpose.xlu0.b32.cont [12/16] 0.0, 128
    %9321 = vxpose.xlu0.b32.cont [13/16] 0.0, 128
    %9322 = vxpose.xlu0.b32.cont [14/16] 0.0, 128
    %9323 = vxpose.xlu0.b32.cont [15/16] 0.0, 128
    %9324 = vxpose.xlu0.b32.end [16/16] 0.0, 128
    %v9325 = vpop.trf.xlu0
    %v9326 = vpop.trf.xlu0
    %v9327 = vpop.trf.xlu0
    %v9328 = vpop.trf.xlu0
    %v9329 = vpop.trf.xlu0
    %v9330 = vpop.trf.xlu0
    %v9331 = vpop.trf.xlu0
    %v9332 = vpop.trf.xlu0
    %v9333 = vpop.trf.xlu0
    %v9334 = vpop.trf.xlu0
    %v9335 = vpop.trf.xlu0
    %v9336 = vpop.trf.xlu0
    %v9337 = vpop.trf.xlu0
    %v9338 = vpop.trf.xlu0
    %v9339 = vpop.trf.xlu0
    %v9340 = vpop.trf.xlu0
    %9341 = vxpose.xlu0.b32.start [1/16] %v8858, 128
    %9342 = vxpose.xlu0.b32.cont [2/16] 0.0, 128
    %9343 = vxpose.xlu0.b32.cont [3/16] 0.0, 128
    %9344 = vxpose.xlu0.b32.cont [4/16] 0.0, 128
    %9345 = vxpose.xlu0.b32.cont [5/16] 0.0, 128
    %9346 = vxpose.xlu0.b32.cont [6/16] 0.0, 128
    %9347 = vxpose.xlu0.b32.cont [7/16] 0.0, 128
    %9348 = vxpose.xlu0.b32.cont [8/16] 0.0, 128
    %9349 = vxpose.xlu0.b32.cont [9/16] 0.0, 128
    %9350 = vxpose.xlu0.b32.cont [10/16] 0.0, 128
    %9351 = vxpose.xlu0.b32.cont [11/16] 0.0, 128
    %9352 = vxpose.xlu0.b32.cont [12/16] 0.0, 128
    %9353 = vxpose.xlu0.b32.cont [13/16] 0.0, 128
    %9354 = vxpose.xlu0.b32.cont [14/16] 0.0, 128
    %9355 = vxpose.xlu0.b32.cont [15/16] 0.0, 128
    %9356 = vxpose.xlu0.b32.end [16/16] 0.0, 128
    %v9357 = vpop.trf.xlu0
    %v9358 = vpop.trf.xlu0
    %v9359 = vpop.trf.xlu0
    %v9360 = vpop.trf.xlu0
    %v9361 = vpop.trf.xlu0
    %v9362 = vpop.trf.xlu0
    %v9363 = vpop.trf.xlu0
    %v9364 = vpop.trf.xlu0
    %v9365 = vpop.trf.xlu0
    %v9366 = vpop.trf.xlu0
    %v9367 = vpop.trf.xlu0
    %v9368 = vpop.trf.xlu0
    %v9369 = vpop.trf.xlu0
    %v9370 = vpop.trf.xlu0
    %v9371 = vpop.trf.xlu0
    %v9372 = vpop.trf.xlu0
    %v9373 = vcombine.low %v8877, %v8941
    %v9374 = vcombine.high %v8877, %v8941
    %v9376 = vunpack.c.l.s4 1983009808
    %v9377 = vunpack.c.0.s8 %v9376
    %v9378 = vlaneseq
    %v9379 = vshrl.u32 %v9378, 7
    %v9380 = vsub.s32 %v9377, %v9379
    %v9381 = vrot.slane %v9373, %v9380
    %v9383 = vunpack.c.l.s4 1983009808
    %v9384 = vunpack.c.0.s8 %v9383
    %v9385 = vlaneseq
    %v9386 = vshrl.u32 %v9385, 7
    %v9387 = vsub.s32 %v9384, %v9386
    %v9388 = vrot.slane %v9374, %v9387
    %v9389 = vcombine.low %v8909, %v8973
    %v9390 = vcombine.high %v8909, %v8973
    %v9392 = vunpack.c.l.s4 1983009808
    %v9393 = vunpack.c.0.s8 %v9392
    %v9394 = vlaneseq
    %v9395 = vshrl.u32 %v9394, 7
    %v9396 = vsub.s32 %v9393, %v9395
    %v9397 = vrot.slane %v9389, %v9396
    %v9399 = vunpack.c.l.s4 1983009808
    %v9400 = vunpack.c.0.s8 %v9399
    %v9401 = vlaneseq
    %v9402 = vshrl.u32 %v9401, 7
    %v9403 = vsub.s32 %v9400, %v9402
    %v9404 = vrot.slane %v9390, %v9403
    %v9405 = vcombine.low %v9005, %v9069
    %v9406 = vcombine.high %v9005, %v9069
    %v9408 = vunpack.c.l.s4 1983009808
    %v9409 = vunpack.c.0.s8 %v9408
    %v9410 = vlaneseq
    %v9411 = vshrl.u32 %v9410, 7
    %v9412 = vsub.s32 %v9409, %v9411
    %v9413 = vrot.slane %v9405, %v9412
    %v9415 = vunpack.c.l.s4 1983009808
    %v9416 = vunpack.c.0.s8 %v9415
    %v9417 = vlaneseq
    %v9418 = vshrl.u32 %v9417, 7
    %v9419 = vsub.s32 %v9416, %v9418
    %v9420 = vrot.slane %v9406, %v9419
    %v9421 = vcombine.low %v9037, %v9101
    %v9422 = vcombine.high %v9037, %v9101
    %v9424 = vunpack.c.l.s4 1983009808
    %v9425 = vunpack.c.0.s8 %v9424
    %v9426 = vlaneseq
    %v9427 = vshrl.u32 %v9426, 7
    %v9428 = vsub.s32 %v9425, %v9427
    %v9429 = vrot.slane %v9421, %v9428
    %v9431 = vunpack.c.l.s4 1983009808
    %v9432 = vunpack.c.0.s8 %v9431
    %v9433 = vlaneseq
    %v9434 = vshrl.u32 %v9433, 7
    %v9435 = vsub.s32 %v9432, %v9434
    %v9436 = vrot.slane %v9422, %v9435
    %v9437 = vcombine.low %v9381, %v9397
    %v9438 = vcombine.high %v9381, %v9397
    %v9440 = vunpack.c.l.s4 1934713408
    %v9441 = vunpack.c.0.s8 %v9440
    %v9442 = vlaneseq
    %v9443 = vshrl.u32 %v9442, 7
    %v9444 = vsub.s32 %v9441, %v9443
    %v9445 = vrot.slane %v9437, %v9444
    %v9447 = vunpack.c.l.s4 1934713408
    %v9448 = vunpack.c.0.s8 %v9447
    %v9449 = vlaneseq
    %v9450 = vshrl.u32 %v9449, 7
    %v9451 = vsub.s32 %v9448, %v9450
    %v9452 = vrot.slane %v9438, %v9451
    %v9453 = vcombine.low %v9388, %v9404
    %v9454 = vcombine.high %v9388, %v9404
    %v9456 = vunpack.c.l.s4 1934713408
    %v9457 = vunpack.c.0.s8 %v9456
    %v9458 = vlaneseq
    %v9459 = vshrl.u32 %v9458, 7
    %v9460 = vsub.s32 %v9457, %v9459
    %v9461 = vrot.slane %v9453, %v9460
    %v9463 = vunpack.c.l.s4 1934713408
    %v9464 = vunpack.c.0.s8 %v9463
    %v9465 = vlaneseq
    %v9466 = vshrl.u32 %v9465, 7
    %v9467 = vsub.s32 %v9464, %v9466
    %v9468 = vrot.slane %v9454, %v9467
    %v9469 = vcombine.low %v9413, %v9429
    %v9470 = vcombine.high %v9413, %v9429
    %v9472 = vunpack.c.l.s4 1934713408
    %v9473 = vunpack.c.0.s8 %v9472
    %v9474 = vlaneseq
    %v9475 = vshrl.u32 %v9474, 7
    %v9476 = vsub.s32 %v9473, %v9475
    %v9477 = vrot.slane %v9469, %v9476
    %v9479 = vunpack.c.l.s4 1934713408
    %v9480 = vunpack.c.0.s8 %v9479
    %v9481 = vlaneseq
    %v9482 = vshrl.u32 %v9481, 7
    %v9483 = vsub.s32 %v9480, %v9482
    %v9484 = vrot.slane %v9470, %v9483
    %v9485 = vcombine.low %v9420, %v9436
    %v9486 = vcombine.high %v9420, %v9436
    %v9488 = vunpack.c.l.s4 1934713408
    %v9489 = vunpack.c.0.s8 %v9488
    %v9490 = vlaneseq
    %v9491 = vshrl.u32 %v9490, 7
    %v9492 = vsub.s32 %v9489, %v9491
    %v9493 = vrot.slane %v9485, %v9492
    %v9495 = vunpack.c.l.s4 1934713408
    %v9496 = vunpack.c.0.s8 %v9495
    %v9497 = vlaneseq
    %v9498 = vshrl.u32 %v9497, 7
    %v9499 = vsub.s32 %v9496, %v9498
    %v9500 = vrot.slane %v9486, %v9499
    %v9501 = vcombine.low %v9445, %v9477
    %v9502 = vcombine.high %v9445, %v9477
    %v9503 = vcombine.low %v9452, %v9484
    %v9504 = vcombine.high %v9452, %v9484
    %v9505 = vcombine.low %v9461, %v9493
    %v9506 = vcombine.high %v9461, %v9493
    %v9507 = vcombine.low %v9468, %v9500
    %v9508 = vcombine.high %v9468, %v9500
    %v9509 = vcombine.low %v9133, %v9197
    %v9510 = vcombine.high %v9133, %v9197
    %v9512 = vunpack.c.l.s4 1983009808
    %v9513 = vunpack.c.0.s8 %v9512
    %v9514 = vlaneseq
    %v9515 = vshrl.u32 %v9514, 7
    %v9516 = vsub.s32 %v9513, %v9515
    %v9517 = vrot.slane %v9509, %v9516
    %v9519 = vunpack.c.l.s4 1983009808
    %v9520 = vunpack.c.0.s8 %v9519
    %v9521 = vlaneseq
    %v9522 = vshrl.u32 %v9521, 7
    %v9523 = vsub.s32 %v9520, %v9522
    %v9524 = vrot.slane %v9510, %v9523
    %v9525 = vcombine.low %v9165, %v9229
    %v9526 = vcombine.high %v9165, %v9229
    %v9528 = vunpack.c.l.s4 1983009808
    %v9529 = vunpack.c.0.s8 %v9528
    %v9530 = vlaneseq
    %v9531 = vshrl.u32 %v9530, 7
    %v9532 = vsub.s32 %v9529, %v9531
    %v9533 = vrot.slane %v9525, %v9532
    %v9535 = vunpack.c.l.s4 1983009808
    %v9536 = vunpack.c.0.s8 %v9535
    %v9537 = vlaneseq
    %v9538 = vshrl.u32 %v9537, 7
    %v9539 = vsub.s32 %v9536, %v9538
    %v9540 = vrot.slane %v9526, %v9539
    %v9541 = vcombine.low %v9261, %v9325
    %v9542 = vcombine.high %v9261, %v9325
    %v9544 = vunpack.c.l.s4 1983009808
    %v9545 = vunpack.c.0.s8 %v9544
    %v9546 = vlaneseq
    %v9547 = vshrl.u32 %v9546, 7
    %v9548 = vsub.s32 %v9545, %v9547
    %v9549 = vrot.slane %v9541, %v9548
    %v9551 = vunpack.c.l.s4 1983009808
    %v9552 = vunpack.c.0.s8 %v9551
    %v9553 = vlaneseq
    %v9554 = vshrl.u32 %v9553, 7
    %v9555 = vsub.s32 %v9552, %v9554
    %v9556 = vrot.slane %v9542, %v9555
    %v9557 = vcombine.low %v9293, %v9357
    %v9558 = vcombine.high %v9293, %v9357
    %v9560 = vunpack.c.l.s4 1983009808
    %v9561 = vunpack.c.0.s8 %v9560
    %v9562 = vlaneseq
    %v9563 = vshrl.u32 %v9562, 7
    %v9564 = vsub.s32 %v9561, %v9563
    %v9565 = vrot.slane %v9557, %v9564
    %v9567 = vunpack.c.l.s4 1983009808
    %v9568 = vunpack.c.0.s8 %v9567
    %v9569 = vlaneseq
    %v9570 = vshrl.u32 %v9569, 7
    %v9571 = vsub.s32 %v9568, %v9570
    %v9572 = vrot.slane %v9558, %v9571
    %v9573 = vcombine.low %v9517, %v9533
    %v9574 = vcombine.high %v9517, %v9533
    %v9576 = vunpack.c.l.s4 1934713408
    %v9577 = vunpack.c.0.s8 %v9576
    %v9578 = vlaneseq
    %v9579 = vshrl.u32 %v9578, 7
    %v9580 = vsub.s32 %v9577, %v9579
    %v9581 = vrot.slane %v9573, %v9580
    %v9583 = vunpack.c.l.s4 1934713408
    %v9584 = vunpack.c.0.s8 %v9583
    %v9585 = vlaneseq
    %v9586 = vshrl.u32 %v9585, 7
    %v9587 = vsub.s32 %v9584, %v9586
    %v9588 = vrot.slane %v9574, %v9587
    %v9589 = vcombine.low %v9524, %v9540
    %v9590 = vcombine.high %v9524, %v9540
    %v9592 = vunpack.c.l.s4 1934713408
    %v9593 = vunpack.c.0.s8 %v9592
    %v9594 = vlaneseq
    %v9595 = vshrl.u32 %v9594, 7
    %v9596 = vsub.s32 %v9593, %v9595
    %v9597 = vrot.slane %v9589, %v9596
    %v9599 = vunpack.c.l.s4 1934713408
    %v9600 = vunpack.c.0.s8 %v9599
    %v9601 = vlaneseq
    %v9602 = vshrl.u32 %v9601, 7
    %v9603 = vsub.s32 %v9600, %v9602
    %v9604 = vrot.slane %v9590, %v9603
    %v9605 = vcombine.low %v9549, %v9565
    %v9606 = vcombine.high %v9549, %v9565
    %v9608 = vunpack.c.l.s4 1934713408
    %v9609 = vunpack.c.0.s8 %v9608
    %v9610 = vlaneseq
    %v9611 = vshrl.u32 %v9610, 7
    %v9612 = vsub.s32 %v9609, %v9611
    %v9613 = vrot.slane %v9605, %v9612
    %v9615 = vunpack.c.l.s4 1934713408
    %v9616 = vunpack.c.0.s8 %v9615
    %v9617 = vlaneseq
    %v9618 = vshrl.u32 %v9617, 7
    %v9619 = vsub.s32 %v9616, %v9618
    %v9620 = vrot.slane %v9606, %v9619
    %v9621 = vcombine.low %v9556, %v9572
    %v9622 = vcombine.high %v9556, %v9572
    %v9624 = vunpack.c.l.s4 1934713408
    %v9625 = vunpack.c.0.s8 %v9624
    %v9626 = vlaneseq
    %v9627 = vshrl.u32 %v9626, 7
    %v9628 = vsub.s32 %v9625, %v9627
    %v9629 = vrot.slane %v9621, %v9628
    %v9631 = vunpack.c.l.s4 1934713408
    %v9632 = vunpack.c.0.s8 %v9631
    %v9633 = vlaneseq
    %v9634 = vshrl.u32 %v9633, 7
    %v9635 = vsub.s32 %v9632, %v9634
    %v9636 = vrot.slane %v9622, %v9635
    %v9637 = vcombine.low %v9581, %v9613
    %v9638 = vcombine.high %v9581, %v9613
    %v9639 = vcombine.low %v9588, %v9620
    %v9640 = vcombine.high %v9588, %v9620
    %v9641 = vcombine.low %v9597, %v9629
    %v9642 = vcombine.high %v9597, %v9629
    %v9643 = vcombine.low %v9604, %v9636
    %v9644 = vcombine.high %v9604, %v9636
    %v9645 = vcombine.low %v9501, %v9503
    %v9646 = vcombine.high %v9501, %v9503
    %v9648 = vunpack.c.l.s4 1983009808
    %v9649 = vunpack.c.0.s8 %v9648
    %v9650 = vlaneseq
    %v9651 = vshrl.u32 %v9650, 7
    %v9652 = vsub.s32 %v9649, %v9651
    %v9653 = vrot.slane %v9645, %v9652
    %v9655 = vunpack.c.l.s4 1983009808
    %v9656 = vunpack.c.0.s8 %v9655
    %v9657 = vlaneseq
    %v9658 = vshrl.u32 %v9657, 7
    %v9659 = vsub.s32 %v9656, %v9658
    %v9660 = vrot.slane %v9646, %v9659
    %v9661 = vcombine.low %v9502, %v9504
    %v9662 = vcombine.high %v9502, %v9504
    %v9664 = vunpack.c.l.s4 1983009808
    %v9665 = vunpack.c.0.s8 %v9664
    %v9666 = vlaneseq
    %v9667 = vshrl.u32 %v9666, 7
    %v9668 = vsub.s32 %v9665, %v9667
    %v9669 = vrot.slane %v9661, %v9668
    %v9671 = vunpack.c.l.s4 1983009808
    %v9672 = vunpack.c.0.s8 %v9671
    %v9673 = vlaneseq
    %v9674 = vshrl.u32 %v9673, 7
    %v9675 = vsub.s32 %v9672, %v9674
    %v9676 = vrot.slane %v9662, %v9675
    %v9677 = vcombine.low %v9505, %v9507
    %v9678 = vcombine.high %v9505, %v9507
    %v9680 = vunpack.c.l.s4 1983009808
    %v9681 = vunpack.c.0.s8 %v9680
    %v9682 = vlaneseq
    %v9683 = vshrl.u32 %v9682, 7
    %v9684 = vsub.s32 %v9681, %v9683
    %v9685 = vrot.slane %v9677, %v9684
    %v9687 = vunpack.c.l.s4 1983009808
    %v9688 = vunpack.c.0.s8 %v9687
    %v9689 = vlaneseq
    %v9690 = vshrl.u32 %v9689, 7
    %v9691 = vsub.s32 %v9688, %v9690
    %v9692 = vrot.slane %v9678, %v9691
    %v9693 = vcombine.low %v9506, %v9508
    %v9694 = vcombine.high %v9506, %v9508
    %v9696 = vunpack.c.l.s4 1983009808
    %v9697 = vunpack.c.0.s8 %v9696
    %v9698 = vlaneseq
    %v9699 = vshrl.u32 %v9698, 7
    %v9700 = vsub.s32 %v9697, %v9699
    %v9701 = vrot.slane %v9693, %v9700
    %v9703 = vunpack.c.l.s4 1983009808
    %v9704 = vunpack.c.0.s8 %v9703
    %v9705 = vlaneseq
    %v9706 = vshrl.u32 %v9705, 7
    %v9707 = vsub.s32 %v9704, %v9706
    %v9708 = vrot.slane %v9694, %v9707
    %v9709 = vcombine.low %v9653, %v9669
    %v9710 = vcombine.high %v9653, %v9669
    %v9712 = vunpack.c.l.s4 1934713408
    %v9713 = vunpack.c.0.s8 %v9712
    %v9714 = vlaneseq
    %v9715 = vshrl.u32 %v9714, 7
    %v9716 = vsub.s32 %v9713, %v9715
    %v9717 = vrot.slane %v9709, %v9716
    %v9719 = vunpack.c.l.s4 1934713408
    %v9720 = vunpack.c.0.s8 %v9719
    %v9721 = vlaneseq
    %v9722 = vshrl.u32 %v9721, 7
    %v9723 = vsub.s32 %v9720, %v9722
    %v9724 = vrot.slane %v9710, %v9723
    %v9725 = vcombine.low %v9660, %v9676
    %v9726 = vcombine.high %v9660, %v9676
    %v9728 = vunpack.c.l.s4 1934713408
    %v9729 = vunpack.c.0.s8 %v9728
    %v9730 = vlaneseq
    %v9731 = vshrl.u32 %v9730, 7
    %v9732 = vsub.s32 %v9729, %v9731
    %v9733 = vrot.slane %v9725, %v9732
    %v9735 = vunpack.c.l.s4 1934713408
    %v9736 = vunpack.c.0.s8 %v9735
    %v9737 = vlaneseq
    %v9738 = vshrl.u32 %v9737, 7
    %v9739 = vsub.s32 %v9736, %v9738
    %v9740 = vrot.slane %v9726, %v9739
    %v9741 = vcombine.low %v9685, %v9701
    %v9742 = vcombine.high %v9685, %v9701
    %v9744 = vunpack.c.l.s4 1934713408
    %v9745 = vunpack.c.0.s8 %v9744
    %v9746 = vlaneseq
    %v9747 = vshrl.u32 %v9746, 7
    %v9748 = vsub.s32 %v9745, %v9747
    %v9749 = vrot.slane %v9741, %v9748
    %v9751 = vunpack.c.l.s4 1934713408
    %v9752 = vunpack.c.0.s8 %v9751
    %v9753 = vlaneseq
    %v9754 = vshrl.u32 %v9753, 7
    %v9755 = vsub.s32 %v9752, %v9754
    %v9756 = vrot.slane %v9742, %v9755
    %v9757 = vcombine.low %v9692, %v9708
    %v9758 = vcombine.high %v9692, %v9708
    %v9760 = vunpack.c.l.s4 1934713408
    %v9761 = vunpack.c.0.s8 %v9760
    %v9762 = vlaneseq
    %v9763 = vshrl.u32 %v9762, 7
    %v9764 = vsub.s32 %v9761, %v9763
    %v9765 = vrot.slane %v9757, %v9764
    %v9767 = vunpack.c.l.s4 1934713408
    %v9768 = vunpack.c.0.s8 %v9767
    %v9769 = vlaneseq
    %v9770 = vshrl.u32 %v9769, 7
    %v9771 = vsub.s32 %v9768, %v9770
    %v9772 = vrot.slane %v9758, %v9771
    %v9773 = vcombine.low %v9717, %v9749
    %v9774 = vcombine.high %v9717, %v9749
    %v9775 = vcombine.low %v9724, %v9756
    %v9776 = vcombine.high %v9724, %v9756
    %v9777 = vcombine.low %v9733, %v9765
    %v9778 = vcombine.high %v9733, %v9765
    %v9779 = vcombine.low %v9740, %v9772
    %v9780 = vcombine.high %v9740, %v9772
    %v9781 = vcombine.low %v9637, %v9639
    %v9782 = vcombine.high %v9637, %v9639
    %v9784 = vunpack.c.l.s4 1983009808
    %v9785 = vunpack.c.0.s8 %v9784
    %v9786 = vlaneseq
    %v9787 = vshrl.u32 %v9786, 7
    %v9788 = vsub.s32 %v9785, %v9787
    %v9789 = vrot.slane %v9781, %v9788
    %v9791 = vunpack.c.l.s4 1983009808
    %v9792 = vunpack.c.0.s8 %v9791
    %v9793 = vlaneseq
    %v9794 = vshrl.u32 %v9793, 7
    %v9795 = vsub.s32 %v9792, %v9794
    %v9796 = vrot.slane %v9782, %v9795
    %v9797 = vcombine.low %v9638, %v9640
    %v9798 = vcombine.high %v9638, %v9640
    %v9800 = vunpack.c.l.s4 1983009808
    %v9801 = vunpack.c.0.s8 %v9800
    %v9802 = vlaneseq
    %v9803 = vshrl.u32 %v9802, 7
    %v9804 = vsub.s32 %v9801, %v9803
    %v9805 = vrot.slane %v9797, %v9804
    %v9807 = vunpack.c.l.s4 1983009808
    %v9808 = vunpack.c.0.s8 %v9807
    %v9809 = vlaneseq
    %v9810 = vshrl.u32 %v9809, 7
    %v9811 = vsub.s32 %v9808, %v9810
    %v9812 = vrot.slane %v9798, %v9811
    %v9813 = vcombine.low %v9641, %v9643
    %v9814 = vcombine.high %v9641, %v9643
    %v9816 = vunpack.c.l.s4 1983009808
    %v9817 = vunpack.c.0.s8 %v9816
    %v9818 = vlaneseq
    %v9819 = vshrl.u32 %v9818, 7
    %v9820 = vsub.s32 %v9817, %v9819
    %v9821 = vrot.slane %v9813, %v9820
    %v9823 = vunpack.c.l.s4 1983009808
    %v9824 = vunpack.c.0.s8 %v9823
    %v9825 = vlaneseq
    %v9826 = vshrl.u32 %v9825, 7
    %v9827 = vsub.s32 %v9824, %v9826
    %v9828 = vrot.slane %v9814, %v9827
    %v9829 = vcombine.low %v9642, %v9644
    %v9830 = vcombine.high %v9642, %v9644
    %v9832 = vunpack.c.l.s4 1983009808
    %v9833 = vunpack.c.0.s8 %v9832
    %v9834 = vlaneseq
    %v9835 = vshrl.u32 %v9834, 7
    %v9836 = vsub.s32 %v9833, %v9835
    %v9837 = vrot.slane %v9829, %v9836
    %v9839 = vunpack.c.l.s4 1983009808
    %v9840 = vunpack.c.0.s8 %v9839
    %v9841 = vlaneseq
    %v9842 = vshrl.u32 %v9841, 7
    %v9843 = vsub.s32 %v9840, %v9842
    %v9844 = vrot.slane %v9830, %v9843
    %v9845 = vcombine.low %v9789, %v9805
    %v9846 = vcombine.high %v9789, %v9805
    %v9848 = vunpack.c.l.s4 1934713408
    %v9849 = vunpack.c.0.s8 %v9848
    %v9850 = vlaneseq
    %v9851 = vshrl.u32 %v9850, 7
    %v9852 = vsub.s32 %v9849, %v9851
    %v9853 = vrot.slane %v9845, %v9852
    %v9855 = vunpack.c.l.s4 1934713408
    %v9856 = vunpack.c.0.s8 %v9855
    %v9857 = vlaneseq
    %v9858 = vshrl.u32 %v9857, 7
    %v9859 = vsub.s32 %v9856, %v9858
    %v9860 = vrot.slane %v9846, %v9859
    %v9861 = vcombine.low %v9796, %v9812
    %v9862 = vcombine.high %v9796, %v9812
    %v9864 = vunpack.c.l.s4 1934713408
    %v9865 = vunpack.c.0.s8 %v9864
    %v9866 = vlaneseq
    %v9867 = vshrl.u32 %v9866, 7
    %v9868 = vsub.s32 %v9865, %v9867
    %v9869 = vrot.slane %v9861, %v9868
    %v9871 = vunpack.c.l.s4 1934713408
    %v9872 = vunpack.c.0.s8 %v9871
    %v9873 = vlaneseq
    %v9874 = vshrl.u32 %v9873, 7
    %v9875 = vsub.s32 %v9872, %v9874
    %v9876 = vrot.slane %v9862, %v9875
    %v9877 = vcombine.low %v9821, %v9837
    %v9878 = vcombine.high %v9821, %v9837
    %v9880 = vunpack.c.l.s4 1934713408
    %v9881 = vunpack.c.0.s8 %v9880
    %v9882 = vlaneseq
    %v9883 = vshrl.u32 %v9882, 7
    %v9884 = vsub.s32 %v9881, %v9883
    %v9885 = vrot.slane %v9877, %v9884
    %v9887 = vunpack.c.l.s4 1934713408
    %v9888 = vunpack.c.0.s8 %v9887
    %v9889 = vlaneseq
    %v9890 = vshrl.u32 %v9889, 7
    %v9891 = vsub.s32 %v9888, %v9890
    %v9892 = vrot.slane %v9878, %v9891
    %v9893 = vcombine.low %v9828, %v9844
    %v9894 = vcombine.high %v9828, %v9844
    %v9896 = vunpack.c.l.s4 1934713408
    %v9897 = vunpack.c.0.s8 %v9896
    %v9898 = vlaneseq
    %v9899 = vshrl.u32 %v9898, 7
    %v9900 = vsub.s32 %v9897, %v9899
    %v9901 = vrot.slane %v9893, %v9900
    %v9903 = vunpack.c.l.s4 1934713408
    %v9904 = vunpack.c.0.s8 %v9903
    %v9905 = vlaneseq
    %v9906 = vshrl.u32 %v9905, 7
    %v9907 = vsub.s32 %v9904, %v9906
    %v9908 = vrot.slane %v9894, %v9907
    %v9909 = vcombine.low %v9853, %v9885
    %v9910 = vcombine.high %v9853, %v9885
    %v9911 = vcombine.low %v9860, %v9892
    %v9912 = vcombine.high %v9860, %v9892
    %v9913 = vcombine.low %v9869, %v9901
    %v9914 = vcombine.high %v9869, %v9901
    %v9915 = vcombine.low %v9876, %v9908
    %v9916 = vcombine.high %v9876, %v9908
    %9918 = vrot.lane.b32.xlu0 %v9774, 8
    %v9919 = vpop.permute.xlu0 %9918
    %9922 = vrot.lane.b32.xlu0 %v9775, 16
    %v9923 = vpop.permute.xlu0 %9922
    %9926 = vrot.lane.b32.xlu0 %v9776, 24
    %v9927 = vpop.permute.xlu0 %9926
    %9930 = vrot.lane.b32.xlu0 %v9777, 32
    %v9931 = vpop.permute.xlu0 %9930
    %9934 = vrot.lane.b32.xlu0 %v9778, 40
    %v9935 = vpop.permute.xlu0 %9934
    %9938 = vrot.lane.b32.xlu0 %v9779, 48
    %v9939 = vpop.permute.xlu0 %9938
    %9942 = vrot.lane.b32.xlu0 %v9780, 56
    %v9943 = vpop.permute.xlu0 %9942
    %9946 = vrot.lane.b32.xlu0 %v9909, 64
    %v9947 = vpop.permute.xlu0 %9946
    %9950 = vrot.lane.b32.xlu0 %v9910, 72
    %v9951 = vpop.permute.xlu0 %9950
    %9954 = vrot.lane.b32.xlu0 %v9911, 80
    %v9955 = vpop.permute.xlu0 %9954
    %9958 = vrot.lane.b32.xlu0 %v9912, 88
    %v9959 = vpop.permute.xlu0 %9958
    %9962 = vrot.lane.b32.xlu0 %v9913, 96
    %v9963 = vpop.permute.xlu0 %9962
    %9966 = vrot.lane.b32.xlu0 %v9914, 104
    %v9967 = vpop.permute.xlu0 %9966
    %9970 = vrot.lane.b32.xlu0 %v9915, 112
    %v9971 = vpop.permute.xlu0 %9970
    %9974 = vrot.lane.b32.xlu0 %v9916, 120
    %v9975 = vpop.permute.xlu0 %9974
    %v9977 = vsel %vm967, %v9773, %v9919
    %v9978 = vsel %vm5141, %v9977, %v9923
    %v9979 = vsel %vm5143, %v9978, %v9927
    %v9980 = vsel %vm5145, %v9979, %v9931
    %v9981 = vsel %vm5147, %v9980, %v9935
    %v9982 = vsel %vm5149, %v9981, %v9939
    %v9983 = vsel %vm5151, %v9982, %v9943
    %v9984 = vsel %vm5153, %v9983, %v9947
    %v9985 = vsel %vm5155, %v9984, %v9951
    %v9986 = vsel %vm5157, %v9985, %v9955
    %v9987 = vsel %vm5159, %v9986, %v9959
    %v9988 = vsel %vm5161, %v9987, %v9963
    %v9989 = vsel %vm5163, %v9988, %v9967
    %v9990 = vsel %vm5165, %v9989, %v9971
    %v9991 = vsel %vm5167, %v9990, %v9975
    %9992 = vst [vmem:[#allocation2 + $0x8] sm:$0xff] %v9991
    %v9993 = vld [vmem:[#allocation2] sm:$0xff]
    %v9994 = vld [vmem:[#allocation2 + $0x8] sm:$0xff]
    %v9995 = vpack.c.bf16 %v9994, %v9993
    %v9996 = vld [vmem:[#allocation8] sm:$0xf]
    %v9997 = vld [vmem:[#allocation8 + $0x4] sm:$0xf]
    %v9998 = vld [vmem:[#allocation8 + $0x8] sm:$0xf]
    %v9999 = vld [vmem:[#allocation8 + $0xc] sm:$0xf]
    %v10000 = vld [vmem:[#allocation8 + $0x10] sm:$0xf]
    %v10001 = vld [vmem:[#allocation8 + $0x14] sm:$0xf]
    %v10002 = vld [vmem:[#allocation8 + $0x18] sm:$0xf]
    %v10003 = vld [vmem:[#allocation8 + $0x1c] sm:$0xf]
    %v10004 = vld [vmem:[#allocation8 + $0x20] sm:$0xf]
    %v10005 = vld [vmem:[#allocation8 + $0x24] sm:$0xf]
    %v10006 = vld [vmem:[#allocation8 + $0x28] sm:$0xf]
    %v10007 = vld [vmem:[#allocation8 + $0x2c] sm:$0xf]
    %v10008 = vld [vmem:[#allocation8 + $0x30] sm:$0xf]
    %v10009 = vld [vmem:[#allocation8 + $0x34] sm:$0xf]
    %v10010 = vld [vmem:[#allocation8 + $0x38] sm:$0xf]
    %v10011 = vld [vmem:[#allocation8 + $0x3c] sm:$0xf]
    %v10012 = vld [vmem:[%s4] sm:$0x1]
    %v10014 = vlaneseq
    %v10015 = vshrl.u32 %v10014, 7
    %v10016 = vsub.s32 0, %v10015
    %v10017 = vrot.slane %v10012, %v10016
    %v10035 = vunpack.c.l.b16 %v9996
    %v10036 = vunpack.c.l.b16 %v9997
    %v10037 = vunpack.c.l.b16 %v9998
    %v10038 = vunpack.c.l.b16 %v9999
    %v10039 = vunpack.c.l.b16 %v10000
    %v10040 = vunpack.c.l.b16 %v10001
    %v10041 = vunpack.c.l.b16 %v10002
    %v10042 = vunpack.c.l.b16 %v10003
    %v10043 = vunpack.c.l.b16 %v10004
    %v10044 = vunpack.c.l.b16 %v10005
    %v10045 = vunpack.c.l.b16 %v10006
    %v10046 = vunpack.c.l.b16 %v10007
    %v10047 = vunpack.c.l.b16 %v10008
    %v10048 = vunpack.c.l.b16 %v10009
    %v10049 = vunpack.c.l.b16 %v10010
    %v10050 = vunpack.c.l.b16 %v10011
    %v10051 = vpack.c.b16 %v10036, %v10035
    %v10052 = vpack.c.b16 %v10038, %v10037
    %v10053 = vpack.c.b16 %v10040, %v10039
    %v10054 = vpack.c.b16 %v10042, %v10041
    %v10055 = vpack.c.b16 %v10044, %v10043
    %v10056 = vpack.c.b16 %v10046, %v10045
    %v10057 = vpack.c.b16 %v10048, %v10047
    %v10058 = vpack.c.b16 %v10050, %v10049
    %10067 = vmatprep.subr.bf16.mxu0 0
    %10068 = vmatpush1.bf16.msra.mxu0 %v10058
    %10069 = vmatprep.subr.bf16.mxu0 0
    %10070 = vmatpush1.bf16.msra.mxu0 %v10057
    %10071 = vmatprep.subr.bf16.mxu0 0
    %10072 = vmatpush1.bf16.msra.mxu0 %v10056
    %10073 = vmatprep.subr.bf16.mxu0 0
    %10074 = vmatpush1.bf16.msra.mxu0 %v10055
    %10075 = vmatprep.subr.bf16.mxu0 0
    %10076 = vmatpush1.bf16.msra.mxu0 %v10054
    %10077 = vmatprep.subr.bf16.mxu0 0
    %10078 = vmatpush1.bf16.msra.mxu0 %v10053
    %10079 = vmatprep.subr.bf16.mxu0 0
    %10080 = vmatpush1.bf16.msra.mxu0 %v10052
    %10081 = vmatprep.subr.bf16.mxu0 0
    %10082 = vmatpush1.bf16.msra.mxu0 %v10051
    %10083 = vmatprep.subr.bf16.mxu0 0
    %10084 = vmatpush2.bf16.msra.mxu0 0
    %10085 = vmatprep.subr.bf16.mxu0 0
    %10086 = vmatpush2.bf16.msra.mxu0 0
    %10087 = vmatprep.subr.bf16.mxu0 0
    %10088 = vmatpush2.bf16.msra.mxu0 0
    %10089 = vmatprep.subr.bf16.mxu0 0
    %10090 = vmatpush2.bf16.msra.mxu0 0
    %10091 = vmatprep.subr.bf16.mxu0 0
    %10092 = vmatpush2.bf16.msra.mxu0 0
    %10093 = vmatprep.subr.bf16.mxu0 0
    %10094 = vmatpush2.bf16.msra.mxu0 0
    %10095 = vmatprep.subr.bf16.mxu0 0
    %10096 = vmatpush2.bf16.msra.mxu0 0
    %10097 = vmatprep.subr.bf16.mxu0 0
    %10098 = vmatpush2.bf16.msra.mxu0 0
    %10099 = vmatprep.mubr.bf16.mxu0 0
    %10100 = vmatmul.mubr.bf16.gmra.mxu0 %v9995
    %v10101 = vpop.f32.mrf.mxu0
    %v10102 = vadd.f32 %v10017, %v10101
    %v10103 = vpop.f32.mrf.mxu0
    %v10104 = vpop.f32.mrf.mxu0
    %v10105 = vadd.f32 %v10017, %v10104
    %v10106 = vpop.f32.mrf.mxu0
    %10107 = vdwg.mxu0
    %10108 = vst [vmem:[#allocation9] sm:$0xff] %v10102
    %10109 = vst [vmem:[#allocation9 + $0x8] sm:$0xff] %v10105
    // Predicated region
    $region34: #{tpu_custom_call.1} parent=1 // pred_check
      _
    $region35: #{tpu_custom_call.1} parent=1 // pred_check_branch
      %10111 = sbr.rel (0) target = $region37
    $region36: #{tpu_custom_call.1} parent=1 // pred_region
      %s10113 = ssub.s32 256, 256
      %10114 = vsyncadd [#allocation5], %s10113
      %s10115 = sshll.u32 [#allocation9], 4
      %s10116 = int_to_ptr.vmem [resolvable:$true] %s10115
      %10121 = dma.vmem_to_hbm [thread:$0]  %s10116, 256, %s5, [#allocation5], 128, 128, 8
    $region37: #{tpu_custom_call.1} parent=1 // pred_fallthru
      _
    // Predicated region
    $region38: #{tpu_custom_call.1} parent=1 // pred_check
      _
    $region39: #{tpu_custom_call.1} parent=1 // pred_check_branch
      %10123 = sbr.rel (0) target = $region41
    $region40: #{tpu_custom_call.1} parent=1 // pred_region
      %10124 = dma.done [#allocation5], 256
    $region41: #{tpu_custom_call.1} parent=1 // pred_fallthru
      _
    %10125 = vsyncpa [#allocation4], 1
    %10126 = vsyncpa [#allocation7], 1
    %10127 = vsyncpa [#allocation5], 1

</llo_original>
